<compile_context>
chip_gen: v7x
topology: tpu7x:2x2x1
jax: 0.10.0
libtpu: 0.0.40
codegen_flags: <defaults>
</compile_context>

<pallas_src>
import functools
import numpy as np

import jax
import jax.numpy as jnp
from jax.experimental import pallas as pl
from jax.experimental.pallas import tpu as pltpu

NEG_SLOPE = 0.1
KERNEL = 4
STRIDE = 2
IMAGE_SIZE = (16, 16)          # stands in for custom_dataset.IMAGE_SIZE
MAPS = (3, 10, 25, 63, 120)    # maps0 .. maps4
DENSE_COMPRESSION = 2


# ----------------------- geometry helpers (match the PyTorch module) -----------------------

def _auto_pad(dim):
    return ((STRIDE - (dim[0] - KERNEL) % STRIDE) // 2,
            (STRIDE - (dim[1] - KERNEL) % STRIDE) // 2)


def _conv_out(dim, pad):
    return (1 + (dim[0] + 2 * pad[0] - KERNEL) // STRIDE,
            1 + (dim[1] + 2 * pad[1] - KERNEL) // STRIDE)


def conv_geometry():
    dims = [IMAGE_SIZE]
    pads = []
    d = IMAGE_SIZE
    for _ in range(4):
        p = _auto_pad(d)
        pads.append(p)
        d = _conv_out(d, p)
        dims.append(d)
    return pads, dims


def _pad128(n):
    return ((n + 127) // 128) * 128


# ----------------------- exact dense lowering of conv / deconv / linear -----------------------
# Built once at init time on the host; zero-padded to (K, N) with K, N multiples of 128 so every
# in-kernel matmul tile is lane-dense.  Flatten order everywhere is (c, h, w), i.e. the row-major
# flatten of an NCHW tensor, which also matches PyTorch's x4.reshape(B, -1).

def _conv_to_dense(w, b, cin, hw_in, cout, hw_out, pad):
    hin, win = hw_in
    hout, wout = hw_out
    w = np.asarray(w, np.float32)
    b = np.asarray(b, np.float32)
    a = np.zeros((_pad128(cin * hin * win), _pad128(cout * hout * wout)), np.float32)
    bias = np.zeros((a.shape[1],), np.float32)
    ci = np.arange(cin)
    for co in range(cout):
        for ho in range(hout):
            for wo in range(wout):
                col = (co * hout + ho) * wout + wo
                for kh in range(KERNEL):
                    h = ho * STRIDE + kh - pad[0]
                    if h < 0 or h >= hin:
                        continue
                    for kw in range(KERNEL):
                        ww = wo * STRIDE + kw - pad[1]
                        if ww < 0 or ww >= win:
                            continue
                        a[(ci * hin + h) * win + ww, col] = w[co, :, kh, kw]
    bias[: cout * hout * wout] = np.repeat(b, hout * wout)
    return a, bias


def _deconv_to_dense(w, b, cin, hw_in, cout, hw_out, pad):
    hin, win = hw_in
    hout, wout = hw_out
    w = np.asarray(w, np.float32)
    b = np.asarray(b, np.float32)
    a = np.zeros((_pad128(cin * hin * win), _pad128(cout * hout * wout)), np.float32)
    bias = np.zeros((a.shape[1],), np.float32)
    co = np.arange(cout)
    for ci in range(cin):
        for h in range(hin):
            for ww in range(win):
                row = (ci * hin + h) * win + ww
                for kh in range(KERNEL):
                    ho = h * STRIDE + kh - pad[0]
                    if ho < 0 or ho >= hout:
                        continue
                    for kw in range(KERNEL):
                        wo = ww * STRIDE + kw - pad[1]
                        if wo < 0 or wo >= wout:
                            continue
                        a[row, (co * hout + ho) * wout + wo] = w[ci, :, kh, kw]
    bias[: cout * hout * wout] = np.repeat(b, hout * wout)
    return a, bias


def _linear_to_dense(w, b, nin, nout):
    w = np.asarray(w, np.float32)
    b = np.asarray(b, np.float32)
    a = np.zeros((_pad128(nin), _pad128(nout)), np.float32)
    bias = np.zeros((a.shape[1],), np.float32)
    a[:nin, :nout] = w.T
    bias[:nout] = b
    return a, bias


# ----------------------------- parameters -----------------------------

def init_params(key):
    pads, dims = conv_geometry()
    dense_neurons = MAPS[4] * dims[4][0] * dims[4][1]
    hidden = dense_neurons // DENSE_COMPRESSION

    def uni(k, shape, fan_in):
        bound = 1.0 / np.sqrt(fan_in)
        return jax.random.uniform(k, shape, jnp.float32, -bound, bound)

    keys = iter(jax.random.split(key, 20))
    a_list, b_list = [], []

    # encoder convs
    for i in range(4):
        cin, cout = MAPS[i], MAPS[i + 1]
        fan = cin * KERNEL * KERNEL
        w = uni(next(keys), (cout, cin, KERNEL, KERNEL), fan)
        bb = uni(next(keys), (cout,), fan)
        a, bias = _conv_to_dense(w, bb, cin, dims[i], cout, dims[i + 1], pads[i])
        a_list.append(a)
        b_list.append(bias)

    # dense1 / dense2
    w1 = uni(next(keys), (hidden, dense_neurons), dense_neurons)
    bb1 = uni(next(keys), (hidden,), dense_neurons)
    a, bias = _linear_to_dense(w1, bb1, dense_neurons, hidden)
    a_list.append(a)
    b_list.append(bias)
    w2 = uni(next(keys), (dense_neurons, hidden), hidden)
    bb2 = uni(next(keys), (dense_neurons,), hidden)
    a, bias = _linear_to_dense(w2, bb2, hidden, dense_neurons)
    a_list.append(a)
    b_list.append(bias)

    # decoder (mode == 1 branch): deconv11 .. deconv41
    for i in range(4):
        cin, cout = MAPS[4 - i], MAPS[3 - i]
        hw_in, pad = dims[4 - i], pads[3 - i]
        hw_out = ((hw_in[0] - 1) * STRIDE - 2 * pad[0] + KERNEL,
                  (hw_in[1] - 1) * STRIDE - 2 * pad[1] + KERNEL)
        fan = cout * KERNEL * KERNEL
        w = uni(next(keys), (cin, cout, KERNEL, KERNEL), fan)
        bb = uni(next(keys), (cout,), fan)
        a, bias = _deconv_to_dense(w, bb, cin, hw_in, cout, hw_out, pad)
        a_list.append(a)
        b_list.append(bias)

    for i in range(len(a_list) - 1):
        assert a_list[i].shape[1] == a_list[i + 1].shape[0]

    return {
        "A": [jnp.asarray(a, jnp.bfloat16) for a in a_list],                   # bf16 MXU operands
        "bias": [jnp.asarray(b.reshape(1, -1), jnp.float32) for b in b_list],  # f32 epilogue
        "out_chw": (MAPS[0], IMAGE_SIZE[0], IMAGE_SIZE[1]),
    }


# ----------------------------- fused Pallas kernel -----------------------------

def _fused_ae_kernel(*refs, n_layers, neg_slope):
    """refs = (x, A_1..A_n, b_1..b_n, out).

    One grid step processes one row tile of the batch: n chained (T, K) @ (K, N) bf16 matmuls on
    the MXU with f32 accumulation; bias + leaky_relu in f32; sigmoid on the last layer.  All
    weights/biases use constant block indices, so they stay resident across grid steps."""
    x_ref = refs[0]
    a_refs = refs[1:1 + n_layers]
    b_refs = refs[1 + n_layers:1 + 2 * n_layers]
    o_ref = refs[1 + 2 * n_layers]

    h = x_ref[...]                       # bf16 row tile
    for i in range(n_layers):
        acc = jnp.dot(h, a_refs[i][...], preferred_element_type=jnp.float32)
        acc = acc + b_refs[i][...]
        act = jnp.maximum(acc, neg_slope * acc)          # leaky_relu(0.1), single VPU max
        if i < n_layers - 1:
            h = act.astype(jnp.bfloat16)
        else:
            # Final decoder layer: leaky_relu THEN sigmoid (matches the PyTorch mode==1 decoder).
            # sigmoid(x) = 0.5*(tanh(x/2)+1): tanh uses the EUP slot and keeps output in [0, 1].
            o_ref[...] = 0.5 * (jnp.tanh(0.5 * act) + 1.0)


def fused_autoencoder(x_flat, a_list, bias_list, row_tile):
    rows, din = x_flat.shape
    dout = a_list[-1].shape[1]
    n = len(a_list)
    assert rows % row_tile == 0

    # x / out stream per row tile; weights & biases have constant block indices (fetched once,
    # kept VMEM-resident across the whole grid).
    in_specs = [pl.BlockSpec((row_tile, din), lambda i: (i, 0))]
    in_specs += [pl.BlockSpec(a.shape, lambda i: (0, 0)) for a in a_list]
    in_specs += [pl.BlockSpec(b.shape, lambda i: (0, 0)) for b in bias_list]

    return pl.pallas_call(
        functools.partial(_fused_ae_kernel, n_layers=n, neg_slope=NEG_SLOPE),
        out_shape=jax.ShapeDtypeStruct((rows, dout), jnp.float32),
        grid=(rows // row_tile,),
        in_specs=in_specs,
        out_specs=pl.BlockSpec((row_tile, dout), lambda i: (i, 0)),
        compiler_params=pltpu.CompilerParams(
            # Row tiles are independent -> "parallel" lets v7x megacore split the batch.
            dimension_semantics=("parallel",),
            vmem_limit_bytes=32 * 1024 * 1024,   # ~14 MiB needed at row_tile=256; safe everywhere
        ),
    )(x_flat, *a_list, *bias_list)


# ----------------------------- forward -----------------------------

def autoencoder_forward(params, x):
    B = x.shape[0]
    c, hh, ww = params["out_chw"]
    a_list, bias_list = params["A"], params["bias"]

    # NCHW -> (B, C*H*W) row-major flatten.  Pad rows to a multiple of 16 (bf16 sublane packing)
    # and pick an MXU-depth row tile (256) when the batch is large enough; pad columns to the
    # lane-padded input width of the first dense-equivalent matrix.
    x_flat = x.reshape(B, -1).astype(jnp.float32)
    din = a_list[0].shape[0]

    rows16 = ((B + 15) // 16) * 16
    row_tile = 256 if rows16 >= 256 else rows16
    rows = ((rows16 + row_tile - 1) // row_tile) * row_tile

    x_flat = jnp.pad(x_flat, ((0, rows - B), (0, din - x_flat.shape[1])))
    x_flat = x_flat.astype(jnp.bfloat16)   # same numerics as the old in-kernel cast, half the DMA

    out_flat = fused_autoencoder(x_flat, a_list, bias_list, row_tile)
    return out_flat[:B, : c * hh * ww].reshape(B, c, hh, ww)


# ----------------------------- main -----------------------------

if __name__ == "__main__":
    key = jax.random.PRNGKey(0)
    k_param, k_data = jax.random.split(key)

    params = init_params(k_param)

    B = 2
    x = jax.random.uniform(k_data, (B, MAPS[0], IMAGE_SIZE[0], IMAGE_SIZE[1]), jnp.float32)

    fwd = jax.jit(functools.partial(autoencoder_forward, params))
    out = jax.block_until_ready(fwd(x))

    assert out.shape == (B, MAPS[0], IMAGE_SIZE[0], IMAGE_SIZE[1]), out.shape
    assert bool(jnp.all(jnp.isfinite(out)))
    assert bool(jnp.all((out >= 0.0) & (out <= 1.0)))   # sigmoid output range (tanh form is exact)

    print("KERNEL_OK")
</pallas_src>

<mosaic_0001>
module attributes {stable_mosaic.version = 11 : i64} {
  func.func @_fused_ae_kernel(%arg0: i32, %arg1: memref<16x768xbf16, #tpu.memory_space<vmem>>, %arg2: memref<768x640xbf16, #tpu.memory_space<vmem>>, %arg3: memref<640x512xbf16, #tpu.memory_space<vmem>>, %arg4: memref<512x256xbf16, #tpu.memory_space<vmem>>, %arg5: memref<256x128xbf16, #tpu.memory_space<vmem>>, %arg6: memref<128x128xbf16, #tpu.memory_space<vmem>>, %arg7: memref<128x128xbf16, #tpu.memory_space<vmem>>, %arg8: memref<128x256xbf16, #tpu.memory_space<vmem>>, %arg9: memref<256x512xbf16, #tpu.memory_space<vmem>>, %arg10: memref<512x640xbf16, #tpu.memory_space<vmem>>, %arg11: memref<640x768xbf16, #tpu.memory_space<vmem>>, %arg12: memref<1x640xf32, #tpu.memory_space<vmem>>, %arg13: memref<1x512xf32, #tpu.memory_space<vmem>>, %arg14: memref<1x256xf32, #tpu.memory_space<vmem>>, %arg15: memref<1x128xf32, #tpu.memory_space<vmem>>, %arg16: memref<1x128xf32, #tpu.memory_space<vmem>>, %arg17: memref<1x128xf32, #tpu.memory_space<vmem>>, %arg18: memref<1x256xf32, #tpu.memory_space<vmem>>, %arg19: memref<1x512xf32, #tpu.memory_space<vmem>>, %arg20: memref<1x640xf32, #tpu.memory_space<vmem>>, %arg21: memref<1x768xf32, #tpu.memory_space<vmem>>, %arg22: memref<16x768xf32, #tpu.memory_space<vmem>>) attributes {dimension_semantics = [#tpu.dimension_semantics<parallel>], iteration_bounds = array<i64: 1>, scalar_prefetch = 0 : i64, scratch_operands = 0 : i64, tpu.core_type = #tpu.core_type<tc>, window_params = [{transform_indices = @transform_0, window_bounds = array<i64: 16, 768>}, {pipeline_mode = #tpu.pipeline_mode<synchronous>, transform_indices = @transform_1, window_bounds = array<i64: 768, 640>}, {pipeline_mode = #tpu.pipeline_mode<synchronous>, transform_indices = @transform_2, window_bounds = array<i64: 640, 512>}, {pipeline_mode = #tpu.pipeline_mode<synchronous>, transform_indices = @transform_3, window_bounds = array<i64: 512, 256>}, {pipeline_mode = #tpu.pipeline_mode<synchronous>, transform_indices = @transform_4, window_bounds = array<i64: 256, 128>}, {pipeline_mode = #tpu.pipeline_mode<synchronous>, transform_indices = @transform_5, window_bounds = array<i64: 128, 128>}, {pipeline_mode = #tpu.pipeline_mode<synchronous>, transform_indices = @transform_6, window_bounds = array<i64: 128, 128>}, {pipeline_mode = #tpu.pipeline_mode<synchronous>, transform_indices = @transform_7, window_bounds = array<i64: 128, 256>}, {pipeline_mode = #tpu.pipeline_mode<synchronous>, transform_indices = @transform_8, window_bounds = array<i64: 256, 512>}, {pipeline_mode = #tpu.pipeline_mode<synchronous>, transform_indices = @transform_9, window_bounds = array<i64: 512, 640>}, {pipeline_mode = #tpu.pipeline_mode<synchronous>, transform_indices = @transform_10, window_bounds = array<i64: 640, 768>}, {pipeline_mode = #tpu.pipeline_mode<synchronous>, transform_indices = @transform_11, window_bounds = array<i64: 1, 640>}, {pipeline_mode = #tpu.pipeline_mode<synchronous>, transform_indices = @transform_12, window_bounds = array<i64: 1, 512>}, {pipeline_mode = #tpu.pipeline_mode<synchronous>, transform_indices = @transform_13, window_bounds = array<i64: 1, 256>}, {pipeline_mode = #tpu.pipeline_mode<synchronous>, transform_indices = @transform_14, window_bounds = array<i64: 1, 128>}, {pipeline_mode = #tpu.pipeline_mode<synchronous>, transform_indices = @transform_15, window_bounds = array<i64: 1, 128>}, {pipeline_mode = #tpu.pipeline_mode<synchronous>, transform_indices = @transform_16, window_bounds = array<i64: 1, 128>}, {pipeline_mode = #tpu.pipeline_mode<synchronous>, transform_indices = @transform_17, window_bounds = array<i64: 1, 256>}, {pipeline_mode = #tpu.pipeline_mode<synchronous>, transform_indices = @transform_18, window_bounds = array<i64: 1, 512>}, {pipeline_mode = #tpu.pipeline_mode<synchronous>, transform_indices = @transform_19, window_bounds = array<i64: 1, 640>}, {pipeline_mode = #tpu.pipeline_mode<synchronous>, transform_indices = @transform_20, window_bounds = array<i64: 1, 768>}, {transform_indices = @transform_21, window_bounds = array<i64: 16, 768>}]} {
    %c0 = arith.constant 0 : index
    %c0_0 = arith.constant 0 : index
    %0 = vector.load %arg1[%c0, %c0_0] : memref<16x768xbf16, #tpu.memory_space<vmem>>, vector<16x768xbf16>
    %c0_1 = arith.constant 0 : index
    %c0_2 = arith.constant 0 : index
    %1 = vector.load %arg2[%c0_1, %c0_2] : memref<768x640xbf16, #tpu.memory_space<vmem>>, vector<768x640xbf16>
    %cst = arith.constant dense<0.000000e+00> : vector<16x640xf32>
    %2 = tpu.matmul %0, %1, %cst {dimension_numbers = #tpu.dot_dimension_numbers<[1], [0], [0], [1], [0, 0, 1, 1], [], []>} : vector<16x768xbf16>, vector<768x640xbf16>, vector<16x640xf32> -> vector<16x640xf32>
    %c0_3 = arith.constant 0 : index
    %c0_4 = arith.constant 0 : index
    %3 = vector.load %arg12[%c0_3, %c0_4] : memref<1x640xf32, #tpu.memory_space<vmem>>, vector<1x640xf32>
    %4 = vector.broadcast %3 : vector<1x640xf32> to vector<16x640xf32>
    %5 = arith.addf %2, %4 : vector<16x640xf32>
    %cst_5 = arith.constant 1.000000e-01 : f32
    %6 = vector.broadcast %cst_5 : f32 to vector<16x640xf32>
    %7 = arith.mulf %6, %5 : vector<16x640xf32>
    %8 = arith.maximumf %5, %7 : vector<16x640xf32>
    %9 = arith.truncf %8 : vector<16x640xf32> to vector<16x640xbf16>
    %c0_6 = arith.constant 0 : index
    %c0_7 = arith.constant 0 : index
    %10 = vector.load %arg3[%c0_6, %c0_7] : memref<640x512xbf16, #tpu.memory_space<vmem>>, vector<640x512xbf16>
    %cst_8 = arith.constant dense<0.000000e+00> : vector<16x512xf32>
    %11 = tpu.matmul %9, %10, %cst_8 {dimension_numbers = #tpu.dot_dimension_numbers<[1], [0], [0], [1], [0, 0, 1, 1], [], []>} : vector<16x640xbf16>, vector<640x512xbf16>, vector<16x512xf32> -> vector<16x512xf32>
    %c0_9 = arith.constant 0 : index
    %c0_10 = arith.constant 0 : index
    %12 = vector.load %arg13[%c0_9, %c0_10] : memref<1x512xf32, #tpu.memory_space<vmem>>, vector<1x512xf32>
    %13 = vector.broadcast %12 : vector<1x512xf32> to vector<16x512xf32>
    %14 = arith.addf %11, %13 : vector<16x512xf32>
    %cst_11 = arith.constant 1.000000e-01 : f32
    %15 = vector.broadcast %cst_11 : f32 to vector<16x512xf32>
    %16 = arith.mulf %15, %14 : vector<16x512xf32>
    %17 = arith.maximumf %14, %16 : vector<16x512xf32>
    %18 = arith.truncf %17 : vector<16x512xf32> to vector<16x512xbf16>
    %c0_12 = arith.constant 0 : index
    %c0_13 = arith.constant 0 : index
    %19 = vector.load %arg4[%c0_12, %c0_13] : memref<512x256xbf16, #tpu.memory_space<vmem>>, vector<512x256xbf16>
    %cst_14 = arith.constant dense<0.000000e+00> : vector<16x256xf32>
    %20 = tpu.matmul %18, %19, %cst_14 {dimension_numbers = #tpu.dot_dimension_numbers<[1], [0], [0], [1], [0, 0, 1, 1], [], []>} : vector<16x512xbf16>, vector<512x256xbf16>, vector<16x256xf32> -> vector<16x256xf32>
    %c0_15 = arith.constant 0 : index
    %c0_16 = arith.constant 0 : index
    %21 = vector.load %arg14[%c0_15, %c0_16] : memref<1x256xf32, #tpu.memory_space<vmem>>, vector<1x256xf32>
    %22 = vector.broadcast %21 : vector<1x256xf32> to vector<16x256xf32>
    %23 = arith.addf %20, %22 : vector<16x256xf32>
    %cst_17 = arith.constant 1.000000e-01 : f32
    %24 = vector.broadcast %cst_17 : f32 to vector<16x256xf32>
    %25 = arith.mulf %24, %23 : vector<16x256xf32>
    %26 = arith.maximumf %23, %25 : vector<16x256xf32>
    %27 = arith.truncf %26 : vector<16x256xf32> to vector<16x256xbf16>
    %c0_18 = arith.constant 0 : index
    %c0_19 = arith.constant 0 : index
    %28 = vector.load %arg5[%c0_18, %c0_19] : memref<256x128xbf16, #tpu.memory_space<vmem>>, vector<256x128xbf16>
    %cst_20 = arith.constant dense<0.000000e+00> : vector<16x128xf32>
    %29 = tpu.matmul %27, %28, %cst_20 {dimension_numbers = #tpu.dot_dimension_numbers<[1], [0], [0], [1], [0, 0, 1, 1], [], []>} : vector<16x256xbf16>, vector<256x128xbf16>, vector<16x128xf32> -> vector<16x128xf32>
    %c0_21 = arith.constant 0 : index
    %c0_22 = arith.constant 0 : index
    %30 = vector.load %arg15[%c0_21, %c0_22] : memref<1x128xf32, #tpu.memory_space<vmem>>, vector<1x128xf32>
    %31 = vector.broadcast %30 : vector<1x128xf32> to vector<16x128xf32>
    %32 = arith.addf %29, %31 : vector<16x128xf32>
    %cst_23 = arith.constant 1.000000e-01 : f32
    %33 = vector.broadcast %cst_23 : f32 to vector<16x128xf32>
    %34 = arith.mulf %33, %32 : vector<16x128xf32>
    %35 = arith.maximumf %32, %34 : vector<16x128xf32>
    %36 = arith.truncf %35 : vector<16x128xf32> to vector<16x128xbf16>
    %c0_24 = arith.constant 0 : index
    %c0_25 = arith.constant 0 : index
    %37 = vector.load %arg6[%c0_24, %c0_25] : memref<128x128xbf16, #tpu.memory_space<vmem>>, vector<128x128xbf16>
    %cst_26 = arith.constant dense<0.000000e+00> : vector<16x128xf32>
    %38 = tpu.matmul %36, %37, %cst_26 {dimension_numbers = #tpu.dot_dimension_numbers<[1], [0], [0], [1], [0, 0, 1, 1], [], []>} : vector<16x128xbf16>, vector<128x128xbf16>, vector<16x128xf32> -> vector<16x128xf32>
    %c0_27 = arith.constant 0 : index
    %c0_28 = arith.constant 0 : index
    %39 = vector.load %arg16[%c0_27, %c0_28] : memref<1x128xf32, #tpu.memory_space<vmem>>, vector<1x128xf32>
    %40 = vector.broadcast %39 : vector<1x128xf32> to vector<16x128xf32>
    %41 = arith.addf %38, %40 : vector<16x128xf32>
    %cst_29 = arith.constant 1.000000e-01 : f32
    %42 = vector.broadcast %cst_29 : f32 to vector<16x128xf32>
    %43 = arith.mulf %42, %41 : vector<16x128xf32>
    %44 = arith.maximumf %41, %43 : vector<16x128xf32>
    %45 = arith.truncf %44 : vector<16x128xf32> to vector<16x128xbf16>
    %c0_30 = arith.constant 0 : index
    %c0_31 = arith.constant 0 : index
    %46 = vector.load %arg7[%c0_30, %c0_31] : memref<128x128xbf16, #tpu.memory_space<vmem>>, vector<128x128xbf16>
    %cst_32 = arith.constant dense<0.000000e+00> : vector<16x128xf32>
    %47 = tpu.matmul %45, %46, %cst_32 {dimension_numbers = #tpu.dot_dimension_numbers<[1], [0], [0], [1], [0, 0, 1, 1], [], []>} : vector<16x128xbf16>, vector<128x128xbf16>, vector<16x128xf32> -> vector<16x128xf32>
    %c0_33 = arith.constant 0 : index
    %c0_34 = arith.constant 0 : index
    %48 = vector.load %arg17[%c0_33, %c0_34] : memref<1x128xf32, #tpu.memory_space<vmem>>, vector<1x128xf32>
    %49 = vector.broadcast %48 : vector<1x128xf32> to vector<16x128xf32>
    %50 = arith.addf %47, %49 : vector<16x128xf32>
    %cst_35 = arith.constant 1.000000e-01 : f32
    %51 = vector.broadcast %cst_35 : f32 to vector<16x128xf32>
    %52 = arith.mulf %51, %50 : vector<16x128xf32>
    %53 = arith.maximumf %50, %52 : vector<16x128xf32>
    %54 = arith.truncf %53 : vector<16x128xf32> to vector<16x128xbf16>
    %c0_36 = arith.constant 0 : index
    %c0_37 = arith.constant 0 : index
    %55 = vector.load %arg8[%c0_36, %c0_37] : memref<128x256xbf16, #tpu.memory_space<vmem>>, vector<128x256xbf16>
    %cst_38 = arith.constant dense<0.000000e+00> : vector<16x256xf32>
    %56 = tpu.matmul %54, %55, %cst_38 {dimension_numbers = #tpu.dot_dimension_numbers<[1], [0], [0], [1], [0, 0, 1, 1], [], []>} : vector<16x128xbf16>, vector<128x256xbf16>, vector<16x256xf32> -> vector<16x256xf32>
    %c0_39 = arith.constant 0 : index
    %c0_40 = arith.constant 0 : index
    %57 = vector.load %arg18[%c0_39, %c0_40] : memref<1x256xf32, #tpu.memory_space<vmem>>, vector<1x256xf32>
    %58 = vector.broadcast %57 : vector<1x256xf32> to vector<16x256xf32>
    %59 = arith.addf %56, %58 : vector<16x256xf32>
    %cst_41 = arith.constant 1.000000e-01 : f32
    %60 = vector.broadcast %cst_41 : f32 to vector<16x256xf32>
    %61 = arith.mulf %60, %59 : vector<16x256xf32>
    %62 = arith.maximumf %59, %61 : vector<16x256xf32>
    %63 = arith.truncf %62 : vector<16x256xf32> to vector<16x256xbf16>
    %c0_42 = arith.constant 0 : index
    %c0_43 = arith.constant 0 : index
    %64 = vector.load %arg9[%c0_42, %c0_43] : memref<256x512xbf16, #tpu.memory_space<vmem>>, vector<256x512xbf16>
    %cst_44 = arith.constant dense<0.000000e+00> : vector<16x512xf32>
    %65 = tpu.matmul %63, %64, %cst_44 {dimension_numbers = #tpu.dot_dimension_numbers<[1], [0], [0], [1], [0, 0, 1, 1], [], []>} : vector<16x256xbf16>, vector<256x512xbf16>, vector<16x512xf32> -> vector<16x512xf32>
    %c0_45 = arith.constant 0 : index
    %c0_46 = arith.constant 0 : index
    %66 = vector.load %arg19[%c0_45, %c0_46] : memref<1x512xf32, #tpu.memory_space<vmem>>, vector<1x512xf32>
    %67 = vector.broadcast %66 : vector<1x512xf32> to vector<16x512xf32>
    %68 = arith.addf %65, %67 : vector<16x512xf32>
    %cst_47 = arith.constant 1.000000e-01 : f32
    %69 = vector.broadcast %cst_47 : f32 to vector<16x512xf32>
    %70 = arith.mulf %69, %68 : vector<16x512xf32>
    %71 = arith.maximumf %68, %70 : vector<16x512xf32>
    %72 = arith.truncf %71 : vector<16x512xf32> to vector<16x512xbf16>
    %c0_48 = arith.constant 0 : index
    %c0_49 = arith.constant 0 : index
    %73 = vector.load %arg10[%c0_48, %c0_49] : memref<512x640xbf16, #tpu.memory_space<vmem>>, vector<512x640xbf16>
    %cst_50 = arith.constant dense<0.000000e+00> : vector<16x640xf32>
    %74 = tpu.matmul %72, %73, %cst_50 {dimension_numbers = #tpu.dot_dimension_numbers<[1], [0], [0], [1], [0, 0, 1, 1], [], []>} : vector<16x512xbf16>, vector<512x640xbf16>, vector<16x640xf32> -> vector<16x640xf32>
    %c0_51 = arith.constant 0 : index
    %c0_52 = arith.constant 0 : index
    %75 = vector.load %arg20[%c0_51, %c0_52] : memref<1x640xf32, #tpu.memory_space<vmem>>, vector<1x640xf32>
    %76 = vector.broadcast %75 : vector<1x640xf32> to vector<16x640xf32>
    %77 = arith.addf %74, %76 : vector<16x640xf32>
    %cst_53 = arith.constant 1.000000e-01 : f32
    %78 = vector.broadcast %cst_53 : f32 to vector<16x640xf32>
    %79 = arith.mulf %78, %77 : vector<16x640xf32>
    %80 = arith.maximumf %77, %79 : vector<16x640xf32>
    %81 = arith.truncf %80 : vector<16x640xf32> to vector<16x640xbf16>
    %c0_54 = arith.constant 0 : index
    %c0_55 = arith.constant 0 : index
    %82 = vector.load %arg11[%c0_54, %c0_55] : memref<640x768xbf16, #tpu.memory_space<vmem>>, vector<640x768xbf16>
    %cst_56 = arith.constant dense<0.000000e+00> : vector<16x768xf32>
    %83 = tpu.matmul %81, %82, %cst_56 {dimension_numbers = #tpu.dot_dimension_numbers<[1], [0], [0], [1], [0, 0, 1, 1], [], []>} : vector<16x640xbf16>, vector<640x768xbf16>, vector<16x768xf32> -> vector<16x768xf32>
    %c0_57 = arith.constant 0 : index
    %c0_58 = arith.constant 0 : index
    %84 = vector.load %arg21[%c0_57, %c0_58] : memref<1x768xf32, #tpu.memory_space<vmem>>, vector<1x768xf32>
    %85 = vector.broadcast %84 : vector<1x768xf32> to vector<16x768xf32>
    %86 = arith.addf %83, %85 : vector<16x768xf32>
    %cst_59 = arith.constant 1.000000e-01 : f32
    %87 = vector.broadcast %cst_59 : f32 to vector<16x768xf32>
    %88 = arith.mulf %87, %86 : vector<16x768xf32>
    %89 = arith.maximumf %86, %88 : vector<16x768xf32>
    %cst_60 = arith.constant 5.000000e-01 : f32
    %90 = vector.broadcast %cst_60 : f32 to vector<16x768xf32>
    %91 = arith.mulf %90, %89 : vector<16x768xf32>
    %92 = math.tanh %91 : vector<16x768xf32>
    %cst_61 = arith.constant 1.000000e+00 : f32
    %93 = vector.broadcast %cst_61 : f32 to vector<16x768xf32>
    %94 = arith.addf %92, %93 : vector<16x768xf32>
    %cst_62 = arith.constant 5.000000e-01 : f32
    %95 = vector.broadcast %cst_62 : f32 to vector<16x768xf32>
    %96 = arith.mulf %95, %94 : vector<16x768xf32>
    %c0_63 = arith.constant 0 : index
    %c0_64 = arith.constant 0 : index
    %97 = vector.load %arg22[%c0_63, %c0_64] : memref<16x768xf32, #tpu.memory_space<vmem>>, vector<16x768xf32>
    tpu.vector_store %arg22[%c0_63, %c0_64], %96 {strides = array<i32>} : memref<16x768xf32, #tpu.memory_space<vmem>>, vector<16x768xf32>,
    return
  }
  func.func @transform_0(%arg0: i32) -> (i32, i32) {
    %c0_i32 = arith.constant 0 : i32
    %c0_i32_0 = arith.constant 0 : i32
    return %arg0, %c0_i32 : i32, i32
  }
  func.func @transform_1(%arg0: i32) -> (i32, i32) {
    %c0_i32 = arith.constant 0 : i32
    %c0_i32_0 = arith.constant 0 : i32
    %c0_i32_1 = arith.constant 0 : i32
    return %c0_i32, %c0_i32_0 : i32, i32
  }
  func.func @transform_2(%arg0: i32) -> (i32, i32) {
    %c0_i32 = arith.constant 0 : i32
    %c0_i32_0 = arith.constant 0 : i32
    %c0_i32_1 = arith.constant 0 : i32
    return %c0_i32, %c0_i32_0 : i32, i32
  }
  func.func @transform_3(%arg0: i32) -> (i32, i32) {
    %c0_i32 = arith.constant 0 : i32
    %c0_i32_0 = arith.constant 0 : i32
    %c0_i32_1 = arith.constant 0 : i32
    return %c0_i32, %c0_i32_0 : i32, i32
  }
  func.func @transform_4(%arg0: i32) -> (i32, i32) {
    %c0_i32 = arith.constant 0 : i32
    %c0_i32_0 = arith.constant 0 : i32
    %c0_i32_1 = arith.constant 0 : i32
    return %c0_i32, %c0_i32_0 : i32, i32
  }
  func.func @transform_5(%arg0: i32) -> (i32, i32) {
    %c0_i32 = arith.constant 0 : i32
    %c0_i32_0 = arith.constant 0 : i32
    %c0_i32_1 = arith.constant 0 : i32
    return %c0_i32, %c0_i32_0 : i32, i32
  }
  func.func @transform_6(%arg0: i32) -> (i32, i32) {
    %c0_i32 = arith.constant 0 : i32
    %c0_i32_0 = arith.constant 0 : i32
    %c0_i32_1 = arith.constant 0 : i32
    return %c0_i32, %c0_i32_0 : i32, i32
  }
  func.func @transform_7(%arg0: i32) -> (i32, i32) {
    %c0_i32 = arith.constant 0 : i32
    %c0_i32_0 = arith.constant 0 : i32
    %c0_i32_1 = arith.constant 0 : i32
    return %c0_i32, %c0_i32_0 : i32, i32
  }
  func.func @transform_8(%arg0: i32) -> (i32, i32) {
    %c0_i32 = arith.constant 0 : i32
    %c0_i32_0 = arith.constant 0 : i32
    %c0_i32_1 = arith.constant 0 : i32
    return %c0_i32, %c0_i32_0 : i32, i32
  }
  func.func @transform_9(%arg0: i32) -> (i32, i32) {
    %c0_i32 = arith.constant 0 : i32
    %c0_i32_0 = arith.constant 0 : i32
    %c0_i32_1 = arith.constant 0 : i32
    return %c0_i32, %c0_i32_0 : i32, i32
  }
  func.func @transform_10(%arg0: i32) -> (i32, i32) {
    %c0_i32 = arith.constant 0 : i32
    %c0_i32_0 = arith.constant 0 : i32
    %c0_i32_1 = arith.constant 0 : i32
    return %c0_i32, %c0_i32_0 : i32, i32
  }
  func.func @transform_11(%arg0: i32) -> (i32, i32) {
    %c0_i32 = arith.constant 0 : i32
    %c0_i32_0 = arith.constant 0 : i32
    %c0_i32_1 = arith.constant 0 : i32
    return %c0_i32, %c0_i32_0 : i32, i32
  }
  func.func @transform_12(%arg0: i32) -> (i32, i32) {
    %c0_i32 = arith.constant 0 : i32
    %c0_i32_0 = arith.constant 0 : i32
    %c0_i32_1 = arith.constant 0 : i32
    return %c0_i32, %c0_i32_0 : i32, i32
  }
  func.func @transform_13(%arg0: i32) -> (i32, i32) {
    %c0_i32 = arith.constant 0 : i32
    %c0_i32_0 = arith.constant 0 : i32
    %c0_i32_1 = arith.constant 0 : i32
    return %c0_i32, %c0_i32_0 : i32, i32
  }
  func.func @transform_14(%arg0: i32) -> (i32, i32) {
    %c0_i32 = arith.constant 0 : i32
    %c0_i32_0 = arith.constant 0 : i32
    %c0_i32_1 = arith.constant 0 : i32
    return %c0_i32, %c0_i32_0 : i32, i32
  }
  func.func @transform_15(%arg0: i32) -> (i32, i32) {
    %c0_i32 = arith.constant 0 : i32
    %c0_i32_0 = arith.constant 0 : i32
    %c0_i32_1 = arith.constant 0 : i32
    return %c0_i32, %c0_i32_0 : i32, i32
  }
  func.func @transform_16(%arg0: i32) -> (i32, i32) {
    %c0_i32 = arith.constant 0 : i32
    %c0_i32_0 = arith.constant 0 : i32
    %c0_i32_1 = arith.constant 0 : i32
    return %c0_i32, %c0_i32_0 : i32, i32
  }
  func.func @transform_17(%arg0: i32) -> (i32, i32) {
    %c0_i32 = arith.constant 0 : i32
    %c0_i32_0 = arith.constant 0 : i32
    %c0_i32_1 = arith.constant 0 : i32
    return %c0_i32, %c0_i32_0 : i32, i32
  }
  func.func @transform_18(%arg0: i32) -> (i32, i32) {
    %c0_i32 = arith.constant 0 : i32
    %c0_i32_0 = arith.constant 0 : i32
    %c0_i32_1 = arith.constant 0 : i32
    return %c0_i32, %c0_i32_0 : i32, i32
  }
  func.func @transform_19(%arg0: i32) -> (i32, i32) {
    %c0_i32 = arith.constant 0 : i32
    %c0_i32_0 = arith.constant 0 : i32
    %c0_i32_1 = arith.constant 0 : i32
    return %c0_i32, %c0_i32_0 : i32, i32
  }
  func.func @transform_20(%arg0: i32) -> (i32, i32) {
    %c0_i32 = arith.constant 0 : i32
    %c0_i32_0 = arith.constant 0 : i32
    %c0_i32_1 = arith.constant 0 : i32
    return %c0_i32, %c0_i32_0 : i32, i32
  }
  func.func @transform_21(%arg0: i32) -> (i32, i32) {
    %c0_i32 = arith.constant 0 : i32
    %c0_i32_0 = arith.constant 0 : i32
    return %arg0, %c0_i32 : i32, i32
  }
}

</mosaic_0001>

<llo_original>
// kernel: autoencoder_forward.1
$region0: #{autoencoder_forward.1}
  #allocation0 [shape = 'u32[]', space=smem, size = 0x4, offset = 0x4, fixed_abs, tag = 'smem constant byte address 0x4 - core index']
  #allocation1 [shape = 'u32[144,128]{1,0:T(1,128)}', space=vmem, size = 0x12000, scoped, tag = 'internal scratch']
  %s0 = inlined_call_operand.vmem [shape: bf16[16,768], index: 0, kind: input, shape index: {}]
  %s1 = inlined_call_operand.vmem [shape: bf16[768,640], index: 1, kind: input, shape index: {}]
  %s2 = inlined_call_operand.vmem [shape: bf16[640,512], index: 2, kind: input, shape index: {}]
  %s3 = inlined_call_operand.vmem [shape: bf16[512,256], index: 3, kind: input, shape index: {}]
  %s4 = inlined_call_operand.vmem [shape: bf16[256,128], index: 4, kind: input, shape index: {}]
  %s5 = inlined_call_operand.vmem [shape: bf16[128,128], index: 5, kind: input, shape index: {}]
  %s6 = inlined_call_operand.vmem [shape: bf16[128,128], index: 6, kind: input, shape index: {}]
  %s7 = inlined_call_operand.vmem [shape: bf16[128,256], index: 7, kind: input, shape index: {}]
  %s8 = inlined_call_operand.vmem [shape: bf16[256,512], index: 8, kind: input, shape index: {}]
  %s9 = inlined_call_operand.vmem [shape: bf16[512,640], index: 9, kind: input, shape index: {}]
  %s10 = inlined_call_operand.vmem [shape: bf16[640,768], index: 10, kind: input, shape index: {}]
  %s11 = inlined_call_operand.vmem [shape: f32[1,640], index: 11, kind: input, shape index: {}]
  %s12 = inlined_call_operand.vmem [shape: f32[1,512], index: 12, kind: input, shape index: {}]
  %s13 = inlined_call_operand.vmem [shape: f32[1,256], index: 13, kind: input, shape index: {}]
  %s14 = inlined_call_operand.vmem [shape: f32[1,128], index: 14, kind: input, shape index: {}]
  %s15 = inlined_call_operand.vmem [shape: f32[1,128], index: 15, kind: input, shape index: {}]
  %s16 = inlined_call_operand.vmem [shape: f32[1,128], index: 16, kind: input, shape index: {}]
  %s17 = inlined_call_operand.vmem [shape: f32[1,256], index: 17, kind: input, shape index: {}]
  %s18 = inlined_call_operand.vmem [shape: f32[1,512], index: 18, kind: input, shape index: {}]
  %s19 = inlined_call_operand.vmem [shape: f32[1,640], index: 19, kind: input, shape index: {}]
  %s20 = inlined_call_operand.vmem [shape: f32[1,768], index: 20, kind: input, shape index: {}]
  %s21 = inlined_call_operand.vmem [shape: f32[16,768], index: 21, kind: output, shape index: {}]
  %s22 = sld [smem:[#allocation0]]
  $region94: #{autoencoder_forward.1} parent=0
    _
  %s24 = ssub.s32 1, %s22
  %s25 = scalar_select 0, %s24, %s22
  // Predicated region
  $region2: #{autoencoder_forward.1} parent=0 // pred_check
    _
  $region3: #{autoencoder_forward.1} parent=0 // pred_check_branch
    %27 = sbr.rel (0) target = $region5
  $region4: #{autoencoder_forward.1} parent=0 // pred_region
    _
  $region5: #{autoencoder_forward.1} parent=0 // pred_fallthru
    _
  // Predicated region
  $region6: #{autoencoder_forward.1} parent=0 // pred_check
    _
  $region7: #{autoencoder_forward.1} parent=0 // pred_check_branch
    %29 = sbr.rel (0) target = $region9
  $region8: #{autoencoder_forward.1} parent=0 // pred_region
    _
  $region9: #{autoencoder_forward.1} parent=0 // pred_fallthru
    _
  // Predicated region
  $region10: #{autoencoder_forward.1} parent=0 // pred_check
    _
  $region11: #{autoencoder_forward.1} parent=0 // pred_check_branch
    %31 = sbr.rel (0) target = $region13
  $region12: #{autoencoder_forward.1} parent=0 // pred_region
    _
  $region13: #{autoencoder_forward.1} parent=0 // pred_fallthru
    _
  // Predicated region
  $region14: #{autoencoder_forward.1} parent=0 // pred_check
    _
  $region15: #{autoencoder_forward.1} parent=0 // pred_check_branch
    %33 = sbr.rel (0) target = $region17
  $region16: #{autoencoder_forward.1} parent=0 // pred_region
    _
  $region17: #{autoencoder_forward.1} parent=0 // pred_fallthru
    _
  // Predicated region
  $region18: #{autoencoder_forward.1} parent=0 // pred_check
    _
  $region19: #{autoencoder_forward.1} parent=0 // pred_check_branch
    %35 = sbr.rel (0) target = $region21
  $region20: #{autoencoder_forward.1} parent=0 // pred_region
    _
  $region21: #{autoencoder_forward.1} parent=0 // pred_fallthru
    _
  // Predicated region
  $region22: #{autoencoder_forward.1} parent=0 // pred_check
    _
  $region23: #{autoencoder_forward.1} parent=0 // pred_check_branch
    %37 = sbr.rel (0) target = $region25
  $region24: #{autoencoder_forward.1} parent=0 // pred_region
    _
  $region25: #{autoencoder_forward.1} parent=0 // pred_fallthru
    _
  // Predicated region
  $region26: #{autoencoder_forward.1} parent=0 // pred_check
    _
  $region27: #{autoencoder_forward.1} parent=0 // pred_check_branch
    %39 = sbr.rel (0) target = $region29
  $region28: #{autoencoder_forward.1} parent=0 // pred_region
    _
  $region29: #{autoencoder_forward.1} parent=0 // pred_fallthru
    _
  // Predicated region
  $region30: #{autoencoder_forward.1} parent=0 // pred_check
    _
  $region31: #{autoencoder_forward.1} parent=0 // pred_check_branch
    %41 = sbr.rel (0) target = $region33
  $region32: #{autoencoder_forward.1} parent=0 // pred_region
    _
  $region33: #{autoencoder_forward.1} parent=0 // pred_fallthru
    _
  // Predicated region
  $region34: #{autoencoder_forward.1} parent=0 // pred_check
    _
  $region35: #{autoencoder_forward.1} parent=0 // pred_check_branch
    %43 = sbr.rel (0) target = $region37
  $region36: #{autoencoder_forward.1} parent=0 // pred_region
    _
  $region37: #{autoencoder_forward.1} parent=0 // pred_fallthru
    _
  // Predicated region
  $region38: #{autoencoder_forward.1} parent=0 // pred_check
    _
  $region39: #{autoencoder_forward.1} parent=0 // pred_check_branch
    %45 = sbr.rel (0) target = $region41
  $region40: #{autoencoder_forward.1} parent=0 // pred_region
    _
  $region41: #{autoencoder_forward.1} parent=0 // pred_fallthru
    _
  // Predicated region
  $region42: #{autoencoder_forward.1} parent=0 // pred_check
    _
  $region43: #{autoencoder_forward.1} parent=0 // pred_check_branch
    %47 = sbr.rel (0) target = $region45
  $region44: #{autoencoder_forward.1} parent=0 // pred_region
    _
  $region45: #{autoencoder_forward.1} parent=0 // pred_fallthru
    _
  // Predicated region
  $region46: #{autoencoder_forward.1} parent=0 // pred_check
    _
  $region47: #{autoencoder_forward.1} parent=0 // pred_check_branch
    %49 = sbr.rel (0) target = $region49
  $region48: #{autoencoder_forward.1} parent=0 // pred_region
    _
  $region49: #{autoencoder_forward.1} parent=0 // pred_fallthru
    _
  // Predicated region
  $region50: #{autoencoder_forward.1} parent=0 // pred_check
    _
  $region51: #{autoencoder_forward.1} parent=0 // pred_check_branch
    %51 = sbr.rel (0) target = $region53
  $region52: #{autoencoder_forward.1} parent=0 // pred_region
    _
  $region53: #{autoencoder_forward.1} parent=0 // pred_fallthru
    _
  // Predicated region
  $region54: #{autoencoder_forward.1} parent=0 // pred_check
    _
  $region55: #{autoencoder_forward.1} parent=0 // pred_check_branch
    %53 = sbr.rel (0) target = $region57
  $region56: #{autoencoder_forward.1} parent=0 // pred_region
    _
  $region57: #{autoencoder_forward.1} parent=0 // pred_fallthru
    _
  // Predicated region
  $region58: #{autoencoder_forward.1} parent=0 // pred_check
    _
  $region59: #{autoencoder_forward.1} parent=0 // pred_check_branch
    %55 = sbr.rel (0) target = $region61
  $region60: #{autoencoder_forward.1} parent=0 // pred_region
    _
  $region61: #{autoencoder_forward.1} parent=0 // pred_fallthru
    _
  // Predicated region
  $region62: #{autoencoder_forward.1} parent=0 // pred_check
    _
  $region63: #{autoencoder_forward.1} parent=0 // pred_check_branch
    %57 = sbr.rel (0) target = $region65
  $region64: #{autoencoder_forward.1} parent=0 // pred_region
    _
  $region65: #{autoencoder_forward.1} parent=0 // pred_fallthru
    _
  // Predicated region
  $region66: #{autoencoder_forward.1} parent=0 // pred_check
    _
  $region67: #{autoencoder_forward.1} parent=0 // pred_check_branch
    %59 = sbr.rel (0) target = $region69
  $region68: #{autoencoder_forward.1} parent=0 // pred_region
    _
  $region69: #{autoencoder_forward.1} parent=0 // pred_fallthru
    _
  // Predicated region
  $region70: #{autoencoder_forward.1} parent=0 // pred_check
    _
  $region71: #{autoencoder_forward.1} parent=0 // pred_check_branch
    %61 = sbr.rel (0) target = $region73
  $region72: #{autoencoder_forward.1} parent=0 // pred_region
    _
  $region73: #{autoencoder_forward.1} parent=0 // pred_fallthru
    _
  // Predicated region
  $region74: #{autoencoder_forward.1} parent=0 // pred_check
    _
  $region75: #{autoencoder_forward.1} parent=0 // pred_check_branch
    %63 = sbr.rel (0) target = $region77
  $region76: #{autoencoder_forward.1} parent=0 // pred_region
    _
  $region77: #{autoencoder_forward.1} parent=0 // pred_fallthru
    _
  // Predicated region
  $region78: #{autoencoder_forward.1} parent=0 // pred_check
    _
  $region79: #{autoencoder_forward.1} parent=0 // pred_check_branch
    %65 = sbr.rel (0) target = $region81
  $region80: #{autoencoder_forward.1} parent=0 // pred_region
    _
  $region81: #{autoencoder_forward.1} parent=0 // pred_fallthru
    _
  // Predicated region
  $region82: #{autoencoder_forward.1} parent=0 // pred_check
    _
  $region83: #{autoencoder_forward.1} parent=0 // pred_check_branch
    %67 = sbr.rel (0) target = $region85
  $region84: #{autoencoder_forward.1} parent=0 // pred_region
    _
  $region85: #{autoencoder_forward.1} parent=0 // pred_fallthru
    _
  %v69 = vld [vmem:[%s0] sm:$0xff]
  %v70 = vld [vmem:[%s0 + $0x8] sm:$0xff]
  %v71 = vld [vmem:[%s0 + $0x10] sm:$0xff]
  %v72 = vld [vmem:[%s0 + $0x18] sm:$0xff]
  %v73 = vld [vmem:[%s0 + $0x20] sm:$0xff]
  %v74 = vld [vmem:[%s0 + $0x28] sm:$0xff]
  %v75 = vld [vmem:[%s1] sm:$0xff]
  %v76 = vld [vmem:[%s1 + $0x8] sm:$0xff]
  %v77 = vld [vmem:[%s1 + $0x10] sm:$0xf]
  %v78 = vld [vmem:[%s1 + $0x14] sm:$0xff]
  %v79 = vld [vmem:[%s1 + $0x1c] sm:$0xff]
  %v80 = vld [vmem:[%s1 + $0x24] sm:$0xf]
  %v81 = vld [vmem:[%s1 + $0x28] sm:$0xff]
  %v82 = vld [vmem:[%s1 + $0x30] sm:$0xff]
  %v83 = vld [vmem:[%s1 + $0x38] sm:$0xf]
  %v84 = vld [vmem:[%s1 + $0x3c] sm:$0xff]
  %v85 = vld [vmem:[%s1 + $0x44] sm:$0xff]
  %v86 = vld [vmem:[%s1 + $0x4c] sm:$0xf]
  %v87 = vld [vmem:[%s1 + $0x50] sm:$0xff]
  %v88 = vld [vmem:[%s1 + $0x58] sm:$0xff]
  %v89 = vld [vmem:[%s1 + $0x60] sm:$0xf]
  %v90 = vld [vmem:[%s1 + $0x64] sm:$0xff]
  %v91 = vld [vmem:[%s1 + $0x6c] sm:$0xff]
  %v92 = vld [vmem:[%s1 + $0x74] sm:$0xf]
  %v93 = vld [vmem:[%s1 + $0x78] sm:$0xff]
  %v94 = vld [vmem:[%s1 + $0x80] sm:$0xff]
  %v95 = vld [vmem:[%s1 + $0x88] sm:$0xf]
  %v96 = vld [vmem:[%s1 + $0x8c] sm:$0xff]
  %v97 = vld [vmem:[%s1 + $0x94] sm:$0xff]
  %v98 = vld [vmem:[%s1 + $0x9c] sm:$0xf]
  %v99 = vld [vmem:[%s1 + $0xa0] sm:$0xff]
  %v100 = vld [vmem:[%s1 + $0xa8] sm:$0xff]
  %v101 = vld [vmem:[%s1 + $0xb0] sm:$0xf]
  %v102 = vld [vmem:[%s1 + $0xb4] sm:$0xff]
  %v103 = vld [vmem:[%s1 + $0xbc] sm:$0xff]
  %v104 = vld [vmem:[%s1 + $0xc4] sm:$0xf]
  %v105 = vld [vmem:[%s1 + $0xc8] sm:$0xff]
  %v106 = vld [vmem:[%s1 + $0xd0] sm:$0xff]
  %v107 = vld [vmem:[%s1 + $0xd8] sm:$0xf]
  %v108 = vld [vmem:[%s1 + $0xdc] sm:$0xff]
  %v109 = vld [vmem:[%s1 + $0xe4] sm:$0xff]
  %v110 = vld [vmem:[%s1 + $0xec] sm:$0xf]
  %v111 = vld [vmem:[%s1 + $0xf0] sm:$0xff]
  %v112 = vld [vmem:[%s1 + $0xf8] sm:$0xff]
  %v113 = vld [vmem:[%s1 + $0x100] sm:$0xf]
  %v114 = vld [vmem:[%s1 + $0x104] sm:$0xff]
  %v115 = vld [vmem:[%s1 + $0x10c] sm:$0xff]
  %v116 = vld [vmem:[%s1 + $0x114] sm:$0xf]
  %v117 = vld [vmem:[%s1 + $0x118] sm:$0xff]
  %v118 = vld [vmem:[%s1 + $0x120] sm:$0xff]
  %v119 = vld [vmem:[%s1 + $0x128] sm:$0xf]
  %v120 = vld [vmem:[%s1 + $0x12c] sm:$0xff]
  %v121 = vld [vmem:[%s1 + $0x134] sm:$0xff]
  %v122 = vld [vmem:[%s1 + $0x13c] sm:$0xf]
  %v123 = vld [vmem:[%s1 + $0x140] sm:$0xff]
  %v124 = vld [vmem:[%s1 + $0x148] sm:$0xff]
  %v125 = vld [vmem:[%s1 + $0x150] sm:$0xf]
  %v126 = vld [vmem:[%s1 + $0x154] sm:$0xff]
  %v127 = vld [vmem:[%s1 + $0x15c] sm:$0xff]
  %v128 = vld [vmem:[%s1 + $0x164] sm:$0xf]
  %v129 = vld [vmem:[%s1 + $0x168] sm:$0xff]
  %v130 = vld [vmem:[%s1 + $0x170] sm:$0xff]
  %v131 = vld [vmem:[%s1 + $0x178] sm:$0xf]
  %v132 = vld [vmem:[%s1 + $0x17c] sm:$0xff]
  %v133 = vld [vmem:[%s1 + $0x184] sm:$0xff]
  %v134 = vld [vmem:[%s1 + $0x18c] sm:$0xf]
  %v135 = vld [vmem:[%s1 + $0x190] sm:$0xff]
  %v136 = vld [vmem:[%s1 + $0x198] sm:$0xff]
  %v137 = vld [vmem:[%s1 + $0x1a0] sm:$0xf]
  %v138 = vld [vmem:[%s1 + $0x1a4] sm:$0xff]
  %v139 = vld [vmem:[%s1 + $0x1ac] sm:$0xff]
  %v140 = vld [vmem:[%s1 + $0x1b4] sm:$0xf]
  %v141 = vld [vmem:[%s1 + $0x1b8] sm:$0xff]
  %v142 = vld [vmem:[%s1 + $0x1c0] sm:$0xff]
  %v143 = vld [vmem:[%s1 + $0x1c8] sm:$0xf]
  %v144 = vld [vmem:[%s1 + $0x1cc] sm:$0xff]
  %v145 = vld [vmem:[%s1 + $0x1d4] sm:$0xff]
  %v146 = vld [vmem:[%s1 + $0x1dc] sm:$0xf]
  %v147 = vld [vmem:[%s1 + $0x1e0] sm:$0xff]
  %v148 = vld [vmem:[%s1 + $0x1e8] sm:$0xff]
  %v149 = vld [vmem:[%s1 + $0x1f0] sm:$0xf]
  %v150 = vld [vmem:[%s1 + $0x1f4] sm:$0xff]
  %v151 = vld [vmem:[%s1 + $0x1fc] sm:$0xff]
  %v152 = vld [vmem:[%s1 + $0x204] sm:$0xf]
  %v153 = vld [vmem:[%s1 + $0x208] sm:$0xff]
  %v154 = vld [vmem:[%s1 + $0x210] sm:$0xff]
  %v155 = vld [vmem:[%s1 + $0x218] sm:$0xf]
  %v156 = vld [vmem:[%s1 + $0x21c] sm:$0xff]
  %v157 = vld [vmem:[%s1 + $0x224] sm:$0xff]
  %v158 = vld [vmem:[%s1 + $0x22c] sm:$0xf]
  %v159 = vld [vmem:[%s1 + $0x230] sm:$0xff]
  %v160 = vld [vmem:[%s1 + $0x238] sm:$0xff]
  %v161 = vld [vmem:[%s1 + $0x240] sm:$0xf]
  %v162 = vld [vmem:[%s1 + $0x244] sm:$0xff]
  %v163 = vld [vmem:[%s1 + $0x24c] sm:$0xff]
  %v164 = vld [vmem:[%s1 + $0x254] sm:$0xf]
  %v165 = vld [vmem:[%s1 + $0x258] sm:$0xff]
  %v166 = vld [vmem:[%s1 + $0x260] sm:$0xff]
  %v167 = vld [vmem:[%s1 + $0x268] sm:$0xf]
  %v168 = vld [vmem:[%s1 + $0x26c] sm:$0xff]
  %v169 = vld [vmem:[%s1 + $0x274] sm:$0xff]
  %v170 = vld [vmem:[%s1 + $0x27c] sm:$0xf]
  %v171 = vld [vmem:[%s1 + $0x280] sm:$0xff]
  %v172 = vld [vmem:[%s1 + $0x288] sm:$0xff]
  %v173 = vld [vmem:[%s1 + $0x290] sm:$0xf]
  %v174 = vld [vmem:[%s1 + $0x294] sm:$0xff]
  %v175 = vld [vmem:[%s1 + $0x29c] sm:$0xff]
  %v176 = vld [vmem:[%s1 + $0x2a4] sm:$0xf]
  %v177 = vld [vmem:[%s1 + $0x2a8] sm:$0xff]
  %v178 = vld [vmem:[%s1 + $0x2b0] sm:$0xff]
  %v179 = vld [vmem:[%s1 + $0x2b8] sm:$0xf]
  %v180 = vld [vmem:[%s1 + $0x2bc] sm:$0xff]
  %v181 = vld [vmem:[%s1 + $0x2c4] sm:$0xff]
  %v182 = vld [vmem:[%s1 + $0x2cc] sm:$0xf]
  %v183 = vld [vmem:[%s1 + $0x2d0] sm:$0xff]
  %v184 = vld [vmem:[%s1 + $0x2d8] sm:$0xff]
  %v185 = vld [vmem:[%s1 + $0x2e0] sm:$0xf]
  %v186 = vld [vmem:[%s1 + $0x2e4] sm:$0xff]
  %v187 = vld [vmem:[%s1 + $0x2ec] sm:$0xff]
  %v188 = vld [vmem:[%s1 + $0x2f4] sm:$0xf]
  %v189 = vld [vmem:[%s1 + $0x2f8] sm:$0xff]
  %v190 = vld [vmem:[%s1 + $0x300] sm:$0xff]
  %v191 = vld [vmem:[%s1 + $0x308] sm:$0xf]
  %v192 = vld [vmem:[%s1 + $0x30c] sm:$0xff]
  %v193 = vld [vmem:[%s1 + $0x314] sm:$0xff]
  %v194 = vld [vmem:[%s1 + $0x31c] sm:$0xf]
  %v195 = vld [vmem:[%s1 + $0x320] sm:$0xff]
  %v196 = vld [vmem:[%s1 + $0x328] sm:$0xff]
  %v197 = vld [vmem:[%s1 + $0x330] sm:$0xf]
  %v198 = vld [vmem:[%s1 + $0x334] sm:$0xff]
  %v199 = vld [vmem:[%s1 + $0x33c] sm:$0xff]
  %v200 = vld [vmem:[%s1 + $0x344] sm:$0xf]
  %v201 = vld [vmem:[%s1 + $0x348] sm:$0xff]
  %v202 = vld [vmem:[%s1 + $0x350] sm:$0xff]
  %v203 = vld [vmem:[%s1 + $0x358] sm:$0xf]
  %v204 = vld [vmem:[%s1 + $0x35c] sm:$0xff]
  %v205 = vld [vmem:[%s1 + $0x364] sm:$0xff]
  %v206 = vld [vmem:[%s1 + $0x36c] sm:$0xf]
  %v207 = vld [vmem:[%s1 + $0x370] sm:$0xff]
  %v208 = vld [vmem:[%s1 + $0x378] sm:$0xff]
  %v209 = vld [vmem:[%s1 + $0x380] sm:$0xf]
  %v210 = vld [vmem:[%s1 + $0x384] sm:$0xff]
  %v211 = vld [vmem:[%s1 + $0x38c] sm:$0xff]
  %v212 = vld [vmem:[%s1 + $0x394] sm:$0xf]
  %v213 = vld [vmem:[%s1 + $0x398] sm:$0xff]
  %v214 = vld [vmem:[%s1 + $0x3a0] sm:$0xff]
  %v215 = vld [vmem:[%s1 + $0x3a8] sm:$0xf]
  %v216 = vld [vmem:[%s1 + $0x3ac] sm:$0xff]
  %v217 = vld [vmem:[%s1 + $0x3b4] sm:$0xff]
  %v218 = vld [vmem:[%s1 + $0x3bc] sm:$0xf]
  %v219 = vld [vmem:[%s1 + $0x3c0] sm:$0xff]
  %v220 = vld [vmem:[%s1 + $0x3c8] sm:$0xff]
  %v221 = vld [vmem:[%s1 + $0x3d0] sm:$0xf]
  %v222 = vld [vmem:[%s1 + $0x3d4] sm:$0xff]
  %v223 = vld [vmem:[%s1 + $0x3dc] sm:$0xff]
  %v224 = vld [vmem:[%s1 + $0x3e4] sm:$0xf]
  %v225 = vld [vmem:[%s1 + $0x3e8] sm:$0xff]
  %v226 = vld [vmem:[%s1 + $0x3f0] sm:$0xff]
  %v227 = vld [vmem:[%s1 + $0x3f8] sm:$0xf]
  %v228 = vld [vmem:[%s1 + $0x3fc] sm:$0xff]
  %v229 = vld [vmem:[%s1 + $0x404] sm:$0xff]
  %v230 = vld [vmem:[%s1 + $0x40c] sm:$0xf]
  %v231 = vld [vmem:[%s1 + $0x410] sm:$0xff]
  %v232 = vld [vmem:[%s1 + $0x418] sm:$0xff]
  %v233 = vld [vmem:[%s1 + $0x420] sm:$0xf]
  %v234 = vld [vmem:[%s1 + $0x424] sm:$0xff]
  %v235 = vld [vmem:[%s1 + $0x42c] sm:$0xff]
  %v236 = vld [vmem:[%s1 + $0x434] sm:$0xf]
  %v237 = vld [vmem:[%s1 + $0x438] sm:$0xff]
  %v238 = vld [vmem:[%s1 + $0x440] sm:$0xff]
  %v239 = vld [vmem:[%s1 + $0x448] sm:$0xf]
  %v240 = vld [vmem:[%s1 + $0x44c] sm:$0xff]
  %v241 = vld [vmem:[%s1 + $0x454] sm:$0xff]
  %v242 = vld [vmem:[%s1 + $0x45c] sm:$0xf]
  %v243 = vld [vmem:[%s1 + $0x460] sm:$0xff]
  %v244 = vld [vmem:[%s1 + $0x468] sm:$0xff]
  %v245 = vld [vmem:[%s1 + $0x470] sm:$0xf]
  %v246 = vld [vmem:[%s1 + $0x474] sm:$0xff]
  %v247 = vld [vmem:[%s1 + $0x47c] sm:$0xff]
  %v248 = vld [vmem:[%s1 + $0x484] sm:$0xf]
  %v249 = vld [vmem:[%s1 + $0x488] sm:$0xff]
  %v250 = vld [vmem:[%s1 + $0x490] sm:$0xff]
  %v251 = vld [vmem:[%s1 + $0x498] sm:$0xf]
  %v252 = vld [vmem:[%s1 + $0x49c] sm:$0xff]
  %v253 = vld [vmem:[%s1 + $0x4a4] sm:$0xff]
  %v254 = vld [vmem:[%s1 + $0x4ac] sm:$0xf]
  %v255 = vld [vmem:[%s1 + $0x4b0] sm:$0xff]
  %v256 = vld [vmem:[%s1 + $0x4b8] sm:$0xff]
  %v257 = vld [vmem:[%s1 + $0x4c0] sm:$0xf]
  %v258 = vld [vmem:[%s1 + $0x4c4] sm:$0xff]
  %v259 = vld [vmem:[%s1 + $0x4cc] sm:$0xff]
  %v260 = vld [vmem:[%s1 + $0x4d4] sm:$0xf]
  %v261 = vld [vmem:[%s1 + $0x4d8] sm:$0xff]
  %v262 = vld [vmem:[%s1 + $0x4e0] sm:$0xff]
  %v263 = vld [vmem:[%s1 + $0x4e8] sm:$0xf]
  %v264 = vld [vmem:[%s1 + $0x4ec] sm:$0xff]
  %v265 = vld [vmem:[%s1 + $0x4f4] sm:$0xff]
  %v266 = vld [vmem:[%s1 + $0x4fc] sm:$0xf]
  %v267 = vld [vmem:[%s1 + $0x500] sm:$0xff]
  %v268 = vld [vmem:[%s1 + $0x508] sm:$0xff]
  %v269 = vld [vmem:[%s1 + $0x510] sm:$0xf]
  %v270 = vld [vmem:[%s1 + $0x514] sm:$0xff]
  %v271 = vld [vmem:[%s1 + $0x51c] sm:$0xff]
  %v272 = vld [vmem:[%s1 + $0x524] sm:$0xf]
  %v273 = vld [vmem:[%s1 + $0x528] sm:$0xff]
  %v274 = vld [vmem:[%s1 + $0x530] sm:$0xff]
  %v275 = vld [vmem:[%s1 + $0x538] sm:$0xf]
  %v276 = vld [vmem:[%s1 + $0x53c] sm:$0xff]
  %v277 = vld [vmem:[%s1 + $0x544] sm:$0xff]
  %v278 = vld [vmem:[%s1 + $0x54c] sm:$0xf]
  %v279 = vld [vmem:[%s1 + $0x550] sm:$0xff]
  %v280 = vld [vmem:[%s1 + $0x558] sm:$0xff]
  %v281 = vld [vmem:[%s1 + $0x560] sm:$0xf]
  %v282 = vld [vmem:[%s1 + $0x564] sm:$0xff]
  %v283 = vld [vmem:[%s1 + $0x56c] sm:$0xff]
  %v284 = vld [vmem:[%s1 + $0x574] sm:$0xf]
  %v285 = vld [vmem:[%s1 + $0x578] sm:$0xff]
  %v286 = vld [vmem:[%s1 + $0x580] sm:$0xff]
  %v287 = vld [vmem:[%s1 + $0x588] sm:$0xf]
  %v288 = vld [vmem:[%s1 + $0x58c] sm:$0xff]
  %v289 = vld [vmem:[%s1 + $0x594] sm:$0xff]
  %v290 = vld [vmem:[%s1 + $0x59c] sm:$0xf]
  %v291 = vld [vmem:[%s1 + $0x5a0] sm:$0xff]
  %v292 = vld [vmem:[%s1 + $0x5a8] sm:$0xff]
  %v293 = vld [vmem:[%s1 + $0x5b0] sm:$0xf]
  %v294 = vld [vmem:[%s1 + $0x5b4] sm:$0xff]
  %v295 = vld [vmem:[%s1 + $0x5bc] sm:$0xff]
  %v296 = vld [vmem:[%s1 + $0x5c4] sm:$0xf]
  %v297 = vld [vmem:[%s1 + $0x5c8] sm:$0xff]
  %v298 = vld [vmem:[%s1 + $0x5d0] sm:$0xff]
  %v299 = vld [vmem:[%s1 + $0x5d8] sm:$0xf]
  %v300 = vld [vmem:[%s1 + $0x5dc] sm:$0xff]
  %v301 = vld [vmem:[%s1 + $0x5e4] sm:$0xff]
  %v302 = vld [vmem:[%s1 + $0x5ec] sm:$0xf]
  %v303 = vld [vmem:[%s1 + $0x5f0] sm:$0xff]
  %v304 = vld [vmem:[%s1 + $0x5f8] sm:$0xff]
  %v305 = vld [vmem:[%s1 + $0x600] sm:$0xf]
  %v306 = vld [vmem:[%s1 + $0x604] sm:$0xff]
  %v307 = vld [vmem:[%s1 + $0x60c] sm:$0xff]
  %v308 = vld [vmem:[%s1 + $0x614] sm:$0xf]
  %v309 = vld [vmem:[%s1 + $0x618] sm:$0xff]
  %v310 = vld [vmem:[%s1 + $0x620] sm:$0xff]
  %v311 = vld [vmem:[%s1 + $0x628] sm:$0xf]
  %v312 = vld [vmem:[%s1 + $0x62c] sm:$0xff]
  %v313 = vld [vmem:[%s1 + $0x634] sm:$0xff]
  %v314 = vld [vmem:[%s1 + $0x63c] sm:$0xf]
  %v315 = vld [vmem:[%s1 + $0x640] sm:$0xff]
  %v316 = vld [vmem:[%s1 + $0x648] sm:$0xff]
  %v317 = vld [vmem:[%s1 + $0x650] sm:$0xf]
  %v318 = vld [vmem:[%s1 + $0x654] sm:$0xff]
  %v319 = vld [vmem:[%s1 + $0x65c] sm:$0xff]
  %v320 = vld [vmem:[%s1 + $0x664] sm:$0xf]
  %v321 = vld [vmem:[%s1 + $0x668] sm:$0xff]
  %v322 = vld [vmem:[%s1 + $0x670] sm:$0xff]
  %v323 = vld [vmem:[%s1 + $0x678] sm:$0xf]
  %v324 = vld [vmem:[%s1 + $0x67c] sm:$0xff]
  %v325 = vld [vmem:[%s1 + $0x684] sm:$0xff]
  %v326 = vld [vmem:[%s1 + $0x68c] sm:$0xf]
  %v327 = vld [vmem:[%s1 + $0x690] sm:$0xff]
  %v328 = vld [vmem:[%s1 + $0x698] sm:$0xff]
  %v329 = vld [vmem:[%s1 + $0x6a0] sm:$0xf]
  %v330 = vld [vmem:[%s1 + $0x6a4] sm:$0xff]
  %v331 = vld [vmem:[%s1 + $0x6ac] sm:$0xff]
  %v332 = vld [vmem:[%s1 + $0x6b4] sm:$0xf]
  %v333 = vld [vmem:[%s1 + $0x6b8] sm:$0xff]
  %v334 = vld [vmem:[%s1 + $0x6c0] sm:$0xff]
  %v335 = vld [vmem:[%s1 + $0x6c8] sm:$0xf]
  %v336 = vld [vmem:[%s1 + $0x6cc] sm:$0xff]
  %v337 = vld [vmem:[%s1 + $0x6d4] sm:$0xff]
  %v338 = vld [vmem:[%s1 + $0x6dc] sm:$0xf]
  %v339 = vld [vmem:[%s1 + $0x6e0] sm:$0xff]
  %v340 = vld [vmem:[%s1 + $0x6e8] sm:$0xff]
  %v341 = vld [vmem:[%s1 + $0x6f0] sm:$0xf]
  %v342 = vld [vmem:[%s1 + $0x6f4] sm:$0xff]
  %v343 = vld [vmem:[%s1 + $0x6fc] sm:$0xff]
  %v344 = vld [vmem:[%s1 + $0x704] sm:$0xf]
  %v345 = vld [vmem:[%s1 + $0x708] sm:$0xff]
  %v346 = vld [vmem:[%s1 + $0x710] sm:$0xff]
  %v347 = vld [vmem:[%s1 + $0x718] sm:$0xf]
  %v348 = vld [vmem:[%s1 + $0x71c] sm:$0xff]
  %v349 = vld [vmem:[%s1 + $0x724] sm:$0xff]
  %v350 = vld [vmem:[%s1 + $0x72c] sm:$0xf]
  %v351 = vld [vmem:[%s1 + $0x730] sm:$0xff]
  %v352 = vld [vmem:[%s1 + $0x738] sm:$0xff]
  %v353 = vld [vmem:[%s1 + $0x740] sm:$0xf]
  %v354 = vld [vmem:[%s1 + $0x744] sm:$0xff]
  %v355 = vld [vmem:[%s1 + $0x74c] sm:$0xff]
  %v356 = vld [vmem:[%s1 + $0x754] sm:$0xf]
  %v357 = vld [vmem:[%s1 + $0x758] sm:$0xff]
  %v358 = vld [vmem:[%s1 + $0x760] sm:$0xff]
  %v359 = vld [vmem:[%s1 + $0x768] sm:$0xf]
  %v360 = vld [vmem:[%s1 + $0x76c] sm:$0xff]
  %v361 = vld [vmem:[%s1 + $0x774] sm:$0xff]
  %v362 = vld [vmem:[%s1 + $0x77c] sm:$0xf]
  %v363 = vld [vmem:[%s11] sm:$0x1f]
  %v365 = vlaneseq
  %v366 = vshrl.u32 %v365, 7
  %v367 = vsub.s32 0, %v366
  %v368 = vrot.slane %v363, %v367
  %v369 = vlaneseq
  %v370 = vshrl.u32 %v369, 7
  %v371 = vsub.s32 1, %v370
  %v372 = vrot.slane %v363, %v371
  %v373 = vlaneseq
  %v374 = vshrl.u32 %v373, 7
  %v375 = vsub.s32 2, %v374
  %v376 = vrot.slane %v363, %v375
  %v377 = vlaneseq
  %v378 = vshrl.u32 %v377, 7
  %v379 = vsub.s32 3, %v378
  %v380 = vrot.slane %v363, %v379
  %v381 = vlaneseq
  %v382 = vshrl.u32 %v381, 7
  %v383 = vsub.s32 4, %v382
  %v384 = vrot.slane %v363, %v383
  %v396 = vunpack.c.l.b16 %v69
  %v397 = vunpack.c.h.b16 %v69
  %v398 = vunpack.c.l.b16 %v70
  %v399 = vunpack.c.h.b16 %v70
  %v400 = vunpack.c.l.b16 %v71
  %v401 = vunpack.c.h.b16 %v71
  %v402 = vunpack.c.l.b16 %v72
  %v403 = vunpack.c.h.b16 %v72
  %v404 = vunpack.c.l.b16 %v73
  %v405 = vunpack.c.h.b16 %v73
  %v406 = vunpack.c.l.b16 %v74
  %v407 = vunpack.c.h.b16 %v74
  %v408 = vpack.c.b16 %v402, %v396
  %v409 = vpack.c.b16 %v403, %v397
  %v410 = vpack.c.b16 %v404, %v398
  %v411 = vpack.c.b16 %v405, %v399
  %v412 = vpack.c.b16 %v406, %v400
  %v413 = vpack.c.b16 %v407, %v401
  %v708 = vunpack.c.l.b16 %v75
  %v709 = vunpack.c.h.b16 %v75
  %v710 = vunpack.c.l.b16 %v76
  %v711 = vunpack.c.h.b16 %v76
  %v712 = vunpack.c.l.b16 %v77
  %v713 = vunpack.c.l.b16 %v78
  %v714 = vunpack.c.h.b16 %v78
  %v715 = vunpack.c.l.b16 %v79
  %v716 = vunpack.c.h.b16 %v79
  %v717 = vunpack.c.l.b16 %v80
  %v718 = vunpack.c.l.b16 %v81
  %v719 = vunpack.c.h.b16 %v81
  %v720 = vunpack.c.l.b16 %v82
  %v721 = vunpack.c.h.b16 %v82
  %v722 = vunpack.c.l.b16 %v83
  %v723 = vunpack.c.l.b16 %v84
  %v724 = vunpack.c.h.b16 %v84
  %v725 = vunpack.c.l.b16 %v85
  %v726 = vunpack.c.h.b16 %v85
  %v727 = vunpack.c.l.b16 %v86
  %v728 = vunpack.c.l.b16 %v87
  %v729 = vunpack.c.h.b16 %v87
  %v730 = vunpack.c.l.b16 %v88
  %v731 = vunpack.c.h.b16 %v88
  %v732 = vunpack.c.l.b16 %v89
  %v733 = vunpack.c.l.b16 %v90
  %v734 = vunpack.c.h.b16 %v90
  %v735 = vunpack.c.l.b16 %v91
  %v736 = vunpack.c.h.b16 %v91
  %v737 = vunpack.c.l.b16 %v92
  %v738 = vunpack.c.l.b16 %v93
  %v739 = vunpack.c.h.b16 %v93
  %v740 = vunpack.c.l.b16 %v94
  %v741 = vunpack.c.h.b16 %v94
  %v742 = vunpack.c.l.b16 %v95
  %v743 = vunpack.c.l.b16 %v96
  %v744 = vunpack.c.h.b16 %v96
  %v745 = vunpack.c.l.b16 %v97
  %v746 = vunpack.c.h.b16 %v97
  %v747 = vunpack.c.l.b16 %v98
  %v748 = vunpack.c.l.b16 %v99
  %v749 = vunpack.c.h.b16 %v99
  %v750 = vunpack.c.l.b16 %v100
  %v751 = vunpack.c.h.b16 %v100
  %v752 = vunpack.c.l.b16 %v101
  %v753 = vunpack.c.l.b16 %v102
  %v754 = vunpack.c.h.b16 %v102
  %v755 = vunpack.c.l.b16 %v103
  %v756 = vunpack.c.h.b16 %v103
  %v757 = vunpack.c.l.b16 %v104
  %v758 = vunpack.c.l.b16 %v105
  %v759 = vunpack.c.h.b16 %v105
  %v760 = vunpack.c.l.b16 %v106
  %v761 = vunpack.c.h.b16 %v106
  %v762 = vunpack.c.l.b16 %v107
  %v763 = vunpack.c.l.b16 %v108
  %v764 = vunpack.c.h.b16 %v108
  %v765 = vunpack.c.l.b16 %v109
  %v766 = vunpack.c.h.b16 %v109
  %v767 = vunpack.c.l.b16 %v110
  %v768 = vunpack.c.l.b16 %v111
  %v769 = vunpack.c.h.b16 %v111
  %v770 = vunpack.c.l.b16 %v112
  %v771 = vunpack.c.h.b16 %v112
  %v772 = vunpack.c.l.b16 %v113
  %v773 = vunpack.c.l.b16 %v114
  %v774 = vunpack.c.h.b16 %v114
  %v775 = vunpack.c.l.b16 %v115
  %v776 = vunpack.c.h.b16 %v115
  %v777 = vunpack.c.l.b16 %v116
  %v778 = vunpack.c.l.b16 %v117
  %v779 = vunpack.c.h.b16 %v117
  %v780 = vunpack.c.l.b16 %v118
  %v781 = vunpack.c.h.b16 %v118
  %v782 = vunpack.c.l.b16 %v119
  %v783 = vunpack.c.l.b16 %v120
  %v784 = vunpack.c.h.b16 %v120
  %v785 = vunpack.c.l.b16 %v121
  %v786 = vunpack.c.h.b16 %v121
  %v787 = vunpack.c.l.b16 %v122
  %v788 = vunpack.c.l.b16 %v123
  %v789 = vunpack.c.h.b16 %v123
  %v790 = vunpack.c.l.b16 %v124
  %v791 = vunpack.c.h.b16 %v124
  %v792 = vunpack.c.l.b16 %v125
  %v793 = vunpack.c.l.b16 %v126
  %v794 = vunpack.c.h.b16 %v126
  %v795 = vunpack.c.l.b16 %v127
  %v796 = vunpack.c.h.b16 %v127
  %v797 = vunpack.c.l.b16 %v128
  %v798 = vunpack.c.l.b16 %v129
  %v799 = vunpack.c.h.b16 %v129
  %v800 = vunpack.c.l.b16 %v130
  %v801 = vunpack.c.h.b16 %v130
  %v802 = vunpack.c.l.b16 %v131
  %v803 = vunpack.c.l.b16 %v132
  %v804 = vunpack.c.h.b16 %v132
  %v805 = vunpack.c.l.b16 %v133
  %v806 = vunpack.c.h.b16 %v133
  %v807 = vunpack.c.l.b16 %v134
  %v808 = vunpack.c.l.b16 %v135
  %v809 = vunpack.c.h.b16 %v135
  %v810 = vunpack.c.l.b16 %v136
  %v811 = vunpack.c.h.b16 %v136
  %v812 = vunpack.c.l.b16 %v137
  %v813 = vunpack.c.l.b16 %v138
  %v814 = vunpack.c.h.b16 %v138
  %v815 = vunpack.c.l.b16 %v139
  %v816 = vunpack.c.h.b16 %v139
  %v817 = vunpack.c.l.b16 %v140
  %v818 = vunpack.c.l.b16 %v141
  %v819 = vunpack.c.h.b16 %v141
  %v820 = vunpack.c.l.b16 %v142
  %v821 = vunpack.c.h.b16 %v142
  %v822 = vunpack.c.l.b16 %v143
  %v823 = vunpack.c.l.b16 %v144
  %v824 = vunpack.c.h.b16 %v144
  %v825 = vunpack.c.l.b16 %v145
  %v826 = vunpack.c.h.b16 %v145
  %v827 = vunpack.c.l.b16 %v146
  %v828 = vunpack.c.l.b16 %v147
  %v829 = vunpack.c.h.b16 %v147
  %v830 = vunpack.c.l.b16 %v148
  %v831 = vunpack.c.h.b16 %v148
  %v832 = vunpack.c.l.b16 %v149
  %v833 = vunpack.c.l.b16 %v150
  %v834 = vunpack.c.h.b16 %v150
  %v835 = vunpack.c.l.b16 %v151
  %v836 = vunpack.c.h.b16 %v151
  %v837 = vunpack.c.l.b16 %v152
  %v838 = vunpack.c.l.b16 %v153
  %v839 = vunpack.c.h.b16 %v153
  %v840 = vunpack.c.l.b16 %v154
  %v841 = vunpack.c.h.b16 %v154
  %v842 = vunpack.c.l.b16 %v155
  %v843 = vunpack.c.l.b16 %v156
  %v844 = vunpack.c.h.b16 %v156
  %v845 = vunpack.c.l.b16 %v157
  %v846 = vunpack.c.h.b16 %v157
  %v847 = vunpack.c.l.b16 %v158
  %v848 = vunpack.c.l.b16 %v159
  %v849 = vunpack.c.h.b16 %v159
  %v850 = vunpack.c.l.b16 %v160
  %v851 = vunpack.c.h.b16 %v160
  %v852 = vunpack.c.l.b16 %v161
  %v853 = vunpack.c.l.b16 %v162
  %v854 = vunpack.c.h.b16 %v162
  %v855 = vunpack.c.l.b16 %v163
  %v856 = vunpack.c.h.b16 %v163
  %v857 = vunpack.c.l.b16 %v164
  %v858 = vunpack.c.l.b16 %v165
  %v859 = vunpack.c.h.b16 %v165
  %v860 = vunpack.c.l.b16 %v166
  %v861 = vunpack.c.h.b16 %v166
  %v862 = vunpack.c.l.b16 %v167
  %v863 = vunpack.c.l.b16 %v168
  %v864 = vunpack.c.h.b16 %v168
  %v865 = vunpack.c.l.b16 %v169
  %v866 = vunpack.c.h.b16 %v169
  %v867 = vunpack.c.l.b16 %v170
  %v868 = vunpack.c.l.b16 %v171
  %v869 = vunpack.c.h.b16 %v171
  %v870 = vunpack.c.l.b16 %v172
  %v871 = vunpack.c.h.b16 %v172
  %v872 = vunpack.c.l.b16 %v173
  %v873 = vunpack.c.l.b16 %v174
  %v874 = vunpack.c.h.b16 %v174
  %v875 = vunpack.c.l.b16 %v175
  %v876 = vunpack.c.h.b16 %v175
  %v877 = vunpack.c.l.b16 %v176
  %v878 = vunpack.c.l.b16 %v177
  %v879 = vunpack.c.h.b16 %v177
  %v880 = vunpack.c.l.b16 %v178
  %v881 = vunpack.c.h.b16 %v178
  %v882 = vunpack.c.l.b16 %v179
  %v883 = vunpack.c.l.b16 %v180
  %v884 = vunpack.c.h.b16 %v180
  %v885 = vunpack.c.l.b16 %v181
  %v886 = vunpack.c.h.b16 %v181
  %v887 = vunpack.c.l.b16 %v182
  %v888 = vunpack.c.l.b16 %v183
  %v889 = vunpack.c.h.b16 %v183
  %v890 = vunpack.c.l.b16 %v184
  %v891 = vunpack.c.h.b16 %v184
  %v892 = vunpack.c.l.b16 %v185
  %v893 = vunpack.c.l.b16 %v186
  %v894 = vunpack.c.h.b16 %v186
  %v895 = vunpack.c.l.b16 %v187
  %v896 = vunpack.c.h.b16 %v187
  %v897 = vunpack.c.l.b16 %v188
  %v898 = vunpack.c.l.b16 %v189
  %v899 = vunpack.c.h.b16 %v189
  %v900 = vunpack.c.l.b16 %v190
  %v901 = vunpack.c.h.b16 %v190
  %v902 = vunpack.c.l.b16 %v191
  %v903 = vunpack.c.l.b16 %v192
  %v904 = vunpack.c.h.b16 %v192
  %v905 = vunpack.c.l.b16 %v193
  %v906 = vunpack.c.h.b16 %v193
  %v907 = vunpack.c.l.b16 %v194
  %v908 = vunpack.c.l.b16 %v195
  %v909 = vunpack.c.h.b16 %v195
  %v910 = vunpack.c.l.b16 %v196
  %v911 = vunpack.c.h.b16 %v196
  %v912 = vunpack.c.l.b16 %v197
  %v913 = vunpack.c.l.b16 %v198
  %v914 = vunpack.c.h.b16 %v198
  %v915 = vunpack.c.l.b16 %v199
  %v916 = vunpack.c.h.b16 %v199
  %v917 = vunpack.c.l.b16 %v200
  %v918 = vunpack.c.l.b16 %v201
  %v919 = vunpack.c.h.b16 %v201
  %v920 = vunpack.c.l.b16 %v202
  %v921 = vunpack.c.h.b16 %v202
  %v922 = vunpack.c.l.b16 %v203
  %v923 = vunpack.c.l.b16 %v204
  %v924 = vunpack.c.h.b16 %v204
  %v925 = vunpack.c.l.b16 %v205
  %v926 = vunpack.c.h.b16 %v205
  %v927 = vunpack.c.l.b16 %v206
  %v928 = vunpack.c.l.b16 %v207
  %v929 = vunpack.c.h.b16 %v207
  %v930 = vunpack.c.l.b16 %v208
  %v931 = vunpack.c.h.b16 %v208
  %v932 = vunpack.c.l.b16 %v209
  %v933 = vunpack.c.l.b16 %v210
  %v934 = vunpack.c.h.b16 %v210
  %v935 = vunpack.c.l.b16 %v211
  %v936 = vunpack.c.h.b16 %v211
  %v937 = vunpack.c.l.b16 %v212
  %v938 = vunpack.c.l.b16 %v213
  %v939 = vunpack.c.h.b16 %v213
  %v940 = vunpack.c.l.b16 %v214
  %v941 = vunpack.c.h.b16 %v214
  %v942 = vunpack.c.l.b16 %v215
  %v943 = vunpack.c.l.b16 %v216
  %v944 = vunpack.c.h.b16 %v216
  %v945 = vunpack.c.l.b16 %v217
  %v946 = vunpack.c.h.b16 %v217
  %v947 = vunpack.c.l.b16 %v218
  %v948 = vunpack.c.l.b16 %v219
  %v949 = vunpack.c.h.b16 %v219
  %v950 = vunpack.c.l.b16 %v220
  %v951 = vunpack.c.h.b16 %v220
  %v952 = vunpack.c.l.b16 %v221
  %v953 = vunpack.c.l.b16 %v222
  %v954 = vunpack.c.h.b16 %v222
  %v955 = vunpack.c.l.b16 %v223
  %v956 = vunpack.c.h.b16 %v223
  %v957 = vunpack.c.l.b16 %v224
  %v958 = vunpack.c.l.b16 %v225
  %v959 = vunpack.c.h.b16 %v225
  %v960 = vunpack.c.l.b16 %v226
  %v961 = vunpack.c.h.b16 %v226
  %v962 = vunpack.c.l.b16 %v227
  %v963 = vunpack.c.l.b16 %v228
  %v964 = vunpack.c.h.b16 %v228
  %v965 = vunpack.c.l.b16 %v229
  %v966 = vunpack.c.h.b16 %v229
  %v967 = vunpack.c.l.b16 %v230
  %v968 = vunpack.c.l.b16 %v231
  %v969 = vunpack.c.h.b16 %v231
  %v970 = vunpack.c.l.b16 %v232
  %v971 = vunpack.c.h.b16 %v232
  %v972 = vunpack.c.l.b16 %v233
  %v973 = vunpack.c.l.b16 %v234
  %v974 = vunpack.c.h.b16 %v234
  %v975 = vunpack.c.l.b16 %v235
  %v976 = vunpack.c.h.b16 %v235
  %v977 = vunpack.c.l.b16 %v236
  %v978 = vunpack.c.l.b16 %v237
  %v979 = vunpack.c.h.b16 %v237
  %v980 = vunpack.c.l.b16 %v238
  %v981 = vunpack.c.h.b16 %v238
  %v982 = vunpack.c.l.b16 %v239
  %v983 = vunpack.c.l.b16 %v240
  %v984 = vunpack.c.h.b16 %v240
  %v985 = vunpack.c.l.b16 %v241
  %v986 = vunpack.c.h.b16 %v241
  %v987 = vunpack.c.l.b16 %v242
  %v988 = vunpack.c.l.b16 %v243
  %v989 = vunpack.c.h.b16 %v243
  %v990 = vunpack.c.l.b16 %v244
  %v991 = vunpack.c.h.b16 %v244
  %v992 = vunpack.c.l.b16 %v245
  %v993 = vunpack.c.l.b16 %v246
  %v994 = vunpack.c.h.b16 %v246
  %v995 = vunpack.c.l.b16 %v247
  %v996 = vunpack.c.h.b16 %v247
  %v997 = vunpack.c.l.b16 %v248
  %v998 = vunpack.c.l.b16 %v249
  %v999 = vunpack.c.h.b16 %v249
  %v1000 = vunpack.c.l.b16 %v250
  %v1001 = vunpack.c.h.b16 %v250
  %v1002 = vunpack.c.l.b16 %v251
  %v1003 = vunpack.c.l.b16 %v252
  %v1004 = vunpack.c.h.b16 %v252
  %v1005 = vunpack.c.l.b16 %v253
  %v1006 = vunpack.c.h.b16 %v253
  %v1007 = vunpack.c.l.b16 %v254
  %v1008 = vunpack.c.l.b16 %v255
  %v1009 = vunpack.c.h.b16 %v255
  %v1010 = vunpack.c.l.b16 %v256
  %v1011 = vunpack.c.h.b16 %v256
  %v1012 = vunpack.c.l.b16 %v257
  %v1013 = vunpack.c.l.b16 %v258
  %v1014 = vunpack.c.h.b16 %v258
  %v1015 = vunpack.c.l.b16 %v259
  %v1016 = vunpack.c.h.b16 %v259
  %v1017 = vunpack.c.l.b16 %v260
  %v1018 = vunpack.c.l.b16 %v261
  %v1019 = vunpack.c.h.b16 %v261
  %v1020 = vunpack.c.l.b16 %v262
  %v1021 = vunpack.c.h.b16 %v262
  %v1022 = vunpack.c.l.b16 %v263
  %v1023 = vunpack.c.l.b16 %v264
  %v1024 = vunpack.c.h.b16 %v264
  %v1025 = vunpack.c.l.b16 %v265
  %v1026 = vunpack.c.h.b16 %v265
  %v1027 = vunpack.c.l.b16 %v266
  %v1028 = vunpack.c.l.b16 %v267
  %v1029 = vunpack.c.h.b16 %v267
  %v1030 = vunpack.c.l.b16 %v268
  %v1031 = vunpack.c.h.b16 %v268
  %v1032 = vunpack.c.l.b16 %v269
  %v1033 = vunpack.c.l.b16 %v270
  %v1034 = vunpack.c.h.b16 %v270
  %v1035 = vunpack.c.l.b16 %v271
  %v1036 = vunpack.c.h.b16 %v271
  %v1037 = vunpack.c.l.b16 %v272
  %v1038 = vunpack.c.l.b16 %v273
  %v1039 = vunpack.c.h.b16 %v273
  %v1040 = vunpack.c.l.b16 %v274
  %v1041 = vunpack.c.h.b16 %v274
  %v1042 = vunpack.c.l.b16 %v275
  %v1043 = vunpack.c.l.b16 %v276
  %v1044 = vunpack.c.h.b16 %v276
  %v1045 = vunpack.c.l.b16 %v277
  %v1046 = vunpack.c.h.b16 %v277
  %v1047 = vunpack.c.l.b16 %v278
  %v1048 = vunpack.c.l.b16 %v279
  %v1049 = vunpack.c.h.b16 %v279
  %v1050 = vunpack.c.l.b16 %v280
  %v1051 = vunpack.c.h.b16 %v280
  %v1052 = vunpack.c.l.b16 %v281
  %v1053 = vunpack.c.l.b16 %v282
  %v1054 = vunpack.c.h.b16 %v282
  %v1055 = vunpack.c.l.b16 %v283
  %v1056 = vunpack.c.h.b16 %v283
  %v1057 = vunpack.c.l.b16 %v284
  %v1058 = vunpack.c.l.b16 %v285
  %v1059 = vunpack.c.h.b16 %v285
  %v1060 = vunpack.c.l.b16 %v286
  %v1061 = vunpack.c.h.b16 %v286
  %v1062 = vunpack.c.l.b16 %v287
  %v1063 = vunpack.c.l.b16 %v288
  %v1064 = vunpack.c.h.b16 %v288
  %v1065 = vunpack.c.l.b16 %v289
  %v1066 = vunpack.c.h.b16 %v289
  %v1067 = vunpack.c.l.b16 %v290
  %v1068 = vunpack.c.l.b16 %v291
  %v1069 = vunpack.c.h.b16 %v291
  %v1070 = vunpack.c.l.b16 %v292
  %v1071 = vunpack.c.h.b16 %v292
  %v1072 = vunpack.c.l.b16 %v293
  %v1073 = vunpack.c.l.b16 %v294
  %v1074 = vunpack.c.h.b16 %v294
  %v1075 = vunpack.c.l.b16 %v295
  %v1076 = vunpack.c.h.b16 %v295
  %v1077 = vunpack.c.l.b16 %v296
  %v1078 = vunpack.c.l.b16 %v297
  %v1079 = vunpack.c.h.b16 %v297
  %v1080 = vunpack.c.l.b16 %v298
  %v1081 = vunpack.c.h.b16 %v298
  %v1082 = vunpack.c.l.b16 %v299
  %v1083 = vunpack.c.l.b16 %v300
  %v1084 = vunpack.c.h.b16 %v300
  %v1085 = vunpack.c.l.b16 %v301
  %v1086 = vunpack.c.h.b16 %v301
  %v1087 = vunpack.c.l.b16 %v302
  %v1088 = vunpack.c.l.b16 %v303
  %v1089 = vunpack.c.h.b16 %v303
  %v1090 = vunpack.c.l.b16 %v304
  %v1091 = vunpack.c.h.b16 %v304
  %v1092 = vunpack.c.l.b16 %v305
  %v1093 = vunpack.c.l.b16 %v306
  %v1094 = vunpack.c.h.b16 %v306
  %v1095 = vunpack.c.l.b16 %v307
  %v1096 = vunpack.c.h.b16 %v307
  %v1097 = vunpack.c.l.b16 %v308
  %v1098 = vunpack.c.l.b16 %v309
  %v1099 = vunpack.c.h.b16 %v309
  %v1100 = vunpack.c.l.b16 %v310
  %v1101 = vunpack.c.h.b16 %v310
  %v1102 = vunpack.c.l.b16 %v311
  %v1103 = vunpack.c.l.b16 %v312
  %v1104 = vunpack.c.h.b16 %v312
  %v1105 = vunpack.c.l.b16 %v313
  %v1106 = vunpack.c.h.b16 %v313
  %v1107 = vunpack.c.l.b16 %v314
  %v1108 = vunpack.c.l.b16 %v315
  %v1109 = vunpack.c.h.b16 %v315
  %v1110 = vunpack.c.l.b16 %v316
  %v1111 = vunpack.c.h.b16 %v316
  %v1112 = vunpack.c.l.b16 %v317
  %v1113 = vunpack.c.l.b16 %v318
  %v1114 = vunpack.c.h.b16 %v318
  %v1115 = vunpack.c.l.b16 %v319
  %v1116 = vunpack.c.h.b16 %v319
  %v1117 = vunpack.c.l.b16 %v320
  %v1118 = vunpack.c.l.b16 %v321
  %v1119 = vunpack.c.h.b16 %v321
  %v1120 = vunpack.c.l.b16 %v322
  %v1121 = vunpack.c.h.b16 %v322
  %v1122 = vunpack.c.l.b16 %v323
  %v1123 = vunpack.c.l.b16 %v324
  %v1124 = vunpack.c.h.b16 %v324
  %v1125 = vunpack.c.l.b16 %v325
  %v1126 = vunpack.c.h.b16 %v325
  %v1127 = vunpack.c.l.b16 %v326
  %v1128 = vunpack.c.l.b16 %v327
  %v1129 = vunpack.c.h.b16 %v327
  %v1130 = vunpack.c.l.b16 %v328
  %v1131 = vunpack.c.h.b16 %v328
  %v1132 = vunpack.c.l.b16 %v329
  %v1133 = vunpack.c.l.b16 %v330
  %v1134 = vunpack.c.h.b16 %v330
  %v1135 = vunpack.c.l.b16 %v331
  %v1136 = vunpack.c.h.b16 %v331
  %v1137 = vunpack.c.l.b16 %v332
  %v1138 = vunpack.c.l.b16 %v333
  %v1139 = vunpack.c.h.b16 %v333
  %v1140 = vunpack.c.l.b16 %v334
  %v1141 = vunpack.c.h.b16 %v334
  %v1142 = vunpack.c.l.b16 %v335
  %v1143 = vunpack.c.l.b16 %v336
  %v1144 = vunpack.c.h.b16 %v336
  %v1145 = vunpack.c.l.b16 %v337
  %v1146 = vunpack.c.h.b16 %v337
  %v1147 = vunpack.c.l.b16 %v338
  %v1148 = vunpack.c.l.b16 %v339
  %v1149 = vunpack.c.h.b16 %v339
  %v1150 = vunpack.c.l.b16 %v340
  %v1151 = vunpack.c.h.b16 %v340
  %v1152 = vunpack.c.l.b16 %v341
  %v1153 = vunpack.c.l.b16 %v342
  %v1154 = vunpack.c.h.b16 %v342
  %v1155 = vunpack.c.l.b16 %v343
  %v1156 = vunpack.c.h.b16 %v343
  %v1157 = vunpack.c.l.b16 %v344
  %v1158 = vunpack.c.l.b16 %v345
  %v1159 = vunpack.c.h.b16 %v345
  %v1160 = vunpack.c.l.b16 %v346
  %v1161 = vunpack.c.h.b16 %v346
  %v1162 = vunpack.c.l.b16 %v347
  %v1163 = vunpack.c.l.b16 %v348
  %v1164 = vunpack.c.h.b16 %v348
  %v1165 = vunpack.c.l.b16 %v349
  %v1166 = vunpack.c.h.b16 %v349
  %v1167 = vunpack.c.l.b16 %v350
  %v1168 = vunpack.c.l.b16 %v351
  %v1169 = vunpack.c.h.b16 %v351
  %v1170 = vunpack.c.l.b16 %v352
  %v1171 = vunpack.c.h.b16 %v352
  %v1172 = vunpack.c.l.b16 %v353
  %v1173 = vunpack.c.l.b16 %v354
  %v1174 = vunpack.c.h.b16 %v354
  %v1175 = vunpack.c.l.b16 %v355
  %v1176 = vunpack.c.h.b16 %v355
  %v1177 = vunpack.c.l.b16 %v356
  %v1178 = vunpack.c.l.b16 %v357
  %v1179 = vunpack.c.h.b16 %v357
  %v1180 = vunpack.c.l.b16 %v358
  %v1181 = vunpack.c.h.b16 %v358
  %v1182 = vunpack.c.l.b16 %v359
  %v1183 = vunpack.c.l.b16 %v360
  %v1184 = vunpack.c.h.b16 %v360
  %v1185 = vunpack.c.l.b16 %v361
  %v1186 = vunpack.c.h.b16 %v361
  %v1187 = vunpack.c.l.b16 %v362
  %v1188 = vpack.c.b16 %v713, %v708
  %v1189 = vpack.c.b16 %v714, %v709
  %v1190 = vpack.c.b16 %v715, %v710
  %v1191 = vpack.c.b16 %v716, %v711
  %v1192 = vpack.c.b16 %v717, %v712
  %v1193 = vpack.c.b16 %v723, %v718
  %v1194 = vpack.c.b16 %v724, %v719
  %v1195 = vpack.c.b16 %v725, %v720
  %v1196 = vpack.c.b16 %v726, %v721
  %v1197 = vpack.c.b16 %v727, %v722
  %v1198 = vpack.c.b16 %v733, %v728
  %v1199 = vpack.c.b16 %v734, %v729
  %v1200 = vpack.c.b16 %v735, %v730
  %v1201 = vpack.c.b16 %v736, %v731
  %v1202 = vpack.c.b16 %v737, %v732
  %v1203 = vpack.c.b16 %v743, %v738
  %v1204 = vpack.c.b16 %v744, %v739
  %v1205 = vpack.c.b16 %v745, %v740
  %v1206 = vpack.c.b16 %v746, %v741
  %v1207 = vpack.c.b16 %v747, %v742
  %v1208 = vpack.c.b16 %v753, %v748
  %v1209 = vpack.c.b16 %v754, %v749
  %v1210 = vpack.c.b16 %v755, %v750
  %v1211 = vpack.c.b16 %v756, %v751
  %v1212 = vpack.c.b16 %v757, %v752
  %v1213 = vpack.c.b16 %v763, %v758
  %v1214 = vpack.c.b16 %v764, %v759
  %v1215 = vpack.c.b16 %v765, %v760
  %v1216 = vpack.c.b16 %v766, %v761
  %v1217 = vpack.c.b16 %v767, %v762
  %v1218 = vpack.c.b16 %v773, %v768
  %v1219 = vpack.c.b16 %v774, %v769
  %v1220 = vpack.c.b16 %v775, %v770
  %v1221 = vpack.c.b16 %v776, %v771
  %v1222 = vpack.c.b16 %v777, %v772
  %v1223 = vpack.c.b16 %v783, %v778
  %v1224 = vpack.c.b16 %v784, %v779
  %v1225 = vpack.c.b16 %v785, %v780
  %v1226 = vpack.c.b16 %v786, %v781
  %v1227 = vpack.c.b16 %v787, %v782
  %v1228 = vpack.c.b16 %v793, %v788
  %v1229 = vpack.c.b16 %v794, %v789
  %v1230 = vpack.c.b16 %v795, %v790
  %v1231 = vpack.c.b16 %v796, %v791
  %v1232 = vpack.c.b16 %v797, %v792
  %v1233 = vpack.c.b16 %v803, %v798
  %v1234 = vpack.c.b16 %v804, %v799
  %v1235 = vpack.c.b16 %v805, %v800
  %v1236 = vpack.c.b16 %v806, %v801
  %v1237 = vpack.c.b16 %v807, %v802
  %v1238 = vpack.c.b16 %v813, %v808
  %v1239 = vpack.c.b16 %v814, %v809
  %v1240 = vpack.c.b16 %v815, %v810
  %v1241 = vpack.c.b16 %v816, %v811
  %v1242 = vpack.c.b16 %v817, %v812
  %v1243 = vpack.c.b16 %v823, %v818
  %v1244 = vpack.c.b16 %v824, %v819
  %v1245 = vpack.c.b16 %v825, %v820
  %v1246 = vpack.c.b16 %v826, %v821
  %v1247 = vpack.c.b16 %v827, %v822
  %v1248 = vpack.c.b16 %v833, %v828
  %v1249 = vpack.c.b16 %v834, %v829
  %v1250 = vpack.c.b16 %v835, %v830
  %v1251 = vpack.c.b16 %v836, %v831
  %v1252 = vpack.c.b16 %v837, %v832
  %v1253 = vpack.c.b16 %v843, %v838
  %v1254 = vpack.c.b16 %v844, %v839
  %v1255 = vpack.c.b16 %v845, %v840
  %v1256 = vpack.c.b16 %v846, %v841
  %v1257 = vpack.c.b16 %v847, %v842
  %v1258 = vpack.c.b16 %v853, %v848
  %v1259 = vpack.c.b16 %v854, %v849
  %v1260 = vpack.c.b16 %v855, %v850
  %v1261 = vpack.c.b16 %v856, %v851
  %v1262 = vpack.c.b16 %v857, %v852
  %v1263 = vpack.c.b16 %v863, %v858
  %v1264 = vpack.c.b16 %v864, %v859
  %v1265 = vpack.c.b16 %v865, %v860
  %v1266 = vpack.c.b16 %v866, %v861
  %v1267 = vpack.c.b16 %v867, %v862
  %v1268 = vpack.c.b16 %v873, %v868
  %v1269 = vpack.c.b16 %v874, %v869
  %v1270 = vpack.c.b16 %v875, %v870
  %v1271 = vpack.c.b16 %v876, %v871
  %v1272 = vpack.c.b16 %v877, %v872
  %v1273 = vpack.c.b16 %v883, %v878
  %v1274 = vpack.c.b16 %v884, %v879
  %v1275 = vpack.c.b16 %v885, %v880
  %v1276 = vpack.c.b16 %v886, %v881
  %v1277 = vpack.c.b16 %v887, %v882
  %v1278 = vpack.c.b16 %v893, %v888
  %v1279 = vpack.c.b16 %v894, %v889
  %v1280 = vpack.c.b16 %v895, %v890
  %v1281 = vpack.c.b16 %v896, %v891
  %v1282 = vpack.c.b16 %v897, %v892
  %v1283 = vpack.c.b16 %v903, %v898
  %v1284 = vpack.c.b16 %v904, %v899
  %v1285 = vpack.c.b16 %v905, %v900
  %v1286 = vpack.c.b16 %v906, %v901
  %v1287 = vpack.c.b16 %v907, %v902
  %v1288 = vpack.c.b16 %v913, %v908
  %v1289 = vpack.c.b16 %v914, %v909
  %v1290 = vpack.c.b16 %v915, %v910
  %v1291 = vpack.c.b16 %v916, %v911
  %v1292 = vpack.c.b16 %v917, %v912
  %v1293 = vpack.c.b16 %v923, %v918
  %v1294 = vpack.c.b16 %v924, %v919
  %v1295 = vpack.c.b16 %v925, %v920
  %v1296 = vpack.c.b16 %v926, %v921
  %v1297 = vpack.c.b16 %v927, %v922
  %v1298 = vpack.c.b16 %v933, %v928
  %v1299 = vpack.c.b16 %v934, %v929
  %v1300 = vpack.c.b16 %v935, %v930
  %v1301 = vpack.c.b16 %v936, %v931
  %v1302 = vpack.c.b16 %v937, %v932
  %v1303 = vpack.c.b16 %v943, %v938
  %v1304 = vpack.c.b16 %v944, %v939
  %v1305 = vpack.c.b16 %v945, %v940
  %v1306 = vpack.c.b16 %v946, %v941
  %v1307 = vpack.c.b16 %v947, %v942
  %v1308 = vpack.c.b16 %v953, %v948
  %v1309 = vpack.c.b16 %v954, %v949
  %v1310 = vpack.c.b16 %v955, %v950
  %v1311 = vpack.c.b16 %v956, %v951
  %v1312 = vpack.c.b16 %v957, %v952
  %v1313 = vpack.c.b16 %v963, %v958
  %v1314 = vpack.c.b16 %v964, %v959
  %v1315 = vpack.c.b16 %v965, %v960
  %v1316 = vpack.c.b16 %v966, %v961
  %v1317 = vpack.c.b16 %v967, %v962
  %v1318 = vpack.c.b16 %v973, %v968
  %v1319 = vpack.c.b16 %v974, %v969
  %v1320 = vpack.c.b16 %v975, %v970
  %v1321 = vpack.c.b16 %v976, %v971
  %v1322 = vpack.c.b16 %v977, %v972
  %v1323 = vpack.c.b16 %v983, %v978
  %v1324 = vpack.c.b16 %v984, %v979
  %v1325 = vpack.c.b16 %v985, %v980
  %v1326 = vpack.c.b16 %v986, %v981
  %v1327 = vpack.c.b16 %v987, %v982
  %v1328 = vpack.c.b16 %v993, %v988
  %v1329 = vpack.c.b16 %v994, %v989
  %v1330 = vpack.c.b16 %v995, %v990
  %v1331 = vpack.c.b16 %v996, %v991
  %v1332 = vpack.c.b16 %v997, %v992
  %v1333 = vpack.c.b16 %v1003, %v998
  %v1334 = vpack.c.b16 %v1004, %v999
  %v1335 = vpack.c.b16 %v1005, %v1000
  %v1336 = vpack.c.b16 %v1006, %v1001
  %v1337 = vpack.c.b16 %v1007, %v1002
  %v1338 = vpack.c.b16 %v1013, %v1008
  %v1339 = vpack.c.b16 %v1014, %v1009
  %v1340 = vpack.c.b16 %v1015, %v1010
  %v1341 = vpack.c.b16 %v1016, %v1011
  %v1342 = vpack.c.b16 %v1017, %v1012
  %v1343 = vpack.c.b16 %v1023, %v1018
  %v1344 = vpack.c.b16 %v1024, %v1019
  %v1345 = vpack.c.b16 %v1025, %v1020
  %v1346 = vpack.c.b16 %v1026, %v1021
  %v1347 = vpack.c.b16 %v1027, %v1022
  %v1348 = vpack.c.b16 %v1033, %v1028
  %v1349 = vpack.c.b16 %v1034, %v1029
  %v1350 = vpack.c.b16 %v1035, %v1030
  %v1351 = vpack.c.b16 %v1036, %v1031
  %v1352 = vpack.c.b16 %v1037, %v1032
  %v1353 = vpack.c.b16 %v1043, %v1038
  %v1354 = vpack.c.b16 %v1044, %v1039
  %v1355 = vpack.c.b16 %v1045, %v1040
  %v1356 = vpack.c.b16 %v1046, %v1041
  %v1357 = vpack.c.b16 %v1047, %v1042
  %v1358 = vpack.c.b16 %v1053, %v1048
  %v1359 = vpack.c.b16 %v1054, %v1049
  %v1360 = vpack.c.b16 %v1055, %v1050
  %v1361 = vpack.c.b16 %v1056, %v1051
  %v1362 = vpack.c.b16 %v1057, %v1052
  %v1363 = vpack.c.b16 %v1063, %v1058
  %v1364 = vpack.c.b16 %v1064, %v1059
  %v1365 = vpack.c.b16 %v1065, %v1060
  %v1366 = vpack.c.b16 %v1066, %v1061
  %v1367 = vpack.c.b16 %v1067, %v1062
  %v1368 = vpack.c.b16 %v1073, %v1068
  %v1369 = vpack.c.b16 %v1074, %v1069
  %v1370 = vpack.c.b16 %v1075, %v1070
  %v1371 = vpack.c.b16 %v1076, %v1071
  %v1372 = vpack.c.b16 %v1077, %v1072
  %v1373 = vpack.c.b16 %v1083, %v1078
  %v1374 = vpack.c.b16 %v1084, %v1079
  %v1375 = vpack.c.b16 %v1085, %v1080
  %v1376 = vpack.c.b16 %v1086, %v1081
  %v1377 = vpack.c.b16 %v1087, %v1082
  %v1378 = vpack.c.b16 %v1093, %v1088
  %v1379 = vpack.c.b16 %v1094, %v1089
  %v1380 = vpack.c.b16 %v1095, %v1090
  %v1381 = vpack.c.b16 %v1096, %v1091
  %v1382 = vpack.c.b16 %v1097, %v1092
  %v1383 = vpack.c.b16 %v1103, %v1098
  %v1384 = vpack.c.b16 %v1104, %v1099
  %v1385 = vpack.c.b16 %v1105, %v1100
  %v1386 = vpack.c.b16 %v1106, %v1101
  %v1387 = vpack.c.b16 %v1107, %v1102
  %v1388 = vpack.c.b16 %v1113, %v1108
  %v1389 = vpack.c.b16 %v1114, %v1109
  %v1390 = vpack.c.b16 %v1115, %v1110
  %v1391 = vpack.c.b16 %v1116, %v1111
  %v1392 = vpack.c.b16 %v1117, %v1112
  %v1393 = vpack.c.b16 %v1123, %v1118
  %v1394 = vpack.c.b16 %v1124, %v1119
  %v1395 = vpack.c.b16 %v1125, %v1120
  %v1396 = vpack.c.b16 %v1126, %v1121
  %v1397 = vpack.c.b16 %v1127, %v1122
  %v1398 = vpack.c.b16 %v1133, %v1128
  %v1399 = vpack.c.b16 %v1134, %v1129
  %v1400 = vpack.c.b16 %v1135, %v1130
  %v1401 = vpack.c.b16 %v1136, %v1131
  %v1402 = vpack.c.b16 %v1137, %v1132
  %v1403 = vpack.c.b16 %v1143, %v1138
  %v1404 = vpack.c.b16 %v1144, %v1139
  %v1405 = vpack.c.b16 %v1145, %v1140
  %v1406 = vpack.c.b16 %v1146, %v1141
  %v1407 = vpack.c.b16 %v1147, %v1142
  %v1408 = vpack.c.b16 %v1153, %v1148
  %v1409 = vpack.c.b16 %v1154, %v1149
  %v1410 = vpack.c.b16 %v1155, %v1150
  %v1411 = vpack.c.b16 %v1156, %v1151
  %v1412 = vpack.c.b16 %v1157, %v1152
  %v1413 = vpack.c.b16 %v1163, %v1158
  %v1414 = vpack.c.b16 %v1164, %v1159
  %v1415 = vpack.c.b16 %v1165, %v1160
  %v1416 = vpack.c.b16 %v1166, %v1161
  %v1417 = vpack.c.b16 %v1167, %v1162
  %v1418 = vpack.c.b16 %v1173, %v1168
  %v1419 = vpack.c.b16 %v1174, %v1169
  %v1420 = vpack.c.b16 %v1175, %v1170
  %v1421 = vpack.c.b16 %v1176, %v1171
  %v1422 = vpack.c.b16 %v1177, %v1172
  %v1423 = vpack.c.b16 %v1183, %v1178
  %v1424 = vpack.c.b16 %v1184, %v1179
  %v1425 = vpack.c.b16 %v1185, %v1180
  %v1426 = vpack.c.b16 %v1186, %v1181
  %v1427 = vpack.c.b16 %v1187, %v1182
  %1668 = vmatprep.subr.bf16.mxu0 %v1189
  %1669 = vmatpush1.bf16.msra.mxu0 %v1188
  %1670 = vmatprep.subr.bf16.mxu0 %v1194
  %1671 = vmatpush1.bf16.msra.mxu0 %v1193
  %1672 = vmatprep.subr.bf16.mxu0 %v1199
  %1673 = vmatpush1.bf16.msra.mxu0 %v1198
  %1674 = vmatprep.subr.bf16.mxu0 %v1204
  %1675 = vmatpush1.bf16.msra.mxu0 %v1203
  %1676 = vmatprep.subr.bf16.mxu0 %v1209
  %1677 = vmatpush1.bf16.msra.mxu0 %v1208
  %1678 = vmatprep.subr.bf16.mxu0 %v1214
  %1679 = vmatpush1.bf16.msra.mxu0 %v1213
  %1680 = vmatprep.subr.bf16.mxu0 %v1219
  %1681 = vmatpush1.bf16.msra.mxu0 %v1218
  %1682 = vmatprep.subr.bf16.mxu0 %v1224
  %1683 = vmatpush1.bf16.msra.mxu0 %v1223
  %1684 = vmatprep.subr.bf16.mxu0 %v1229
  %1685 = vmatpush1.bf16.msra.mxu0 %v1228
  %1686 = vmatprep.subr.bf16.mxu0 %v1234
  %1687 = vmatpush1.bf16.msra.mxu0 %v1233
  %1688 = vmatprep.subr.bf16.mxu0 %v1239
  %1689 = vmatpush1.bf16.msra.mxu0 %v1238
  %1690 = vmatprep.subr.bf16.mxu0 %v1244
  %1691 = vmatpush1.bf16.msra.mxu0 %v1243
  %1692 = vmatprep.subr.bf16.mxu0 %v1249
  %1693 = vmatpush1.bf16.msra.mxu0 %v1248
  %1694 = vmatprep.subr.bf16.mxu0 %v1254
  %1695 = vmatpush1.bf16.msra.mxu0 %v1253
  %1696 = vmatprep.subr.bf16.mxu0 %v1259
  %1697 = vmatpush1.bf16.msra.mxu0 %v1258
  %1698 = vmatprep.subr.bf16.mxu0 %v1264
  %1699 = vmatpush1.bf16.msra.mxu0 %v1263
  %1700 = vmatprep.mubr.bf16.mxu0 %v409
  %1701 = vmatmul.mubr.bf16.gmra.mrb[0].mxu0 %v408
  %v1702 = vpop.f32.mrb[0].mxu0
  %v1703 = vadd.f32 %v368, %v1702
  %v1704 = vpop.f32.mrb[0].mxu0
  %v1705 = vadd.f32 %v372, %v1704
  %v1706 = vpop.f32.mrb[0].mxu0
  %v1707 = vadd.f32 %v368, %v1706
  %v1708 = vpop.f32.mrb[0].mxu0
  %v1709 = vadd.f32 %v372, %v1708
  %1710 = vdwg.mxu0
  %1711 = vmatprep.subr.bf16.mxu0 %v1269
  %1712 = vmatpush1.bf16.msra.mxu0 %v1268
  %1713 = vmatprep.subr.bf16.mxu0 %v1274
  %1714 = vmatpush1.bf16.msra.mxu0 %v1273
  %1715 = vmatprep.subr.bf16.mxu0 %v1279
  %1716 = vmatpush1.bf16.msra.mxu0 %v1278
  %1717 = vmatprep.subr.bf16.mxu0 %v1284
  %1718 = vmatpush1.bf16.msra.mxu0 %v1283
  %1719 = vmatprep.subr.bf16.mxu0 %v1289
  %1720 = vmatpush1.bf16.msra.mxu0 %v1288
  %1721 = vmatprep.subr.bf16.mxu0 %v1294
  %1722 = vmatpush1.bf16.msra.mxu0 %v1293
  %1723 = vmatprep.subr.bf16.mxu0 %v1299
  %1724 = vmatpush1.bf16.msra.mxu0 %v1298
  %1725 = vmatprep.subr.bf16.mxu0 %v1304
  %1726 = vmatpush1.bf16.msra.mxu0 %v1303
  %1727 = vmatprep.subr.bf16.mxu0 %v1309
  %1728 = vmatpush1.bf16.msra.mxu0 %v1308
  %1729 = vmatprep.subr.bf16.mxu0 %v1314
  %1730 = vmatpush1.bf16.msra.mxu0 %v1313
  %1731 = vmatprep.subr.bf16.mxu0 %v1319
  %1732 = vmatpush1.bf16.msra.mxu0 %v1318
  %1733 = vmatprep.subr.bf16.mxu0 %v1324
  %1734 = vmatpush1.bf16.msra.mxu0 %v1323
  %1735 = vmatprep.subr.bf16.mxu0 %v1329
  %1736 = vmatpush1.bf16.msra.mxu0 %v1328
  %1737 = vmatprep.subr.bf16.mxu0 %v1334
  %1738 = vmatpush1.bf16.msra.mxu0 %v1333
  %1739 = vmatprep.subr.bf16.mxu0 %v1339
  %1740 = vmatpush1.bf16.msra.mxu0 %v1338
  %1741 = vmatprep.subr.bf16.mxu0 %v1344
  %1742 = vmatpush1.bf16.msra.mxu0 %v1343
  %1743 = vmatprep.mubr.bf16.mxu0 %v411
  %1744 = vmatmul.mubr.bf16.gmra.mrb[0].mxu0 %v410
  %v1745 = vpop.f32.mrb[0].mxu0
  %v1746 = vadd.f32 %v1703, %v1745
  %v1747 = vpop.f32.mrb[0].mxu0
  %v1748 = vadd.f32 %v1705, %v1747
  %v1749 = vpop.f32.mrb[0].mxu0
  %v1750 = vadd.f32 %v1707, %v1749
  %v1751 = vpop.f32.mrb[0].mxu0
  %v1752 = vadd.f32 %v1709, %v1751
  %1753 = vdwg.mxu0
  %1754 = vmatprep.subr.bf16.mxu0 %v1349
  %1755 = vmatpush1.bf16.msra.mxu0 %v1348
  %1756 = vmatprep.subr.bf16.mxu0 %v1354
  %1757 = vmatpush1.bf16.msra.mxu0 %v1353
  %1758 = vmatprep.subr.bf16.mxu0 %v1359
  %1759 = vmatpush1.bf16.msra.mxu0 %v1358
  %1760 = vmatprep.subr.bf16.mxu0 %v1364
  %1761 = vmatpush1.bf16.msra.mxu0 %v1363
  %1762 = vmatprep.subr.bf16.mxu0 %v1369
  %1763 = vmatpush1.bf16.msra.mxu0 %v1368
  %1764 = vmatprep.subr.bf16.mxu0 %v1374
  %1765 = vmatpush1.bf16.msra.mxu0 %v1373
  %1766 = vmatprep.subr.bf16.mxu0 %v1379
  %1767 = vmatpush1.bf16.msra.mxu0 %v1378
  %1768 = vmatprep.subr.bf16.mxu0 %v1384
  %1769 = vmatpush1.bf16.msra.mxu0 %v1383
  %1770 = vmatprep.subr.bf16.mxu0 %v1389
  %1771 = vmatpush1.bf16.msra.mxu0 %v1388
  %1772 = vmatprep.subr.bf16.mxu0 %v1394
  %1773 = vmatpush1.bf16.msra.mxu0 %v1393
  %1774 = vmatprep.subr.bf16.mxu0 %v1399
  %1775 = vmatpush1.bf16.msra.mxu0 %v1398
  %1776 = vmatprep.subr.bf16.mxu0 %v1404
  %1777 = vmatpush1.bf16.msra.mxu0 %v1403
  %1778 = vmatprep.subr.bf16.mxu0 %v1409
  %1779 = vmatpush1.bf16.msra.mxu0 %v1408
  %1780 = vmatprep.subr.bf16.mxu0 %v1414
  %1781 = vmatpush1.bf16.msra.mxu0 %v1413
  %1782 = vmatprep.subr.bf16.mxu0 %v1419
  %1783 = vmatpush1.bf16.msra.mxu0 %v1418
  %1784 = vmatprep.subr.bf16.mxu0 %v1424
  %1785 = vmatpush1.bf16.msra.mxu0 %v1423
  %1786 = vmatprep.mubr.bf16.mxu0 %v413
  %1787 = vmatmul.mubr.bf16.gmra.mrb[0].mxu0 %v412
  %v1788 = vpop.f32.mrb[0].mxu0
  %v1789 = vadd.f32 %v1746, %v1788
  %v1790 = vpop.f32.mrb[0].mxu0
  %v1791 = vadd.f32 %v1748, %v1790
  %v1792 = vpop.f32.mrb[0].mxu0
  %v1793 = vadd.f32 %v1750, %v1792
  %v1794 = vpop.f32.mrb[0].mxu0
  %v1795 = vadd.f32 %v1752, %v1794
  %1796 = vdwg.mxu0
  %1797 = vmatprep.subr.bf16.mxu0 %v1191
  %1798 = vmatpush1.bf16.msra.mxu0 %v1190
  %1799 = vmatprep.subr.bf16.mxu0 %v1196
  %1800 = vmatpush1.bf16.msra.mxu0 %v1195
  %1801 = vmatprep.subr.bf16.mxu0 %v1201
  %1802 = vmatpush1.bf16.msra.mxu0 %v1200
  %1803 = vmatprep.subr.bf16.mxu0 %v1206
  %1804 = vmatpush1.bf16.msra.mxu0 %v1205
  %1805 = vmatprep.subr.bf16.mxu0 %v1211
  %1806 = vmatpush1.bf16.msra.mxu0 %v1210
  %1807 = vmatprep.subr.bf16.mxu0 %v1216
  %1808 = vmatpush1.bf16.msra.mxu0 %v1215
  %1809 = vmatprep.subr.bf16.mxu0 %v1221
  %1810 = vmatpush1.bf16.msra.mxu0 %v1220
  %1811 = vmatprep.subr.bf16.mxu0 %v1226
  %1812 = vmatpush1.bf16.msra.mxu0 %v1225
  %1813 = vmatprep.subr.bf16.mxu0 %v1231
  %1814 = vmatpush1.bf16.msra.mxu0 %v1230
  %1815 = vmatprep.subr.bf16.mxu0 %v1236
  %1816 = vmatpush1.bf16.msra.mxu0 %v1235
  %1817 = vmatprep.subr.bf16.mxu0 %v1241
  %1818 = vmatpush1.bf16.msra.mxu0 %v1240
  %1819 = vmatprep.subr.bf16.mxu0 %v1246
  %1820 = vmatpush1.bf16.msra.mxu0 %v1245
  %1821 = vmatprep.subr.bf16.mxu0 %v1251
  %1822 = vmatpush1.bf16.msra.mxu0 %v1250
  %1823 = vmatprep.subr.bf16.mxu0 %v1256
  %1824 = vmatpush1.bf16.msra.mxu0 %v1255
  %1825 = vmatprep.subr.bf16.mxu0 %v1261
  %1826 = vmatpush1.bf16.msra.mxu0 %v1260
  %1827 = vmatprep.subr.bf16.mxu0 %v1266
  %1828 = vmatpush1.bf16.msra.mxu0 %v1265
  %1829 = vmatprep.mubr.bf16.mxu0 %v409
  %1830 = vmatmul.mubr.bf16.gmra.mrb[0].mxu0 %v408
  %v1831 = vpop.f32.mrb[0].mxu0
  %v1832 = vadd.f32 %v376, %v1831
  %v1833 = vpop.f32.mrb[0].mxu0
  %v1834 = vadd.f32 %v380, %v1833
  %v1835 = vpop.f32.mrb[0].mxu0
  %v1836 = vadd.f32 %v376, %v1835
  %v1837 = vpop.f32.mrb[0].mxu0
  %v1838 = vadd.f32 %v380, %v1837
  %1839 = vdwg.mxu0
  %1840 = vmatprep.subr.bf16.mxu0 %v1271
  %1841 = vmatpush1.bf16.msra.mxu0 %v1270
  %1842 = vmatprep.subr.bf16.mxu0 %v1276
  %1843 = vmatpush1.bf16.msra.mxu0 %v1275
  %1844 = vmatprep.subr.bf16.mxu0 %v1281
  %1845 = vmatpush1.bf16.msra.mxu0 %v1280
  %1846 = vmatprep.subr.bf16.mxu0 %v1286
  %1847 = vmatpush1.bf16.msra.mxu0 %v1285
  %1848 = vmatprep.subr.bf16.mxu0 %v1291
  %1849 = vmatpush1.bf16.msra.mxu0 %v1290
  %1850 = vmatprep.subr.bf16.mxu0 %v1296
  %1851 = vmatpush1.bf16.msra.mxu0 %v1295
  %1852 = vmatprep.subr.bf16.mxu0 %v1301
  %1853 = vmatpush1.bf16.msra.mxu0 %v1300
  %1854 = vmatprep.subr.bf16.mxu0 %v1306
  %1855 = vmatpush1.bf16.msra.mxu0 %v1305
  %1856 = vmatprep.subr.bf16.mxu0 %v1311
  %1857 = vmatpush1.bf16.msra.mxu0 %v1310
  %1858 = vmatprep.subr.bf16.mxu0 %v1316
  %1859 = vmatpush1.bf16.msra.mxu0 %v1315
  %1860 = vmatprep.subr.bf16.mxu0 %v1321
  %1861 = vmatpush1.bf16.msra.mxu0 %v1320
  %1862 = vmatprep.subr.bf16.mxu0 %v1326
  %1863 = vmatpush1.bf16.msra.mxu0 %v1325
  %1864 = vmatprep.subr.bf16.mxu0 %v1331
  %1865 = vmatpush1.bf16.msra.mxu0 %v1330
  %1866 = vmatprep.subr.bf16.mxu0 %v1336
  %1867 = vmatpush1.bf16.msra.mxu0 %v1335
  %1868 = vmatprep.subr.bf16.mxu0 %v1341
  %1869 = vmatpush1.bf16.msra.mxu0 %v1340
  %1870 = vmatprep.subr.bf16.mxu0 %v1346
  %1871 = vmatpush1.bf16.msra.mxu0 %v1345
  %1872 = vmatprep.mubr.bf16.mxu0 %v411
  %1873 = vmatmul.mubr.bf16.gmra.mrb[0].mxu0 %v410
  %v1874 = vpop.f32.mrb[0].mxu0
  %v1875 = vadd.f32 %v1832, %v1874
  %v1876 = vpop.f32.mrb[0].mxu0
  %v1877 = vadd.f32 %v1834, %v1876
  %v1878 = vpop.f32.mrb[0].mxu0
  %v1879 = vadd.f32 %v1836, %v1878
  %v1880 = vpop.f32.mrb[0].mxu0
  %v1881 = vadd.f32 %v1838, %v1880
  %1882 = vdwg.mxu0
  %1883 = vmatprep.subr.bf16.mxu0 %v1351
  %1884 = vmatpush1.bf16.msra.mxu0 %v1350
  %1885 = vmatprep.subr.bf16.mxu0 %v1356
  %1886 = vmatpush1.bf16.msra.mxu0 %v1355
  %1887 = vmatprep.subr.bf16.mxu0 %v1361
  %1888 = vmatpush1.bf16.msra.mxu0 %v1360
  %1889 = vmatprep.subr.bf16.mxu0 %v1366
  %1890 = vmatpush1.bf16.msra.mxu0 %v1365
  %1891 = vmatprep.subr.bf16.mxu0 %v1371
  %1892 = vmatpush1.bf16.msra.mxu0 %v1370
  %1893 = vmatprep.subr.bf16.mxu0 %v1376
  %1894 = vmatpush1.bf16.msra.mxu0 %v1375
  %1895 = vmatprep.subr.bf16.mxu0 %v1381
  %1896 = vmatpush1.bf16.msra.mxu0 %v1380
  %1897 = vmatprep.subr.bf16.mxu0 %v1386
  %1898 = vmatpush1.bf16.msra.mxu0 %v1385
  %1899 = vmatprep.subr.bf16.mxu0 %v1391
  %1900 = vmatpush1.bf16.msra.mxu0 %v1390
  %1901 = vmatprep.subr.bf16.mxu0 %v1396
  %1902 = vmatpush1.bf16.msra.mxu0 %v1395
  %1903 = vmatprep.subr.bf16.mxu0 %v1401
  %1904 = vmatpush1.bf16.msra.mxu0 %v1400
  %1905 = vmatprep.subr.bf16.mxu0 %v1406
  %1906 = vmatpush1.bf16.msra.mxu0 %v1405
  %1907 = vmatprep.subr.bf16.mxu0 %v1411
  %1908 = vmatpush1.bf16.msra.mxu0 %v1410
  %1909 = vmatprep.subr.bf16.mxu0 %v1416
  %1910 = vmatpush1.bf16.msra.mxu0 %v1415
  %1911 = vmatprep.subr.bf16.mxu0 %v1421
  %1912 = vmatpush1.bf16.msra.mxu0 %v1420
  %1913 = vmatprep.subr.bf16.mxu0 %v1426
  %1914 = vmatpush1.bf16.msra.mxu0 %v1425
  %1915 = vmatprep.mubr.bf16.mxu0 %v413
  %1916 = vmatmul.mubr.bf16.gmra.mrb[0].mxu0 %v412
  %v1917 = vpop.f32.mrb[0].mxu0
  %v1918 = vadd.f32 %v1875, %v1917
  %v1919 = vpop.f32.mrb[0].mxu0
  %v1920 = vadd.f32 %v1877, %v1919
  %v1921 = vpop.f32.mrb[0].mxu0
  %v1922 = vadd.f32 %v1879, %v1921
  %v1923 = vpop.f32.mrb[0].mxu0
  %v1924 = vadd.f32 %v1881, %v1923
  %1925 = vdwg.mxu0
  %1926 = vmatprep.subr.bf16.mxu0 0
  %1927 = vmatpush1.bf16.msra.mxu0 %v1192
  %1928 = vmatprep.subr.bf16.mxu0 0
  %1929 = vmatpush1.bf16.msra.mxu0 %v1197
  %1930 = vmatprep.subr.bf16.mxu0 0
  %1931 = vmatpush1.bf16.msra.mxu0 %v1202
  %1932 = vmatprep.subr.bf16.mxu0 0
  %1933 = vmatpush1.bf16.msra.mxu0 %v1207
  %1934 = vmatprep.subr.bf16.mxu0 0
  %1935 = vmatpush1.bf16.msra.mxu0 %v1212
  %1936 = vmatprep.subr.bf16.mxu0 0
  %1937 = vmatpush1.bf16.msra.mxu0 %v1217
  %1938 = vmatprep.subr.bf16.mxu0 0
  %1939 = vmatpush1.bf16.msra.mxu0 %v1222
  %1940 = vmatprep.subr.bf16.mxu0 0
  %1941 = vmatpush1.bf16.msra.mxu0 %v1227
  %1942 = vmatprep.subr.bf16.mxu0 0
  %1943 = vmatpush1.bf16.msra.mxu0 %v1232
  %1944 = vmatprep.subr.bf16.mxu0 0
  %1945 = vmatpush1.bf16.msra.mxu0 %v1237
  %1946 = vmatprep.subr.bf16.mxu0 0
  %1947 = vmatpush1.bf16.msra.mxu0 %v1242
  %1948 = vmatprep.subr.bf16.mxu0 0
  %1949 = vmatpush1.bf16.msra.mxu0 %v1247
  %1950 = vmatprep.subr.bf16.mxu0 0
  %1951 = vmatpush1.bf16.msra.mxu0 %v1252
  %1952 = vmatprep.subr.bf16.mxu0 0
  %1953 = vmatpush1.bf16.msra.mxu0 %v1257
  %1954 = vmatprep.subr.bf16.mxu0 0
  %1955 = vmatpush1.bf16.msra.mxu0 %v1262
  %1956 = vmatprep.subr.bf16.mxu0 0
  %1957 = vmatpush1.bf16.msra.mxu0 %v1267
  %1958 = vmatprep.mubr.bf16.mxu0 %v409
  %1959 = vmatmul.mubr.bf16.gmra.mrb[0].mxu0 %v408
  %v1960 = vpop.f32.mrb[0].mxu0
  %v1961 = vadd.f32 %v384, %v1960
  %v1962 = vpop.f32.mrb[0].mxu0
  %v1963 = vpop.f32.mrb[0].mxu0
  %v1964 = vadd.f32 %v384, %v1963
  %v1965 = vpop.f32.mrb[0].mxu0
  %1966 = vdwg.mxu0
  %1967 = vmatprep.subr.bf16.mxu0 0
  %1968 = vmatpush1.bf16.msra.mxu0 %v1272
  %1969 = vmatprep.subr.bf16.mxu0 0
  %1970 = vmatpush1.bf16.msra.mxu0 %v1277
  %1971 = vmatprep.subr.bf16.mxu0 0
  %1972 = vmatpush1.bf16.msra.mxu0 %v1282
  %1973 = vmatprep.subr.bf16.mxu0 0
  %1974 = vmatpush1.bf16.msra.mxu0 %v1287
  %1975 = vmatprep.subr.bf16.mxu0 0
  %1976 = vmatpush1.bf16.msra.mxu0 %v1292
  %1977 = vmatprep.subr.bf16.mxu0 0
  %1978 = vmatpush1.bf16.msra.mxu0 %v1297
  %1979 = vmatprep.subr.bf16.mxu0 0
  %1980 = vmatpush1.bf16.msra.mxu0 %v1302
  %1981 = vmatprep.subr.bf16.mxu0 0
  %1982 = vmatpush1.bf16.msra.mxu0 %v1307
  %1983 = vmatprep.subr.bf16.mxu0 0
  %1984 = vmatpush1.bf16.msra.mxu0 %v1312
  %1985 = vmatprep.subr.bf16.mxu0 0
  %1986 = vmatpush1.bf16.msra.mxu0 %v1317
  %1987 = vmatprep.subr.bf16.mxu0 0
  %1988 = vmatpush1.bf16.msra.mxu0 %v1322
  %1989 = vmatprep.subr.bf16.mxu0 0
  %1990 = vmatpush1.bf16.msra.mxu0 %v1327
  %1991 = vmatprep.subr.bf16.mxu0 0
  %1992 = vmatpush1.bf16.msra.mxu0 %v1332
  %1993 = vmatprep.subr.bf16.mxu0 0
  %1994 = vmatpush1.bf16.msra.mxu0 %v1337
  %1995 = vmatprep.subr.bf16.mxu0 0
  %1996 = vmatpush1.bf16.msra.mxu0 %v1342
  %1997 = vmatprep.subr.bf16.mxu0 0
  %1998 = vmatpush1.bf16.msra.mxu0 %v1347
  %1999 = vmatprep.mubr.bf16.mxu0 %v411
  %2000 = vmatmul.mubr.bf16.gmra.mrb[0].mxu0 %v410
  %v2001 = vpop.f32.mrb[0].mxu0
  %v2002 = vadd.f32 %v1961, %v2001
  %v2003 = vpop.f32.mrb[0].mxu0
  %v2004 = vpop.f32.mrb[0].mxu0
  %v2005 = vadd.f32 %v1964, %v2004
  %v2006 = vpop.f32.mrb[0].mxu0
  %2007 = vdwg.mxu0
  %2008 = vmatprep.subr.bf16.mxu0 0
  %2009 = vmatpush1.bf16.msra.mxu0 %v1352
  %2010 = vmatprep.subr.bf16.mxu0 0
  %2011 = vmatpush1.bf16.msra.mxu0 %v1357
  %2012 = vmatprep.subr.bf16.mxu0 0
  %2013 = vmatpush1.bf16.msra.mxu0 %v1362
  %2014 = vmatprep.subr.bf16.mxu0 0
  %2015 = vmatpush1.bf16.msra.mxu0 %v1367
  %2016 = vmatprep.subr.bf16.mxu0 0
  %2017 = vmatpush1.bf16.msra.mxu0 %v1372
  %2018 = vmatprep.subr.bf16.mxu0 0
  %2019 = vmatpush1.bf16.msra.mxu0 %v1377
  %2020 = vmatprep.subr.bf16.mxu0 0
  %2021 = vmatpush1.bf16.msra.mxu0 %v1382
  %2022 = vmatprep.subr.bf16.mxu0 0
  %2023 = vmatpush1.bf16.msra.mxu0 %v1387
  %2024 = vmatprep.subr.bf16.mxu0 0
  %2025 = vmatpush1.bf16.msra.mxu0 %v1392
  %2026 = vmatprep.subr.bf16.mxu0 0
  %2027 = vmatpush1.bf16.msra.mxu0 %v1397
  %2028 = vmatprep.subr.bf16.mxu0 0
  %2029 = vmatpush1.bf16.msra.mxu0 %v1402
  %2030 = vmatprep.subr.bf16.mxu0 0
  %2031 = vmatpush1.bf16.msra.mxu0 %v1407
  %2032 = vmatprep.subr.bf16.mxu0 0
  %2033 = vmatpush1.bf16.msra.mxu0 %v1412
  %2034 = vmatprep.subr.bf16.mxu0 0
  %2035 = vmatpush1.bf16.msra.mxu0 %v1417
  %2036 = vmatprep.subr.bf16.mxu0 0
  %2037 = vmatpush1.bf16.msra.mxu0 %v1422
  %2038 = vmatprep.subr.bf16.mxu0 0
  %2039 = vmatpush1.bf16.msra.mxu0 %v1427
  %2040 = vmatprep.mubr.bf16.mxu0 %v413
  %2041 = vmatmul.mubr.bf16.gmra.mrb[0].mxu0 %v412
  %v2042 = vpop.f32.mrb[0].mxu0
  %v2043 = vadd.f32 %v2002, %v2042
  %v2044 = vpop.f32.mrb[0].mxu0
  %v2045 = vpop.f32.mrb[0].mxu0
  %v2046 = vadd.f32 %v2005, %v2045
  %v2047 = vpop.f32.mrb[0].mxu0
  %2048 = vdwg.mxu0
  %v2049 = vmul.f32 %v1789, 0.1
  %v2050 = vmul.f32 %v1791, 0.1
  %v2051 = vmul.f32 %v1918, 0.1
  %v2052 = vmul.f32 %v1920, 0.1
  %v2053 = vmul.f32 %v2043, 0.1
  %v2054 = vmul.f32 %v1793, 0.1
  %v2055 = vmul.f32 %v1795, 0.1
  %v2056 = vmul.f32 %v1922, 0.1
  %v2057 = vmul.f32 %v1924, 0.1
  %v2058 = vmul.f32 %v2046, 0.1
  %v2059 = vmax.f32 %v1789, %v2049
  %v2060 = vmax.f32 %v1791, %v2050
  %v2061 = vmax.f32 %v1918, %v2051
  %v2062 = vmax.f32 %v1920, %v2052
  %v2063 = vmax.f32 %v2043, %v2053
  %v2064 = vmax.f32 %v1793, %v2054
  %v2065 = vmax.f32 %v1795, %v2055
  %v2066 = vmax.f32 %v1922, %v2056
  %v2067 = vmax.f32 %v1924, %v2057
  %v2068 = vmax.f32 %v2046, %v2058
  %v2069 = vpack.c.bf16 %v2064, %v2059
  %v2070 = vpack.c.bf16 %v2065, %v2060
  %v2071 = vpack.c.bf16 %v2066, %v2061
  %v2072 = vpack.c.bf16 %v2067, %v2062
  %v2073 = vpack.c.bf16 %v2068, %v2063
  %v2074 = vld [vmem:[%s2] sm:$0xff]
  %v2075 = vld [vmem:[%s2 + $0x8] sm:$0xff]
  %v2076 = vld [vmem:[%s2 + $0x10] sm:$0xff]
  %v2077 = vld [vmem:[%s2 + $0x18] sm:$0xff]
  %v2078 = vld [vmem:[%s2 + $0x20] sm:$0xff]
  %v2079 = vld [vmem:[%s2 + $0x28] sm:$0xff]
  %v2080 = vld [vmem:[%s2 + $0x30] sm:$0xff]
  %v2081 = vld [vmem:[%s2 + $0x38] sm:$0xff]
  %v2082 = vld [vmem:[%s2 + $0x40] sm:$0xff]
  %v2083 = vld [vmem:[%s2 + $0x48] sm:$0xff]
  %v2084 = vld [vmem:[%s2 + $0x50] sm:$0xff]
  %v2085 = vld [vmem:[%s2 + $0x58] sm:$0xff]
  %v2086 = vld [vmem:[%s2 + $0x60] sm:$0xff]
  %v2087 = vld [vmem:[%s2 + $0x68] sm:$0xff]
  %v2088 = vld [vmem:[%s2 + $0x70] sm:$0xff]
  %v2089 = vld [vmem:[%s2 + $0x78] sm:$0xff]
  %v2090 = vld [vmem:[%s2 + $0x80] sm:$0xff]
  %v2091 = vld [vmem:[%s2 + $0x88] sm:$0xff]
  %v2092 = vld [vmem:[%s2 + $0x90] sm:$0xff]
  %v2093 = vld [vmem:[%s2 + $0x98] sm:$0xff]
  %v2094 = vld [vmem:[%s2 + $0xa0] sm:$0xff]
  %v2095 = vld [vmem:[%s2 + $0xa8] sm:$0xff]
  %v2096 = vld [vmem:[%s2 + $0xb0] sm:$0xff]
  %v2097 = vld [vmem:[%s2 + $0xb8] sm:$0xff]
  %v2098 = vld [vmem:[%s2 + $0xc0] sm:$0xff]
  %v2099 = vld [vmem:[%s2 + $0xc8] sm:$0xff]
  %v2100 = vld [vmem:[%s2 + $0xd0] sm:$0xff]
  %v2101 = vld [vmem:[%s2 + $0xd8] sm:$0xff]
  %v2102 = vld [vmem:[%s2 + $0xe0] sm:$0xff]
  %v2103 = vld [vmem:[%s2 + $0xe8] sm:$0xff]
  %v2104 = vld [vmem:[%s2 + $0xf0] sm:$0xff]
  %v2105 = vld [vmem:[%s2 + $0xf8] sm:$0xff]
  %v2106 = vld [vmem:[%s2 + $0x100] sm:$0xff]
  %v2107 = vld [vmem:[%s2 + $0x108] sm:$0xff]
  %v2108 = vld [vmem:[%s2 + $0x110] sm:$0xff]
  %v2109 = vld [vmem:[%s2 + $0x118] sm:$0xff]
  %v2110 = vld [vmem:[%s2 + $0x120] sm:$0xff]
  %v2111 = vld [vmem:[%s2 + $0x128] sm:$0xff]
  %v2112 = vld [vmem:[%s2 + $0x130] sm:$0xff]
  %v2113 = vld [vmem:[%s2 + $0x138] sm:$0xff]
  %v2114 = vld [vmem:[%s2 + $0x140] sm:$0xff]
  %v2115 = vld [vmem:[%s2 + $0x148] sm:$0xff]
  %v2116 = vld [vmem:[%s2 + $0x150] sm:$0xff]
  %v2117 = vld [vmem:[%s2 + $0x158] sm:$0xff]
  %v2118 = vld [vmem:[%s2 + $0x160] sm:$0xff]
  %v2119 = vld [vmem:[%s2 + $0x168] sm:$0xff]
  %v2120 = vld [vmem:[%s2 + $0x170] sm:$0xff]
  %v2121 = vld [vmem:[%s2 + $0x178] sm:$0xff]
  %v2122 = vld [vmem:[%s2 + $0x180] sm:$0xff]
  %v2123 = vld [vmem:[%s2 + $0x188] sm:$0xff]
  %v2124 = vld [vmem:[%s2 + $0x190] sm:$0xff]
  %v2125 = vld [vmem:[%s2 + $0x198] sm:$0xff]
  %v2126 = vld [vmem:[%s2 + $0x1a0] sm:$0xff]
  %v2127 = vld [vmem:[%s2 + $0x1a8] sm:$0xff]
  %v2128 = vld [vmem:[%s2 + $0x1b0] sm:$0xff]
  %v2129 = vld [vmem:[%s2 + $0x1b8] sm:$0xff]
  %v2130 = vld [vmem:[%s2 + $0x1c0] sm:$0xff]
  %v2131 = vld [vmem:[%s2 + $0x1c8] sm:$0xff]
  %v2132 = vld [vmem:[%s2 + $0x1d0] sm:$0xff]
  %v2133 = vld [vmem:[%s2 + $0x1d8] sm:$0xff]
  %v2134 = vld [vmem:[%s2 + $0x1e0] sm:$0xff]
  %v2135 = vld [vmem:[%s2 + $0x1e8] sm:$0xff]
  %v2136 = vld [vmem:[%s2 + $0x1f0] sm:$0xff]
  %v2137 = vld [vmem:[%s2 + $0x1f8] sm:$0xff]
  %v2138 = vld [vmem:[%s2 + $0x200] sm:$0xff]
  %v2139 = vld [vmem:[%s2 + $0x208] sm:$0xff]
  %v2140 = vld [vmem:[%s2 + $0x210] sm:$0xff]
  %v2141 = vld [vmem:[%s2 + $0x218] sm:$0xff]
  %v2142 = vld [vmem:[%s2 + $0x220] sm:$0xff]
  %v2143 = vld [vmem:[%s2 + $0x228] sm:$0xff]
  %v2144 = vld [vmem:[%s2 + $0x230] sm:$0xff]
  %v2145 = vld [vmem:[%s2 + $0x238] sm:$0xff]
  %v2146 = vld [vmem:[%s2 + $0x240] sm:$0xff]
  %v2147 = vld [vmem:[%s2 + $0x248] sm:$0xff]
  %v2148 = vld [vmem:[%s2 + $0x250] sm:$0xff]
  %v2149 = vld [vmem:[%s2 + $0x258] sm:$0xff]
  %v2150 = vld [vmem:[%s2 + $0x260] sm:$0xff]
  %v2151 = vld [vmem:[%s2 + $0x268] sm:$0xff]
  %v2152 = vld [vmem:[%s2 + $0x270] sm:$0xff]
  %v2153 = vld [vmem:[%s2 + $0x278] sm:$0xff]
  %v2154 = vld [vmem:[%s2 + $0x280] sm:$0xff]
  %v2155 = vld [vmem:[%s2 + $0x288] sm:$0xff]
  %v2156 = vld [vmem:[%s2 + $0x290] sm:$0xff]
  %v2157 = vld [vmem:[%s2 + $0x298] sm:$0xff]
  %v2158 = vld [vmem:[%s2 + $0x2a0] sm:$0xff]
  %v2159 = vld [vmem:[%s2 + $0x2a8] sm:$0xff]
  %v2160 = vld [vmem:[%s2 + $0x2b0] sm:$0xff]
  %v2161 = vld [vmem:[%s2 + $0x2b8] sm:$0xff]
  %v2162 = vld [vmem:[%s2 + $0x2c0] sm:$0xff]
  %v2163 = vld [vmem:[%s2 + $0x2c8] sm:$0xff]
  %v2164 = vld [vmem:[%s2 + $0x2d0] sm:$0xff]
  %v2165 = vld [vmem:[%s2 + $0x2d8] sm:$0xff]
  %v2166 = vld [vmem:[%s2 + $0x2e0] sm:$0xff]
  %v2167 = vld [vmem:[%s2 + $0x2e8] sm:$0xff]
  %v2168 = vld [vmem:[%s2 + $0x2f0] sm:$0xff]
  %v2169 = vld [vmem:[%s2 + $0x2f8] sm:$0xff]
  %v2170 = vld [vmem:[%s2 + $0x300] sm:$0xff]
  %v2171 = vld [vmem:[%s2 + $0x308] sm:$0xff]
  %v2172 = vld [vmem:[%s2 + $0x310] sm:$0xff]
  %v2173 = vld [vmem:[%s2 + $0x318] sm:$0xff]
  %v2174 = vld [vmem:[%s2 + $0x320] sm:$0xff]
  %v2175 = vld [vmem:[%s2 + $0x328] sm:$0xff]
  %v2176 = vld [vmem:[%s2 + $0x330] sm:$0xff]
  %v2177 = vld [vmem:[%s2 + $0x338] sm:$0xff]
  %v2178 = vld [vmem:[%s2 + $0x340] sm:$0xff]
  %v2179 = vld [vmem:[%s2 + $0x348] sm:$0xff]
  %v2180 = vld [vmem:[%s2 + $0x350] sm:$0xff]
  %v2181 = vld [vmem:[%s2 + $0x358] sm:$0xff]
  %v2182 = vld [vmem:[%s2 + $0x360] sm:$0xff]
  %v2183 = vld [vmem:[%s2 + $0x368] sm:$0xff]
  %v2184 = vld [vmem:[%s2 + $0x370] sm:$0xff]
  %v2185 = vld [vmem:[%s2 + $0x378] sm:$0xff]
  %v2186 = vld [vmem:[%s2 + $0x380] sm:$0xff]
  %v2187 = vld [vmem:[%s2 + $0x388] sm:$0xff]
  %v2188 = vld [vmem:[%s2 + $0x390] sm:$0xff]
  %v2189 = vld [vmem:[%s2 + $0x398] sm:$0xff]
  %v2190 = vld [vmem:[%s2 + $0x3a0] sm:$0xff]
  %v2191 = vld [vmem:[%s2 + $0x3a8] sm:$0xff]
  %v2192 = vld [vmem:[%s2 + $0x3b0] sm:$0xff]
  %v2193 = vld [vmem:[%s2 + $0x3b8] sm:$0xff]
  %v2194 = vld [vmem:[%s2 + $0x3c0] sm:$0xff]
  %v2195 = vld [vmem:[%s2 + $0x3c8] sm:$0xff]
  %v2196 = vld [vmem:[%s2 + $0x3d0] sm:$0xff]
  %v2197 = vld [vmem:[%s2 + $0x3d8] sm:$0xff]
  %v2198 = vld [vmem:[%s2 + $0x3e0] sm:$0xff]
  %v2199 = vld [vmem:[%s2 + $0x3e8] sm:$0xff]
  %v2200 = vld [vmem:[%s2 + $0x3f0] sm:$0xff]
  %v2201 = vld [vmem:[%s2 + $0x3f8] sm:$0xff]
  %v2202 = vld [vmem:[%s2 + $0x400] sm:$0xff]
  %v2203 = vld [vmem:[%s2 + $0x408] sm:$0xff]
  %v2204 = vld [vmem:[%s2 + $0x410] sm:$0xff]
  %v2205 = vld [vmem:[%s2 + $0x418] sm:$0xff]
  %v2206 = vld [vmem:[%s2 + $0x420] sm:$0xff]
  %v2207 = vld [vmem:[%s2 + $0x428] sm:$0xff]
  %v2208 = vld [vmem:[%s2 + $0x430] sm:$0xff]
  %v2209 = vld [vmem:[%s2 + $0x438] sm:$0xff]
  %v2210 = vld [vmem:[%s2 + $0x440] sm:$0xff]
  %v2211 = vld [vmem:[%s2 + $0x448] sm:$0xff]
  %v2212 = vld [vmem:[%s2 + $0x450] sm:$0xff]
  %v2213 = vld [vmem:[%s2 + $0x458] sm:$0xff]
  %v2214 = vld [vmem:[%s2 + $0x460] sm:$0xff]
  %v2215 = vld [vmem:[%s2 + $0x468] sm:$0xff]
  %v2216 = vld [vmem:[%s2 + $0x470] sm:$0xff]
  %v2217 = vld [vmem:[%s2 + $0x478] sm:$0xff]
  %v2218 = vld [vmem:[%s2 + $0x480] sm:$0xff]
  %v2219 = vld [vmem:[%s2 + $0x488] sm:$0xff]
  %v2220 = vld [vmem:[%s2 + $0x490] sm:$0xff]
  %v2221 = vld [vmem:[%s2 + $0x498] sm:$0xff]
  %v2222 = vld [vmem:[%s2 + $0x4a0] sm:$0xff]
  %v2223 = vld [vmem:[%s2 + $0x4a8] sm:$0xff]
  %v2224 = vld [vmem:[%s2 + $0x4b0] sm:$0xff]
  %v2225 = vld [vmem:[%s2 + $0x4b8] sm:$0xff]
  %v2226 = vld [vmem:[%s2 + $0x4c0] sm:$0xff]
  %v2227 = vld [vmem:[%s2 + $0x4c8] sm:$0xff]
  %v2228 = vld [vmem:[%s2 + $0x4d0] sm:$0xff]
  %v2229 = vld [vmem:[%s2 + $0x4d8] sm:$0xff]
  %v2230 = vld [vmem:[%s2 + $0x4e0] sm:$0xff]
  %v2231 = vld [vmem:[%s2 + $0x4e8] sm:$0xff]
  %v2232 = vld [vmem:[%s2 + $0x4f0] sm:$0xff]
  %v2233 = vld [vmem:[%s2 + $0x4f8] sm:$0xff]
  %v2234 = vld [vmem:[%s12] sm:$0xf]
  %v2236 = vlaneseq
  %v2237 = vshrl.u32 %v2236, 7
  %v2238 = vsub.s32 0, %v2237
  %v2239 = vrot.slane %v2234, %v2238
  %v2240 = vlaneseq
  %v2241 = vshrl.u32 %v2240, 7
  %v2242 = vsub.s32 1, %v2241
  %v2243 = vrot.slane %v2234, %v2242
  %v2244 = vlaneseq
  %v2245 = vshrl.u32 %v2244, 7
  %v2246 = vsub.s32 2, %v2245
  %v2247 = vrot.slane %v2234, %v2246
  %v2248 = vlaneseq
  %v2249 = vshrl.u32 %v2248, 7
  %v2250 = vsub.s32 3, %v2249
  %v2251 = vrot.slane %v2234, %v2250
  %v2416 = vunpack.c.l.b16 %v2074
  %v2417 = vunpack.c.h.b16 %v2074
  %v2418 = vunpack.c.l.b16 %v2075
  %v2419 = vunpack.c.h.b16 %v2075
  %v2420 = vunpack.c.l.b16 %v2076
  %v2421 = vunpack.c.h.b16 %v2076
  %v2422 = vunpack.c.l.b16 %v2077
  %v2423 = vunpack.c.h.b16 %v2077
  %v2424 = vunpack.c.l.b16 %v2078
  %v2425 = vunpack.c.h.b16 %v2078
  %v2426 = vunpack.c.l.b16 %v2079
  %v2427 = vunpack.c.h.b16 %v2079
  %v2428 = vunpack.c.l.b16 %v2080
  %v2429 = vunpack.c.h.b16 %v2080
  %v2430 = vunpack.c.l.b16 %v2081
  %v2431 = vunpack.c.h.b16 %v2081
  %v2432 = vunpack.c.l.b16 %v2082
  %v2433 = vunpack.c.h.b16 %v2082
  %v2434 = vunpack.c.l.b16 %v2083
  %v2435 = vunpack.c.h.b16 %v2083
  %v2436 = vunpack.c.l.b16 %v2084
  %v2437 = vunpack.c.h.b16 %v2084
  %v2438 = vunpack.c.l.b16 %v2085
  %v2439 = vunpack.c.h.b16 %v2085
  %v2440 = vunpack.c.l.b16 %v2086
  %v2441 = vunpack.c.h.b16 %v2086
  %v2442 = vunpack.c.l.b16 %v2087
  %v2443 = vunpack.c.h.b16 %v2087
  %v2444 = vunpack.c.l.b16 %v2088
  %v2445 = vunpack.c.h.b16 %v2088
  %v2446 = vunpack.c.l.b16 %v2089
  %v2447 = vunpack.c.h.b16 %v2089
  %v2448 = vunpack.c.l.b16 %v2090
  %v2449 = vunpack.c.h.b16 %v2090
  %v2450 = vunpack.c.l.b16 %v2091
  %v2451 = vunpack.c.h.b16 %v2091
  %v2452 = vunpack.c.l.b16 %v2092
  %v2453 = vunpack.c.h.b16 %v2092
  %v2454 = vunpack.c.l.b16 %v2093
  %v2455 = vunpack.c.h.b16 %v2093
  %v2456 = vunpack.c.l.b16 %v2094
  %v2457 = vunpack.c.h.b16 %v2094
  %v2458 = vunpack.c.l.b16 %v2095
  %v2459 = vunpack.c.h.b16 %v2095
  %v2460 = vunpack.c.l.b16 %v2096
  %v2461 = vunpack.c.h.b16 %v2096
  %v2462 = vunpack.c.l.b16 %v2097
  %v2463 = vunpack.c.h.b16 %v2097
  %v2464 = vunpack.c.l.b16 %v2098
  %v2465 = vunpack.c.h.b16 %v2098
  %v2466 = vunpack.c.l.b16 %v2099
  %v2467 = vunpack.c.h.b16 %v2099
  %v2468 = vunpack.c.l.b16 %v2100
  %v2469 = vunpack.c.h.b16 %v2100
  %v2470 = vunpack.c.l.b16 %v2101
  %v2471 = vunpack.c.h.b16 %v2101
  %v2472 = vunpack.c.l.b16 %v2102
  %v2473 = vunpack.c.h.b16 %v2102
  %v2474 = vunpack.c.l.b16 %v2103
  %v2475 = vunpack.c.h.b16 %v2103
  %v2476 = vunpack.c.l.b16 %v2104
  %v2477 = vunpack.c.h.b16 %v2104
  %v2478 = vunpack.c.l.b16 %v2105
  %v2479 = vunpack.c.h.b16 %v2105
  %v2480 = vunpack.c.l.b16 %v2106
  %v2481 = vunpack.c.h.b16 %v2106
  %v2482 = vunpack.c.l.b16 %v2107
  %v2483 = vunpack.c.h.b16 %v2107
  %v2484 = vunpack.c.l.b16 %v2108
  %v2485 = vunpack.c.h.b16 %v2108
  %v2486 = vunpack.c.l.b16 %v2109
  %v2487 = vunpack.c.h.b16 %v2109
  %v2488 = vunpack.c.l.b16 %v2110
  %v2489 = vunpack.c.h.b16 %v2110
  %v2490 = vunpack.c.l.b16 %v2111
  %v2491 = vunpack.c.h.b16 %v2111
  %v2492 = vunpack.c.l.b16 %v2112
  %v2493 = vunpack.c.h.b16 %v2112
  %v2494 = vunpack.c.l.b16 %v2113
  %v2495 = vunpack.c.h.b16 %v2113
  %v2496 = vunpack.c.l.b16 %v2114
  %v2497 = vunpack.c.h.b16 %v2114
  %v2498 = vunpack.c.l.b16 %v2115
  %v2499 = vunpack.c.h.b16 %v2115
  %v2500 = vunpack.c.l.b16 %v2116
  %v2501 = vunpack.c.h.b16 %v2116
  %v2502 = vunpack.c.l.b16 %v2117
  %v2503 = vunpack.c.h.b16 %v2117
  %v2504 = vunpack.c.l.b16 %v2118
  %v2505 = vunpack.c.h.b16 %v2118
  %v2506 = vunpack.c.l.b16 %v2119
  %v2507 = vunpack.c.h.b16 %v2119
  %v2508 = vunpack.c.l.b16 %v2120
  %v2509 = vunpack.c.h.b16 %v2120
  %v2510 = vunpack.c.l.b16 %v2121
  %v2511 = vunpack.c.h.b16 %v2121
  %v2512 = vunpack.c.l.b16 %v2122
  %v2513 = vunpack.c.h.b16 %v2122
  %v2514 = vunpack.c.l.b16 %v2123
  %v2515 = vunpack.c.h.b16 %v2123
  %v2516 = vunpack.c.l.b16 %v2124
  %v2517 = vunpack.c.h.b16 %v2124
  %v2518 = vunpack.c.l.b16 %v2125
  %v2519 = vunpack.c.h.b16 %v2125
  %v2520 = vunpack.c.l.b16 %v2126
  %v2521 = vunpack.c.h.b16 %v2126
  %v2522 = vunpack.c.l.b16 %v2127
  %v2523 = vunpack.c.h.b16 %v2127
  %v2524 = vunpack.c.l.b16 %v2128
  %v2525 = vunpack.c.h.b16 %v2128
  %v2526 = vunpack.c.l.b16 %v2129
  %v2527 = vunpack.c.h.b16 %v2129
  %v2528 = vunpack.c.l.b16 %v2130
  %v2529 = vunpack.c.h.b16 %v2130
  %v2530 = vunpack.c.l.b16 %v2131
  %v2531 = vunpack.c.h.b16 %v2131
  %v2532 = vunpack.c.l.b16 %v2132
  %v2533 = vunpack.c.h.b16 %v2132
  %v2534 = vunpack.c.l.b16 %v2133
  %v2535 = vunpack.c.h.b16 %v2133
  %v2536 = vunpack.c.l.b16 %v2134
  %v2537 = vunpack.c.h.b16 %v2134
  %v2538 = vunpack.c.l.b16 %v2135
  %v2539 = vunpack.c.h.b16 %v2135
  %v2540 = vunpack.c.l.b16 %v2136
  %v2541 = vunpack.c.h.b16 %v2136
  %v2542 = vunpack.c.l.b16 %v2137
  %v2543 = vunpack.c.h.b16 %v2137
  %v2544 = vunpack.c.l.b16 %v2138
  %v2545 = vunpack.c.h.b16 %v2138
  %v2546 = vunpack.c.l.b16 %v2139
  %v2547 = vunpack.c.h.b16 %v2139
  %v2548 = vunpack.c.l.b16 %v2140
  %v2549 = vunpack.c.h.b16 %v2140
  %v2550 = vunpack.c.l.b16 %v2141
  %v2551 = vunpack.c.h.b16 %v2141
  %v2552 = vunpack.c.l.b16 %v2142
  %v2553 = vunpack.c.h.b16 %v2142
  %v2554 = vunpack.c.l.b16 %v2143
  %v2555 = vunpack.c.h.b16 %v2143
  %v2556 = vunpack.c.l.b16 %v2144
  %v2557 = vunpack.c.h.b16 %v2144
  %v2558 = vunpack.c.l.b16 %v2145
  %v2559 = vunpack.c.h.b16 %v2145
  %v2560 = vunpack.c.l.b16 %v2146
  %v2561 = vunpack.c.h.b16 %v2146
  %v2562 = vunpack.c.l.b16 %v2147
  %v2563 = vunpack.c.h.b16 %v2147
  %v2564 = vunpack.c.l.b16 %v2148
  %v2565 = vunpack.c.h.b16 %v2148
  %v2566 = vunpack.c.l.b16 %v2149
  %v2567 = vunpack.c.h.b16 %v2149
  %v2568 = vunpack.c.l.b16 %v2150
  %v2569 = vunpack.c.h.b16 %v2150
  %v2570 = vunpack.c.l.b16 %v2151
  %v2571 = vunpack.c.h.b16 %v2151
  %v2572 = vunpack.c.l.b16 %v2152
  %v2573 = vunpack.c.h.b16 %v2152
  %v2574 = vunpack.c.l.b16 %v2153
  %v2575 = vunpack.c.h.b16 %v2153
  %v2576 = vunpack.c.l.b16 %v2154
  %v2577 = vunpack.c.h.b16 %v2154
  %v2578 = vunpack.c.l.b16 %v2155
  %v2579 = vunpack.c.h.b16 %v2155
  %v2580 = vunpack.c.l.b16 %v2156
  %v2581 = vunpack.c.h.b16 %v2156
  %v2582 = vunpack.c.l.b16 %v2157
  %v2583 = vunpack.c.h.b16 %v2157
  %v2584 = vunpack.c.l.b16 %v2158
  %v2585 = vunpack.c.h.b16 %v2158
  %v2586 = vunpack.c.l.b16 %v2159
  %v2587 = vunpack.c.h.b16 %v2159
  %v2588 = vunpack.c.l.b16 %v2160
  %v2589 = vunpack.c.h.b16 %v2160
  %v2590 = vunpack.c.l.b16 %v2161
  %v2591 = vunpack.c.h.b16 %v2161
  %v2592 = vunpack.c.l.b16 %v2162
  %v2593 = vunpack.c.h.b16 %v2162
  %v2594 = vunpack.c.l.b16 %v2163
  %v2595 = vunpack.c.h.b16 %v2163
  %v2596 = vunpack.c.l.b16 %v2164
  %v2597 = vunpack.c.h.b16 %v2164
  %v2598 = vunpack.c.l.b16 %v2165
  %v2599 = vunpack.c.h.b16 %v2165
  %v2600 = vunpack.c.l.b16 %v2166
  %v2601 = vunpack.c.h.b16 %v2166
  %v2602 = vunpack.c.l.b16 %v2167
  %v2603 = vunpack.c.h.b16 %v2167
  %v2604 = vunpack.c.l.b16 %v2168
  %v2605 = vunpack.c.h.b16 %v2168
  %v2606 = vunpack.c.l.b16 %v2169
  %v2607 = vunpack.c.h.b16 %v2169
  %v2608 = vunpack.c.l.b16 %v2170
  %v2609 = vunpack.c.h.b16 %v2170
  %v2610 = vunpack.c.l.b16 %v2171
  %v2611 = vunpack.c.h.b16 %v2171
  %v2612 = vunpack.c.l.b16 %v2172
  %v2613 = vunpack.c.h.b16 %v2172
  %v2614 = vunpack.c.l.b16 %v2173
  %v2615 = vunpack.c.h.b16 %v2173
  %v2616 = vunpack.c.l.b16 %v2174
  %v2617 = vunpack.c.h.b16 %v2174
  %v2618 = vunpack.c.l.b16 %v2175
  %v2619 = vunpack.c.h.b16 %v2175
  %v2620 = vunpack.c.l.b16 %v2176
  %v2621 = vunpack.c.h.b16 %v2176
  %v2622 = vunpack.c.l.b16 %v2177
  %v2623 = vunpack.c.h.b16 %v2177
  %v2624 = vunpack.c.l.b16 %v2178
  %v2625 = vunpack.c.h.b16 %v2178
  %v2626 = vunpack.c.l.b16 %v2179
  %v2627 = vunpack.c.h.b16 %v2179
  %v2628 = vunpack.c.l.b16 %v2180
  %v2629 = vunpack.c.h.b16 %v2180
  %v2630 = vunpack.c.l.b16 %v2181
  %v2631 = vunpack.c.h.b16 %v2181
  %v2632 = vunpack.c.l.b16 %v2182
  %v2633 = vunpack.c.h.b16 %v2182
  %v2634 = vunpack.c.l.b16 %v2183
  %v2635 = vunpack.c.h.b16 %v2183
  %v2636 = vunpack.c.l.b16 %v2184
  %v2637 = vunpack.c.h.b16 %v2184
  %v2638 = vunpack.c.l.b16 %v2185
  %v2639 = vunpack.c.h.b16 %v2185
  %v2640 = vunpack.c.l.b16 %v2186
  %v2641 = vunpack.c.h.b16 %v2186
  %v2642 = vunpack.c.l.b16 %v2187
  %v2643 = vunpack.c.h.b16 %v2187
  %v2644 = vunpack.c.l.b16 %v2188
  %v2645 = vunpack.c.h.b16 %v2188
  %v2646 = vunpack.c.l.b16 %v2189
  %v2647 = vunpack.c.h.b16 %v2189
  %v2648 = vunpack.c.l.b16 %v2190
  %v2649 = vunpack.c.h.b16 %v2190
  %v2650 = vunpack.c.l.b16 %v2191
  %v2651 = vunpack.c.h.b16 %v2191
  %v2652 = vunpack.c.l.b16 %v2192
  %v2653 = vunpack.c.h.b16 %v2192
  %v2654 = vunpack.c.l.b16 %v2193
  %v2655 = vunpack.c.h.b16 %v2193
  %v2656 = vunpack.c.l.b16 %v2194
  %v2657 = vunpack.c.h.b16 %v2194
  %v2658 = vunpack.c.l.b16 %v2195
  %v2659 = vunpack.c.h.b16 %v2195
  %v2660 = vunpack.c.l.b16 %v2196
  %v2661 = vunpack.c.h.b16 %v2196
  %v2662 = vunpack.c.l.b16 %v2197
  %v2663 = vunpack.c.h.b16 %v2197
  %v2664 = vunpack.c.l.b16 %v2198
  %v2665 = vunpack.c.h.b16 %v2198
  %v2666 = vunpack.c.l.b16 %v2199
  %v2667 = vunpack.c.h.b16 %v2199
  %v2668 = vunpack.c.l.b16 %v2200
  %v2669 = vunpack.c.h.b16 %v2200
  %v2670 = vunpack.c.l.b16 %v2201
  %v2671 = vunpack.c.h.b16 %v2201
  %v2672 = vunpack.c.l.b16 %v2202
  %v2673 = vunpack.c.h.b16 %v2202
  %v2674 = vunpack.c.l.b16 %v2203
  %v2675 = vunpack.c.h.b16 %v2203
  %v2676 = vunpack.c.l.b16 %v2204
  %v2677 = vunpack.c.h.b16 %v2204
  %v2678 = vunpack.c.l.b16 %v2205
  %v2679 = vunpack.c.h.b16 %v2205
  %v2680 = vunpack.c.l.b16 %v2206
  %v2681 = vunpack.c.h.b16 %v2206
  %v2682 = vunpack.c.l.b16 %v2207
  %v2683 = vunpack.c.h.b16 %v2207
  %v2684 = vunpack.c.l.b16 %v2208
  %v2685 = vunpack.c.h.b16 %v2208
  %v2686 = vunpack.c.l.b16 %v2209
  %v2687 = vunpack.c.h.b16 %v2209
  %v2688 = vunpack.c.l.b16 %v2210
  %v2689 = vunpack.c.h.b16 %v2210
  %v2690 = vunpack.c.l.b16 %v2211
  %v2691 = vunpack.c.h.b16 %v2211
  %v2692 = vunpack.c.l.b16 %v2212
  %v2693 = vunpack.c.h.b16 %v2212
  %v2694 = vunpack.c.l.b16 %v2213
  %v2695 = vunpack.c.h.b16 %v2213
  %v2696 = vunpack.c.l.b16 %v2214
  %v2697 = vunpack.c.h.b16 %v2214
  %v2698 = vunpack.c.l.b16 %v2215
  %v2699 = vunpack.c.h.b16 %v2215
  %v2700 = vunpack.c.l.b16 %v2216
  %v2701 = vunpack.c.h.b16 %v2216
  %v2702 = vunpack.c.l.b16 %v2217
  %v2703 = vunpack.c.h.b16 %v2217
  %v2704 = vunpack.c.l.b16 %v2218
  %v2705 = vunpack.c.h.b16 %v2218
  %v2706 = vunpack.c.l.b16 %v2219
  %v2707 = vunpack.c.h.b16 %v2219
  %v2708 = vunpack.c.l.b16 %v2220
  %v2709 = vunpack.c.h.b16 %v2220
  %v2710 = vunpack.c.l.b16 %v2221
  %v2711 = vunpack.c.h.b16 %v2221
  %v2712 = vunpack.c.l.b16 %v2222
  %v2713 = vunpack.c.h.b16 %v2222
  %v2714 = vunpack.c.l.b16 %v2223
  %v2715 = vunpack.c.h.b16 %v2223
  %v2716 = vunpack.c.l.b16 %v2224
  %v2717 = vunpack.c.h.b16 %v2224
  %v2718 = vunpack.c.l.b16 %v2225
  %v2719 = vunpack.c.h.b16 %v2225
  %v2720 = vunpack.c.l.b16 %v2226
  %v2721 = vunpack.c.h.b16 %v2226
  %v2722 = vunpack.c.l.b16 %v2227
  %v2723 = vunpack.c.h.b16 %v2227
  %v2724 = vunpack.c.l.b16 %v2228
  %v2725 = vunpack.c.h.b16 %v2228
  %v2726 = vunpack.c.l.b16 %v2229
  %v2727 = vunpack.c.h.b16 %v2229
  %v2728 = vunpack.c.l.b16 %v2230
  %v2729 = vunpack.c.h.b16 %v2230
  %v2730 = vunpack.c.l.b16 %v2231
  %v2731 = vunpack.c.h.b16 %v2231
  %v2732 = vunpack.c.l.b16 %v2232
  %v2733 = vunpack.c.h.b16 %v2232
  %v2734 = vunpack.c.l.b16 %v2233
  %v2735 = vunpack.c.h.b16 %v2233
  %v2736 = vpack.c.b16 %v2420, %v2416
  %v2737 = vpack.c.b16 %v2421, %v2417
  %v2738 = vpack.c.b16 %v2422, %v2418
  %v2739 = vpack.c.b16 %v2423, %v2419
  %v2740 = vpack.c.b16 %v2428, %v2424
  %v2741 = vpack.c.b16 %v2429, %v2425
  %v2742 = vpack.c.b16 %v2430, %v2426
  %v2743 = vpack.c.b16 %v2431, %v2427
  %v2744 = vpack.c.b16 %v2436, %v2432
  %v2745 = vpack.c.b16 %v2437, %v2433
  %v2746 = vpack.c.b16 %v2438, %v2434
  %v2747 = vpack.c.b16 %v2439, %v2435
  %v2748 = vpack.c.b16 %v2444, %v2440
  %v2749 = vpack.c.b16 %v2445, %v2441
  %v2750 = vpack.c.b16 %v2446, %v2442
  %v2751 = vpack.c.b16 %v2447, %v2443
  %v2752 = vpack.c.b16 %v2452, %v2448
  %v2753 = vpack.c.b16 %v2453, %v2449
  %v2754 = vpack.c.b16 %v2454, %v2450
  %v2755 = vpack.c.b16 %v2455, %v2451
  %v2756 = vpack.c.b16 %v2460, %v2456
  %v2757 = vpack.c.b16 %v2461, %v2457
  %v2758 = vpack.c.b16 %v2462, %v2458
  %v2759 = vpack.c.b16 %v2463, %v2459
  %v2760 = vpack.c.b16 %v2468, %v2464
  %v2761 = vpack.c.b16 %v2469, %v2465
  %v2762 = vpack.c.b16 %v2470, %v2466
  %v2763 = vpack.c.b16 %v2471, %v2467
  %v2764 = vpack.c.b16 %v2476, %v2472
  %v2765 = vpack.c.b16 %v2477, %v2473
  %v2766 = vpack.c.b16 %v2478, %v2474
  %v2767 = vpack.c.b16 %v2479, %v2475
  %v2768 = vpack.c.b16 %v2484, %v2480
  %v2769 = vpack.c.b16 %v2485, %v2481
  %v2770 = vpack.c.b16 %v2486, %v2482
  %v2771 = vpack.c.b16 %v2487, %v2483
  %v2772 = vpack.c.b16 %v2492, %v2488
  %v2773 = vpack.c.b16 %v2493, %v2489
  %v2774 = vpack.c.b16 %v2494, %v2490
  %v2775 = vpack.c.b16 %v2495, %v2491
  %v2776 = vpack.c.b16 %v2500, %v2496
  %v2777 = vpack.c.b16 %v2501, %v2497
  %v2778 = vpack.c.b16 %v2502, %v2498
  %v2779 = vpack.c.b16 %v2503, %v2499
  %v2780 = vpack.c.b16 %v2508, %v2504
  %v2781 = vpack.c.b16 %v2509, %v2505
  %v2782 = vpack.c.b16 %v2510, %v2506
  %v2783 = vpack.c.b16 %v2511, %v2507
  %v2784 = vpack.c.b16 %v2516, %v2512
  %v2785 = vpack.c.b16 %v2517, %v2513
  %v2786 = vpack.c.b16 %v2518, %v2514
  %v2787 = vpack.c.b16 %v2519, %v2515
  %v2788 = vpack.c.b16 %v2524, %v2520
  %v2789 = vpack.c.b16 %v2525, %v2521
  %v2790 = vpack.c.b16 %v2526, %v2522
  %v2791 = vpack.c.b16 %v2527, %v2523
  %v2792 = vpack.c.b16 %v2532, %v2528
  %v2793 = vpack.c.b16 %v2533, %v2529
  %v2794 = vpack.c.b16 %v2534, %v2530
  %v2795 = vpack.c.b16 %v2535, %v2531
  %v2796 = vpack.c.b16 %v2540, %v2536
  %v2797 = vpack.c.b16 %v2541, %v2537
  %v2798 = vpack.c.b16 %v2542, %v2538
  %v2799 = vpack.c.b16 %v2543, %v2539
  %v2800 = vpack.c.b16 %v2548, %v2544
  %v2801 = vpack.c.b16 %v2549, %v2545
  %v2802 = vpack.c.b16 %v2550, %v2546
  %v2803 = vpack.c.b16 %v2551, %v2547
  %v2804 = vpack.c.b16 %v2556, %v2552
  %v2805 = vpack.c.b16 %v2557, %v2553
  %v2806 = vpack.c.b16 %v2558, %v2554
  %v2807 = vpack.c.b16 %v2559, %v2555
  %v2808 = vpack.c.b16 %v2564, %v2560
  %v2809 = vpack.c.b16 %v2565, %v2561
  %v2810 = vpack.c.b16 %v2566, %v2562
  %v2811 = vpack.c.b16 %v2567, %v2563
  %v2812 = vpack.c.b16 %v2572, %v2568
  %v2813 = vpack.c.b16 %v2573, %v2569
  %v2814 = vpack.c.b16 %v2574, %v2570
  %v2815 = vpack.c.b16 %v2575, %v2571
  %v2816 = vpack.c.b16 %v2580, %v2576
  %v2817 = vpack.c.b16 %v2581, %v2577
  %v2818 = vpack.c.b16 %v2582, %v2578
  %v2819 = vpack.c.b16 %v2583, %v2579
  %v2820 = vpack.c.b16 %v2588, %v2584
  %v2821 = vpack.c.b16 %v2589, %v2585
  %v2822 = vpack.c.b16 %v2590, %v2586
  %v2823 = vpack.c.b16 %v2591, %v2587
  %v2824 = vpack.c.b16 %v2596, %v2592
  %v2825 = vpack.c.b16 %v2597, %v2593
  %v2826 = vpack.c.b16 %v2598, %v2594
  %v2827 = vpack.c.b16 %v2599, %v2595
  %v2828 = vpack.c.b16 %v2604, %v2600
  %v2829 = vpack.c.b16 %v2605, %v2601
  %v2830 = vpack.c.b16 %v2606, %v2602
  %v2831 = vpack.c.b16 %v2607, %v2603
  %v2832 = vpack.c.b16 %v2612, %v2608
  %v2833 = vpack.c.b16 %v2613, %v2609
  %v2834 = vpack.c.b16 %v2614, %v2610
  %v2835 = vpack.c.b16 %v2615, %v2611
  %v2836 = vpack.c.b16 %v2620, %v2616
  %v2837 = vpack.c.b16 %v2621, %v2617
  %v2838 = vpack.c.b16 %v2622, %v2618
  %v2839 = vpack.c.b16 %v2623, %v2619
  %v2840 = vpack.c.b16 %v2628, %v2624
  %v2841 = vpack.c.b16 %v2629, %v2625
  %v2842 = vpack.c.b16 %v2630, %v2626
  %v2843 = vpack.c.b16 %v2631, %v2627
  %v2844 = vpack.c.b16 %v2636, %v2632
  %v2845 = vpack.c.b16 %v2637, %v2633
  %v2846 = vpack.c.b16 %v2638, %v2634
  %v2847 = vpack.c.b16 %v2639, %v2635
  %v2848 = vpack.c.b16 %v2644, %v2640
  %v2849 = vpack.c.b16 %v2645, %v2641
  %v2850 = vpack.c.b16 %v2646, %v2642
  %v2851 = vpack.c.b16 %v2647, %v2643
  %v2852 = vpack.c.b16 %v2652, %v2648
  %v2853 = vpack.c.b16 %v2653, %v2649
  %v2854 = vpack.c.b16 %v2654, %v2650
  %v2855 = vpack.c.b16 %v2655, %v2651
  %v2856 = vpack.c.b16 %v2660, %v2656
  %v2857 = vpack.c.b16 %v2661, %v2657
  %v2858 = vpack.c.b16 %v2662, %v2658
  %v2859 = vpack.c.b16 %v2663, %v2659
  %v2860 = vpack.c.b16 %v2668, %v2664
  %v2861 = vpack.c.b16 %v2669, %v2665
  %v2862 = vpack.c.b16 %v2670, %v2666
  %v2863 = vpack.c.b16 %v2671, %v2667
  %v2864 = vpack.c.b16 %v2676, %v2672
  %v2865 = vpack.c.b16 %v2677, %v2673
  %v2866 = vpack.c.b16 %v2678, %v2674
  %v2867 = vpack.c.b16 %v2679, %v2675
  %v2868 = vpack.c.b16 %v2684, %v2680
  %v2869 = vpack.c.b16 %v2685, %v2681
  %v2870 = vpack.c.b16 %v2686, %v2682
  %v2871 = vpack.c.b16 %v2687, %v2683
  %v2872 = vpack.c.b16 %v2692, %v2688
  %v2873 = vpack.c.b16 %v2693, %v2689
  %v2874 = vpack.c.b16 %v2694, %v2690
  %v2875 = vpack.c.b16 %v2695, %v2691
  %v2876 = vpack.c.b16 %v2700, %v2696
  %v2877 = vpack.c.b16 %v2701, %v2697
  %v2878 = vpack.c.b16 %v2702, %v2698
  %v2879 = vpack.c.b16 %v2703, %v2699
  %v2880 = vpack.c.b16 %v2708, %v2704
  %v2881 = vpack.c.b16 %v2709, %v2705
  %v2882 = vpack.c.b16 %v2710, %v2706
  %v2883 = vpack.c.b16 %v2711, %v2707
  %v2884 = vpack.c.b16 %v2716, %v2712
  %v2885 = vpack.c.b16 %v2717, %v2713
  %v2886 = vpack.c.b16 %v2718, %v2714
  %v2887 = vpack.c.b16 %v2719, %v2715
  %v2888 = vpack.c.b16 %v2724, %v2720
  %v2889 = vpack.c.b16 %v2725, %v2721
  %v2890 = vpack.c.b16 %v2726, %v2722
  %v2891 = vpack.c.b16 %v2727, %v2723
  %v2892 = vpack.c.b16 %v2732, %v2728
  %v2893 = vpack.c.b16 %v2733, %v2729
  %v2894 = vpack.c.b16 %v2734, %v2730
  %v2895 = vpack.c.b16 %v2735, %v2731
  %3056 = vmatprep.subr.bf16.mxu0 %v2737
  %3057 = vmatpush1.bf16.msra.mxu0 %v2736
  %3058 = vmatprep.subr.bf16.mxu0 %v2741
  %3059 = vmatpush1.bf16.msra.mxu0 %v2740
  %3060 = vmatprep.subr.bf16.mxu0 %v2745
  %3061 = vmatpush1.bf16.msra.mxu0 %v2744
  %3062 = vmatprep.subr.bf16.mxu0 %v2749
  %3063 = vmatpush1.bf16.msra.mxu0 %v2748
  %3064 = vmatprep.subr.bf16.mxu0 %v2753
  %3065 = vmatpush1.bf16.msra.mxu0 %v2752
  %3066 = vmatprep.subr.bf16.mxu0 %v2757
  %3067 = vmatpush1.bf16.msra.mxu0 %v2756
  %3068 = vmatprep.subr.bf16.mxu0 %v2761
  %3069 = vmatpush1.bf16.msra.mxu0 %v2760
  %3070 = vmatprep.subr.bf16.mxu0 %v2765
  %3071 = vmatpush1.bf16.msra.mxu0 %v2764
  %3072 = vmatprep.subr.bf16.mxu0 %v2769
  %3073 = vmatpush1.bf16.msra.mxu0 %v2768
  %3074 = vmatprep.subr.bf16.mxu0 %v2773
  %3075 = vmatpush1.bf16.msra.mxu0 %v2772
  %3076 = vmatprep.subr.bf16.mxu0 %v2777
  %3077 = vmatpush1.bf16.msra.mxu0 %v2776
  %3078 = vmatprep.subr.bf16.mxu0 %v2781
  %3079 = vmatpush1.bf16.msra.mxu0 %v2780
  %3080 = vmatprep.subr.bf16.mxu0 %v2785
  %3081 = vmatpush1.bf16.msra.mxu0 %v2784
  %3082 = vmatprep.subr.bf16.mxu0 %v2789
  %3083 = vmatpush1.bf16.msra.mxu0 %v2788
  %3084 = vmatprep.subr.bf16.mxu0 %v2793
  %3085 = vmatpush1.bf16.msra.mxu0 %v2792
  %3086 = vmatprep.subr.bf16.mxu0 %v2797
  %3087 = vmatpush1.bf16.msra.mxu0 %v2796
  %3088 = vmatprep.mubr.bf16.mxu0 %v2070
  %3089 = vmatmul.mubr.bf16.gmra.mrb[0].mxu0 %v2069
  %v3090 = vpop.f32.mrb[0].mxu0
  %v3091 = vadd.f32 %v2239, %v3090
  %v3092 = vpop.f32.mrb[0].mxu0
  %v3093 = vadd.f32 %v2243, %v3092
  %v3094 = vpop.f32.mrb[0].mxu0
  %v3095 = vadd.f32 %v2239, %v3094
  %v3096 = vpop.f32.mrb[0].mxu0
  %v3097 = vadd.f32 %v2243, %v3096
  %3098 = vdwg.mxu0
  %3099 = vmatprep.subr.bf16.mxu0 %v2801
  %3100 = vmatpush1.bf16.msra.mxu0 %v2800
  %3101 = vmatprep.subr.bf16.mxu0 %v2805
  %3102 = vmatpush1.bf16.msra.mxu0 %v2804
  %3103 = vmatprep.subr.bf16.mxu0 %v2809
  %3104 = vmatpush1.bf16.msra.mxu0 %v2808
  %3105 = vmatprep.subr.bf16.mxu0 %v2813
  %3106 = vmatpush1.bf16.msra.mxu0 %v2812
  %3107 = vmatprep.subr.bf16.mxu0 %v2817
  %3108 = vmatpush1.bf16.msra.mxu0 %v2816
  %3109 = vmatprep.subr.bf16.mxu0 %v2821
  %3110 = vmatpush1.bf16.msra.mxu0 %v2820
  %3111 = vmatprep.subr.bf16.mxu0 %v2825
  %3112 = vmatpush1.bf16.msra.mxu0 %v2824
  %3113 = vmatprep.subr.bf16.mxu0 %v2829
  %3114 = vmatpush1.bf16.msra.mxu0 %v2828
  %3115 = vmatprep.subr.bf16.mxu0 %v2833
  %3116 = vmatpush1.bf16.msra.mxu0 %v2832
  %3117 = vmatprep.subr.bf16.mxu0 %v2837
  %3118 = vmatpush1.bf16.msra.mxu0 %v2836
  %3119 = vmatprep.subr.bf16.mxu0 %v2841
  %3120 = vmatpush1.bf16.msra.mxu0 %v2840
  %3121 = vmatprep.subr.bf16.mxu0 %v2845
  %3122 = vmatpush1.bf16.msra.mxu0 %v2844
  %3123 = vmatprep.subr.bf16.mxu0 %v2849
  %3124 = vmatpush1.bf16.msra.mxu0 %v2848
  %3125 = vmatprep.subr.bf16.mxu0 %v2853
  %3126 = vmatpush1.bf16.msra.mxu0 %v2852
  %3127 = vmatprep.subr.bf16.mxu0 %v2857
  %3128 = vmatpush1.bf16.msra.mxu0 %v2856
  %3129 = vmatprep.subr.bf16.mxu0 %v2861
  %3130 = vmatpush1.bf16.msra.mxu0 %v2860
  %3131 = vmatprep.mubr.bf16.mxu0 %v2072
  %3132 = vmatmul.mubr.bf16.gmra.mrb[0].mxu0 %v2071
  %v3133 = vpop.f32.mrb[0].mxu0
  %v3134 = vadd.f32 %v3091, %v3133
  %v3135 = vpop.f32.mrb[0].mxu0
  %v3136 = vadd.f32 %v3093, %v3135
  %v3137 = vpop.f32.mrb[0].mxu0
  %v3138 = vadd.f32 %v3095, %v3137
  %v3139 = vpop.f32.mrb[0].mxu0
  %v3140 = vadd.f32 %v3097, %v3139
  %3141 = vdwg.mxu0
  %3142 = vmatprep.subr.bf16.mxu0 %v2865
  %3143 = vmatpush1.bf16.msra.mxu0 %v2864
  %3144 = vmatprep.subr.bf16.mxu0 %v2869
  %3145 = vmatpush1.bf16.msra.mxu0 %v2868
  %3146 = vmatprep.subr.bf16.mxu0 %v2873
  %3147 = vmatpush1.bf16.msra.mxu0 %v2872
  %3148 = vmatprep.subr.bf16.mxu0 %v2877
  %3149 = vmatpush1.bf16.msra.mxu0 %v2876
  %3150 = vmatprep.subr.bf16.mxu0 %v2881
  %3151 = vmatpush1.bf16.msra.mxu0 %v2880
  %3152 = vmatprep.subr.bf16.mxu0 %v2885
  %3153 = vmatpush1.bf16.msra.mxu0 %v2884
  %3154 = vmatprep.subr.bf16.mxu0 %v2889
  %3155 = vmatpush1.bf16.msra.mxu0 %v2888
  %3156 = vmatprep.subr.bf16.mxu0 %v2893
  %3157 = vmatpush1.bf16.msra.mxu0 %v2892
  %3158 = vmatprep.subr.bf16.mxu0 0
  %3159 = vmatpush1.bf16.msra.mxu0 0
  %3160 = vmatprep.subr.bf16.mxu0 0
  %3161 = vmatpush1.bf16.msra.mxu0 0
  %3162 = vmatprep.subr.bf16.mxu0 0
  %3163 = vmatpush1.bf16.msra.mxu0 0
  %3164 = vmatprep.subr.bf16.mxu0 0
  %3165 = vmatpush1.bf16.msra.mxu0 0
  %3166 = vmatprep.subr.bf16.mxu0 0
  %3167 = vmatpush1.bf16.msra.mxu0 0
  %3168 = vmatprep.subr.bf16.mxu0 0
  %3169 = vmatpush1.bf16.msra.mxu0 0
  %3170 = vmatprep.subr.bf16.mxu0 0
  %3171 = vmatpush1.bf16.msra.mxu0 0
  %3172 = vmatprep.subr.bf16.mxu0 0
  %3173 = vmatpush1.bf16.msra.mxu0 0
  %3174 = vmatprep.mubr.bf16.mxu0 0
  %3175 = vmatmul.mubr.bf16.gmra.mrb[0].mxu0 %v2073
  %v3176 = vpop.f32.mrb[0].mxu0
  %v3177 = vadd.f32 %v3134, %v3176
  %v3178 = vpop.f32.mrb[0].mxu0
  %v3179 = vadd.f32 %v3136, %v3178
  %v3180 = vpop.f32.mrb[0].mxu0
  %v3181 = vadd.f32 %v3138, %v3180
  %v3182 = vpop.f32.mrb[0].mxu0
  %v3183 = vadd.f32 %v3140, %v3182
  %3184 = vdwg.mxu0
  %3185 = vmatprep.subr.bf16.mxu0 %v2739
  %3186 = vmatpush1.bf16.msra.mxu0 %v2738
  %3187 = vmatprep.subr.bf16.mxu0 %v2743
  %3188 = vmatpush1.bf16.msra.mxu0 %v2742
  %3189 = vmatprep.subr.bf16.mxu0 %v2747
  %3190 = vmatpush1.bf16.msra.mxu0 %v2746
  %3191 = vmatprep.subr.bf16.mxu0 %v2751
  %3192 = vmatpush1.bf16.msra.mxu0 %v2750
  %3193 = vmatprep.subr.bf16.mxu0 %v2755
  %3194 = vmatpush1.bf16.msra.mxu0 %v2754
  %3195 = vmatprep.subr.bf16.mxu0 %v2759
  %3196 = vmatpush1.bf16.msra.mxu0 %v2758
  %3197 = vmatprep.subr.bf16.mxu0 %v2763
  %3198 = vmatpush1.bf16.msra.mxu0 %v2762
  %3199 = vmatprep.subr.bf16.mxu0 %v2767
  %3200 = vmatpush1.bf16.msra.mxu0 %v2766
  %3201 = vmatprep.subr.bf16.mxu0 %v2771
  %3202 = vmatpush1.bf16.msra.mxu0 %v2770
  %3203 = vmatprep.subr.bf16.mxu0 %v2775
  %3204 = vmatpush1.bf16.msra.mxu0 %v2774
  %3205 = vmatprep.subr.bf16.mxu0 %v2779
  %3206 = vmatpush1.bf16.msra.mxu0 %v2778
  %3207 = vmatprep.subr.bf16.mxu0 %v2783
  %3208 = vmatpush1.bf16.msra.mxu0 %v2782
  %3209 = vmatprep.subr.bf16.mxu0 %v2787
  %3210 = vmatpush1.bf16.msra.mxu0 %v2786
  %3211 = vmatprep.subr.bf16.mxu0 %v2791
  %3212 = vmatpush1.bf16.msra.mxu0 %v2790
  %3213 = vmatprep.subr.bf16.mxu0 %v2795
  %3214 = vmatpush1.bf16.msra.mxu0 %v2794
  %3215 = vmatprep.subr.bf16.mxu0 %v2799
  %3216 = vmatpush1.bf16.msra.mxu0 %v2798
  %3217 = vmatprep.mubr.bf16.mxu0 %v2070
  %3218 = vmatmul.mubr.bf16.gmra.mrb[0].mxu0 %v2069
  %v3219 = vpop.f32.mrb[0].mxu0
  %v3220 = vadd.f32 %v2247, %v3219
  %v3221 = vpop.f32.mrb[0].mxu0
  %v3222 = vadd.f32 %v2251, %v3221
  %v3223 = vpop.f32.mrb[0].mxu0
  %v3224 = vadd.f32 %v2247, %v3223
  %v3225 = vpop.f32.mrb[0].mxu0
  %v3226 = vadd.f32 %v2251, %v3225
  %3227 = vdwg.mxu0
  %3228 = vmatprep.subr.bf16.mxu0 %v2803
  %3229 = vmatpush1.bf16.msra.mxu0 %v2802
  %3230 = vmatprep.subr.bf16.mxu0 %v2807
  %3231 = vmatpush1.bf16.msra.mxu0 %v2806
  %3232 = vmatprep.subr.bf16.mxu0 %v2811
  %3233 = vmatpush1.bf16.msra.mxu0 %v2810
  %3234 = vmatprep.subr.bf16.mxu0 %v2815
  %3235 = vmatpush1.bf16.msra.mxu0 %v2814
  %3236 = vmatprep.subr.bf16.mxu0 %v2819
  %3237 = vmatpush1.bf16.msra.mxu0 %v2818
  %3238 = vmatprep.subr.bf16.mxu0 %v2823
  %3239 = vmatpush1.bf16.msra.mxu0 %v2822
  %3240 = vmatprep.subr.bf16.mxu0 %v2827
  %3241 = vmatpush1.bf16.msra.mxu0 %v2826
  %3242 = vmatprep.subr.bf16.mxu0 %v2831
  %3243 = vmatpush1.bf16.msra.mxu0 %v2830
  %3244 = vmatprep.subr.bf16.mxu0 %v2835
  %3245 = vmatpush1.bf16.msra.mxu0 %v2834
  %3246 = vmatprep.subr.bf16.mxu0 %v2839
  %3247 = vmatpush1.bf16.msra.mxu0 %v2838
  %3248 = vmatprep.subr.bf16.mxu0 %v2843
  %3249 = vmatpush1.bf16.msra.mxu0 %v2842
  %3250 = vmatprep.subr.bf16.mxu0 %v2847
  %3251 = vmatpush1.bf16.msra.mxu0 %v2846
  %3252 = vmatprep.subr.bf16.mxu0 %v2851
  %3253 = vmatpush1.bf16.msra.mxu0 %v2850
  %3254 = vmatprep.subr.bf16.mxu0 %v2855
  %3255 = vmatpush1.bf16.msra.mxu0 %v2854
  %3256 = vmatprep.subr.bf16.mxu0 %v2859
  %3257 = vmatpush1.bf16.msra.mxu0 %v2858
  %3258 = vmatprep.subr.bf16.mxu0 %v2863
  %3259 = vmatpush1.bf16.msra.mxu0 %v2862
  %3260 = vmatprep.mubr.bf16.mxu0 %v2072
  %3261 = vmatmul.mubr.bf16.gmra.mrb[0].mxu0 %v2071
  %v3262 = vpop.f32.mrb[0].mxu0
  %v3263 = vadd.f32 %v3220, %v3262
  %v3264 = vpop.f32.mrb[0].mxu0
  %v3265 = vadd.f32 %v3222, %v3264
  %v3266 = vpop.f32.mrb[0].mxu0
  %v3267 = vadd.f32 %v3224, %v3266
  %v3268 = vpop.f32.mrb[0].mxu0
  %v3269 = vadd.f32 %v3226, %v3268
  %3270 = vdwg.mxu0
  %3271 = vmatprep.subr.bf16.mxu0 %v2867
  %3272 = vmatpush1.bf16.msra.mxu0 %v2866
  %3273 = vmatprep.subr.bf16.mxu0 %v2871
  %3274 = vmatpush1.bf16.msra.mxu0 %v2870
  %3275 = vmatprep.subr.bf16.mxu0 %v2875
  %3276 = vmatpush1.bf16.msra.mxu0 %v2874
  %3277 = vmatprep.subr.bf16.mxu0 %v2879
  %3278 = vmatpush1.bf16.msra.mxu0 %v2878
  %3279 = vmatprep.subr.bf16.mxu0 %v2883
  %3280 = vmatpush1.bf16.msra.mxu0 %v2882
  %3281 = vmatprep.subr.bf16.mxu0 %v2887
  %3282 = vmatpush1.bf16.msra.mxu0 %v2886
  %3283 = vmatprep.subr.bf16.mxu0 %v2891
  %3284 = vmatpush1.bf16.msra.mxu0 %v2890
  %3285 = vmatprep.subr.bf16.mxu0 %v2895
  %3286 = vmatpush1.bf16.msra.mxu0 %v2894
  %3287 = vmatprep.subr.bf16.mxu0 0
  %3288 = vmatpush1.bf16.msra.mxu0 0
  %3289 = vmatprep.subr.bf16.mxu0 0
  %3290 = vmatpush1.bf16.msra.mxu0 0
  %3291 = vmatprep.subr.bf16.mxu0 0
  %3292 = vmatpush1.bf16.msra.mxu0 0
  %3293 = vmatprep.subr.bf16.mxu0 0
  %3294 = vmatpush1.bf16.msra.mxu0 0
  %3295 = vmatprep.subr.bf16.mxu0 0
  %3296 = vmatpush1.bf16.msra.mxu0 0
  %3297 = vmatprep.subr.bf16.mxu0 0
  %3298 = vmatpush1.bf16.msra.mxu0 0
  %3299 = vmatprep.subr.bf16.mxu0 0
  %3300 = vmatpush1.bf16.msra.mxu0 0
  %3301 = vmatprep.subr.bf16.mxu0 0
  %3302 = vmatpush1.bf16.msra.mxu0 0
  %3303 = vmatprep.mubr.bf16.mxu0 0
  %3304 = vmatmul.mubr.bf16.gmra.mrb[0].mxu0 %v2073
  %v3305 = vpop.f32.mrb[0].mxu0
  %v3306 = vadd.f32 %v3263, %v3305
  %v3307 = vpop.f32.mrb[0].mxu0
  %v3308 = vadd.f32 %v3265, %v3307
  %v3309 = vpop.f32.mrb[0].mxu0
  %v3310 = vadd.f32 %v3267, %v3309
  %v3311 = vpop.f32.mrb[0].mxu0
  %v3312 = vadd.f32 %v3269, %v3311
  %3313 = vdwg.mxu0
  %v3314 = vmul.f32 %v3177, 0.1
  %v3315 = vmul.f32 %v3179, 0.1
  %v3316 = vmul.f32 %v3306, 0.1
  %v3317 = vmul.f32 %v3308, 0.1
  %v3318 = vmul.f32 %v3181, 0.1
  %v3319 = vmul.f32 %v3183, 0.1
  %v3320 = vmul.f32 %v3310, 0.1
  %v3321 = vmul.f32 %v3312, 0.1
  %v3322 = vmax.f32 %v3177, %v3314
  %v3323 = vmax.f32 %v3179, %v3315
  %v3324 = vmax.f32 %v3306, %v3316
  %v3325 = vmax.f32 %v3308, %v3317
  %v3326 = vmax.f32 %v3181, %v3318
  %v3327 = vmax.f32 %v3183, %v3319
  %v3328 = vmax.f32 %v3310, %v3320
  %v3329 = vmax.f32 %v3312, %v3321
  %v3330 = vpack.c.bf16 %v3326, %v3322
  %v3331 = vpack.c.bf16 %v3327, %v3323
  %v3332 = vpack.c.bf16 %v3328, %v3324
  %v3333 = vpack.c.bf16 %v3329, %v3325
  %v3334 = vld [vmem:[%s3] sm:$0xff]
  %v3335 = vld [vmem:[%s3 + $0x8] sm:$0xff]
  %v3336 = vld [vmem:[%s3 + $0x10] sm:$0xff]
  %v3337 = vld [vmem:[%s3 + $0x18] sm:$0xff]
  %v3338 = vld [vmem:[%s3 + $0x20] sm:$0xff]
  %v3339 = vld [vmem:[%s3 + $0x28] sm:$0xff]
  %v3340 = vld [vmem:[%s3 + $0x30] sm:$0xff]
  %v3341 = vld [vmem:[%s3 + $0x38] sm:$0xff]
  %v3342 = vld [vmem:[%s3 + $0x40] sm:$0xff]
  %v3343 = vld [vmem:[%s3 + $0x48] sm:$0xff]
  %v3344 = vld [vmem:[%s3 + $0x50] sm:$0xff]
  %v3345 = vld [vmem:[%s3 + $0x58] sm:$0xff]
  %v3346 = vld [vmem:[%s3 + $0x60] sm:$0xff]
  %v3347 = vld [vmem:[%s3 + $0x68] sm:$0xff]
  %v3348 = vld [vmem:[%s3 + $0x70] sm:$0xff]
  %v3349 = vld [vmem:[%s3 + $0x78] sm:$0xff]
  %v3350 = vld [vmem:[%s3 + $0x80] sm:$0xff]
  %v3351 = vld [vmem:[%s3 + $0x88] sm:$0xff]
  %v3352 = vld [vmem:[%s3 + $0x90] sm:$0xff]
  %v3353 = vld [vmem:[%s3 + $0x98] sm:$0xff]
  %v3354 = vld [vmem:[%s3 + $0xa0] sm:$0xff]
  %v3355 = vld [vmem:[%s3 + $0xa8] sm:$0xff]
  %v3356 = vld [vmem:[%s3 + $0xb0] sm:$0xff]
  %v3357 = vld [vmem:[%s3 + $0xb8] sm:$0xff]
  %v3358 = vld [vmem:[%s3 + $0xc0] sm:$0xff]
  %v3359 = vld [vmem:[%s3 + $0xc8] sm:$0xff]
  %v3360 = vld [vmem:[%s3 + $0xd0] sm:$0xff]
  %v3361 = vld [vmem:[%s3 + $0xd8] sm:$0xff]
  %v3362 = vld [vmem:[%s3 + $0xe0] sm:$0xff]
  %v3363 = vld [vmem:[%s3 + $0xe8] sm:$0xff]
  %v3364 = vld [vmem:[%s3 + $0xf0] sm:$0xff]
  %v3365 = vld [vmem:[%s3 + $0xf8] sm:$0xff]
  %v3366 = vld [vmem:[%s3 + $0x100] sm:$0xff]
  %v3367 = vld [vmem:[%s3 + $0x108] sm:$0xff]
  %v3368 = vld [vmem:[%s3 + $0x110] sm:$0xff]
  %v3369 = vld [vmem:[%s3 + $0x118] sm:$0xff]
  %v3370 = vld [vmem:[%s3 + $0x120] sm:$0xff]
  %v3371 = vld [vmem:[%s3 + $0x128] sm:$0xff]
  %v3372 = vld [vmem:[%s3 + $0x130] sm:$0xff]
  %v3373 = vld [vmem:[%s3 + $0x138] sm:$0xff]
  %v3374 = vld [vmem:[%s3 + $0x140] sm:$0xff]
  %v3375 = vld [vmem:[%s3 + $0x148] sm:$0xff]
  %v3376 = vld [vmem:[%s3 + $0x150] sm:$0xff]
  %v3377 = vld [vmem:[%s3 + $0x158] sm:$0xff]
  %v3378 = vld [vmem:[%s3 + $0x160] sm:$0xff]
  %v3379 = vld [vmem:[%s3 + $0x168] sm:$0xff]
  %v3380 = vld [vmem:[%s3 + $0x170] sm:$0xff]
  %v3381 = vld [vmem:[%s3 + $0x178] sm:$0xff]
  %v3382 = vld [vmem:[%s3 + $0x180] sm:$0xff]
  %v3383 = vld [vmem:[%s3 + $0x188] sm:$0xff]
  %v3384 = vld [vmem:[%s3 + $0x190] sm:$0xff]
  %v3385 = vld [vmem:[%s3 + $0x198] sm:$0xff]
  %v3386 = vld [vmem:[%s3 + $0x1a0] sm:$0xff]
  %v3387 = vld [vmem:[%s3 + $0x1a8] sm:$0xff]
  %v3388 = vld [vmem:[%s3 + $0x1b0] sm:$0xff]
  %v3389 = vld [vmem:[%s3 + $0x1b8] sm:$0xff]
  %v3390 = vld [vmem:[%s3 + $0x1c0] sm:$0xff]
  %v3391 = vld [vmem:[%s3 + $0x1c8] sm:$0xff]
  %v3392 = vld [vmem:[%s3 + $0x1d0] sm:$0xff]
  %v3393 = vld [vmem:[%s3 + $0x1d8] sm:$0xff]
  %v3394 = vld [vmem:[%s3 + $0x1e0] sm:$0xff]
  %v3395 = vld [vmem:[%s3 + $0x1e8] sm:$0xff]
  %v3396 = vld [vmem:[%s3 + $0x1f0] sm:$0xff]
  %v3397 = vld [vmem:[%s3 + $0x1f8] sm:$0xff]
  %v3398 = vld [vmem:[%s13] sm:$0x3]
  %v3400 = vlaneseq
  %v3401 = vshrl.u32 %v3400, 7
  %v3402 = vsub.s32 0, %v3401
  %v3403 = vrot.slane %v3398, %v3402
  %v3404 = vlaneseq
  %v3405 = vshrl.u32 %v3404, 7
  %v3406 = vsub.s32 1, %v3405
  %v3407 = vrot.slane %v3398, %v3406
  %v3474 = vunpack.c.l.b16 %v3334
  %v3475 = vunpack.c.h.b16 %v3334
  %v3476 = vunpack.c.l.b16 %v3335
  %v3477 = vunpack.c.h.b16 %v3335
  %v3478 = vunpack.c.l.b16 %v3336
  %v3479 = vunpack.c.h.b16 %v3336
  %v3480 = vunpack.c.l.b16 %v3337
  %v3481 = vunpack.c.h.b16 %v3337
  %v3482 = vunpack.c.l.b16 %v3338
  %v3483 = vunpack.c.h.b16 %v3338
  %v3484 = vunpack.c.l.b16 %v3339
  %v3485 = vunpack.c.h.b16 %v3339
  %v3486 = vunpack.c.l.b16 %v3340
  %v3487 = vunpack.c.h.b16 %v3340
  %v3488 = vunpack.c.l.b16 %v3341
  %v3489 = vunpack.c.h.b16 %v3341
  %v3490 = vunpack.c.l.b16 %v3342
  %v3491 = vunpack.c.h.b16 %v3342
  %v3492 = vunpack.c.l.b16 %v3343
  %v3493 = vunpack.c.h.b16 %v3343
  %v3494 = vunpack.c.l.b16 %v3344
  %v3495 = vunpack.c.h.b16 %v3344
  %v3496 = vunpack.c.l.b16 %v3345
  %v3497 = vunpack.c.h.b16 %v3345
  %v3498 = vunpack.c.l.b16 %v3346
  %v3499 = vunpack.c.h.b16 %v3346
  %v3500 = vunpack.c.l.b16 %v3347
  %v3501 = vunpack.c.h.b16 %v3347
  %v3502 = vunpack.c.l.b16 %v3348
  %v3503 = vunpack.c.h.b16 %v3348
  %v3504 = vunpack.c.l.b16 %v3349
  %v3505 = vunpack.c.h.b16 %v3349
  %v3506 = vunpack.c.l.b16 %v3350
  %v3507 = vunpack.c.h.b16 %v3350
  %v3508 = vunpack.c.l.b16 %v3351
  %v3509 = vunpack.c.h.b16 %v3351
  %v3510 = vunpack.c.l.b16 %v3352
  %v3511 = vunpack.c.h.b16 %v3352
  %v3512 = vunpack.c.l.b16 %v3353
  %v3513 = vunpack.c.h.b16 %v3353
  %v3514 = vunpack.c.l.b16 %v3354
  %v3515 = vunpack.c.h.b16 %v3354
  %v3516 = vunpack.c.l.b16 %v3355
  %v3517 = vunpack.c.h.b16 %v3355
  %v3518 = vunpack.c.l.b16 %v3356
  %v3519 = vunpack.c.h.b16 %v3356
  %v3520 = vunpack.c.l.b16 %v3357
  %v3521 = vunpack.c.h.b16 %v3357
  %v3522 = vunpack.c.l.b16 %v3358
  %v3523 = vunpack.c.h.b16 %v3358
  %v3524 = vunpack.c.l.b16 %v3359
  %v3525 = vunpack.c.h.b16 %v3359
  %v3526 = vunpack.c.l.b16 %v3360
  %v3527 = vunpack.c.h.b16 %v3360
  %v3528 = vunpack.c.l.b16 %v3361
  %v3529 = vunpack.c.h.b16 %v3361
  %v3530 = vunpack.c.l.b16 %v3362
  %v3531 = vunpack.c.h.b16 %v3362
  %v3532 = vunpack.c.l.b16 %v3363
  %v3533 = vunpack.c.h.b16 %v3363
  %v3534 = vunpack.c.l.b16 %v3364
  %v3535 = vunpack.c.h.b16 %v3364
  %v3536 = vunpack.c.l.b16 %v3365
  %v3537 = vunpack.c.h.b16 %v3365
  %v3538 = vunpack.c.l.b16 %v3366
  %v3539 = vunpack.c.h.b16 %v3366
  %v3540 = vunpack.c.l.b16 %v3367
  %v3541 = vunpack.c.h.b16 %v3367
  %v3542 = vunpack.c.l.b16 %v3368
  %v3543 = vunpack.c.h.b16 %v3368
  %v3544 = vunpack.c.l.b16 %v3369
  %v3545 = vunpack.c.h.b16 %v3369
  %v3546 = vunpack.c.l.b16 %v3370
  %v3547 = vunpack.c.h.b16 %v3370
  %v3548 = vunpack.c.l.b16 %v3371
  %v3549 = vunpack.c.h.b16 %v3371
  %v3550 = vunpack.c.l.b16 %v3372
  %v3551 = vunpack.c.h.b16 %v3372
  %v3552 = vunpack.c.l.b16 %v3373
  %v3553 = vunpack.c.h.b16 %v3373
  %v3554 = vunpack.c.l.b16 %v3374
  %v3555 = vunpack.c.h.b16 %v3374
  %v3556 = vunpack.c.l.b16 %v3375
  %v3557 = vunpack.c.h.b16 %v3375
  %v3558 = vunpack.c.l.b16 %v3376
  %v3559 = vunpack.c.h.b16 %v3376
  %v3560 = vunpack.c.l.b16 %v3377
  %v3561 = vunpack.c.h.b16 %v3377
  %v3562 = vunpack.c.l.b16 %v3378
  %v3563 = vunpack.c.h.b16 %v3378
  %v3564 = vunpack.c.l.b16 %v3379
  %v3565 = vunpack.c.h.b16 %v3379
  %v3566 = vunpack.c.l.b16 %v3380
  %v3567 = vunpack.c.h.b16 %v3380
  %v3568 = vunpack.c.l.b16 %v3381
  %v3569 = vunpack.c.h.b16 %v3381
  %v3570 = vunpack.c.l.b16 %v3382
  %v3571 = vunpack.c.h.b16 %v3382
  %v3572 = vunpack.c.l.b16 %v3383
  %v3573 = vunpack.c.h.b16 %v3383
  %v3574 = vunpack.c.l.b16 %v3384
  %v3575 = vunpack.c.h.b16 %v3384
  %v3576 = vunpack.c.l.b16 %v3385
  %v3577 = vunpack.c.h.b16 %v3385
  %v3578 = vunpack.c.l.b16 %v3386
  %v3579 = vunpack.c.h.b16 %v3386
  %v3580 = vunpack.c.l.b16 %v3387
  %v3581 = vunpack.c.h.b16 %v3387
  %v3582 = vunpack.c.l.b16 %v3388
  %v3583 = vunpack.c.h.b16 %v3388
  %v3584 = vunpack.c.l.b16 %v3389
  %v3585 = vunpack.c.h.b16 %v3389
  %v3586 = vunpack.c.l.b16 %v3390
  %v3587 = vunpack.c.h.b16 %v3390
  %v3588 = vunpack.c.l.b16 %v3391
  %v3589 = vunpack.c.h.b16 %v3391
  %v3590 = vunpack.c.l.b16 %v3392
  %v3591 = vunpack.c.h.b16 %v3392
  %v3592 = vunpack.c.l.b16 %v3393
  %v3593 = vunpack.c.h.b16 %v3393
  %v3594 = vunpack.c.l.b16 %v3394
  %v3595 = vunpack.c.h.b16 %v3394
  %v3596 = vunpack.c.l.b16 %v3395
  %v3597 = vunpack.c.h.b16 %v3395
  %v3598 = vunpack.c.l.b16 %v3396
  %v3599 = vunpack.c.h.b16 %v3396
  %v3600 = vunpack.c.l.b16 %v3397
  %v3601 = vunpack.c.h.b16 %v3397
  %v3602 = vpack.c.b16 %v3476, %v3474
  %v3603 = vpack.c.b16 %v3477, %v3475
  %v3604 = vpack.c.b16 %v3480, %v3478
  %v3605 = vpack.c.b16 %v3481, %v3479
  %v3606 = vpack.c.b16 %v3484, %v3482
  %v3607 = vpack.c.b16 %v3485, %v3483
  %v3608 = vpack.c.b16 %v3488, %v3486
  %v3609 = vpack.c.b16 %v3489, %v3487
  %v3610 = vpack.c.b16 %v3492, %v3490
  %v3611 = vpack.c.b16 %v3493, %v3491
  %v3612 = vpack.c.b16 %v3496, %v3494
  %v3613 = vpack.c.b16 %v3497, %v3495
  %v3614 = vpack.c.b16 %v3500, %v3498
  %v3615 = vpack.c.b16 %v3501, %v3499
  %v3616 = vpack.c.b16 %v3504, %v3502
  %v3617 = vpack.c.b16 %v3505, %v3503
  %v3618 = vpack.c.b16 %v3508, %v3506
  %v3619 = vpack.c.b16 %v3509, %v3507
  %v3620 = vpack.c.b16 %v3512, %v3510
  %v3621 = vpack.c.b16 %v3513, %v3511
  %v3622 = vpack.c.b16 %v3516, %v3514
  %v3623 = vpack.c.b16 %v3517, %v3515
  %v3624 = vpack.c.b16 %v3520, %v3518
  %v3625 = vpack.c.b16 %v3521, %v3519
  %v3626 = vpack.c.b16 %v3524, %v3522
  %v3627 = vpack.c.b16 %v3525, %v3523
  %v3628 = vpack.c.b16 %v3528, %v3526
  %v3629 = vpack.c.b16 %v3529, %v3527
  %v3630 = vpack.c.b16 %v3532, %v3530
  %v3631 = vpack.c.b16 %v3533, %v3531
  %v3632 = vpack.c.b16 %v3536, %v3534
  %v3633 = vpack.c.b16 %v3537, %v3535
  %v3634 = vpack.c.b16 %v3540, %v3538
  %v3635 = vpack.c.b16 %v3541, %v3539
  %v3636 = vpack.c.b16 %v3544, %v3542
  %v3637 = vpack.c.b16 %v3545, %v3543
  %v3638 = vpack.c.b16 %v3548, %v3546
  %v3639 = vpack.c.b16 %v3549, %v3547
  %v3640 = vpack.c.b16 %v3552, %v3550
  %v3641 = vpack.c.b16 %v3553, %v3551
  %v3642 = vpack.c.b16 %v3556, %v3554
  %v3643 = vpack.c.b16 %v3557, %v3555
  %v3644 = vpack.c.b16 %v3560, %v3558
  %v3645 = vpack.c.b16 %v3561, %v3559
  %v3646 = vpack.c.b16 %v3564, %v3562
  %v3647 = vpack.c.b16 %v3565, %v3563
  %v3648 = vpack.c.b16 %v3568, %v3566
  %v3649 = vpack.c.b16 %v3569, %v3567
  %v3650 = vpack.c.b16 %v3572, %v3570
  %v3651 = vpack.c.b16 %v3573, %v3571
  %v3652 = vpack.c.b16 %v3576, %v3574
  %v3653 = vpack.c.b16 %v3577, %v3575
  %v3654 = vpack.c.b16 %v3580, %v3578
  %v3655 = vpack.c.b16 %v3581, %v3579
  %v3656 = vpack.c.b16 %v3584, %v3582
  %v3657 = vpack.c.b16 %v3585, %v3583
  %v3658 = vpack.c.b16 %v3588, %v3586
  %v3659 = vpack.c.b16 %v3589, %v3587
  %v3660 = vpack.c.b16 %v3592, %v3590
  %v3661 = vpack.c.b16 %v3593, %v3591
  %v3662 = vpack.c.b16 %v3596, %v3594
  %v3663 = vpack.c.b16 %v3597, %v3595
  %v3664 = vpack.c.b16 %v3600, %v3598
  %v3665 = vpack.c.b16 %v3601, %v3599
  %3730 = vmatprep.subr.bf16.mxu0 %v3603
  %3731 = vmatpush1.bf16.msra.mxu0 %v3602
  %3732 = vmatprep.subr.bf16.mxu0 %v3605
  %3733 = vmatpush1.bf16.msra.mxu0 %v3604
  %3734 = vmatprep.subr.bf16.mxu0 %v3607
  %3735 = vmatpush1.bf16.msra.mxu0 %v3606
  %3736 = vmatprep.subr.bf16.mxu0 %v3609
  %3737 = vmatpush1.bf16.msra.mxu0 %v3608
  %3738 = vmatprep.subr.bf16.mxu0 %v3611
  %3739 = vmatpush1.bf16.msra.mxu0 %v3610
  %3740 = vmatprep.subr.bf16.mxu0 %v3613
  %3741 = vmatpush1.bf16.msra.mxu0 %v3612
  %3742 = vmatprep.subr.bf16.mxu0 %v3615
  %3743 = vmatpush1.bf16.msra.mxu0 %v3614
  %3744 = vmatprep.subr.bf16.mxu0 %v3617
  %3745 = vmatpush1.bf16.msra.mxu0 %v3616
  %3746 = vmatprep.subr.bf16.mxu0 %v3619
  %3747 = vmatpush1.bf16.msra.mxu0 %v3618
  %3748 = vmatprep.subr.bf16.mxu0 %v3621
  %3749 = vmatpush1.bf16.msra.mxu0 %v3620
  %3750 = vmatprep.subr.bf16.mxu0 %v3623
  %3751 = vmatpush1.bf16.msra.mxu0 %v3622
  %3752 = vmatprep.subr.bf16.mxu0 %v3625
  %3753 = vmatpush1.bf16.msra.mxu0 %v3624
  %3754 = vmatprep.subr.bf16.mxu0 %v3627
  %3755 = vmatpush1.bf16.msra.mxu0 %v3626
  %3756 = vmatprep.subr.bf16.mxu0 %v3629
  %3757 = vmatpush1.bf16.msra.mxu0 %v3628
  %3758 = vmatprep.subr.bf16.mxu0 %v3631
  %3759 = vmatpush1.bf16.msra.mxu0 %v3630
  %3760 = vmatprep.subr.bf16.mxu0 %v3633
  %3761 = vmatpush1.bf16.msra.mxu0 %v3632
  %3762 = vmatprep.mubr.bf16.mxu0 %v3331
  %3763 = vmatmul.mubr.bf16.gmra.mrb[0].mxu0 %v3330
  %v3764 = vpop.f32.mrb[0].mxu0
  %v3765 = vadd.f32 %v3403, %v3764
  %v3766 = vpop.f32.mrb[0].mxu0
  %v3767 = vadd.f32 %v3407, %v3766
  %v3768 = vpop.f32.mrb[0].mxu0
  %v3769 = vadd.f32 %v3403, %v3768
  %v3770 = vpop.f32.mrb[0].mxu0
  %v3771 = vadd.f32 %v3407, %v3770
  %3772 = vdwg.mxu0
  %3773 = vmatprep.subr.bf16.mxu0 %v3635
  %3774 = vmatpush1.bf16.msra.mxu0 %v3634
  %3775 = vmatprep.subr.bf16.mxu0 %v3637
  %3776 = vmatpush1.bf16.msra.mxu0 %v3636
  %3777 = vmatprep.subr.bf16.mxu0 %v3639
  %3778 = vmatpush1.bf16.msra.mxu0 %v3638
  %3779 = vmatprep.subr.bf16.mxu0 %v3641
  %3780 = vmatpush1.bf16.msra.mxu0 %v3640
  %3781 = vmatprep.subr.bf16.mxu0 %v3643
  %3782 = vmatpush1.bf16.msra.mxu0 %v3642
  %3783 = vmatprep.subr.bf16.mxu0 %v3645
  %3784 = vmatpush1.bf16.msra.mxu0 %v3644
  %3785 = vmatprep.subr.bf16.mxu0 %v3647
  %3786 = vmatpush1.bf16.msra.mxu0 %v3646
  %3787 = vmatprep.subr.bf16.mxu0 %v3649
  %3788 = vmatpush1.bf16.msra.mxu0 %v3648
  %3789 = vmatprep.subr.bf16.mxu0 %v3651
  %3790 = vmatpush1.bf16.msra.mxu0 %v3650
  %3791 = vmatprep.subr.bf16.mxu0 %v3653
  %3792 = vmatpush1.bf16.msra.mxu0 %v3652
  %3793 = vmatprep.subr.bf16.mxu0 %v3655
  %3794 = vmatpush1.bf16.msra.mxu0 %v3654
  %3795 = vmatprep.subr.bf16.mxu0 %v3657
  %3796 = vmatpush1.bf16.msra.mxu0 %v3656
  %3797 = vmatprep.subr.bf16.mxu0 %v3659
  %3798 = vmatpush1.bf16.msra.mxu0 %v3658
  %3799 = vmatprep.subr.bf16.mxu0 %v3661
  %3800 = vmatpush1.bf16.msra.mxu0 %v3660
  %3801 = vmatprep.subr.bf16.mxu0 %v3663
  %3802 = vmatpush1.bf16.msra.mxu0 %v3662
  %3803 = vmatprep.subr.bf16.mxu0 %v3665
  %3804 = vmatpush1.bf16.msra.mxu0 %v3664
  %3805 = vmatprep.mubr.bf16.mxu0 %v3333
  %3806 = vmatmul.mubr.bf16.gmra.mrb[0].mxu0 %v3332
  %v3807 = vpop.f32.mrb[0].mxu0
  %v3808 = vadd.f32 %v3765, %v3807
  %v3809 = vpop.f32.mrb[0].mxu0
  %v3810 = vadd.f32 %v3767, %v3809
  %v3811 = vpop.f32.mrb[0].mxu0
  %v3812 = vadd.f32 %v3769, %v3811
  %v3813 = vpop.f32.mrb[0].mxu0
  %v3814 = vadd.f32 %v3771, %v3813
  %3815 = vdwg.mxu0
  %v3816 = vmul.f32 %v3808, 0.1
  %v3817 = vmul.f32 %v3810, 0.1
  %v3818 = vmul.f32 %v3812, 0.1
  %v3819 = vmul.f32 %v3814, 0.1
  %v3820 = vmax.f32 %v3808, %v3816
  %v3821 = vmax.f32 %v3810, %v3817
  %v3822 = vmax.f32 %v3812, %v3818
  %v3823 = vmax.f32 %v3814, %v3819
  %v3824 = vpack.c.bf16 %v3822, %v3820
  %v3825 = vpack.c.bf16 %v3823, %v3821
  %v3826 = vld [vmem:[%s4] sm:$0xf]
  %v3827 = vld [vmem:[%s4 + $0x4] sm:$0xf]
  %v3828 = vld [vmem:[%s4 + $0x8] sm:$0xf]
  %v3829 = vld [vmem:[%s4 + $0xc] sm:$0xf]
  %v3830 = vld [vmem:[%s4 + $0x10] sm:$0xf]
  %v3831 = vld [vmem:[%s4 + $0x14] sm:$0xf]
  %v3832 = vld [vmem:[%s4 + $0x18] sm:$0xf]
  %v3833 = vld [vmem:[%s4 + $0x1c] sm:$0xf]
  %v3834 = vld [vmem:[%s4 + $0x20] sm:$0xf]
  %v3835 = vld [vmem:[%s4 + $0x24] sm:$0xf]
  %v3836 = vld [vmem:[%s4 + $0x28] sm:$0xf]
  %v3837 = vld [vmem:[%s4 + $0x2c] sm:$0xf]
  %v3838 = vld [vmem:[%s4 + $0x30] sm:$0xf]
  %v3839 = vld [vmem:[%s4 + $0x34] sm:$0xf]
  %v3840 = vld [vmem:[%s4 + $0x38] sm:$0xf]
  %v3841 = vld [vmem:[%s4 + $0x3c] sm:$0xf]
  %v3842 = vld [vmem:[%s4 + $0x40] sm:$0xf]
  %v3843 = vld [vmem:[%s4 + $0x44] sm:$0xf]
  %v3844 = vld [vmem:[%s4 + $0x48] sm:$0xf]
  %v3845 = vld [vmem:[%s4 + $0x4c] sm:$0xf]
  %v3846 = vld [vmem:[%s4 + $0x50] sm:$0xf]
  %v3847 = vld [vmem:[%s4 + $0x54] sm:$0xf]
  %v3848 = vld [vmem:[%s4 + $0x58] sm:$0xf]
  %v3849 = vld [vmem:[%s4 + $0x5c] sm:$0xf]
  %v3850 = vld [vmem:[%s4 + $0x60] sm:$0xf]
  %v3851 = vld [vmem:[%s4 + $0x64] sm:$0xf]
  %v3852 = vld [vmem:[%s4 + $0x68] sm:$0xf]
  %v3853 = vld [vmem:[%s4 + $0x6c] sm:$0xf]
  %v3854 = vld [vmem:[%s4 + $0x70] sm:$0xf]
  %v3855 = vld [vmem:[%s4 + $0x74] sm:$0xf]
  %v3856 = vld [vmem:[%s4 + $0x78] sm:$0xf]
  %v3857 = vld [vmem:[%s4 + $0x7c] sm:$0xf]
  %v3858 = vld [vmem:[%s14] sm:$0x1]
  %v3860 = vlaneseq
  %v3861 = vshrl.u32 %v3860, 7
  %v3862 = vsub.s32 0, %v3861
  %v3863 = vrot.slane %v3858, %v3862
  %v3897 = vunpack.c.l.b16 %v3826
  %v3898 = vunpack.c.l.b16 %v3827
  %v3899 = vunpack.c.l.b16 %v3828
  %v3900 = vunpack.c.l.b16 %v3829
  %v3901 = vunpack.c.l.b16 %v3830
  %v3902 = vunpack.c.l.b16 %v3831
  %v3903 = vunpack.c.l.b16 %v3832
  %v3904 = vunpack.c.l.b16 %v3833
  %v3905 = vunpack.c.l.b16 %v3834
  %v3906 = vunpack.c.l.b16 %v3835
  %v3907 = vunpack.c.l.b16 %v3836
  %v3908 = vunpack.c.l.b16 %v3837
  %v3909 = vunpack.c.l.b16 %v3838
  %v3910 = vunpack.c.l.b16 %v3839
  %v3911 = vunpack.c.l.b16 %v3840
  %v3912 = vunpack.c.l.b16 %v3841
  %v3913 = vunpack.c.l.b16 %v3842
  %v3914 = vunpack.c.l.b16 %v3843
  %v3915 = vunpack.c.l.b16 %v3844
  %v3916 = vunpack.c.l.b16 %v3845
  %v3917 = vunpack.c.l.b16 %v3846
  %v3918 = vunpack.c.l.b16 %v3847
  %v3919 = vunpack.c.l.b16 %v3848
  %v3920 = vunpack.c.l.b16 %v3849
  %v3921 = vunpack.c.l.b16 %v3850
  %v3922 = vunpack.c.l.b16 %v3851
  %v3923 = vunpack.c.l.b16 %v3852
  %v3924 = vunpack.c.l.b16 %v3853
  %v3925 = vunpack.c.l.b16 %v3854
  %v3926 = vunpack.c.l.b16 %v3855
  %v3927 = vunpack.c.l.b16 %v3856
  %v3928 = vunpack.c.l.b16 %v3857
  %v3929 = vpack.c.b16 %v3898, %v3897
  %v3930 = vpack.c.b16 %v3900, %v3899
  %v3931 = vpack.c.b16 %v3902, %v3901
  %v3932 = vpack.c.b16 %v3904, %v3903
  %v3933 = vpack.c.b16 %v3906, %v3905
  %v3934 = vpack.c.b16 %v3908, %v3907
  %v3935 = vpack.c.b16 %v3910, %v3909
  %v3936 = vpack.c.b16 %v3912, %v3911
  %v3937 = vpack.c.b16 %v3914, %v3913
  %v3938 = vpack.c.b16 %v3916, %v3915
  %v3939 = vpack.c.b16 %v3918, %v3917
  %v3940 = vpack.c.b16 %v3920, %v3919
  %v3941 = vpack.c.b16 %v3922, %v3921
  %v3942 = vpack.c.b16 %v3924, %v3923
  %v3943 = vpack.c.b16 %v3926, %v3925
  %v3944 = vpack.c.b16 %v3928, %v3927
  %3961 = vmatprep.subr.bf16.mxu0 0
  %3962 = vmatpush1.bf16.msra.mxu0 %v3929
  %3963 = vmatprep.subr.bf16.mxu0 0
  %3964 = vmatpush1.bf16.msra.mxu0 %v3930
  %3965 = vmatprep.subr.bf16.mxu0 0
  %3966 = vmatpush1.bf16.msra.mxu0 %v3931
  %3967 = vmatprep.subr.bf16.mxu0 0
  %3968 = vmatpush1.bf16.msra.mxu0 %v3932
  %3969 = vmatprep.subr.bf16.mxu0 0
  %3970 = vmatpush1.bf16.msra.mxu0 %v3933
  %3971 = vmatprep.subr.bf16.mxu0 0
  %3972 = vmatpush1.bf16.msra.mxu0 %v3934
  %3973 = vmatprep.subr.bf16.mxu0 0
  %3974 = vmatpush1.bf16.msra.mxu0 %v3935
  %3975 = vmatprep.subr.bf16.mxu0 0
  %3976 = vmatpush1.bf16.msra.mxu0 %v3936
  %3977 = vmatprep.subr.bf16.mxu0 0
  %3978 = vmatpush1.bf16.msra.mxu0 %v3937
  %3979 = vmatprep.subr.bf16.mxu0 0
  %3980 = vmatpush1.bf16.msra.mxu0 %v3938
  %3981 = vmatprep.subr.bf16.mxu0 0
  %3982 = vmatpush1.bf16.msra.mxu0 %v3939
  %3983 = vmatprep.subr.bf16.mxu0 0
  %3984 = vmatpush1.bf16.msra.mxu0 %v3940
  %3985 = vmatprep.subr.bf16.mxu0 0
  %3986 = vmatpush1.bf16.msra.mxu0 %v3941
  %3987 = vmatprep.subr.bf16.mxu0 0
  %3988 = vmatpush1.bf16.msra.mxu0 %v3942
  %3989 = vmatprep.subr.bf16.mxu0 0
  %3990 = vmatpush1.bf16.msra.mxu0 %v3943
  %3991 = vmatprep.subr.bf16.mxu0 0
  %3992 = vmatpush1.bf16.msra.mxu0 %v3944
  %3993 = vmatprep.mubr.bf16.mxu0 %v3825
  %3994 = vmatmul.mubr.bf16.gmra.mrb[0].mxu0 %v3824
  %v3995 = vpop.f32.mrb[0].mxu0
  %v3996 = vadd.f32 %v3863, %v3995
  %v3997 = vpop.f32.mrb[0].mxu0
  %v3998 = vpop.f32.mrb[0].mxu0
  %v3999 = vadd.f32 %v3863, %v3998
  %v4000 = vpop.f32.mrb[0].mxu0
  %4001 = vdwg.mxu0
  %v4002 = vmul.f32 %v3996, 0.1
  %v4003 = vmul.f32 %v3999, 0.1
  %v4004 = vmax.f32 %v3996, %v4002
  %v4005 = vmax.f32 %v3999, %v4003
  %v4006 = vpack.c.bf16 %v4005, %v4004
  %v4007 = vld [vmem:[%s5] sm:$0xf]
  %v4008 = vld [vmem:[%s5 + $0x4] sm:$0xf]
  %v4009 = vld [vmem:[%s5 + $0x8] sm:$0xf]
  %v4010 = vld [vmem:[%s5 + $0xc] sm:$0xf]
  %v4011 = vld [vmem:[%s5 + $0x10] sm:$0xf]
  %v4012 = vld [vmem:[%s5 + $0x14] sm:$0xf]
  %v4013 = vld [vmem:[%s5 + $0x18] sm:$0xf]
  %v4014 = vld [vmem:[%s5 + $0x1c] sm:$0xf]
  %v4015 = vld [vmem:[%s5 + $0x20] sm:$0xf]
  %v4016 = vld [vmem:[%s5 + $0x24] sm:$0xf]
  %v4017 = vld [vmem:[%s5 + $0x28] sm:$0xf]
  %v4018 = vld [vmem:[%s5 + $0x2c] sm:$0xf]
  %v4019 = vld [vmem:[%s5 + $0x30] sm:$0xf]
  %v4020 = vld [vmem:[%s5 + $0x34] sm:$0xf]
  %v4021 = vld [vmem:[%s5 + $0x38] sm:$0xf]
  %v4022 = vld [vmem:[%s5 + $0x3c] sm:$0xf]
  %v4023 = vld [vmem:[%s15] sm:$0x1]
  %v4025 = vlaneseq
  %v4026 = vshrl.u32 %v4025, 7
  %v4027 = vsub.s32 0, %v4026
  %v4028 = vrot.slane %v4023, %v4027
  %v4046 = vunpack.c.l.b16 %v4007
  %v4047 = vunpack.c.l.b16 %v4008
  %v4048 = vunpack.c.l.b16 %v4009
  %v4049 = vunpack.c.l.b16 %v4010
  %v4050 = vunpack.c.l.b16 %v4011
  %v4051 = vunpack.c.l.b16 %v4012
  %v4052 = vunpack.c.l.b16 %v4013
  %v4053 = vunpack.c.l.b16 %v4014
  %v4054 = vunpack.c.l.b16 %v4015
  %v4055 = vunpack.c.l.b16 %v4016
  %v4056 = vunpack.c.l.b16 %v4017
  %v4057 = vunpack.c.l.b16 %v4018
  %v4058 = vunpack.c.l.b16 %v4019
  %v4059 = vunpack.c.l.b16 %v4020
  %v4060 = vunpack.c.l.b16 %v4021
  %v4061 = vunpack.c.l.b16 %v4022
  %v4062 = vpack.c.b16 %v4047, %v4046
  %v4063 = vpack.c.b16 %v4049, %v4048
  %v4064 = vpack.c.b16 %v4051, %v4050
  %v4065 = vpack.c.b16 %v4053, %v4052
  %v4066 = vpack.c.b16 %v4055, %v4054
  %v4067 = vpack.c.b16 %v4057, %v4056
  %v4068 = vpack.c.b16 %v4059, %v4058
  %v4069 = vpack.c.b16 %v4061, %v4060
  %4078 = vmatprep.subr.bf16.mxu0 0
  %4079 = vmatpush1.bf16.msra.mxu0 %v4062
  %4080 = vmatprep.subr.bf16.mxu0 0
  %4081 = vmatpush1.bf16.msra.mxu0 %v4063
  %4082 = vmatprep.subr.bf16.mxu0 0
  %4083 = vmatpush1.bf16.msra.mxu0 %v4064
  %4084 = vmatprep.subr.bf16.mxu0 0
  %4085 = vmatpush1.bf16.msra.mxu0 %v4065
  %4086 = vmatprep.subr.bf16.mxu0 0
  %4087 = vmatpush1.bf16.msra.mxu0 %v4066
  %4088 = vmatprep.subr.bf16.mxu0 0
  %4089 = vmatpush1.bf16.msra.mxu0 %v4067
  %4090 = vmatprep.subr.bf16.mxu0 0
  %4091 = vmatpush1.bf16.msra.mxu0 %v4068
  %4092 = vmatprep.subr.bf16.mxu0 0
  %4093 = vmatpush1.bf16.msra.mxu0 %v4069
  %4094 = vmatprep.subr.bf16.mxu0 0
  %4095 = vmatpush1.bf16.msra.mxu0 0
  %4096 = vmatprep.subr.bf16.mxu0 0
  %4097 = vmatpush1.bf16.msra.mxu0 0
  %4098 = vmatprep.subr.bf16.mxu0 0
  %4099 = vmatpush1.bf16.msra.mxu0 0
  %4100 = vmatprep.subr.bf16.mxu0 0
  %4101 = vmatpush1.bf16.msra.mxu0 0
  %4102 = vmatprep.subr.bf16.mxu0 0
  %4103 = vmatpush1.bf16.msra.mxu0 0
  %4104 = vmatprep.subr.bf16.mxu0 0
  %4105 = vmatpush1.bf16.msra.mxu0 0
  %4106 = vmatprep.subr.bf16.mxu0 0
  %4107 = vmatpush1.bf16.msra.mxu0 0
  %4108 = vmatprep.subr.bf16.mxu0 0
  %4109 = vmatpush1.bf16.msra.mxu0 0
  %4110 = vmatprep.mubr.bf16.mxu0 0
  %4111 = vmatmul.mubr.bf16.gmra.mrb[0].mxu0 %v4006
  %v4112 = vpop.f32.mrb[0].mxu0
  %v4113 = vadd.f32 %v4028, %v4112
  %v4114 = vpop.f32.mrb[0].mxu0
  %v4115 = vpop.f32.mrb[0].mxu0
  %v4116 = vadd.f32 %v4028, %v4115
  %v4117 = vpop.f32.mrb[0].mxu0
  %4118 = vdwg.mxu0
  %v4119 = vmul.f32 %v4113, 0.1
  %v4120 = vmul.f32 %v4116, 0.1
  %v4121 = vmax.f32 %v4113, %v4119
  %v4122 = vmax.f32 %v4116, %v4120
  %v4123 = vpack.c.bf16 %v4122, %v4121
  %v4124 = vld [vmem:[%s6] sm:$0xf]
  %v4125 = vld [vmem:[%s6 + $0x4] sm:$0xf]
  %v4126 = vld [vmem:[%s6 + $0x8] sm:$0xf]
  %v4127 = vld [vmem:[%s6 + $0xc] sm:$0xf]
  %v4128 = vld [vmem:[%s6 + $0x10] sm:$0xf]
  %v4129 = vld [vmem:[%s6 + $0x14] sm:$0xf]
  %v4130 = vld [vmem:[%s6 + $0x18] sm:$0xf]
  %v4131 = vld [vmem:[%s6 + $0x1c] sm:$0xf]
  %v4132 = vld [vmem:[%s6 + $0x20] sm:$0xf]
  %v4133 = vld [vmem:[%s6 + $0x24] sm:$0xf]
  %v4134 = vld [vmem:[%s6 + $0x28] sm:$0xf]
  %v4135 = vld [vmem:[%s6 + $0x2c] sm:$0xf]
  %v4136 = vld [vmem:[%s6 + $0x30] sm:$0xf]
  %v4137 = vld [vmem:[%s6 + $0x34] sm:$0xf]
  %v4138 = vld [vmem:[%s6 + $0x38] sm:$0xf]
  %v4139 = vld [vmem:[%s6 + $0x3c] sm:$0xf]
  %v4140 = vld [vmem:[%s16] sm:$0x1]
  %v4142 = vlaneseq
  %v4143 = vshrl.u32 %v4142, 7
  %v4144 = vsub.s32 0, %v4143
  %v4145 = vrot.slane %v4140, %v4144
  %v4163 = vunpack.c.l.b16 %v4124
  %v4164 = vunpack.c.l.b16 %v4125
  %v4165 = vunpack.c.l.b16 %v4126
  %v4166 = vunpack.c.l.b16 %v4127
  %v4167 = vunpack.c.l.b16 %v4128
  %v4168 = vunpack.c.l.b16 %v4129
  %v4169 = vunpack.c.l.b16 %v4130
  %v4170 = vunpack.c.l.b16 %v4131
  %v4171 = vunpack.c.l.b16 %v4132
  %v4172 = vunpack.c.l.b16 %v4133
  %v4173 = vunpack.c.l.b16 %v4134
  %v4174 = vunpack.c.l.b16 %v4135
  %v4175 = vunpack.c.l.b16 %v4136
  %v4176 = vunpack.c.l.b16 %v4137
  %v4177 = vunpack.c.l.b16 %v4138
  %v4178 = vunpack.c.l.b16 %v4139
  %v4179 = vpack.c.b16 %v4164, %v4163
  %v4180 = vpack.c.b16 %v4166, %v4165
  %v4181 = vpack.c.b16 %v4168, %v4167
  %v4182 = vpack.c.b16 %v4170, %v4169
  %v4183 = vpack.c.b16 %v4172, %v4171
  %v4184 = vpack.c.b16 %v4174, %v4173
  %v4185 = vpack.c.b16 %v4176, %v4175
  %v4186 = vpack.c.b16 %v4178, %v4177
  %4195 = vmatprep.subr.bf16.mxu0 0
  %4196 = vmatpush1.bf16.msra.mxu0 %v4179
  %4197 = vmatprep.subr.bf16.mxu0 0
  %4198 = vmatpush1.bf16.msra.mxu0 %v4180
  %4199 = vmatprep.subr.bf16.mxu0 0
  %4200 = vmatpush1.bf16.msra.mxu0 %v4181
  %4201 = vmatprep.subr.bf16.mxu0 0
  %4202 = vmatpush1.bf16.msra.mxu0 %v4182
  %4203 = vmatprep.subr.bf16.mxu0 0
  %4204 = vmatpush1.bf16.msra.mxu0 %v4183
  %4205 = vmatprep.subr.bf16.mxu0 0
  %4206 = vmatpush1.bf16.msra.mxu0 %v4184
  %4207 = vmatprep.subr.bf16.mxu0 0
  %4208 = vmatpush1.bf16.msra.mxu0 %v4185
  %4209 = vmatprep.subr.bf16.mxu0 0
  %4210 = vmatpush1.bf16.msra.mxu0 %v4186
  %4211 = vmatprep.subr.bf16.mxu0 0
  %4212 = vmatpush1.bf16.msra.mxu0 0
  %4213 = vmatprep.subr.bf16.mxu0 0
  %4214 = vmatpush1.bf16.msra.mxu0 0
  %4215 = vmatprep.subr.bf16.mxu0 0
  %4216 = vmatpush1.bf16.msra.mxu0 0
  %4217 = vmatprep.subr.bf16.mxu0 0
  %4218 = vmatpush1.bf16.msra.mxu0 0
  %4219 = vmatprep.subr.bf16.mxu0 0
  %4220 = vmatpush1.bf16.msra.mxu0 0
  %4221 = vmatprep.subr.bf16.mxu0 0
  %4222 = vmatpush1.bf16.msra.mxu0 0
  %4223 = vmatprep.subr.bf16.mxu0 0
  %4224 = vmatpush1.bf16.msra.mxu0 0
  %4225 = vmatprep.subr.bf16.mxu0 0
  %4226 = vmatpush1.bf16.msra.mxu0 0
  %4227 = vmatprep.mubr.bf16.mxu0 0
  %4228 = vmatmul.mubr.bf16.gmra.mrb[0].mxu0 %v4123
  %v4229 = vpop.f32.mrb[0].mxu0
  %v4230 = vadd.f32 %v4145, %v4229
  %v4231 = vpop.f32.mrb[0].mxu0
  %v4232 = vpop.f32.mrb[0].mxu0
  %v4233 = vadd.f32 %v4145, %v4232
  %v4234 = vpop.f32.mrb[0].mxu0
  %4235 = vdwg.mxu0
  %v4236 = vmul.f32 %v4230, 0.1
  %v4237 = vmul.f32 %v4233, 0.1
  %v4238 = vmax.f32 %v4230, %v4236
  %v4239 = vmax.f32 %v4233, %v4237
  %v4240 = vpack.c.bf16 %v4239, %v4238
  %v4241 = vld [vmem:[%s7] sm:$0xff]
  %v4242 = vld [vmem:[%s7 + $0x8] sm:$0xff]
  %v4243 = vld [vmem:[%s7 + $0x10] sm:$0xff]
  %v4244 = vld [vmem:[%s7 + $0x18] sm:$0xff]
  %v4245 = vld [vmem:[%s7 + $0x20] sm:$0xff]
  %v4246 = vld [vmem:[%s7 + $0x28] sm:$0xff]
  %v4247 = vld [vmem:[%s7 + $0x30] sm:$0xff]
  %v4248 = vld [vmem:[%s7 + $0x38] sm:$0xff]
  %v4249 = vld [vmem:[%s7 + $0x40] sm:$0xff]
  %v4250 = vld [vmem:[%s7 + $0x48] sm:$0xff]
  %v4251 = vld [vmem:[%s7 + $0x50] sm:$0xff]
  %v4252 = vld [vmem:[%s7 + $0x58] sm:$0xff]
  %v4253 = vld [vmem:[%s7 + $0x60] sm:$0xff]
  %v4254 = vld [vmem:[%s7 + $0x68] sm:$0xff]
  %v4255 = vld [vmem:[%s7 + $0x70] sm:$0xff]
  %v4256 = vld [vmem:[%s7 + $0x78] sm:$0xff]
  %v4257 = vld [vmem:[%s17] sm:$0x3]
  %v4259 = vlaneseq
  %v4260 = vshrl.u32 %v4259, 7
  %v4261 = vsub.s32 0, %v4260
  %v4262 = vrot.slane %v4257, %v4261
  %v4263 = vlaneseq
  %v4264 = vshrl.u32 %v4263, 7
  %v4265 = vsub.s32 1, %v4264
  %v4266 = vrot.slane %v4257, %v4265
  %v4285 = vunpack.c.l.b16 %v4241
  %v4286 = vunpack.c.h.b16 %v4241
  %v4287 = vunpack.c.l.b16 %v4242
  %v4288 = vunpack.c.h.b16 %v4242
  %v4289 = vunpack.c.l.b16 %v4243
  %v4290 = vunpack.c.h.b16 %v4243
  %v4291 = vunpack.c.l.b16 %v4244
  %v4292 = vunpack.c.h.b16 %v4244
  %v4293 = vunpack.c.l.b16 %v4245
  %v4294 = vunpack.c.h.b16 %v4245
  %v4295 = vunpack.c.l.b16 %v4246
  %v4296 = vunpack.c.h.b16 %v4246
  %v4297 = vunpack.c.l.b16 %v4247
  %v4298 = vunpack.c.h.b16 %v4247
  %v4299 = vunpack.c.l.b16 %v4248
  %v4300 = vunpack.c.h.b16 %v4248
  %v4301 = vunpack.c.l.b16 %v4249
  %v4302 = vunpack.c.h.b16 %v4249
  %v4303 = vunpack.c.l.b16 %v4250
  %v4304 = vunpack.c.h.b16 %v4250
  %v4305 = vunpack.c.l.b16 %v4251
  %v4306 = vunpack.c.h.b16 %v4251
  %v4307 = vunpack.c.l.b16 %v4252
  %v4308 = vunpack.c.h.b16 %v4252
  %v4309 = vunpack.c.l.b16 %v4253
  %v4310 = vunpack.c.h.b16 %v4253
  %v4311 = vunpack.c.l.b16 %v4254
  %v4312 = vunpack.c.h.b16 %v4254
  %v4313 = vunpack.c.l.b16 %v4255
  %v4314 = vunpack.c.h.b16 %v4255
  %v4315 = vunpack.c.l.b16 %v4256
  %v4316 = vunpack.c.h.b16 %v4256
  %v4317 = vpack.c.b16 %v4287, %v4285
  %v4318 = vpack.c.b16 %v4288, %v4286
  %v4319 = vpack.c.b16 %v4291, %v4289
  %v4320 = vpack.c.b16 %v4292, %v4290
  %v4321 = vpack.c.b16 %v4295, %v4293
  %v4322 = vpack.c.b16 %v4296, %v4294
  %v4323 = vpack.c.b16 %v4299, %v4297
  %v4324 = vpack.c.b16 %v4300, %v4298
  %v4325 = vpack.c.b16 %v4303, %v4301
  %v4326 = vpack.c.b16 %v4304, %v4302
  %v4327 = vpack.c.b16 %v4307, %v4305
  %v4328 = vpack.c.b16 %v4308, %v4306
  %v4329 = vpack.c.b16 %v4311, %v4309
  %v4330 = vpack.c.b16 %v4312, %v4310
  %v4331 = vpack.c.b16 %v4315, %v4313
  %v4332 = vpack.c.b16 %v4316, %v4314
  %4349 = vmatprep.subr.bf16.mxu0 %v4318
  %4350 = vmatpush1.bf16.msra.mxu0 %v4317
  %4351 = vmatprep.subr.bf16.mxu0 %v4320
  %4352 = vmatpush1.bf16.msra.mxu0 %v4319
  %4353 = vmatprep.subr.bf16.mxu0 %v4322
  %4354 = vmatpush1.bf16.msra.mxu0 %v4321
  %4355 = vmatprep.subr.bf16.mxu0 %v4324
  %4356 = vmatpush1.bf16.msra.mxu0 %v4323
  %4357 = vmatprep.subr.bf16.mxu0 %v4326
  %4358 = vmatpush1.bf16.msra.mxu0 %v4325
  %4359 = vmatprep.subr.bf16.mxu0 %v4328
  %4360 = vmatpush1.bf16.msra.mxu0 %v4327
  %4361 = vmatprep.subr.bf16.mxu0 %v4330
  %4362 = vmatpush1.bf16.msra.mxu0 %v4329
  %4363 = vmatprep.subr.bf16.mxu0 %v4332
  %4364 = vmatpush1.bf16.msra.mxu0 %v4331
  %4365 = vmatprep.subr.bf16.mxu0 0
  %4366 = vmatpush1.bf16.msra.mxu0 0
  %4367 = vmatprep.subr.bf16.mxu0 0
  %4368 = vmatpush1.bf16.msra.mxu0 0
  %4369 = vmatprep.subr.bf16.mxu0 0
  %4370 = vmatpush1.bf16.msra.mxu0 0
  %4371 = vmatprep.subr.bf16.mxu0 0
  %4372 = vmatpush1.bf16.msra.mxu0 0
  %4373 = vmatprep.subr.bf16.mxu0 0
  %4374 = vmatpush1.bf16.msra.mxu0 0
  %4375 = vmatprep.subr.bf16.mxu0 0
  %4376 = vmatpush1.bf16.msra.mxu0 0
  %4377 = vmatprep.subr.bf16.mxu0 0
  %4378 = vmatpush1.bf16.msra.mxu0 0
  %4379 = vmatprep.subr.bf16.mxu0 0
  %4380 = vmatpush1.bf16.msra.mxu0 0
  %4381 = vmatprep.mubr.bf16.mxu0 0
  %4382 = vmatmul.mubr.bf16.gmra.mrb[0].mxu0 %v4240
  %v4383 = vpop.f32.mrb[0].mxu0
  %v4384 = vadd.f32 %v4262, %v4383
  %v4385 = vpop.f32.mrb[0].mxu0
  %v4386 = vadd.f32 %v4266, %v4385
  %v4387 = vpop.f32.mrb[0].mxu0
  %v4388 = vadd.f32 %v4262, %v4387
  %v4389 = vpop.f32.mrb[0].mxu0
  %v4390 = vadd.f32 %v4266, %v4389
  %4391 = vdwg.mxu0
  %v4392 = vmul.f32 %v4384, 0.1
  %v4393 = vmul.f32 %v4386, 0.1
  %v4394 = vmul.f32 %v4388, 0.1
  %v4395 = vmul.f32 %v4390, 0.1
  %v4396 = vmax.f32 %v4384, %v4392
  %v4397 = vmax.f32 %v4386, %v4393
  %v4398 = vmax.f32 %v4388, %v4394
  %v4399 = vmax.f32 %v4390, %v4395
  %v4400 = vpack.c.bf16 %v4398, %v4396
  %v4401 = vpack.c.bf16 %v4399, %v4397
  %v4402 = vld [vmem:[%s8] sm:$0xff]
  %v4403 = vld [vmem:[%s8 + $0x8] sm:$0xff]
  %v4404 = vld [vmem:[%s8 + $0x10] sm:$0xff]
  %v4405 = vld [vmem:[%s8 + $0x18] sm:$0xff]
  %v4406 = vld [vmem:[%s8 + $0x20] sm:$0xff]
  %v4407 = vld [vmem:[%s8 + $0x28] sm:$0xff]
  %v4408 = vld [vmem:[%s8 + $0x30] sm:$0xff]
  %v4409 = vld [vmem:[%s8 + $0x38] sm:$0xff]
  %v4410 = vld [vmem:[%s8 + $0x40] sm:$0xff]
  %v4411 = vld [vmem:[%s8 + $0x48] sm:$0xff]
  %v4412 = vld [vmem:[%s8 + $0x50] sm:$0xff]
  %v4413 = vld [vmem:[%s8 + $0x58] sm:$0xff]
  %v4414 = vld [vmem:[%s8 + $0x60] sm:$0xff]
  %v4415 = vld [vmem:[%s8 + $0x68] sm:$0xff]
  %v4416 = vld [vmem:[%s8 + $0x70] sm:$0xff]
  %v4417 = vld [vmem:[%s8 + $0x78] sm:$0xff]
  %v4418 = vld [vmem:[%s8 + $0x80] sm:$0xff]
  %v4419 = vld [vmem:[%s8 + $0x88] sm:$0xff]
  %v4420 = vld [vmem:[%s8 + $0x90] sm:$0xff]
  %v4421 = vld [vmem:[%s8 + $0x98] sm:$0xff]
  %v4422 = vld [vmem:[%s8 + $0xa0] sm:$0xff]
  %v4423 = vld [vmem:[%s8 + $0xa8] sm:$0xff]
  %v4424 = vld [vmem:[%s8 + $0xb0] sm:$0xff]
  %v4425 = vld [vmem:[%s8 + $0xb8] sm:$0xff]
  %v4426 = vld [vmem:[%s8 + $0xc0] sm:$0xff]
  %v4427 = vld [vmem:[%s8 + $0xc8] sm:$0xff]
  %v4428 = vld [vmem:[%s8 + $0xd0] sm:$0xff]
  %v4429 = vld [vmem:[%s8 + $0xd8] sm:$0xff]
  %v4430 = vld [vmem:[%s8 + $0xe0] sm:$0xff]
  %v4431 = vld [vmem:[%s8 + $0xe8] sm:$0xff]
  %v4432 = vld [vmem:[%s8 + $0xf0] sm:$0xff]
  %v4433 = vld [vmem:[%s8 + $0xf8] sm:$0xff]
  %v4434 = vld [vmem:[%s8 + $0x100] sm:$0xff]
  %v4435 = vld [vmem:[%s8 + $0x108] sm:$0xff]
  %v4436 = vld [vmem:[%s8 + $0x110] sm:$0xff]
  %v4437 = vld [vmem:[%s8 + $0x118] sm:$0xff]
  %v4438 = vld [vmem:[%s8 + $0x120] sm:$0xff]
  %v4439 = vld [vmem:[%s8 + $0x128] sm:$0xff]
  %v4440 = vld [vmem:[%s8 + $0x130] sm:$0xff]
  %v4441 = vld [vmem:[%s8 + $0x138] sm:$0xff]
  %v4442 = vld [vmem:[%s8 + $0x140] sm:$0xff]
  %v4443 = vld [vmem:[%s8 + $0x148] sm:$0xff]
  %v4444 = vld [vmem:[%s8 + $0x150] sm:$0xff]
  %v4445 = vld [vmem:[%s8 + $0x158] sm:$0xff]
  %v4446 = vld [vmem:[%s8 + $0x160] sm:$0xff]
  %v4447 = vld [vmem:[%s8 + $0x168] sm:$0xff]
  %v4448 = vld [vmem:[%s8 + $0x170] sm:$0xff]
  %v4449 = vld [vmem:[%s8 + $0x178] sm:$0xff]
  %v4450 = vld [vmem:[%s8 + $0x180] sm:$0xff]
  %v4451 = vld [vmem:[%s8 + $0x188] sm:$0xff]
  %v4452 = vld [vmem:[%s8 + $0x190] sm:$0xff]
  %v4453 = vld [vmem:[%s8 + $0x198] sm:$0xff]
  %v4454 = vld [vmem:[%s8 + $0x1a0] sm:$0xff]
  %v4455 = vld [vmem:[%s8 + $0x1a8] sm:$0xff]
  %v4456 = vld [vmem:[%s8 + $0x1b0] sm:$0xff]
  %v4457 = vld [vmem:[%s8 + $0x1b8] sm:$0xff]
  %v4458 = vld [vmem:[%s8 + $0x1c0] sm:$0xff]
  %v4459 = vld [vmem:[%s8 + $0x1c8] sm:$0xff]
  %v4460 = vld [vmem:[%s8 + $0x1d0] sm:$0xff]
  %v4461 = vld [vmem:[%s8 + $0x1d8] sm:$0xff]
  %v4462 = vld [vmem:[%s8 + $0x1e0] sm:$0xff]
  %v4463 = vld [vmem:[%s8 + $0x1e8] sm:$0xff]
  %v4464 = vld [vmem:[%s8 + $0x1f0] sm:$0xff]
  %v4465 = vld [vmem:[%s8 + $0x1f8] sm:$0xff]
  %v4466 = vld [vmem:[%s18] sm:$0xf]
  %v4468 = vlaneseq
  %v4469 = vshrl.u32 %v4468, 7
  %v4470 = vsub.s32 0, %v4469
  %v4471 = vrot.slane %v4466, %v4470
  %v4472 = vlaneseq
  %v4473 = vshrl.u32 %v4472, 7
  %v4474 = vsub.s32 1, %v4473
  %v4475 = vrot.slane %v4466, %v4474
  %v4476 = vlaneseq
  %v4477 = vshrl.u32 %v4476, 7
  %v4478 = vsub.s32 2, %v4477
  %v4479 = vrot.slane %v4466, %v4478
  %v4480 = vlaneseq
  %v4481 = vshrl.u32 %v4480, 7
  %v4482 = vsub.s32 3, %v4481
  %v4483 = vrot.slane %v4466, %v4482
  %v4552 = vunpack.c.l.b16 %v4402
  %v4553 = vunpack.c.h.b16 %v4402
  %v4554 = vunpack.c.l.b16 %v4403
  %v4555 = vunpack.c.h.b16 %v4403
  %v4556 = vunpack.c.l.b16 %v4404
  %v4557 = vunpack.c.h.b16 %v4404
  %v4558 = vunpack.c.l.b16 %v4405
  %v4559 = vunpack.c.h.b16 %v4405
  %v4560 = vunpack.c.l.b16 %v4406
  %v4561 = vunpack.c.h.b16 %v4406
  %v4562 = vunpack.c.l.b16 %v4407
  %v4563 = vunpack.c.h.b16 %v4407
  %v4564 = vunpack.c.l.b16 %v4408
  %v4565 = vunpack.c.h.b16 %v4408
  %v4566 = vunpack.c.l.b16 %v4409
  %v4567 = vunpack.c.h.b16 %v4409
  %v4568 = vunpack.c.l.b16 %v4410
  %v4569 = vunpack.c.h.b16 %v4410
  %v4570 = vunpack.c.l.b16 %v4411
  %v4571 = vunpack.c.h.b16 %v4411
  %v4572 = vunpack.c.l.b16 %v4412
  %v4573 = vunpack.c.h.b16 %v4412
  %v4574 = vunpack.c.l.b16 %v4413
  %v4575 = vunpack.c.h.b16 %v4413
  %v4576 = vunpack.c.l.b16 %v4414
  %v4577 = vunpack.c.h.b16 %v4414
  %v4578 = vunpack.c.l.b16 %v4415
  %v4579 = vunpack.c.h.b16 %v4415
  %v4580 = vunpack.c.l.b16 %v4416
  %v4581 = vunpack.c.h.b16 %v4416
  %v4582 = vunpack.c.l.b16 %v4417
  %v4583 = vunpack.c.h.b16 %v4417
  %v4584 = vunpack.c.l.b16 %v4418
  %v4585 = vunpack.c.h.b16 %v4418
  %v4586 = vunpack.c.l.b16 %v4419
  %v4587 = vunpack.c.h.b16 %v4419
  %v4588 = vunpack.c.l.b16 %v4420
  %v4589 = vunpack.c.h.b16 %v4420
  %v4590 = vunpack.c.l.b16 %v4421
  %v4591 = vunpack.c.h.b16 %v4421
  %v4592 = vunpack.c.l.b16 %v4422
  %v4593 = vunpack.c.h.b16 %v4422
  %v4594 = vunpack.c.l.b16 %v4423
  %v4595 = vunpack.c.h.b16 %v4423
  %v4596 = vunpack.c.l.b16 %v4424
  %v4597 = vunpack.c.h.b16 %v4424
  %v4598 = vunpack.c.l.b16 %v4425
  %v4599 = vunpack.c.h.b16 %v4425
  %v4600 = vunpack.c.l.b16 %v4426
  %v4601 = vunpack.c.h.b16 %v4426
  %v4602 = vunpack.c.l.b16 %v4427
  %v4603 = vunpack.c.h.b16 %v4427
  %v4604 = vunpack.c.l.b16 %v4428
  %v4605 = vunpack.c.h.b16 %v4428
  %v4606 = vunpack.c.l.b16 %v4429
  %v4607 = vunpack.c.h.b16 %v4429
  %v4608 = vunpack.c.l.b16 %v4430
  %v4609 = vunpack.c.h.b16 %v4430
  %v4610 = vunpack.c.l.b16 %v4431
  %v4611 = vunpack.c.h.b16 %v4431
  %v4612 = vunpack.c.l.b16 %v4432
  %v4613 = vunpack.c.h.b16 %v4432
  %v4614 = vunpack.c.l.b16 %v4433
  %v4615 = vunpack.c.h.b16 %v4433
  %v4616 = vunpack.c.l.b16 %v4434
  %v4617 = vunpack.c.h.b16 %v4434
  %v4618 = vunpack.c.l.b16 %v4435
  %v4619 = vunpack.c.h.b16 %v4435
  %v4620 = vunpack.c.l.b16 %v4436
  %v4621 = vunpack.c.h.b16 %v4436
  %v4622 = vunpack.c.l.b16 %v4437
  %v4623 = vunpack.c.h.b16 %v4437
  %v4624 = vunpack.c.l.b16 %v4438
  %v4625 = vunpack.c.h.b16 %v4438
  %v4626 = vunpack.c.l.b16 %v4439
  %v4627 = vunpack.c.h.b16 %v4439
  %v4628 = vunpack.c.l.b16 %v4440
  %v4629 = vunpack.c.h.b16 %v4440
  %v4630 = vunpack.c.l.b16 %v4441
  %v4631 = vunpack.c.h.b16 %v4441
  %v4632 = vunpack.c.l.b16 %v4442
  %v4633 = vunpack.c.h.b16 %v4442
  %v4634 = vunpack.c.l.b16 %v4443
  %v4635 = vunpack.c.h.b16 %v4443
  %v4636 = vunpack.c.l.b16 %v4444
  %v4637 = vunpack.c.h.b16 %v4444
  %v4638 = vunpack.c.l.b16 %v4445
  %v4639 = vunpack.c.h.b16 %v4445
  %v4640 = vunpack.c.l.b16 %v4446
  %v4641 = vunpack.c.h.b16 %v4446
  %v4642 = vunpack.c.l.b16 %v4447
  %v4643 = vunpack.c.h.b16 %v4447
  %v4644 = vunpack.c.l.b16 %v4448
  %v4645 = vunpack.c.h.b16 %v4448
  %v4646 = vunpack.c.l.b16 %v4449
  %v4647 = vunpack.c.h.b16 %v4449
  %v4648 = vunpack.c.l.b16 %v4450
  %v4649 = vunpack.c.h.b16 %v4450
  %v4650 = vunpack.c.l.b16 %v4451
  %v4651 = vunpack.c.h.b16 %v4451
  %v4652 = vunpack.c.l.b16 %v4452
  %v4653 = vunpack.c.h.b16 %v4452
  %v4654 = vunpack.c.l.b16 %v4453
  %v4655 = vunpack.c.h.b16 %v4453
  %v4656 = vunpack.c.l.b16 %v4454
  %v4657 = vunpack.c.h.b16 %v4454
  %v4658 = vunpack.c.l.b16 %v4455
  %v4659 = vunpack.c.h.b16 %v4455
  %v4660 = vunpack.c.l.b16 %v4456
  %v4661 = vunpack.c.h.b16 %v4456
  %v4662 = vunpack.c.l.b16 %v4457
  %v4663 = vunpack.c.h.b16 %v4457
  %v4664 = vunpack.c.l.b16 %v4458
  %v4665 = vunpack.c.h.b16 %v4458
  %v4666 = vunpack.c.l.b16 %v4459
  %v4667 = vunpack.c.h.b16 %v4459
  %v4668 = vunpack.c.l.b16 %v4460
  %v4669 = vunpack.c.h.b16 %v4460
  %v4670 = vunpack.c.l.b16 %v4461
  %v4671 = vunpack.c.h.b16 %v4461
  %v4672 = vunpack.c.l.b16 %v4462
  %v4673 = vunpack.c.h.b16 %v4462
  %v4674 = vunpack.c.l.b16 %v4463
  %v4675 = vunpack.c.h.b16 %v4463
  %v4676 = vunpack.c.l.b16 %v4464
  %v4677 = vunpack.c.h.b16 %v4464
  %v4678 = vunpack.c.l.b16 %v4465
  %v4679 = vunpack.c.h.b16 %v4465
  %v4680 = vpack.c.b16 %v4556, %v4552
  %v4681 = vpack.c.b16 %v4557, %v4553
  %v4682 = vpack.c.b16 %v4558, %v4554
  %v4683 = vpack.c.b16 %v4559, %v4555
  %v4684 = vpack.c.b16 %v4564, %v4560
  %v4685 = vpack.c.b16 %v4565, %v4561
  %v4686 = vpack.c.b16 %v4566, %v4562
  %v4687 = vpack.c.b16 %v4567, %v4563
  %v4688 = vpack.c.b16 %v4572, %v4568
  %v4689 = vpack.c.b16 %v4573, %v4569
  %v4690 = vpack.c.b16 %v4574, %v4570
  %v4691 = vpack.c.b16 %v4575, %v4571
  %v4692 = vpack.c.b16 %v4580, %v4576
  %v4693 = vpack.c.b16 %v4581, %v4577
  %v4694 = vpack.c.b16 %v4582, %v4578
  %v4695 = vpack.c.b16 %v4583, %v4579
  %v4696 = vpack.c.b16 %v4588, %v4584
  %v4697 = vpack.c.b16 %v4589, %v4585
  %v4698 = vpack.c.b16 %v4590, %v4586
  %v4699 = vpack.c.b16 %v4591, %v4587
  %v4700 = vpack.c.b16 %v4596, %v4592
  %v4701 = vpack.c.b16 %v4597, %v4593
  %v4702 = vpack.c.b16 %v4598, %v4594
  %v4703 = vpack.c.b16 %v4599, %v4595
  %v4704 = vpack.c.b16 %v4604, %v4600
  %v4705 = vpack.c.b16 %v4605, %v4601
  %v4706 = vpack.c.b16 %v4606, %v4602
  %v4707 = vpack.c.b16 %v4607, %v4603
  %v4708 = vpack.c.b16 %v4612, %v4608
  %v4709 = vpack.c.b16 %v4613, %v4609
  %v4710 = vpack.c.b16 %v4614, %v4610
  %v4711 = vpack.c.b16 %v4615, %v4611
  %v4712 = vpack.c.b16 %v4620, %v4616
  %v4713 = vpack.c.b16 %v4621, %v4617
  %v4714 = vpack.c.b16 %v4622, %v4618
  %v4715 = vpack.c.b16 %v4623, %v4619
  %v4716 = vpack.c.b16 %v4628, %v4624
  %v4717 = vpack.c.b16 %v4629, %v4625
  %v4718 = vpack.c.b16 %v4630, %v4626
  %v4719 = vpack.c.b16 %v4631, %v4627
  %v4720 = vpack.c.b16 %v4636, %v4632
  %v4721 = vpack.c.b16 %v4637, %v4633
  %v4722 = vpack.c.b16 %v4638, %v4634
  %v4723 = vpack.c.b16 %v4639, %v4635
  %v4724 = vpack.c.b16 %v4644, %v4640
  %v4725 = vpack.c.b16 %v4645, %v4641
  %v4726 = vpack.c.b16 %v4646, %v4642
  %v4727 = vpack.c.b16 %v4647, %v4643
  %v4728 = vpack.c.b16 %v4652, %v4648
  %v4729 = vpack.c.b16 %v4653, %v4649
  %v4730 = vpack.c.b16 %v4654, %v4650
  %v4731 = vpack.c.b16 %v4655, %v4651
  %v4732 = vpack.c.b16 %v4660, %v4656
  %v4733 = vpack.c.b16 %v4661, %v4657
  %v4734 = vpack.c.b16 %v4662, %v4658
  %v4735 = vpack.c.b16 %v4663, %v4659
  %v4736 = vpack.c.b16 %v4668, %v4664
  %v4737 = vpack.c.b16 %v4669, %v4665
  %v4738 = vpack.c.b16 %v4670, %v4666
  %v4739 = vpack.c.b16 %v4671, %v4667
  %v4740 = vpack.c.b16 %v4676, %v4672
  %v4741 = vpack.c.b16 %v4677, %v4673
  %v4742 = vpack.c.b16 %v4678, %v4674
  %v4743 = vpack.c.b16 %v4679, %v4675
  %4808 = vmatprep.subr.bf16.mxu0 %v4681
  %4809 = vmatpush1.bf16.msra.mxu0 %v4680
  %4810 = vmatprep.subr.bf16.mxu0 %v4685
  %4811 = vmatpush1.bf16.msra.mxu0 %v4684
  %4812 = vmatprep.subr.bf16.mxu0 %v4689
  %4813 = vmatpush1.bf16.msra.mxu0 %v4688
  %4814 = vmatprep.subr.bf16.mxu0 %v4693
  %4815 = vmatpush1.bf16.msra.mxu0 %v4692
  %4816 = vmatprep.subr.bf16.mxu0 %v4697
  %4817 = vmatpush1.bf16.msra.mxu0 %v4696
  %4818 = vmatprep.subr.bf16.mxu0 %v4701
  %4819 = vmatpush1.bf16.msra.mxu0 %v4700
  %4820 = vmatprep.subr.bf16.mxu0 %v4705
  %4821 = vmatpush1.bf16.msra.mxu0 %v4704
  %4822 = vmatprep.subr.bf16.mxu0 %v4709
  %4823 = vmatpush1.bf16.msra.mxu0 %v4708
  %4824 = vmatprep.subr.bf16.mxu0 %v4713
  %4825 = vmatpush1.bf16.msra.mxu0 %v4712
  %4826 = vmatprep.subr.bf16.mxu0 %v4717
  %4827 = vmatpush1.bf16.msra.mxu0 %v4716
  %4828 = vmatprep.subr.bf16.mxu0 %v4721
  %4829 = vmatpush1.bf16.msra.mxu0 %v4720
  %4830 = vmatprep.subr.bf16.mxu0 %v4725
  %4831 = vmatpush1.bf16.msra.mxu0 %v4724
  %4832 = vmatprep.subr.bf16.mxu0 %v4729
  %4833 = vmatpush1.bf16.msra.mxu0 %v4728
  %4834 = vmatprep.subr.bf16.mxu0 %v4733
  %4835 = vmatpush1.bf16.msra.mxu0 %v4732
  %4836 = vmatprep.subr.bf16.mxu0 %v4737
  %4837 = vmatpush1.bf16.msra.mxu0 %v4736
  %4838 = vmatprep.subr.bf16.mxu0 %v4741
  %4839 = vmatpush1.bf16.msra.mxu0 %v4740
  %4840 = vmatprep.mubr.bf16.mxu0 %v4401
  %4841 = vmatmul.mubr.bf16.gmra.mrb[0].mxu0 %v4400
  %v4842 = vpop.f32.mrb[0].mxu0
  %v4843 = vadd.f32 %v4471, %v4842
  %v4844 = vpop.f32.mrb[0].mxu0
  %v4845 = vadd.f32 %v4475, %v4844
  %v4846 = vpop.f32.mrb[0].mxu0
  %v4847 = vadd.f32 %v4471, %v4846
  %v4848 = vpop.f32.mrb[0].mxu0
  %v4849 = vadd.f32 %v4475, %v4848
  %4850 = vdwg.mxu0
  %4851 = vmatprep.subr.bf16.mxu0 %v4683
  %4852 = vmatpush1.bf16.msra.mxu0 %v4682
  %4853 = vmatprep.subr.bf16.mxu0 %v4687
  %4854 = vmatpush1.bf16.msra.mxu0 %v4686
  %4855 = vmatprep.subr.bf16.mxu0 %v4691
  %4856 = vmatpush1.bf16.msra.mxu0 %v4690
  %4857 = vmatprep.subr.bf16.mxu0 %v4695
  %4858 = vmatpush1.bf16.msra.mxu0 %v4694
  %4859 = vmatprep.subr.bf16.mxu0 %v4699
  %4860 = vmatpush1.bf16.msra.mxu0 %v4698
  %4861 = vmatprep.subr.bf16.mxu0 %v4703
  %4862 = vmatpush1.bf16.msra.mxu0 %v4702
  %4863 = vmatprep.subr.bf16.mxu0 %v4707
  %4864 = vmatpush1.bf16.msra.mxu0 %v4706
  %4865 = vmatprep.subr.bf16.mxu0 %v4711
  %4866 = vmatpush1.bf16.msra.mxu0 %v4710
  %4867 = vmatprep.subr.bf16.mxu0 %v4715
  %4868 = vmatpush1.bf16.msra.mxu0 %v4714
  %4869 = vmatprep.subr.bf16.mxu0 %v4719
  %4870 = vmatpush1.bf16.msra.mxu0 %v4718
  %4871 = vmatprep.subr.bf16.mxu0 %v4723
  %4872 = vmatpush1.bf16.msra.mxu0 %v4722
  %4873 = vmatprep.subr.bf16.mxu0 %v4727
  %4874 = vmatpush1.bf16.msra.mxu0 %v4726
  %4875 = vmatprep.subr.bf16.mxu0 %v4731
  %4876 = vmatpush1.bf16.msra.mxu0 %v4730
  %4877 = vmatprep.subr.bf16.mxu0 %v4735
  %4878 = vmatpush1.bf16.msra.mxu0 %v4734
  %4879 = vmatprep.subr.bf16.mxu0 %v4739
  %4880 = vmatpush1.bf16.msra.mxu0 %v4738
  %4881 = vmatprep.subr.bf16.mxu0 %v4743
  %4882 = vmatpush1.bf16.msra.mxu0 %v4742
  %4883 = vmatprep.mubr.bf16.mxu0 %v4401
  %4884 = vmatmul.mubr.bf16.gmra.mrb[0].mxu0 %v4400
  %v4885 = vpop.f32.mrb[0].mxu0
  %v4886 = vadd.f32 %v4479, %v4885
  %v4887 = vpop.f32.mrb[0].mxu0
  %v4888 = vadd.f32 %v4483, %v4887
  %v4889 = vpop.f32.mrb[0].mxu0
  %v4890 = vadd.f32 %v4479, %v4889
  %v4891 = vpop.f32.mrb[0].mxu0
  %v4892 = vadd.f32 %v4483, %v4891
  %4893 = vdwg.mxu0
  %v4894 = vmul.f32 %v4843, 0.1
  %v4895 = vmul.f32 %v4845, 0.1
  %v4896 = vmul.f32 %v4886, 0.1
  %v4897 = vmul.f32 %v4888, 0.1
  %v4898 = vmul.f32 %v4847, 0.1
  %v4899 = vmul.f32 %v4849, 0.1
  %v4900 = vmul.f32 %v4890, 0.1
  %v4901 = vmul.f32 %v4892, 0.1
  %v4902 = vmax.f32 %v4843, %v4894
  %v4903 = vmax.f32 %v4845, %v4895
  %v4904 = vmax.f32 %v4886, %v4896
  %v4905 = vmax.f32 %v4888, %v4897
  %v4906 = vmax.f32 %v4847, %v4898
  %v4907 = vmax.f32 %v4849, %v4899
  %v4908 = vmax.f32 %v4890, %v4900
  %v4909 = vmax.f32 %v4892, %v4901
  %v4910 = vpack.c.bf16 %v4906, %v4902
  %v4911 = vpack.c.bf16 %v4907, %v4903
  %v4912 = vpack.c.bf16 %v4908, %v4904
  %v4913 = vpack.c.bf16 %v4909, %v4905
  %v4914 = vld [vmem:[%s9] sm:$0xff]
  %v4915 = vld [vmem:[%s9 + $0x8] sm:$0xff]
  %v4916 = vld [vmem:[%s9 + $0x10] sm:$0xf]
  %v4917 = vld [vmem:[%s9 + $0x14] sm:$0xff]
  %v4918 = vld [vmem:[%s9 + $0x1c] sm:$0xff]
  %v4919 = vld [vmem:[%s9 + $0x24] sm:$0xf]
  %v4920 = vld [vmem:[%s9 + $0x28] sm:$0xff]
  %v4921 = vld [vmem:[%s9 + $0x30] sm:$0xff]
  %v4922 = vld [vmem:[%s9 + $0x38] sm:$0xf]
  %v4923 = vld [vmem:[%s9 + $0x3c] sm:$0xff]
  %v4924 = vld [vmem:[%s9 + $0x44] sm:$0xff]
  %v4925 = vld [vmem:[%s9 + $0x4c] sm:$0xf]
  %v4926 = vld [vmem:[%s9 + $0x50] sm:$0xff]
  %v4927 = vld [vmem:[%s9 + $0x58] sm:$0xff]
  %v4928 = vld [vmem:[%s9 + $0x60] sm:$0xf]
  %v4929 = vld [vmem:[%s9 + $0x64] sm:$0xff]
  %v4930 = vld [vmem:[%s9 + $0x6c] sm:$0xff]
  %v4931 = vld [vmem:[%s9 + $0x74] sm:$0xf]
  %v4932 = vld [vmem:[%s9 + $0x78] sm:$0xff]
  %v4933 = vld [vmem:[%s9 + $0x80] sm:$0xff]
  %v4934 = vld [vmem:[%s9 + $0x88] sm:$0xf]
  %v4935 = vld [vmem:[%s9 + $0x8c] sm:$0xff]
  %v4936 = vld [vmem:[%s9 + $0x94] sm:$0xff]
  %v4937 = vld [vmem:[%s9 + $0x9c] sm:$0xf]
  %v4938 = vld [vmem:[%s9 + $0xa0] sm:$0xff]
  %v4939 = vld [vmem:[%s9 + $0xa8] sm:$0xff]
  %v4940 = vld [vmem:[%s9 + $0xb0] sm:$0xf]
  %v4941 = vld [vmem:[%s9 + $0xb4] sm:$0xff]
  %v4942 = vld [vmem:[%s9 + $0xbc] sm:$0xff]
  %v4943 = vld [vmem:[%s9 + $0xc4] sm:$0xf]
  %v4944 = vld [vmem:[%s9 + $0xc8] sm:$0xff]
  %v4945 = vld [vmem:[%s9 + $0xd0] sm:$0xff]
  %v4946 = vld [vmem:[%s9 + $0xd8] sm:$0xf]
  %v4947 = vld [vmem:[%s9 + $0xdc] sm:$0xff]
  %v4948 = vld [vmem:[%s9 + $0xe4] sm:$0xff]
  %v4949 = vld [vmem:[%s9 + $0xec] sm:$0xf]
  %v4950 = vld [vmem:[%s9 + $0xf0] sm:$0xff]
  %v4951 = vld [vmem:[%s9 + $0xf8] sm:$0xff]
  %v4952 = vld [vmem:[%s9 + $0x100] sm:$0xf]
  %v4953 = vld [vmem:[%s9 + $0x104] sm:$0xff]
  %v4954 = vld [vmem:[%s9 + $0x10c] sm:$0xff]
  %v4955 = vld [vmem:[%s9 + $0x114] sm:$0xf]
  %v4956 = vld [vmem:[%s9 + $0x118] sm:$0xff]
  %v4957 = vld [vmem:[%s9 + $0x120] sm:$0xff]
  %v4958 = vld [vmem:[%s9 + $0x128] sm:$0xf]
  %v4959 = vld [vmem:[%s9 + $0x12c] sm:$0xff]
  %v4960 = vld [vmem:[%s9 + $0x134] sm:$0xff]
  %v4961 = vld [vmem:[%s9 + $0x13c] sm:$0xf]
  %v4962 = vld [vmem:[%s9 + $0x140] sm:$0xff]
  %v4963 = vld [vmem:[%s9 + $0x148] sm:$0xff]
  %v4964 = vld [vmem:[%s9 + $0x150] sm:$0xf]
  %v4965 = vld [vmem:[%s9 + $0x154] sm:$0xff]
  %v4966 = vld [vmem:[%s9 + $0x15c] sm:$0xff]
  %v4967 = vld [vmem:[%s9 + $0x164] sm:$0xf]
  %v4968 = vld [vmem:[%s9 + $0x168] sm:$0xff]
  %v4969 = vld [vmem:[%s9 + $0x170] sm:$0xff]
  %v4970 = vld [vmem:[%s9 + $0x178] sm:$0xf]
  %v4971 = vld [vmem:[%s9 + $0x17c] sm:$0xff]
  %v4972 = vld [vmem:[%s9 + $0x184] sm:$0xff]
  %v4973 = vld [vmem:[%s9 + $0x18c] sm:$0xf]
  %v4974 = vld [vmem:[%s9 + $0x190] sm:$0xff]
  %v4975 = vld [vmem:[%s9 + $0x198] sm:$0xff]
  %v4976 = vld [vmem:[%s9 + $0x1a0] sm:$0xf]
  %v4977 = vld [vmem:[%s9 + $0x1a4] sm:$0xff]
  %v4978 = vld [vmem:[%s9 + $0x1ac] sm:$0xff]
  %v4979 = vld [vmem:[%s9 + $0x1b4] sm:$0xf]
  %v4980 = vld [vmem:[%s9 + $0x1b8] sm:$0xff]
  %v4981 = vld [vmem:[%s9 + $0x1c0] sm:$0xff]
  %v4982 = vld [vmem:[%s9 + $0x1c8] sm:$0xf]
  %v4983 = vld [vmem:[%s9 + $0x1cc] sm:$0xff]
  %v4984 = vld [vmem:[%s9 + $0x1d4] sm:$0xff]
  %v4985 = vld [vmem:[%s9 + $0x1dc] sm:$0xf]
  %v4986 = vld [vmem:[%s9 + $0x1e0] sm:$0xff]
  %v4987 = vld [vmem:[%s9 + $0x1e8] sm:$0xff]
  %v4988 = vld [vmem:[%s9 + $0x1f0] sm:$0xf]
  %v4989 = vld [vmem:[%s9 + $0x1f4] sm:$0xff]
  %v4990 = vld [vmem:[%s9 + $0x1fc] sm:$0xff]
  %v4991 = vld [vmem:[%s9 + $0x204] sm:$0xf]
  %v4992 = vld [vmem:[%s9 + $0x208] sm:$0xff]
  %v4993 = vld [vmem:[%s9 + $0x210] sm:$0xff]
  %v4994 = vld [vmem:[%s9 + $0x218] sm:$0xf]
  %v4995 = vld [vmem:[%s9 + $0x21c] sm:$0xff]
  %v4996 = vld [vmem:[%s9 + $0x224] sm:$0xff]
  %v4997 = vld [vmem:[%s9 + $0x22c] sm:$0xf]
  %v4998 = vld [vmem:[%s9 + $0x230] sm:$0xff]
  %v4999 = vld [vmem:[%s9 + $0x238] sm:$0xff]
  %v5000 = vld [vmem:[%s9 + $0x240] sm:$0xf]
  %v5001 = vld [vmem:[%s9 + $0x244] sm:$0xff]
  %v5002 = vld [vmem:[%s9 + $0x24c] sm:$0xff]
  %v5003 = vld [vmem:[%s9 + $0x254] sm:$0xf]
  %v5004 = vld [vmem:[%s9 + $0x258] sm:$0xff]
  %v5005 = vld [vmem:[%s9 + $0x260] sm:$0xff]
  %v5006 = vld [vmem:[%s9 + $0x268] sm:$0xf]
  %v5007 = vld [vmem:[%s9 + $0x26c] sm:$0xff]
  %v5008 = vld [vmem:[%s9 + $0x274] sm:$0xff]
  %v5009 = vld [vmem:[%s9 + $0x27c] sm:$0xf]
  %v5010 = vld [vmem:[%s9 + $0x280] sm:$0xff]
  %v5011 = vld [vmem:[%s9 + $0x288] sm:$0xff]
  %v5012 = vld [vmem:[%s9 + $0x290] sm:$0xf]
  %v5013 = vld [vmem:[%s9 + $0x294] sm:$0xff]
  %v5014 = vld [vmem:[%s9 + $0x29c] sm:$0xff]
  %v5015 = vld [vmem:[%s9 + $0x2a4] sm:$0xf]
  %v5016 = vld [vmem:[%s9 + $0x2a8] sm:$0xff]
  %v5017 = vld [vmem:[%s9 + $0x2b0] sm:$0xff]
  %v5018 = vld [vmem:[%s9 + $0x2b8] sm:$0xf]
  %v5019 = vld [vmem:[%s9 + $0x2bc] sm:$0xff]
  %v5020 = vld [vmem:[%s9 + $0x2c4] sm:$0xff]
  %v5021 = vld [vmem:[%s9 + $0x2cc] sm:$0xf]
  %v5022 = vld [vmem:[%s9 + $0x2d0] sm:$0xff]
  %v5023 = vld [vmem:[%s9 + $0x2d8] sm:$0xff]
  %v5024 = vld [vmem:[%s9 + $0x2e0] sm:$0xf]
  %v5025 = vld [vmem:[%s9 + $0x2e4] sm:$0xff]
  %v5026 = vld [vmem:[%s9 + $0x2ec] sm:$0xff]
  %v5027 = vld [vmem:[%s9 + $0x2f4] sm:$0xf]
  %v5028 = vld [vmem:[%s9 + $0x2f8] sm:$0xff]
  %v5029 = vld [vmem:[%s9 + $0x300] sm:$0xff]
  %v5030 = vld [vmem:[%s9 + $0x308] sm:$0xf]
  %v5031 = vld [vmem:[%s9 + $0x30c] sm:$0xff]
  %v5032 = vld [vmem:[%s9 + $0x314] sm:$0xff]
  %v5033 = vld [vmem:[%s9 + $0x31c] sm:$0xf]
  %v5034 = vld [vmem:[%s9 + $0x320] sm:$0xff]
  %v5035 = vld [vmem:[%s9 + $0x328] sm:$0xff]
  %v5036 = vld [vmem:[%s9 + $0x330] sm:$0xf]
  %v5037 = vld [vmem:[%s9 + $0x334] sm:$0xff]
  %v5038 = vld [vmem:[%s9 + $0x33c] sm:$0xff]
  %v5039 = vld [vmem:[%s9 + $0x344] sm:$0xf]
  %v5040 = vld [vmem:[%s9 + $0x348] sm:$0xff]
  %v5041 = vld [vmem:[%s9 + $0x350] sm:$0xff]
  %v5042 = vld [vmem:[%s9 + $0x358] sm:$0xf]
  %v5043 = vld [vmem:[%s9 + $0x35c] sm:$0xff]
  %v5044 = vld [vmem:[%s9 + $0x364] sm:$0xff]
  %v5045 = vld [vmem:[%s9 + $0x36c] sm:$0xf]
  %v5046 = vld [vmem:[%s9 + $0x370] sm:$0xff]
  %v5047 = vld [vmem:[%s9 + $0x378] sm:$0xff]
  %v5048 = vld [vmem:[%s9 + $0x380] sm:$0xf]
  %v5049 = vld [vmem:[%s9 + $0x384] sm:$0xff]
  %v5050 = vld [vmem:[%s9 + $0x38c] sm:$0xff]
  %v5051 = vld [vmem:[%s9 + $0x394] sm:$0xf]
  %v5052 = vld [vmem:[%s9 + $0x398] sm:$0xff]
  %v5053 = vld [vmem:[%s9 + $0x3a0] sm:$0xff]
  %v5054 = vld [vmem:[%s9 + $0x3a8] sm:$0xf]
  %v5055 = vld [vmem:[%s9 + $0x3ac] sm:$0xff]
  %v5056 = vld [vmem:[%s9 + $0x3b4] sm:$0xff]
  %v5057 = vld [vmem:[%s9 + $0x3bc] sm:$0xf]
  %v5058 = vld [vmem:[%s9 + $0x3c0] sm:$0xff]
  %v5059 = vld [vmem:[%s9 + $0x3c8] sm:$0xff]
  %v5060 = vld [vmem:[%s9 + $0x3d0] sm:$0xf]
  %v5061 = vld [vmem:[%s9 + $0x3d4] sm:$0xff]
  %v5062 = vld [vmem:[%s9 + $0x3dc] sm:$0xff]
  %v5063 = vld [vmem:[%s9 + $0x3e4] sm:$0xf]
  %v5064 = vld [vmem:[%s9 + $0x3e8] sm:$0xff]
  %v5065 = vld [vmem:[%s9 + $0x3f0] sm:$0xff]
  %v5066 = vld [vmem:[%s9 + $0x3f8] sm:$0xf]
  %v5067 = vld [vmem:[%s9 + $0x3fc] sm:$0xff]
  %v5068 = vld [vmem:[%s9 + $0x404] sm:$0xff]
  %v5069 = vld [vmem:[%s9 + $0x40c] sm:$0xf]
  %v5070 = vld [vmem:[%s9 + $0x410] sm:$0xff]
  %v5071 = vld [vmem:[%s9 + $0x418] sm:$0xff]
  %v5072 = vld [vmem:[%s9 + $0x420] sm:$0xf]
  %v5073 = vld [vmem:[%s9 + $0x424] sm:$0xff]
  %v5074 = vld [vmem:[%s9 + $0x42c] sm:$0xff]
  %v5075 = vld [vmem:[%s9 + $0x434] sm:$0xf]
  %v5076 = vld [vmem:[%s9 + $0x438] sm:$0xff]
  %v5077 = vld [vmem:[%s9 + $0x440] sm:$0xff]
  %v5078 = vld [vmem:[%s9 + $0x448] sm:$0xf]
  %v5079 = vld [vmem:[%s9 + $0x44c] sm:$0xff]
  %v5080 = vld [vmem:[%s9 + $0x454] sm:$0xff]
  %v5081 = vld [vmem:[%s9 + $0x45c] sm:$0xf]
  %v5082 = vld [vmem:[%s9 + $0x460] sm:$0xff]
  %v5083 = vld [vmem:[%s9 + $0x468] sm:$0xff]
  %v5084 = vld [vmem:[%s9 + $0x470] sm:$0xf]
  %v5085 = vld [vmem:[%s9 + $0x474] sm:$0xff]
  %v5086 = vld [vmem:[%s9 + $0x47c] sm:$0xff]
  %v5087 = vld [vmem:[%s9 + $0x484] sm:$0xf]
  %v5088 = vld [vmem:[%s9 + $0x488] sm:$0xff]
  %v5089 = vld [vmem:[%s9 + $0x490] sm:$0xff]
  %v5090 = vld [vmem:[%s9 + $0x498] sm:$0xf]
  %v5091 = vld [vmem:[%s9 + $0x49c] sm:$0xff]
  %v5092 = vld [vmem:[%s9 + $0x4a4] sm:$0xff]
  %v5093 = vld [vmem:[%s9 + $0x4ac] sm:$0xf]
  %v5094 = vld [vmem:[%s9 + $0x4b0] sm:$0xff]
  %v5095 = vld [vmem:[%s9 + $0x4b8] sm:$0xff]
  %v5096 = vld [vmem:[%s9 + $0x4c0] sm:$0xf]
  %v5097 = vld [vmem:[%s9 + $0x4c4] sm:$0xff]
  %v5098 = vld [vmem:[%s9 + $0x4cc] sm:$0xff]
  %v5099 = vld [vmem:[%s9 + $0x4d4] sm:$0xf]
  %v5100 = vld [vmem:[%s9 + $0x4d8] sm:$0xff]
  %v5101 = vld [vmem:[%s9 + $0x4e0] sm:$0xff]
  %v5102 = vld [vmem:[%s9 + $0x4e8] sm:$0xf]
  %v5103 = vld [vmem:[%s9 + $0x4ec] sm:$0xff]
  %v5104 = vld [vmem:[%s9 + $0x4f4] sm:$0xff]
  %v5105 = vld [vmem:[%s9 + $0x4fc] sm:$0xf]
  %v5106 = vld [vmem:[%s19] sm:$0x1f]
  %v5108 = vlaneseq
  %v5109 = vshrl.u32 %v5108, 7
  %v5110 = vsub.s32 0, %v5109
  %v5111 = vrot.slane %v5106, %v5110
  %v5112 = vlaneseq
  %v5113 = vshrl.u32 %v5112, 7
  %v5114 = vsub.s32 1, %v5113
  %v5115 = vrot.slane %v5106, %v5114
  %v5116 = vlaneseq
  %v5117 = vshrl.u32 %v5116, 7
  %v5118 = vsub.s32 2, %v5117
  %v5119 = vrot.slane %v5106, %v5118
  %v5120 = vlaneseq
  %v5121 = vshrl.u32 %v5120, 7
  %v5122 = vsub.s32 3, %v5121
  %v5123 = vrot.slane %v5106, %v5122
  %v5124 = vlaneseq
  %v5125 = vshrl.u32 %v5124, 7
  %v5126 = vsub.s32 4, %v5125
  %v5127 = vrot.slane %v5106, %v5126
  %v5325 = vunpack.c.l.b16 %v4914
  %v5326 = vunpack.c.h.b16 %v4914
  %v5327 = vunpack.c.l.b16 %v4915
  %v5328 = vunpack.c.h.b16 %v4915
  %v5329 = vunpack.c.l.b16 %v4916
  %v5330 = vunpack.c.l.b16 %v4917
  %v5331 = vunpack.c.h.b16 %v4917
  %v5332 = vunpack.c.l.b16 %v4918
  %v5333 = vunpack.c.h.b16 %v4918
  %v5334 = vunpack.c.l.b16 %v4919
  %v5335 = vunpack.c.l.b16 %v4920
  %v5336 = vunpack.c.h.b16 %v4920
  %v5337 = vunpack.c.l.b16 %v4921
  %v5338 = vunpack.c.h.b16 %v4921
  %v5339 = vunpack.c.l.b16 %v4922
  %v5340 = vunpack.c.l.b16 %v4923
  %v5341 = vunpack.c.h.b16 %v4923
  %v5342 = vunpack.c.l.b16 %v4924
  %v5343 = vunpack.c.h.b16 %v4924
  %v5344 = vunpack.c.l.b16 %v4925
  %v5345 = vunpack.c.l.b16 %v4926
  %v5346 = vunpack.c.h.b16 %v4926
  %v5347 = vunpack.c.l.b16 %v4927
  %v5348 = vunpack.c.h.b16 %v4927
  %v5349 = vunpack.c.l.b16 %v4928
  %v5350 = vunpack.c.l.b16 %v4929
  %v5351 = vunpack.c.h.b16 %v4929
  %v5352 = vunpack.c.l.b16 %v4930
  %v5353 = vunpack.c.h.b16 %v4930
  %v5354 = vunpack.c.l.b16 %v4931
  %v5355 = vunpack.c.l.b16 %v4932
  %v5356 = vunpack.c.h.b16 %v4932
  %v5357 = vunpack.c.l.b16 %v4933
  %v5358 = vunpack.c.h.b16 %v4933
  %v5359 = vunpack.c.l.b16 %v4934
  %v5360 = vunpack.c.l.b16 %v4935
  %v5361 = vunpack.c.h.b16 %v4935
  %v5362 = vunpack.c.l.b16 %v4936
  %v5363 = vunpack.c.h.b16 %v4936
  %v5364 = vunpack.c.l.b16 %v4937
  %v5365 = vunpack.c.l.b16 %v4938
  %v5366 = vunpack.c.h.b16 %v4938
  %v5367 = vunpack.c.l.b16 %v4939
  %v5368 = vunpack.c.h.b16 %v4939
  %v5369 = vunpack.c.l.b16 %v4940
  %v5370 = vunpack.c.l.b16 %v4941
  %v5371 = vunpack.c.h.b16 %v4941
  %v5372 = vunpack.c.l.b16 %v4942
  %v5373 = vunpack.c.h.b16 %v4942
  %v5374 = vunpack.c.l.b16 %v4943
  %v5375 = vunpack.c.l.b16 %v4944
  %v5376 = vunpack.c.h.b16 %v4944
  %v5377 = vunpack.c.l.b16 %v4945
  %v5378 = vunpack.c.h.b16 %v4945
  %v5379 = vunpack.c.l.b16 %v4946
  %v5380 = vunpack.c.l.b16 %v4947
  %v5381 = vunpack.c.h.b16 %v4947
  %v5382 = vunpack.c.l.b16 %v4948
  %v5383 = vunpack.c.h.b16 %v4948
  %v5384 = vunpack.c.l.b16 %v4949
  %v5385 = vunpack.c.l.b16 %v4950
  %v5386 = vunpack.c.h.b16 %v4950
  %v5387 = vunpack.c.l.b16 %v4951
  %v5388 = vunpack.c.h.b16 %v4951
  %v5389 = vunpack.c.l.b16 %v4952
  %v5390 = vunpack.c.l.b16 %v4953
  %v5391 = vunpack.c.h.b16 %v4953
  %v5392 = vunpack.c.l.b16 %v4954
  %v5393 = vunpack.c.h.b16 %v4954
  %v5394 = vunpack.c.l.b16 %v4955
  %v5395 = vunpack.c.l.b16 %v4956
  %v5396 = vunpack.c.h.b16 %v4956
  %v5397 = vunpack.c.l.b16 %v4957
  %v5398 = vunpack.c.h.b16 %v4957
  %v5399 = vunpack.c.l.b16 %v4958
  %v5400 = vunpack.c.l.b16 %v4959
  %v5401 = vunpack.c.h.b16 %v4959
  %v5402 = vunpack.c.l.b16 %v4960
  %v5403 = vunpack.c.h.b16 %v4960
  %v5404 = vunpack.c.l.b16 %v4961
  %v5405 = vunpack.c.l.b16 %v4962
  %v5406 = vunpack.c.h.b16 %v4962
  %v5407 = vunpack.c.l.b16 %v4963
  %v5408 = vunpack.c.h.b16 %v4963
  %v5409 = vunpack.c.l.b16 %v4964
  %v5410 = vunpack.c.l.b16 %v4965
  %v5411 = vunpack.c.h.b16 %v4965
  %v5412 = vunpack.c.l.b16 %v4966
  %v5413 = vunpack.c.h.b16 %v4966
  %v5414 = vunpack.c.l.b16 %v4967
  %v5415 = vunpack.c.l.b16 %v4968
  %v5416 = vunpack.c.h.b16 %v4968
  %v5417 = vunpack.c.l.b16 %v4969
  %v5418 = vunpack.c.h.b16 %v4969
  %v5419 = vunpack.c.l.b16 %v4970
  %v5420 = vunpack.c.l.b16 %v4971
  %v5421 = vunpack.c.h.b16 %v4971
  %v5422 = vunpack.c.l.b16 %v4972
  %v5423 = vunpack.c.h.b16 %v4972
  %v5424 = vunpack.c.l.b16 %v4973
  %v5425 = vunpack.c.l.b16 %v4974
  %v5426 = vunpack.c.h.b16 %v4974
  %v5427 = vunpack.c.l.b16 %v4975
  %v5428 = vunpack.c.h.b16 %v4975
  %v5429 = vunpack.c.l.b16 %v4976
  %v5430 = vunpack.c.l.b16 %v4977
  %v5431 = vunpack.c.h.b16 %v4977
  %v5432 = vunpack.c.l.b16 %v4978
  %v5433 = vunpack.c.h.b16 %v4978
  %v5434 = vunpack.c.l.b16 %v4979
  %v5435 = vunpack.c.l.b16 %v4980
  %v5436 = vunpack.c.h.b16 %v4980
  %v5437 = vunpack.c.l.b16 %v4981
  %v5438 = vunpack.c.h.b16 %v4981
  %v5439 = vunpack.c.l.b16 %v4982
  %v5440 = vunpack.c.l.b16 %v4983
  %v5441 = vunpack.c.h.b16 %v4983
  %v5442 = vunpack.c.l.b16 %v4984
  %v5443 = vunpack.c.h.b16 %v4984
  %v5444 = vunpack.c.l.b16 %v4985
  %v5445 = vunpack.c.l.b16 %v4986
  %v5446 = vunpack.c.h.b16 %v4986
  %v5447 = vunpack.c.l.b16 %v4987
  %v5448 = vunpack.c.h.b16 %v4987
  %v5449 = vunpack.c.l.b16 %v4988
  %v5450 = vunpack.c.l.b16 %v4989
  %v5451 = vunpack.c.h.b16 %v4989
  %v5452 = vunpack.c.l.b16 %v4990
  %v5453 = vunpack.c.h.b16 %v4990
  %v5454 = vunpack.c.l.b16 %v4991
  %v5455 = vunpack.c.l.b16 %v4992
  %v5456 = vunpack.c.h.b16 %v4992
  %v5457 = vunpack.c.l.b16 %v4993
  %v5458 = vunpack.c.h.b16 %v4993
  %v5459 = vunpack.c.l.b16 %v4994
  %v5460 = vunpack.c.l.b16 %v4995
  %v5461 = vunpack.c.h.b16 %v4995
  %v5462 = vunpack.c.l.b16 %v4996
  %v5463 = vunpack.c.h.b16 %v4996
  %v5464 = vunpack.c.l.b16 %v4997
  %v5465 = vunpack.c.l.b16 %v4998
  %v5466 = vunpack.c.h.b16 %v4998
  %v5467 = vunpack.c.l.b16 %v4999
  %v5468 = vunpack.c.h.b16 %v4999
  %v5469 = vunpack.c.l.b16 %v5000
  %v5470 = vunpack.c.l.b16 %v5001
  %v5471 = vunpack.c.h.b16 %v5001
  %v5472 = vunpack.c.l.b16 %v5002
  %v5473 = vunpack.c.h.b16 %v5002
  %v5474 = vunpack.c.l.b16 %v5003
  %v5475 = vunpack.c.l.b16 %v5004
  %v5476 = vunpack.c.h.b16 %v5004
  %v5477 = vunpack.c.l.b16 %v5005
  %v5478 = vunpack.c.h.b16 %v5005
  %v5479 = vunpack.c.l.b16 %v5006
  %v5480 = vunpack.c.l.b16 %v5007
  %v5481 = vunpack.c.h.b16 %v5007
  %v5482 = vunpack.c.l.b16 %v5008
  %v5483 = vunpack.c.h.b16 %v5008
  %v5484 = vunpack.c.l.b16 %v5009
  %v5485 = vunpack.c.l.b16 %v5010
  %v5486 = vunpack.c.h.b16 %v5010
  %v5487 = vunpack.c.l.b16 %v5011
  %v5488 = vunpack.c.h.b16 %v5011
  %v5489 = vunpack.c.l.b16 %v5012
  %v5490 = vunpack.c.l.b16 %v5013
  %v5491 = vunpack.c.h.b16 %v5013
  %v5492 = vunpack.c.l.b16 %v5014
  %v5493 = vunpack.c.h.b16 %v5014
  %v5494 = vunpack.c.l.b16 %v5015
  %v5495 = vunpack.c.l.b16 %v5016
  %v5496 = vunpack.c.h.b16 %v5016
  %v5497 = vunpack.c.l.b16 %v5017
  %v5498 = vunpack.c.h.b16 %v5017
  %v5499 = vunpack.c.l.b16 %v5018
  %v5500 = vunpack.c.l.b16 %v5019
  %v5501 = vunpack.c.h.b16 %v5019
  %v5502 = vunpack.c.l.b16 %v5020
  %v5503 = vunpack.c.h.b16 %v5020
  %v5504 = vunpack.c.l.b16 %v5021
  %v5505 = vunpack.c.l.b16 %v5022
  %v5506 = vunpack.c.h.b16 %v5022
  %v5507 = vunpack.c.l.b16 %v5023
  %v5508 = vunpack.c.h.b16 %v5023
  %v5509 = vunpack.c.l.b16 %v5024
  %v5510 = vunpack.c.l.b16 %v5025
  %v5511 = vunpack.c.h.b16 %v5025
  %v5512 = vunpack.c.l.b16 %v5026
  %v5513 = vunpack.c.h.b16 %v5026
  %v5514 = vunpack.c.l.b16 %v5027
  %v5515 = vunpack.c.l.b16 %v5028
  %v5516 = vunpack.c.h.b16 %v5028
  %v5517 = vunpack.c.l.b16 %v5029
  %v5518 = vunpack.c.h.b16 %v5029
  %v5519 = vunpack.c.l.b16 %v5030
  %v5520 = vunpack.c.l.b16 %v5031
  %v5521 = vunpack.c.h.b16 %v5031
  %v5522 = vunpack.c.l.b16 %v5032
  %v5523 = vunpack.c.h.b16 %v5032
  %v5524 = vunpack.c.l.b16 %v5033
  %v5525 = vunpack.c.l.b16 %v5034
  %v5526 = vunpack.c.h.b16 %v5034
  %v5527 = vunpack.c.l.b16 %v5035
  %v5528 = vunpack.c.h.b16 %v5035
  %v5529 = vunpack.c.l.b16 %v5036
  %v5530 = vunpack.c.l.b16 %v5037
  %v5531 = vunpack.c.h.b16 %v5037
  %v5532 = vunpack.c.l.b16 %v5038
  %v5533 = vunpack.c.h.b16 %v5038
  %v5534 = vunpack.c.l.b16 %v5039
  %v5535 = vunpack.c.l.b16 %v5040
  %v5536 = vunpack.c.h.b16 %v5040
  %v5537 = vunpack.c.l.b16 %v5041
  %v5538 = vunpack.c.h.b16 %v5041
  %v5539 = vunpack.c.l.b16 %v5042
  %v5540 = vunpack.c.l.b16 %v5043
  %v5541 = vunpack.c.h.b16 %v5043
  %v5542 = vunpack.c.l.b16 %v5044
  %v5543 = vunpack.c.h.b16 %v5044
  %v5544 = vunpack.c.l.b16 %v5045
  %v5545 = vunpack.c.l.b16 %v5046
  %v5546 = vunpack.c.h.b16 %v5046
  %v5547 = vunpack.c.l.b16 %v5047
  %v5548 = vunpack.c.h.b16 %v5047
  %v5549 = vunpack.c.l.b16 %v5048
  %v5550 = vunpack.c.l.b16 %v5049
  %v5551 = vunpack.c.h.b16 %v5049
  %v5552 = vunpack.c.l.b16 %v5050
  %v5553 = vunpack.c.h.b16 %v5050
  %v5554 = vunpack.c.l.b16 %v5051
  %v5555 = vunpack.c.l.b16 %v5052
  %v5556 = vunpack.c.h.b16 %v5052
  %v5557 = vunpack.c.l.b16 %v5053
  %v5558 = vunpack.c.h.b16 %v5053
  %v5559 = vunpack.c.l.b16 %v5054
  %v5560 = vunpack.c.l.b16 %v5055
  %v5561 = vunpack.c.h.b16 %v5055
  %v5562 = vunpack.c.l.b16 %v5056
  %v5563 = vunpack.c.h.b16 %v5056
  %v5564 = vunpack.c.l.b16 %v5057
  %v5565 = vunpack.c.l.b16 %v5058
  %v5566 = vunpack.c.h.b16 %v5058
  %v5567 = vunpack.c.l.b16 %v5059
  %v5568 = vunpack.c.h.b16 %v5059
  %v5569 = vunpack.c.l.b16 %v5060
  %v5570 = vunpack.c.l.b16 %v5061
  %v5571 = vunpack.c.h.b16 %v5061
  %v5572 = vunpack.c.l.b16 %v5062
  %v5573 = vunpack.c.h.b16 %v5062
  %v5574 = vunpack.c.l.b16 %v5063
  %v5575 = vunpack.c.l.b16 %v5064
  %v5576 = vunpack.c.h.b16 %v5064
  %v5577 = vunpack.c.l.b16 %v5065
  %v5578 = vunpack.c.h.b16 %v5065
  %v5579 = vunpack.c.l.b16 %v5066
  %v5580 = vunpack.c.l.b16 %v5067
  %v5581 = vunpack.c.h.b16 %v5067
  %v5582 = vunpack.c.l.b16 %v5068
  %v5583 = vunpack.c.h.b16 %v5068
  %v5584 = vunpack.c.l.b16 %v5069
  %v5585 = vunpack.c.l.b16 %v5070
  %v5586 = vunpack.c.h.b16 %v5070
  %v5587 = vunpack.c.l.b16 %v5071
  %v5588 = vunpack.c.h.b16 %v5071
  %v5589 = vunpack.c.l.b16 %v5072
  %v5590 = vunpack.c.l.b16 %v5073
  %v5591 = vunpack.c.h.b16 %v5073
  %v5592 = vunpack.c.l.b16 %v5074
  %v5593 = vunpack.c.h.b16 %v5074
  %v5594 = vunpack.c.l.b16 %v5075
  %v5595 = vunpack.c.l.b16 %v5076
  %v5596 = vunpack.c.h.b16 %v5076
  %v5597 = vunpack.c.l.b16 %v5077
  %v5598 = vunpack.c.h.b16 %v5077
  %v5599 = vunpack.c.l.b16 %v5078
  %v5600 = vunpack.c.l.b16 %v5079
  %v5601 = vunpack.c.h.b16 %v5079
  %v5602 = vunpack.c.l.b16 %v5080
  %v5603 = vunpack.c.h.b16 %v5080
  %v5604 = vunpack.c.l.b16 %v5081
  %v5605 = vunpack.c.l.b16 %v5082
  %v5606 = vunpack.c.h.b16 %v5082
  %v5607 = vunpack.c.l.b16 %v5083
  %v5608 = vunpack.c.h.b16 %v5083
  %v5609 = vunpack.c.l.b16 %v5084
  %v5610 = vunpack.c.l.b16 %v5085
  %v5611 = vunpack.c.h.b16 %v5085
  %v5612 = vunpack.c.l.b16 %v5086
  %v5613 = vunpack.c.h.b16 %v5086
  %v5614 = vunpack.c.l.b16 %v5087
  %v5615 = vunpack.c.l.b16 %v5088
  %v5616 = vunpack.c.h.b16 %v5088
  %v5617 = vunpack.c.l.b16 %v5089
  %v5618 = vunpack.c.h.b16 %v5089
  %v5619 = vunpack.c.l.b16 %v5090
  %v5620 = vunpack.c.l.b16 %v5091
  %v5621 = vunpack.c.h.b16 %v5091
  %v5622 = vunpack.c.l.b16 %v5092
  %v5623 = vunpack.c.h.b16 %v5092
  %v5624 = vunpack.c.l.b16 %v5093
  %v5625 = vunpack.c.l.b16 %v5094
  %v5626 = vunpack.c.h.b16 %v5094
  %v5627 = vunpack.c.l.b16 %v5095
  %v5628 = vunpack.c.h.b16 %v5095
  %v5629 = vunpack.c.l.b16 %v5096
  %v5630 = vunpack.c.l.b16 %v5097
  %v5631 = vunpack.c.h.b16 %v5097
  %v5632 = vunpack.c.l.b16 %v5098
  %v5633 = vunpack.c.h.b16 %v5098
  %v5634 = vunpack.c.l.b16 %v5099
  %v5635 = vunpack.c.l.b16 %v5100
  %v5636 = vunpack.c.h.b16 %v5100
  %v5637 = vunpack.c.l.b16 %v5101
  %v5638 = vunpack.c.h.b16 %v5101
  %v5639 = vunpack.c.l.b16 %v5102
  %v5640 = vunpack.c.l.b16 %v5103
  %v5641 = vunpack.c.h.b16 %v5103
  %v5642 = vunpack.c.l.b16 %v5104
  %v5643 = vunpack.c.h.b16 %v5104
  %v5644 = vunpack.c.l.b16 %v5105
  %v5645 = vpack.c.b16 %v5330, %v5325
  %v5646 = vpack.c.b16 %v5331, %v5326
  %v5647 = vpack.c.b16 %v5332, %v5327
  %v5648 = vpack.c.b16 %v5333, %v5328
  %v5649 = vpack.c.b16 %v5334, %v5329
  %v5650 = vpack.c.b16 %v5340, %v5335
  %v5651 = vpack.c.b16 %v5341, %v5336
  %v5652 = vpack.c.b16 %v5342, %v5337
  %v5653 = vpack.c.b16 %v5343, %v5338
  %v5654 = vpack.c.b16 %v5344, %v5339
  %v5655 = vpack.c.b16 %v5350, %v5345
  %v5656 = vpack.c.b16 %v5351, %v5346
  %v5657 = vpack.c.b16 %v5352, %v5347
  %v5658 = vpack.c.b16 %v5353, %v5348
  %v5659 = vpack.c.b16 %v5354, %v5349
  %v5660 = vpack.c.b16 %v5360, %v5355
  %v5661 = vpack.c.b16 %v5361, %v5356
  %v5662 = vpack.c.b16 %v5362, %v5357
  %v5663 = vpack.c.b16 %v5363, %v5358
  %v5664 = vpack.c.b16 %v5364, %v5359
  %v5665 = vpack.c.b16 %v5370, %v5365
  %v5666 = vpack.c.b16 %v5371, %v5366
  %v5667 = vpack.c.b16 %v5372, %v5367
  %v5668 = vpack.c.b16 %v5373, %v5368
  %v5669 = vpack.c.b16 %v5374, %v5369
  %v5670 = vpack.c.b16 %v5380, %v5375
  %v5671 = vpack.c.b16 %v5381, %v5376
  %v5672 = vpack.c.b16 %v5382, %v5377
  %v5673 = vpack.c.b16 %v5383, %v5378
  %v5674 = vpack.c.b16 %v5384, %v5379
  %v5675 = vpack.c.b16 %v5390, %v5385
  %v5676 = vpack.c.b16 %v5391, %v5386
  %v5677 = vpack.c.b16 %v5392, %v5387
  %v5678 = vpack.c.b16 %v5393, %v5388
  %v5679 = vpack.c.b16 %v5394, %v5389
  %v5680 = vpack.c.b16 %v5400, %v5395
  %v5681 = vpack.c.b16 %v5401, %v5396
  %v5682 = vpack.c.b16 %v5402, %v5397
  %v5683 = vpack.c.b16 %v5403, %v5398
  %v5684 = vpack.c.b16 %v5404, %v5399
  %v5685 = vpack.c.b16 %v5410, %v5405
  %v5686 = vpack.c.b16 %v5411, %v5406
  %v5687 = vpack.c.b16 %v5412, %v5407
  %v5688 = vpack.c.b16 %v5413, %v5408
  %v5689 = vpack.c.b16 %v5414, %v5409
  %v5690 = vpack.c.b16 %v5420, %v5415
  %v5691 = vpack.c.b16 %v5421, %v5416
  %v5692 = vpack.c.b16 %v5422, %v5417
  %v5693 = vpack.c.b16 %v5423, %v5418
  %v5694 = vpack.c.b16 %v5424, %v5419
  %v5695 = vpack.c.b16 %v5430, %v5425
  %v5696 = vpack.c.b16 %v5431, %v5426
  %v5697 = vpack.c.b16 %v5432, %v5427
  %v5698 = vpack.c.b16 %v5433, %v5428
  %v5699 = vpack.c.b16 %v5434, %v5429
  %v5700 = vpack.c.b16 %v5440, %v5435
  %v5701 = vpack.c.b16 %v5441, %v5436
  %v5702 = vpack.c.b16 %v5442, %v5437
  %v5703 = vpack.c.b16 %v5443, %v5438
  %v5704 = vpack.c.b16 %v5444, %v5439
  %v5705 = vpack.c.b16 %v5450, %v5445
  %v5706 = vpack.c.b16 %v5451, %v5446
  %v5707 = vpack.c.b16 %v5452, %v5447
  %v5708 = vpack.c.b16 %v5453, %v5448
  %v5709 = vpack.c.b16 %v5454, %v5449
  %v5710 = vpack.c.b16 %v5460, %v5455
  %v5711 = vpack.c.b16 %v5461, %v5456
  %v5712 = vpack.c.b16 %v5462, %v5457
  %v5713 = vpack.c.b16 %v5463, %v5458
  %v5714 = vpack.c.b16 %v5464, %v5459
  %v5715 = vpack.c.b16 %v5470, %v5465
  %v5716 = vpack.c.b16 %v5471, %v5466
  %v5717 = vpack.c.b16 %v5472, %v5467
  %v5718 = vpack.c.b16 %v5473, %v5468
  %v5719 = vpack.c.b16 %v5474, %v5469
  %v5720 = vpack.c.b16 %v5480, %v5475
  %v5721 = vpack.c.b16 %v5481, %v5476
  %v5722 = vpack.c.b16 %v5482, %v5477
  %v5723 = vpack.c.b16 %v5483, %v5478
  %v5724 = vpack.c.b16 %v5484, %v5479
  %v5725 = vpack.c.b16 %v5490, %v5485
  %v5726 = vpack.c.b16 %v5491, %v5486
  %v5727 = vpack.c.b16 %v5492, %v5487
  %v5728 = vpack.c.b16 %v5493, %v5488
  %v5729 = vpack.c.b16 %v5494, %v5489
  %v5730 = vpack.c.b16 %v5500, %v5495
  %v5731 = vpack.c.b16 %v5501, %v5496
  %v5732 = vpack.c.b16 %v5502, %v5497
  %v5733 = vpack.c.b16 %v5503, %v5498
  %v5734 = vpack.c.b16 %v5504, %v5499
  %v5735 = vpack.c.b16 %v5510, %v5505
  %v5736 = vpack.c.b16 %v5511, %v5506
  %v5737 = vpack.c.b16 %v5512, %v5507
  %v5738 = vpack.c.b16 %v5513, %v5508
  %v5739 = vpack.c.b16 %v5514, %v5509
  %v5740 = vpack.c.b16 %v5520, %v5515
  %v5741 = vpack.c.b16 %v5521, %v5516
  %v5742 = vpack.c.b16 %v5522, %v5517
  %v5743 = vpack.c.b16 %v5523, %v5518
  %v5744 = vpack.c.b16 %v5524, %v5519
  %v5745 = vpack.c.b16 %v5530, %v5525
  %v5746 = vpack.c.b16 %v5531, %v5526
  %v5747 = vpack.c.b16 %v5532, %v5527
  %v5748 = vpack.c.b16 %v5533, %v5528
  %v5749 = vpack.c.b16 %v5534, %v5529
  %v5750 = vpack.c.b16 %v5540, %v5535
  %v5751 = vpack.c.b16 %v5541, %v5536
  %v5752 = vpack.c.b16 %v5542, %v5537
  %v5753 = vpack.c.b16 %v5543, %v5538
  %v5754 = vpack.c.b16 %v5544, %v5539
  %v5755 = vpack.c.b16 %v5550, %v5545
  %v5756 = vpack.c.b16 %v5551, %v5546
  %v5757 = vpack.c.b16 %v5552, %v5547
  %v5758 = vpack.c.b16 %v5553, %v5548
  %v5759 = vpack.c.b16 %v5554, %v5549
  %v5760 = vpack.c.b16 %v5560, %v5555
  %v5761 = vpack.c.b16 %v5561, %v5556
  %v5762 = vpack.c.b16 %v5562, %v5557
  %v5763 = vpack.c.b16 %v5563, %v5558
  %v5764 = vpack.c.b16 %v5564, %v5559
  %v5765 = vpack.c.b16 %v5570, %v5565
  %v5766 = vpack.c.b16 %v5571, %v5566
  %v5767 = vpack.c.b16 %v5572, %v5567
  %v5768 = vpack.c.b16 %v5573, %v5568
  %v5769 = vpack.c.b16 %v5574, %v5569
  %v5770 = vpack.c.b16 %v5580, %v5575
  %v5771 = vpack.c.b16 %v5581, %v5576
  %v5772 = vpack.c.b16 %v5582, %v5577
  %v5773 = vpack.c.b16 %v5583, %v5578
  %v5774 = vpack.c.b16 %v5584, %v5579
  %v5775 = vpack.c.b16 %v5590, %v5585
  %v5776 = vpack.c.b16 %v5591, %v5586
  %v5777 = vpack.c.b16 %v5592, %v5587
  %v5778 = vpack.c.b16 %v5593, %v5588
  %v5779 = vpack.c.b16 %v5594, %v5589
  %v5780 = vpack.c.b16 %v5600, %v5595
  %v5781 = vpack.c.b16 %v5601, %v5596
  %v5782 = vpack.c.b16 %v5602, %v5597
  %v5783 = vpack.c.b16 %v5603, %v5598
  %v5784 = vpack.c.b16 %v5604, %v5599
  %v5785 = vpack.c.b16 %v5610, %v5605
  %v5786 = vpack.c.b16 %v5611, %v5606
  %v5787 = vpack.c.b16 %v5612, %v5607
  %v5788 = vpack.c.b16 %v5613, %v5608
  %v5789 = vpack.c.b16 %v5614, %v5609
  %v5790 = vpack.c.b16 %v5620, %v5615
  %v5791 = vpack.c.b16 %v5621, %v5616
  %v5792 = vpack.c.b16 %v5622, %v5617
  %v5793 = vpack.c.b16 %v5623, %v5618
  %v5794 = vpack.c.b16 %v5624, %v5619
  %v5795 = vpack.c.b16 %v5630, %v5625
  %v5796 = vpack.c.b16 %v5631, %v5626
  %v5797 = vpack.c.b16 %v5632, %v5627
  %v5798 = vpack.c.b16 %v5633, %v5628
  %v5799 = vpack.c.b16 %v5634, %v5629
  %v5800 = vpack.c.b16 %v5640, %v5635
  %v5801 = vpack.c.b16 %v5641, %v5636
  %v5802 = vpack.c.b16 %v5642, %v5637
  %v5803 = vpack.c.b16 %v5643, %v5638
  %v5804 = vpack.c.b16 %v5644, %v5639
  %5965 = vmatprep.subr.bf16.mxu0 %v5646
  %5966 = vmatpush1.bf16.msra.mxu0 %v5645
  %5967 = vmatprep.subr.bf16.mxu0 %v5651
  %5968 = vmatpush1.bf16.msra.mxu0 %v5650
  %5969 = vmatprep.subr.bf16.mxu0 %v5656
  %5970 = vmatpush1.bf16.msra.mxu0 %v5655
  %5971 = vmatprep.subr.bf16.mxu0 %v5661
  %5972 = vmatpush1.bf16.msra.mxu0 %v5660
  %5973 = vmatprep.subr.bf16.mxu0 %v5666
  %5974 = vmatpush1.bf16.msra.mxu0 %v5665
  %5975 = vmatprep.subr.bf16.mxu0 %v5671
  %5976 = vmatpush1.bf16.msra.mxu0 %v5670
  %5977 = vmatprep.subr.bf16.mxu0 %v5676
  %5978 = vmatpush1.bf16.msra.mxu0 %v5675
  %5979 = vmatprep.subr.bf16.mxu0 %v5681
  %5980 = vmatpush1.bf16.msra.mxu0 %v5680
  %5981 = vmatprep.subr.bf16.mxu0 %v5686
  %5982 = vmatpush1.bf16.msra.mxu0 %v5685
  %5983 = vmatprep.subr.bf16.mxu0 %v5691
  %5984 = vmatpush1.bf16.msra.mxu0 %v5690
  %5985 = vmatprep.subr.bf16.mxu0 %v5696
  %5986 = vmatpush1.bf16.msra.mxu0 %v5695
  %5987 = vmatprep.subr.bf16.mxu0 %v5701
  %5988 = vmatpush1.bf16.msra.mxu0 %v5700
  %5989 = vmatprep.subr.bf16.mxu0 %v5706
  %5990 = vmatpush1.bf16.msra.mxu0 %v5705
  %5991 = vmatprep.subr.bf16.mxu0 %v5711
  %5992 = vmatpush1.bf16.msra.mxu0 %v5710
  %5993 = vmatprep.subr.bf16.mxu0 %v5716
  %5994 = vmatpush1.bf16.msra.mxu0 %v5715
  %5995 = vmatprep.subr.bf16.mxu0 %v5721
  %5996 = vmatpush1.bf16.msra.mxu0 %v5720
  %5997 = vmatprep.mubr.bf16.mxu0 %v4911
  %5998 = vmatmul.mubr.bf16.gmra.mrb[0].mxu0 %v4910
  %v5999 = vpop.f32.mrb[0].mxu0
  %v6000 = vadd.f32 %v5111, %v5999
  %v6001 = vpop.f32.mrb[0].mxu0
  %v6002 = vadd.f32 %v5115, %v6001
  %v6003 = vpop.f32.mrb[0].mxu0
  %v6004 = vadd.f32 %v5111, %v6003
  %v6005 = vpop.f32.mrb[0].mxu0
  %v6006 = vadd.f32 %v5115, %v6005
  %6007 = vdwg.mxu0
  %6008 = vmatprep.subr.bf16.mxu0 %v5726
  %6009 = vmatpush1.bf16.msra.mxu0 %v5725
  %6010 = vmatprep.subr.bf16.mxu0 %v5731
  %6011 = vmatpush1.bf16.msra.mxu0 %v5730
  %6012 = vmatprep.subr.bf16.mxu0 %v5736
  %6013 = vmatpush1.bf16.msra.mxu0 %v5735
  %6014 = vmatprep.subr.bf16.mxu0 %v5741
  %6015 = vmatpush1.bf16.msra.mxu0 %v5740
  %6016 = vmatprep.subr.bf16.mxu0 %v5746
  %6017 = vmatpush1.bf16.msra.mxu0 %v5745
  %6018 = vmatprep.subr.bf16.mxu0 %v5751
  %6019 = vmatpush1.bf16.msra.mxu0 %v5750
  %6020 = vmatprep.subr.bf16.mxu0 %v5756
  %6021 = vmatpush1.bf16.msra.mxu0 %v5755
  %6022 = vmatprep.subr.bf16.mxu0 %v5761
  %6023 = vmatpush1.bf16.msra.mxu0 %v5760
  %6024 = vmatprep.subr.bf16.mxu0 %v5766
  %6025 = vmatpush1.bf16.msra.mxu0 %v5765
  %6026 = vmatprep.subr.bf16.mxu0 %v5771
  %6027 = vmatpush1.bf16.msra.mxu0 %v5770
  %6028 = vmatprep.subr.bf16.mxu0 %v5776
  %6029 = vmatpush1.bf16.msra.mxu0 %v5775
  %6030 = vmatprep.subr.bf16.mxu0 %v5781
  %6031 = vmatpush1.bf16.msra.mxu0 %v5780
  %6032 = vmatprep.subr.bf16.mxu0 %v5786
  %6033 = vmatpush1.bf16.msra.mxu0 %v5785
  %6034 = vmatprep.subr.bf16.mxu0 %v5791
  %6035 = vmatpush1.bf16.msra.mxu0 %v5790
  %6036 = vmatprep.subr.bf16.mxu0 %v5796
  %6037 = vmatpush1.bf16.msra.mxu0 %v5795
  %6038 = vmatprep.subr.bf16.mxu0 %v5801
  %6039 = vmatpush1.bf16.msra.mxu0 %v5800
  %6040 = vmatprep.mubr.bf16.mxu0 %v4913
  %6041 = vmatmul.mubr.bf16.gmra.mrb[0].mxu0 %v4912
  %v6042 = vpop.f32.mrb[0].mxu0
  %v6043 = vadd.f32 %v6000, %v6042
  %v6044 = vpop.f32.mrb[0].mxu0
  %v6045 = vadd.f32 %v6002, %v6044
  %v6046 = vpop.f32.mrb[0].mxu0
  %v6047 = vadd.f32 %v6004, %v6046
  %v6048 = vpop.f32.mrb[0].mxu0
  %v6049 = vadd.f32 %v6006, %v6048
  %6050 = vdwg.mxu0
  %6051 = vmatprep.subr.bf16.mxu0 %v5648
  %6052 = vmatpush1.bf16.msra.mxu0 %v5647
  %6053 = vmatprep.subr.bf16.mxu0 %v5653
  %6054 = vmatpush1.bf16.msra.mxu0 %v5652
  %6055 = vmatprep.subr.bf16.mxu0 %v5658
  %6056 = vmatpush1.bf16.msra.mxu0 %v5657
  %6057 = vmatprep.subr.bf16.mxu0 %v5663
  %6058 = vmatpush1.bf16.msra.mxu0 %v5662
  %6059 = vmatprep.subr.bf16.mxu0 %v5668
  %6060 = vmatpush1.bf16.msra.mxu0 %v5667
  %6061 = vmatprep.subr.bf16.mxu0 %v5673
  %6062 = vmatpush1.bf16.msra.mxu0 %v5672
  %6063 = vmatprep.subr.bf16.mxu0 %v5678
  %6064 = vmatpush1.bf16.msra.mxu0 %v5677
  %6065 = vmatprep.subr.bf16.mxu0 %v5683
  %6066 = vmatpush1.bf16.msra.mxu0 %v5682
  %6067 = vmatprep.subr.bf16.mxu0 %v5688
  %6068 = vmatpush1.bf16.msra.mxu0 %v5687
  %6069 = vmatprep.subr.bf16.mxu0 %v5693
  %6070 = vmatpush1.bf16.msra.mxu0 %v5692
  %6071 = vmatprep.subr.bf16.mxu0 %v5698
  %6072 = vmatpush1.bf16.msra.mxu0 %v5697
  %6073 = vmatprep.subr.bf16.mxu0 %v5703
  %6074 = vmatpush1.bf16.msra.mxu0 %v5702
  %6075 = vmatprep.subr.bf16.mxu0 %v5708
  %6076 = vmatpush1.bf16.msra.mxu0 %v5707
  %6077 = vmatprep.subr.bf16.mxu0 %v5713
  %6078 = vmatpush1.bf16.msra.mxu0 %v5712
  %6079 = vmatprep.subr.bf16.mxu0 %v5718
  %6080 = vmatpush1.bf16.msra.mxu0 %v5717
  %6081 = vmatprep.subr.bf16.mxu0 %v5723
  %6082 = vmatpush1.bf16.msra.mxu0 %v5722
  %6083 = vmatprep.mubr.bf16.mxu0 %v4911
  %6084 = vmatmul.mubr.bf16.gmra.mrb[0].mxu0 %v4910
  %v6085 = vpop.f32.mrb[0].mxu0
  %v6086 = vadd.f32 %v5119, %v6085
  %v6087 = vpop.f32.mrb[0].mxu0
  %v6088 = vadd.f32 %v5123, %v6087
  %v6089 = vpop.f32.mrb[0].mxu0
  %v6090 = vadd.f32 %v5119, %v6089
  %v6091 = vpop.f32.mrb[0].mxu0
  %v6092 = vadd.f32 %v5123, %v6091
  %6093 = vdwg.mxu0
  %6094 = vmatprep.subr.bf16.mxu0 %v5728
  %6095 = vmatpush1.bf16.msra.mxu0 %v5727
  %6096 = vmatprep.subr.bf16.mxu0 %v5733
  %6097 = vmatpush1.bf16.msra.mxu0 %v5732
  %6098 = vmatprep.subr.bf16.mxu0 %v5738
  %6099 = vmatpush1.bf16.msra.mxu0 %v5737
  %6100 = vmatprep.subr.bf16.mxu0 %v5743
  %6101 = vmatpush1.bf16.msra.mxu0 %v5742
  %6102 = vmatprep.subr.bf16.mxu0 %v5748
  %6103 = vmatpush1.bf16.msra.mxu0 %v5747
  %6104 = vmatprep.subr.bf16.mxu0 %v5753
  %6105 = vmatpush1.bf16.msra.mxu0 %v5752
  %6106 = vmatprep.subr.bf16.mxu0 %v5758
  %6107 = vmatpush1.bf16.msra.mxu0 %v5757
  %6108 = vmatprep.subr.bf16.mxu0 %v5763
  %6109 = vmatpush1.bf16.msra.mxu0 %v5762
  %6110 = vmatprep.subr.bf16.mxu0 %v5768
  %6111 = vmatpush1.bf16.msra.mxu0 %v5767
  %6112 = vmatprep.subr.bf16.mxu0 %v5773
  %6113 = vmatpush1.bf16.msra.mxu0 %v5772
  %6114 = vmatprep.subr.bf16.mxu0 %v5778
  %6115 = vmatpush1.bf16.msra.mxu0 %v5777
  %6116 = vmatprep.subr.bf16.mxu0 %v5783
  %6117 = vmatpush1.bf16.msra.mxu0 %v5782
  %6118 = vmatprep.subr.bf16.mxu0 %v5788
  %6119 = vmatpush1.bf16.msra.mxu0 %v5787
  %6120 = vmatprep.subr.bf16.mxu0 %v5793
  %6121 = vmatpush1.bf16.msra.mxu0 %v5792
  %6122 = vmatprep.subr.bf16.mxu0 %v5798
  %6123 = vmatpush1.bf16.msra.mxu0 %v5797
  %6124 = vmatprep.subr.bf16.mxu0 %v5803
  %6125 = vmatpush1.bf16.msra.mxu0 %v5802
  %6126 = vmatprep.mubr.bf16.mxu0 %v4913
  %6127 = vmatmul.mubr.bf16.gmra.mrb[0].mxu0 %v4912
  %v6128 = vpop.f32.mrb[0].mxu0
  %v6129 = vadd.f32 %v6086, %v6128
  %v6130 = vpop.f32.mrb[0].mxu0
  %v6131 = vadd.f32 %v6088, %v6130
  %v6132 = vpop.f32.mrb[0].mxu0
  %v6133 = vadd.f32 %v6090, %v6132
  %v6134 = vpop.f32.mrb[0].mxu0
  %v6135 = vadd.f32 %v6092, %v6134
  %6136 = vdwg.mxu0
  %6137 = vmatprep.subr.bf16.mxu0 0
  %6138 = vmatpush1.bf16.msra.mxu0 %v5649
  %6139 = vmatprep.subr.bf16.mxu0 0
  %6140 = vmatpush1.bf16.msra.mxu0 %v5654
  %6141 = vmatprep.subr.bf16.mxu0 0
  %6142 = vmatpush1.bf16.msra.mxu0 %v5659
  %6143 = vmatprep.subr.bf16.mxu0 0
  %6144 = vmatpush1.bf16.msra.mxu0 %v5664
  %6145 = vmatprep.subr.bf16.mxu0 0
  %6146 = vmatpush1.bf16.msra.mxu0 %v5669
  %6147 = vmatprep.subr.bf16.mxu0 0
  %6148 = vmatpush1.bf16.msra.mxu0 %v5674
  %6149 = vmatprep.subr.bf16.mxu0 0
  %6150 = vmatpush1.bf16.msra.mxu0 %v5679
  %6151 = vmatprep.subr.bf16.mxu0 0
  %6152 = vmatpush1.bf16.msra.mxu0 %v5684
  %6153 = vmatprep.subr.bf16.mxu0 0
  %6154 = vmatpush1.bf16.msra.mxu0 %v5689
  %6155 = vmatprep.subr.bf16.mxu0 0
  %6156 = vmatpush1.bf16.msra.mxu0 %v5694
  %6157 = vmatprep.subr.bf16.mxu0 0
  %6158 = vmatpush1.bf16.msra.mxu0 %v5699
  %6159 = vmatprep.subr.bf16.mxu0 0
  %6160 = vmatpush1.bf16.msra.mxu0 %v5704
  %6161 = vmatprep.subr.bf16.mxu0 0
  %6162 = vmatpush1.bf16.msra.mxu0 %v5709
  %6163 = vmatprep.subr.bf16.mxu0 0
  %6164 = vmatpush1.bf16.msra.mxu0 %v5714
  %6165 = vmatprep.subr.bf16.mxu0 0
  %6166 = vmatpush1.bf16.msra.mxu0 %v5719
  %6167 = vmatprep.subr.bf16.mxu0 0
  %6168 = vmatpush1.bf16.msra.mxu0 %v5724
  %6169 = vmatprep.mubr.bf16.mxu0 %v4911
  %6170 = vmatmul.mubr.bf16.gmra.mrb[0].mxu0 %v4910
  %v6171 = vpop.f32.mrb[0].mxu0
  %v6172 = vadd.f32 %v5127, %v6171
  %v6173 = vpop.f32.mrb[0].mxu0
  %v6174 = vpop.f32.mrb[0].mxu0
  %v6175 = vadd.f32 %v5127, %v6174
  %v6176 = vpop.f32.mrb[0].mxu0
  %6177 = vdwg.mxu0
  %6178 = vmatprep.subr.bf16.mxu0 0
  %6179 = vmatpush1.bf16.msra.mxu0 %v5729
  %6180 = vmatprep.subr.bf16.mxu0 0
  %6181 = vmatpush1.bf16.msra.mxu0 %v5734
  %6182 = vmatprep.subr.bf16.mxu0 0
  %6183 = vmatpush1.bf16.msra.mxu0 %v5739
  %6184 = vmatprep.subr.bf16.mxu0 0
  %6185 = vmatpush1.bf16.msra.mxu0 %v5744
  %6186 = vmatprep.subr.bf16.mxu0 0
  %6187 = vmatpush1.bf16.msra.mxu0 %v5749
  %6188 = vmatprep.subr.bf16.mxu0 0
  %6189 = vmatpush1.bf16.msra.mxu0 %v5754
  %6190 = vmatprep.subr.bf16.mxu0 0
  %6191 = vmatpush1.bf16.msra.mxu0 %v5759
  %6192 = vmatprep.subr.bf16.mxu0 0
  %6193 = vmatpush1.bf16.msra.mxu0 %v5764
  %6194 = vmatprep.subr.bf16.mxu0 0
  %6195 = vmatpush1.bf16.msra.mxu0 %v5769
  %6196 = vmatprep.subr.bf16.mxu0 0
  %6197 = vmatpush1.bf16.msra.mxu0 %v5774
  %6198 = vmatprep.subr.bf16.mxu0 0
  %6199 = vmatpush1.bf16.msra.mxu0 %v5779
  %6200 = vmatprep.subr.bf16.mxu0 0
  %6201 = vmatpush1.bf16.msra.mxu0 %v5784
  %6202 = vmatprep.subr.bf16.mxu0 0
  %6203 = vmatpush1.bf16.msra.mxu0 %v5789
  %6204 = vmatprep.subr.bf16.mxu0 0
  %6205 = vmatpush1.bf16.msra.mxu0 %v5794
  %6206 = vmatprep.subr.bf16.mxu0 0
  %6207 = vmatpush1.bf16.msra.mxu0 %v5799
  %6208 = vmatprep.subr.bf16.mxu0 0
  %6209 = vmatpush1.bf16.msra.mxu0 %v5804
  %6210 = vmatprep.mubr.bf16.mxu0 %v4913
  %6211 = vmatmul.mubr.bf16.gmra.mrb[0].mxu0 %v4912
  %v6212 = vpop.f32.mrb[0].mxu0
  %v6213 = vadd.f32 %v6172, %v6212
  %v6214 = vpop.f32.mrb[0].mxu0
  %v6215 = vpop.f32.mrb[0].mxu0
  %v6216 = vadd.f32 %v6175, %v6215
  %v6217 = vpop.f32.mrb[0].mxu0
  %6218 = vdwg.mxu0
  %v6219 = vmul.f32 %v6043, 0.1
  %v6220 = vmul.f32 %v6045, 0.1
  %v6221 = vmul.f32 %v6129, 0.1
  %v6222 = vmul.f32 %v6131, 0.1
  %v6223 = vmul.f32 %v6213, 0.1
  %v6224 = vmul.f32 %v6047, 0.1
  %v6225 = vmul.f32 %v6049, 0.1
  %v6226 = vmul.f32 %v6133, 0.1
  %v6227 = vmul.f32 %v6135, 0.1
  %v6228 = vmul.f32 %v6216, 0.1
  %v6229 = vmax.f32 %v6043, %v6219
  %v6230 = vmax.f32 %v6045, %v6220
  %v6231 = vmax.f32 %v6129, %v6221
  %v6232 = vmax.f32 %v6131, %v6222
  %v6233 = vmax.f32 %v6213, %v6223
  %v6234 = vmax.f32 %v6047, %v6224
  %v6235 = vmax.f32 %v6049, %v6225
  %v6236 = vmax.f32 %v6133, %v6226
  %v6237 = vmax.f32 %v6135, %v6227
  %v6238 = vmax.f32 %v6216, %v6228
  %v6239 = vpack.c.bf16 %v6234, %v6229
  %v6240 = vpack.c.bf16 %v6235, %v6230
  %v6241 = vpack.c.bf16 %v6236, %v6231
  %v6242 = vpack.c.bf16 %v6237, %v6232
  %v6243 = vpack.c.bf16 %v6238, %v6233
  %v6244 = vld [vmem:[%s10] sm:$0xff]
  %v6245 = vld [vmem:[%s10 + $0x8] sm:$0xff]
  %v6246 = vld [vmem:[%s10 + $0x10] sm:$0xff]
  %v6247 = vld [vmem:[%s10 + $0x18] sm:$0xff]
  %v6248 = vld [vmem:[%s10 + $0x20] sm:$0xff]
  %v6249 = vld [vmem:[%s10 + $0x28] sm:$0xff]
  %v6250 = vld [vmem:[%s10 + $0x30] sm:$0xff]
  %v6251 = vld [vmem:[%s10 + $0x38] sm:$0xff]
  %v6252 = vld [vmem:[%s10 + $0x40] sm:$0xff]
  %v6253 = vld [vmem:[%s10 + $0x48] sm:$0xff]
  %v6254 = vld [vmem:[%s10 + $0x50] sm:$0xff]
  %v6255 = vld [vmem:[%s10 + $0x58] sm:$0xff]
  %v6256 = vld [vmem:[%s10 + $0x60] sm:$0xff]
  %v6257 = vld [vmem:[%s10 + $0x68] sm:$0xff]
  %v6258 = vld [vmem:[%s10 + $0x70] sm:$0xff]
  %v6259 = vld [vmem:[%s10 + $0x78] sm:$0xff]
  %v6260 = vld [vmem:[%s10 + $0x80] sm:$0xff]
  %v6261 = vld [vmem:[%s10 + $0x88] sm:$0xff]
  %v6262 = vld [vmem:[%s10 + $0x90] sm:$0xff]
  %v6263 = vld [vmem:[%s10 + $0x98] sm:$0xff]
  %v6264 = vld [vmem:[%s10 + $0xa0] sm:$0xff]
  %v6265 = vld [vmem:[%s10 + $0xa8] sm:$0xff]
  %v6266 = vld [vmem:[%s10 + $0xb0] sm:$0xff]
  %v6267 = vld [vmem:[%s10 + $0xb8] sm:$0xff]
  %v6268 = vld [vmem:[%s10 + $0xc0] sm:$0xff]
  %v6269 = vld [vmem:[%s10 + $0xc8] sm:$0xff]
  %v6270 = vld [vmem:[%s10 + $0xd0] sm:$0xff]
  %v6271 = vld [vmem:[%s10 + $0xd8] sm:$0xff]
  %v6272 = vld [vmem:[%s10 + $0xe0] sm:$0xff]
  %v6273 = vld [vmem:[%s10 + $0xe8] sm:$0xff]
  %v6274 = vld [vmem:[%s10 + $0xf0] sm:$0xff]
  %v6275 = vld [vmem:[%s10 + $0xf8] sm:$0xff]
  %v6276 = vld [vmem:[%s10 + $0x100] sm:$0xff]
  %v6277 = vld [vmem:[%s10 + $0x108] sm:$0xff]
  %v6278 = vld [vmem:[%s10 + $0x110] sm:$0xff]
  %v6279 = vld [vmem:[%s10 + $0x118] sm:$0xff]
  %v6280 = vld [vmem:[%s10 + $0x120] sm:$0xff]
  %v6281 = vld [vmem:[%s10 + $0x128] sm:$0xff]
  %v6282 = vld [vmem:[%s10 + $0x130] sm:$0xff]
  %v6283 = vld [vmem:[%s10 + $0x138] sm:$0xff]
  %v6284 = vld [vmem:[%s10 + $0x140] sm:$0xff]
  %v6285 = vld [vmem:[%s10 + $0x148] sm:$0xff]
  %v6286 = vld [vmem:[%s10 + $0x150] sm:$0xff]
  %v6287 = vld [vmem:[%s10 + $0x158] sm:$0xff]
  %v6288 = vld [vmem:[%s10 + $0x160] sm:$0xff]
  %v6289 = vld [vmem:[%s10 + $0x168] sm:$0xff]
  %v6290 = vld [vmem:[%s10 + $0x170] sm:$0xff]
  %v6291 = vld [vmem:[%s10 + $0x178] sm:$0xff]
  %v6292 = vld [vmem:[%s10 + $0x180] sm:$0xff]
  %v6293 = vld [vmem:[%s10 + $0x188] sm:$0xff]
  %v6294 = vld [vmem:[%s10 + $0x190] sm:$0xff]
  %v6295 = vld [vmem:[%s10 + $0x198] sm:$0xff]
  %v6296 = vld [vmem:[%s10 + $0x1a0] sm:$0xff]
  %v6297 = vld [vmem:[%s10 + $0x1a8] sm:$0xff]
  %v6298 = vld [vmem:[%s10 + $0x1b0] sm:$0xff]
  %v6299 = vld [vmem:[%s10 + $0x1b8] sm:$0xff]
  %v6300 = vld [vmem:[%s10 + $0x1c0] sm:$0xff]
  %v6301 = vld [vmem:[%s10 + $0x1c8] sm:$0xff]
  %v6302 = vld [vmem:[%s10 + $0x1d0] sm:$0xff]
  %v6303 = vld [vmem:[%s10 + $0x1d8] sm:$0xff]
  %v6304 = vld [vmem:[%s10 + $0x1e0] sm:$0xff]
  %v6305 = vld [vmem:[%s10 + $0x1e8] sm:$0xff]
  %v6306 = vld [vmem:[%s10 + $0x1f0] sm:$0xff]
  %v6307 = vld [vmem:[%s10 + $0x1f8] sm:$0xff]
  %v6308 = vld [vmem:[%s10 + $0x200] sm:$0xff]
  %v6309 = vld [vmem:[%s10 + $0x208] sm:$0xff]
  %v6310 = vld [vmem:[%s10 + $0x210] sm:$0xff]
  %v6311 = vld [vmem:[%s10 + $0x218] sm:$0xff]
  %v6312 = vld [vmem:[%s10 + $0x220] sm:$0xff]
  %v6313 = vld [vmem:[%s10 + $0x228] sm:$0xff]
  %v6314 = vld [vmem:[%s10 + $0x230] sm:$0xff]
  %v6315 = vld [vmem:[%s10 + $0x238] sm:$0xff]
  %v6316 = vld [vmem:[%s10 + $0x240] sm:$0xff]
  %v6317 = vld [vmem:[%s10 + $0x248] sm:$0xff]
  %v6318 = vld [vmem:[%s10 + $0x250] sm:$0xff]
  %v6319 = vld [vmem:[%s10 + $0x258] sm:$0xff]
  %v6320 = vld [vmem:[%s10 + $0x260] sm:$0xff]
  %v6321 = vld [vmem:[%s10 + $0x268] sm:$0xff]
  %v6322 = vld [vmem:[%s10 + $0x270] sm:$0xff]
  %v6323 = vld [vmem:[%s10 + $0x278] sm:$0xff]
  %v6324 = vld [vmem:[%s10 + $0x280] sm:$0xff]
  %v6325 = vld [vmem:[%s10 + $0x288] sm:$0xff]
  %v6326 = vld [vmem:[%s10 + $0x290] sm:$0xff]
  %v6327 = vld [vmem:[%s10 + $0x298] sm:$0xff]
  %v6328 = vld [vmem:[%s10 + $0x2a0] sm:$0xff]
  %v6329 = vld [vmem:[%s10 + $0x2a8] sm:$0xff]
  %v6330 = vld [vmem:[%s10 + $0x2b0] sm:$0xff]
  %v6331 = vld [vmem:[%s10 + $0x2b8] sm:$0xff]
  %v6332 = vld [vmem:[%s10 + $0x2c0] sm:$0xff]
  %v6333 = vld [vmem:[%s10 + $0x2c8] sm:$0xff]
  %v6334 = vld [vmem:[%s10 + $0x2d0] sm:$0xff]
  %v6335 = vld [vmem:[%s10 + $0x2d8] sm:$0xff]
  %v6336 = vld [vmem:[%s10 + $0x2e0] sm:$0xff]
  %v6337 = vld [vmem:[%s10 + $0x2e8] sm:$0xff]
  %v6338 = vld [vmem:[%s10 + $0x2f0] sm:$0xff]
  %v6339 = vld [vmem:[%s10 + $0x2f8] sm:$0xff]
  %v6340 = vld [vmem:[%s10 + $0x300] sm:$0xff]
  %v6341 = vld [vmem:[%s10 + $0x308] sm:$0xff]
  %v6342 = vld [vmem:[%s10 + $0x310] sm:$0xff]
  %v6343 = vld [vmem:[%s10 + $0x318] sm:$0xff]
  %v6344 = vld [vmem:[%s10 + $0x320] sm:$0xff]
  %v6345 = vld [vmem:[%s10 + $0x328] sm:$0xff]
  %v6346 = vld [vmem:[%s10 + $0x330] sm:$0xff]
  %v6347 = vld [vmem:[%s10 + $0x338] sm:$0xff]
  %v6348 = vld [vmem:[%s10 + $0x340] sm:$0xff]
  %v6349 = vld [vmem:[%s10 + $0x348] sm:$0xff]
  %v6350 = vld [vmem:[%s10 + $0x350] sm:$0xff]
  %v6351 = vld [vmem:[%s10 + $0x358] sm:$0xff]
  %v6352 = vld [vmem:[%s10 + $0x360] sm:$0xff]
  %v6353 = vld [vmem:[%s10 + $0x368] sm:$0xff]
  %v6354 = vld [vmem:[%s10 + $0x370] sm:$0xff]
  %v6355 = vld [vmem:[%s10 + $0x378] sm:$0xff]
  %v6356 = vld [vmem:[%s10 + $0x380] sm:$0xff]
  %v6357 = vld [vmem:[%s10 + $0x388] sm:$0xff]
  %v6358 = vld [vmem:[%s10 + $0x390] sm:$0xff]
  %v6359 = vld [vmem:[%s10 + $0x398] sm:$0xff]
  %v6360 = vld [vmem:[%s10 + $0x3a0] sm:$0xff]
  %v6361 = vld [vmem:[%s10 + $0x3a8] sm:$0xff]
  %v6362 = vld [vmem:[%s10 + $0x3b0] sm:$0xff]
  %v6363 = vld [vmem:[%s10 + $0x3b8] sm:$0xff]
  %v6364 = vld [vmem:[%s10 + $0x3c0] sm:$0xff]
  %v6365 = vld [vmem:[%s10 + $0x3c8] sm:$0xff]
  %v6366 = vld [vmem:[%s10 + $0x3d0] sm:$0xff]
  %v6367 = vld [vmem:[%s10 + $0x3d8] sm:$0xff]
  %v6368 = vld [vmem:[%s10 + $0x3e0] sm:$0xff]
  %v6369 = vld [vmem:[%s10 + $0x3e8] sm:$0xff]
  %v6370 = vld [vmem:[%s10 + $0x3f0] sm:$0xff]
  %v6371 = vld [vmem:[%s10 + $0x3f8] sm:$0xff]
  %v6372 = vld [vmem:[%s10 + $0x400] sm:$0xff]
  %v6373 = vld [vmem:[%s10 + $0x408] sm:$0xff]
  %v6374 = vld [vmem:[%s10 + $0x410] sm:$0xff]
  %v6375 = vld [vmem:[%s10 + $0x418] sm:$0xff]
  %v6376 = vld [vmem:[%s10 + $0x420] sm:$0xff]
  %v6377 = vld [vmem:[%s10 + $0x428] sm:$0xff]
  %v6378 = vld [vmem:[%s10 + $0x430] sm:$0xff]
  %v6379 = vld [vmem:[%s10 + $0x438] sm:$0xff]
  %v6380 = vld [vmem:[%s10 + $0x440] sm:$0xff]
  %v6381 = vld [vmem:[%s10 + $0x448] sm:$0xff]
  %v6382 = vld [vmem:[%s10 + $0x450] sm:$0xff]
  %v6383 = vld [vmem:[%s10 + $0x458] sm:$0xff]
  %v6384 = vld [vmem:[%s10 + $0x460] sm:$0xff]
  %v6385 = vld [vmem:[%s10 + $0x468] sm:$0xff]
  %v6386 = vld [vmem:[%s10 + $0x470] sm:$0xff]
  %v6387 = vld [vmem:[%s10 + $0x478] sm:$0xff]
  %v6388 = vld [vmem:[%s10 + $0x480] sm:$0xff]
  %v6389 = vld [vmem:[%s10 + $0x488] sm:$0xff]
  %v6390 = vld [vmem:[%s10 + $0x490] sm:$0xff]
  %v6391 = vld [vmem:[%s10 + $0x498] sm:$0xff]
  %v6392 = vld [vmem:[%s10 + $0x4a0] sm:$0xff]
  %v6393 = vld [vmem:[%s10 + $0x4a8] sm:$0xff]
  %v6394 = vld [vmem:[%s10 + $0x4b0] sm:$0xff]
  %v6395 = vld [vmem:[%s10 + $0x4b8] sm:$0xff]
  %v6396 = vld [vmem:[%s10 + $0x4c0] sm:$0xff]
  %v6397 = vld [vmem:[%s10 + $0x4c8] sm:$0xff]
  %v6398 = vld [vmem:[%s10 + $0x4d0] sm:$0xff]
  %v6399 = vld [vmem:[%s10 + $0x4d8] sm:$0xff]
  %v6400 = vld [vmem:[%s10 + $0x4e0] sm:$0xff]
  %v6401 = vld [vmem:[%s10 + $0x4e8] sm:$0xff]
  %v6402 = vld [vmem:[%s10 + $0x4f0] sm:$0xff]
  %v6403 = vld [vmem:[%s10 + $0x4f8] sm:$0xff]
  %v6404 = vld [vmem:[%s10 + $0x500] sm:$0xff]
  %v6405 = vld [vmem:[%s10 + $0x508] sm:$0xff]
  %v6406 = vld [vmem:[%s10 + $0x510] sm:$0xff]
  %v6407 = vld [vmem:[%s10 + $0x518] sm:$0xff]
  %v6408 = vld [vmem:[%s10 + $0x520] sm:$0xff]
  %v6409 = vld [vmem:[%s10 + $0x528] sm:$0xff]
  %v6410 = vld [vmem:[%s10 + $0x530] sm:$0xff]
  %v6411 = vld [vmem:[%s10 + $0x538] sm:$0xff]
  %v6412 = vld [vmem:[%s10 + $0x540] sm:$0xff]
  %v6413 = vld [vmem:[%s10 + $0x548] sm:$0xff]
  %v6414 = vld [vmem:[%s10 + $0x550] sm:$0xff]
  %v6415 = vld [vmem:[%s10 + $0x558] sm:$0xff]
  %v6416 = vld [vmem:[%s10 + $0x560] sm:$0xff]
  %v6417 = vld [vmem:[%s10 + $0x568] sm:$0xff]
  %v6418 = vld [vmem:[%s10 + $0x570] sm:$0xff]
  %v6419 = vld [vmem:[%s10 + $0x578] sm:$0xff]
  %v6420 = vld [vmem:[%s10 + $0x580] sm:$0xff]
  %v6421 = vld [vmem:[%s10 + $0x588] sm:$0xff]
  %v6422 = vld [vmem:[%s10 + $0x590] sm:$0xff]
  %v6423 = vld [vmem:[%s10 + $0x598] sm:$0xff]
  %v6424 = vld [vmem:[%s10 + $0x5a0] sm:$0xff]
  %v6425 = vld [vmem:[%s10 + $0x5a8] sm:$0xff]
  %v6426 = vld [vmem:[%s10 + $0x5b0] sm:$0xff]
  %v6427 = vld [vmem:[%s10 + $0x5b8] sm:$0xff]
  %v6428 = vld [vmem:[%s10 + $0x5c0] sm:$0xff]
  %v6429 = vld [vmem:[%s10 + $0x5c8] sm:$0xff]
  %v6430 = vld [vmem:[%s10 + $0x5d0] sm:$0xff]
  %v6431 = vld [vmem:[%s10 + $0x5d8] sm:$0xff]
  %v6432 = vld [vmem:[%s10 + $0x5e0] sm:$0xff]
  %v6433 = vld [vmem:[%s10 + $0x5e8] sm:$0xff]
  %v6434 = vld [vmem:[%s10 + $0x5f0] sm:$0xff]
  %v6435 = vld [vmem:[%s10 + $0x5f8] sm:$0xff]
  %v6436 = vld [vmem:[%s10 + $0x600] sm:$0xff]
  %v6437 = vld [vmem:[%s10 + $0x608] sm:$0xff]
  %v6438 = vld [vmem:[%s10 + $0x610] sm:$0xff]
  %v6439 = vld [vmem:[%s10 + $0x618] sm:$0xff]
  %v6440 = vld [vmem:[%s10 + $0x620] sm:$0xff]
  %v6441 = vld [vmem:[%s10 + $0x628] sm:$0xff]
  %v6442 = vld [vmem:[%s10 + $0x630] sm:$0xff]
  %v6443 = vld [vmem:[%s10 + $0x638] sm:$0xff]
  %v6444 = vld [vmem:[%s10 + $0x640] sm:$0xff]
  %v6445 = vld [vmem:[%s10 + $0x648] sm:$0xff]
  %v6446 = vld [vmem:[%s10 + $0x650] sm:$0xff]
  %v6447 = vld [vmem:[%s10 + $0x658] sm:$0xff]
  %v6448 = vld [vmem:[%s10 + $0x660] sm:$0xff]
  %v6449 = vld [vmem:[%s10 + $0x668] sm:$0xff]
  %v6450 = vld [vmem:[%s10 + $0x670] sm:$0xff]
  %v6451 = vld [vmem:[%s10 + $0x678] sm:$0xff]
  %v6452 = vld [vmem:[%s10 + $0x680] sm:$0xff]
  %v6453 = vld [vmem:[%s10 + $0x688] sm:$0xff]
  %v6454 = vld [vmem:[%s10 + $0x690] sm:$0xff]
  %v6455 = vld [vmem:[%s10 + $0x698] sm:$0xff]
  %v6456 = vld [vmem:[%s10 + $0x6a0] sm:$0xff]
  %v6457 = vld [vmem:[%s10 + $0x6a8] sm:$0xff]
  %v6458 = vld [vmem:[%s10 + $0x6b0] sm:$0xff]
  %v6459 = vld [vmem:[%s10 + $0x6b8] sm:$0xff]
  %v6460 = vld [vmem:[%s10 + $0x6c0] sm:$0xff]
  %v6461 = vld [vmem:[%s10 + $0x6c8] sm:$0xff]
  %v6462 = vld [vmem:[%s10 + $0x6d0] sm:$0xff]
  %v6463 = vld [vmem:[%s10 + $0x6d8] sm:$0xff]
  %v6464 = vld [vmem:[%s10 + $0x6e0] sm:$0xff]
  %v6465 = vld [vmem:[%s10 + $0x6e8] sm:$0xff]
  %v6466 = vld [vmem:[%s10 + $0x6f0] sm:$0xff]
  %v6467 = vld [vmem:[%s10 + $0x6f8] sm:$0xff]
  %v6468 = vld [vmem:[%s10 + $0x700] sm:$0xff]
  %v6469 = vld [vmem:[%s10 + $0x708] sm:$0xff]
  %v6470 = vld [vmem:[%s10 + $0x710] sm:$0xff]
  %v6471 = vld [vmem:[%s10 + $0x718] sm:$0xff]
  %v6472 = vld [vmem:[%s10 + $0x720] sm:$0xff]
  %v6473 = vld [vmem:[%s10 + $0x728] sm:$0xff]
  %v6474 = vld [vmem:[%s10 + $0x730] sm:$0xff]
  %v6475 = vld [vmem:[%s10 + $0x738] sm:$0xff]
  %v6476 = vld [vmem:[%s10 + $0x740] sm:$0xff]
  %v6477 = vld [vmem:[%s10 + $0x748] sm:$0xff]
  %v6478 = vld [vmem:[%s10 + $0x750] sm:$0xff]
  %v6479 = vld [vmem:[%s10 + $0x758] sm:$0xff]
  %v6480 = vld [vmem:[%s10 + $0x760] sm:$0xff]
  %v6481 = vld [vmem:[%s10 + $0x768] sm:$0xff]
  %v6482 = vld [vmem:[%s10 + $0x770] sm:$0xff]
  %v6483 = vld [vmem:[%s10 + $0x778] sm:$0xff]
  %v6484 = vld [vmem:[%s20] sm:$0x3f]
  %v6486 = vlaneseq
  %v6487 = vshrl.u32 %v6486, 7
  %v6488 = vsub.s32 0, %v6487
  %v6489 = vrot.slane %v6484, %v6488
  %v6490 = vlaneseq
  %v6491 = vshrl.u32 %v6490, 7
  %v6492 = vsub.s32 1, %v6491
  %v6493 = vrot.slane %v6484, %v6492
  %v6494 = vlaneseq
  %v6495 = vshrl.u32 %v6494, 7
  %v6496 = vsub.s32 2, %v6495
  %v6497 = vrot.slane %v6484, %v6496
  %v6498 = vlaneseq
  %v6499 = vshrl.u32 %v6498, 7
  %v6500 = vsub.s32 3, %v6499
  %v6501 = vrot.slane %v6484, %v6500
  %v6502 = vlaneseq
  %v6503 = vshrl.u32 %v6502, 7
  %v6504 = vsub.s32 4, %v6503
  %v6505 = vrot.slane %v6484, %v6504
  %v6506 = vlaneseq
  %v6507 = vshrl.u32 %v6506, 7
  %v6508 = vsub.s32 5, %v6507
  %v6509 = vrot.slane %v6484, %v6508
  %v6756 = vunpack.c.l.b16 %v6244
  %v6757 = vunpack.c.h.b16 %v6244
  %v6758 = vunpack.c.l.b16 %v6245
  %v6759 = vunpack.c.h.b16 %v6245
  %v6760 = vunpack.c.l.b16 %v6246
  %v6761 = vunpack.c.h.b16 %v6246
  %v6762 = vunpack.c.l.b16 %v6247
  %v6763 = vunpack.c.h.b16 %v6247
  %v6764 = vunpack.c.l.b16 %v6248
  %v6765 = vunpack.c.h.b16 %v6248
  %v6766 = vunpack.c.l.b16 %v6249
  %v6767 = vunpack.c.h.b16 %v6249
  %v6768 = vunpack.c.l.b16 %v6250
  %v6769 = vunpack.c.h.b16 %v6250
  %v6770 = vunpack.c.l.b16 %v6251
  %v6771 = vunpack.c.h.b16 %v6251
  %v6772 = vunpack.c.l.b16 %v6252
  %v6773 = vunpack.c.h.b16 %v6252
  %v6774 = vunpack.c.l.b16 %v6253
  %v6775 = vunpack.c.h.b16 %v6253
  %v6776 = vunpack.c.l.b16 %v6254
  %v6777 = vunpack.c.h.b16 %v6254
  %v6778 = vunpack.c.l.b16 %v6255
  %v6779 = vunpack.c.h.b16 %v6255
  %v6780 = vunpack.c.l.b16 %v6256
  %v6781 = vunpack.c.h.b16 %v6256
  %v6782 = vunpack.c.l.b16 %v6257
  %v6783 = vunpack.c.h.b16 %v6257
  %v6784 = vunpack.c.l.b16 %v6258
  %v6785 = vunpack.c.h.b16 %v6258
  %v6786 = vunpack.c.l.b16 %v6259
  %v6787 = vunpack.c.h.b16 %v6259
  %v6788 = vunpack.c.l.b16 %v6260
  %v6789 = vunpack.c.h.b16 %v6260
  %v6790 = vunpack.c.l.b16 %v6261
  %v6791 = vunpack.c.h.b16 %v6261
  %v6792 = vunpack.c.l.b16 %v6262
  %v6793 = vunpack.c.h.b16 %v6262
  %v6794 = vunpack.c.l.b16 %v6263
  %v6795 = vunpack.c.h.b16 %v6263
  %v6796 = vunpack.c.l.b16 %v6264
  %v6797 = vunpack.c.h.b16 %v6264
  %v6798 = vunpack.c.l.b16 %v6265
  %v6799 = vunpack.c.h.b16 %v6265
  %v6800 = vunpack.c.l.b16 %v6266
  %v6801 = vunpack.c.h.b16 %v6266
  %v6802 = vunpack.c.l.b16 %v6267
  %v6803 = vunpack.c.h.b16 %v6267
  %v6804 = vunpack.c.l.b16 %v6268
  %v6805 = vunpack.c.h.b16 %v6268
  %v6806 = vunpack.c.l.b16 %v6269
  %v6807 = vunpack.c.h.b16 %v6269
  %v6808 = vunpack.c.l.b16 %v6270
  %v6809 = vunpack.c.h.b16 %v6270
  %v6810 = vunpack.c.l.b16 %v6271
  %v6811 = vunpack.c.h.b16 %v6271
  %v6812 = vunpack.c.l.b16 %v6272
  %v6813 = vunpack.c.h.b16 %v6272
  %v6814 = vunpack.c.l.b16 %v6273
  %v6815 = vunpack.c.h.b16 %v6273
  %v6816 = vunpack.c.l.b16 %v6274
  %v6817 = vunpack.c.h.b16 %v6274
  %v6818 = vunpack.c.l.b16 %v6275
  %v6819 = vunpack.c.h.b16 %v6275
  %v6820 = vunpack.c.l.b16 %v6276
  %v6821 = vunpack.c.h.b16 %v6276
  %v6822 = vunpack.c.l.b16 %v6277
  %v6823 = vunpack.c.h.b16 %v6277
  %v6824 = vunpack.c.l.b16 %v6278
  %v6825 = vunpack.c.h.b16 %v6278
  %v6826 = vunpack.c.l.b16 %v6279
  %v6827 = vunpack.c.h.b16 %v6279
  %v6828 = vunpack.c.l.b16 %v6280
  %v6829 = vunpack.c.h.b16 %v6280
  %v6830 = vunpack.c.l.b16 %v6281
  %v6831 = vunpack.c.h.b16 %v6281
  %v6832 = vunpack.c.l.b16 %v6282
  %v6833 = vunpack.c.h.b16 %v6282
  %v6834 = vunpack.c.l.b16 %v6283
  %v6835 = vunpack.c.h.b16 %v6283
  %v6836 = vunpack.c.l.b16 %v6284
  %v6837 = vunpack.c.h.b16 %v6284
  %v6838 = vunpack.c.l.b16 %v6285
  %v6839 = vunpack.c.h.b16 %v6285
  %v6840 = vunpack.c.l.b16 %v6286
  %v6841 = vunpack.c.h.b16 %v6286
  %v6842 = vunpack.c.l.b16 %v6287
  %v6843 = vunpack.c.h.b16 %v6287
  %v6844 = vunpack.c.l.b16 %v6288
  %v6845 = vunpack.c.h.b16 %v6288
  %v6846 = vunpack.c.l.b16 %v6289
  %v6847 = vunpack.c.h.b16 %v6289
  %v6848 = vunpack.c.l.b16 %v6290
  %v6849 = vunpack.c.h.b16 %v6290
  %v6850 = vunpack.c.l.b16 %v6291
  %v6851 = vunpack.c.h.b16 %v6291
  %v6852 = vunpack.c.l.b16 %v6292
  %v6853 = vunpack.c.h.b16 %v6292
  %v6854 = vunpack.c.l.b16 %v6293
  %v6855 = vunpack.c.h.b16 %v6293
  %v6856 = vunpack.c.l.b16 %v6294
  %v6857 = vunpack.c.h.b16 %v6294
  %v6858 = vunpack.c.l.b16 %v6295
  %v6859 = vunpack.c.h.b16 %v6295
  %v6860 = vunpack.c.l.b16 %v6296
  %v6861 = vunpack.c.h.b16 %v6296
  %v6862 = vunpack.c.l.b16 %v6297
  %v6863 = vunpack.c.h.b16 %v6297
  %v6864 = vunpack.c.l.b16 %v6298
  %v6865 = vunpack.c.h.b16 %v6298
  %v6866 = vunpack.c.l.b16 %v6299
  %v6867 = vunpack.c.h.b16 %v6299
  %v6868 = vunpack.c.l.b16 %v6300
  %v6869 = vunpack.c.h.b16 %v6300
  %v6870 = vunpack.c.l.b16 %v6301
  %v6871 = vunpack.c.h.b16 %v6301
  %v6872 = vunpack.c.l.b16 %v6302
  %v6873 = vunpack.c.h.b16 %v6302
  %v6874 = vunpack.c.l.b16 %v6303
  %v6875 = vunpack.c.h.b16 %v6303
  %v6876 = vunpack.c.l.b16 %v6304
  %v6877 = vunpack.c.h.b16 %v6304
  %v6878 = vunpack.c.l.b16 %v6305
  %v6879 = vunpack.c.h.b16 %v6305
  %v6880 = vunpack.c.l.b16 %v6306
  %v6881 = vunpack.c.h.b16 %v6306
  %v6882 = vunpack.c.l.b16 %v6307
  %v6883 = vunpack.c.h.b16 %v6307
  %v6884 = vunpack.c.l.b16 %v6308
  %v6885 = vunpack.c.h.b16 %v6308
  %v6886 = vunpack.c.l.b16 %v6309
  %v6887 = vunpack.c.h.b16 %v6309
  %v6888 = vunpack.c.l.b16 %v6310
  %v6889 = vunpack.c.h.b16 %v6310
  %v6890 = vunpack.c.l.b16 %v6311
  %v6891 = vunpack.c.h.b16 %v6311
  %v6892 = vunpack.c.l.b16 %v6312
  %v6893 = vunpack.c.h.b16 %v6312
  %v6894 = vunpack.c.l.b16 %v6313
  %v6895 = vunpack.c.h.b16 %v6313
  %v6896 = vunpack.c.l.b16 %v6314
  %v6897 = vunpack.c.h.b16 %v6314
  %v6898 = vunpack.c.l.b16 %v6315
  %v6899 = vunpack.c.h.b16 %v6315
  %v6900 = vunpack.c.l.b16 %v6316
  %v6901 = vunpack.c.h.b16 %v6316
  %v6902 = vunpack.c.l.b16 %v6317
  %v6903 = vunpack.c.h.b16 %v6317
  %v6904 = vunpack.c.l.b16 %v6318
  %v6905 = vunpack.c.h.b16 %v6318
  %v6906 = vunpack.c.l.b16 %v6319
  %v6907 = vunpack.c.h.b16 %v6319
  %v6908 = vunpack.c.l.b16 %v6320
  %v6909 = vunpack.c.h.b16 %v6320
  %v6910 = vunpack.c.l.b16 %v6321
  %v6911 = vunpack.c.h.b16 %v6321
  %v6912 = vunpack.c.l.b16 %v6322
  %v6913 = vunpack.c.h.b16 %v6322
  %v6914 = vunpack.c.l.b16 %v6323
  %v6915 = vunpack.c.h.b16 %v6323
  %v6916 = vunpack.c.l.b16 %v6324
  %v6917 = vunpack.c.h.b16 %v6324
  %v6918 = vunpack.c.l.b16 %v6325
  %v6919 = vunpack.c.h.b16 %v6325
  %v6920 = vunpack.c.l.b16 %v6326
  %v6921 = vunpack.c.h.b16 %v6326
  %v6922 = vunpack.c.l.b16 %v6327
  %v6923 = vunpack.c.h.b16 %v6327
  %v6924 = vunpack.c.l.b16 %v6328
  %v6925 = vunpack.c.h.b16 %v6328
  %v6926 = vunpack.c.l.b16 %v6329
  %v6927 = vunpack.c.h.b16 %v6329
  %v6928 = vunpack.c.l.b16 %v6330
  %v6929 = vunpack.c.h.b16 %v6330
  %v6930 = vunpack.c.l.b16 %v6331
  %v6931 = vunpack.c.h.b16 %v6331
  %v6932 = vunpack.c.l.b16 %v6332
  %v6933 = vunpack.c.h.b16 %v6332
  %v6934 = vunpack.c.l.b16 %v6333
  %v6935 = vunpack.c.h.b16 %v6333
  %v6936 = vunpack.c.l.b16 %v6334
  %v6937 = vunpack.c.h.b16 %v6334
  %v6938 = vunpack.c.l.b16 %v6335
  %v6939 = vunpack.c.h.b16 %v6335
  %v6940 = vunpack.c.l.b16 %v6336
  %v6941 = vunpack.c.h.b16 %v6336
  %v6942 = vunpack.c.l.b16 %v6337
  %v6943 = vunpack.c.h.b16 %v6337
  %v6944 = vunpack.c.l.b16 %v6338
  %v6945 = vunpack.c.h.b16 %v6338
  %v6946 = vunpack.c.l.b16 %v6339
  %v6947 = vunpack.c.h.b16 %v6339
  %v6948 = vunpack.c.l.b16 %v6340
  %v6949 = vunpack.c.h.b16 %v6340
  %v6950 = vunpack.c.l.b16 %v6341
  %v6951 = vunpack.c.h.b16 %v6341
  %v6952 = vunpack.c.l.b16 %v6342
  %v6953 = vunpack.c.h.b16 %v6342
  %v6954 = vunpack.c.l.b16 %v6343
  %v6955 = vunpack.c.h.b16 %v6343
  %v6956 = vunpack.c.l.b16 %v6344
  %v6957 = vunpack.c.h.b16 %v6344
  %v6958 = vunpack.c.l.b16 %v6345
  %v6959 = vunpack.c.h.b16 %v6345
  %v6960 = vunpack.c.l.b16 %v6346
  %v6961 = vunpack.c.h.b16 %v6346
  %v6962 = vunpack.c.l.b16 %v6347
  %v6963 = vunpack.c.h.b16 %v6347
  %v6964 = vunpack.c.l.b16 %v6348
  %v6965 = vunpack.c.h.b16 %v6348
  %v6966 = vunpack.c.l.b16 %v6349
  %v6967 = vunpack.c.h.b16 %v6349
  %v6968 = vunpack.c.l.b16 %v6350
  %v6969 = vunpack.c.h.b16 %v6350
  %v6970 = vunpack.c.l.b16 %v6351
  %v6971 = vunpack.c.h.b16 %v6351
  %v6972 = vunpack.c.l.b16 %v6352
  %v6973 = vunpack.c.h.b16 %v6352
  %v6974 = vunpack.c.l.b16 %v6353
  %v6975 = vunpack.c.h.b16 %v6353
  %v6976 = vunpack.c.l.b16 %v6354
  %v6977 = vunpack.c.h.b16 %v6354
  %v6978 = vunpack.c.l.b16 %v6355
  %v6979 = vunpack.c.h.b16 %v6355
  %v6980 = vunpack.c.l.b16 %v6356
  %v6981 = vunpack.c.h.b16 %v6356
  %v6982 = vunpack.c.l.b16 %v6357
  %v6983 = vunpack.c.h.b16 %v6357
  %v6984 = vunpack.c.l.b16 %v6358
  %v6985 = vunpack.c.h.b16 %v6358
  %v6986 = vunpack.c.l.b16 %v6359
  %v6987 = vunpack.c.h.b16 %v6359
  %v6988 = vunpack.c.l.b16 %v6360
  %v6989 = vunpack.c.h.b16 %v6360
  %v6990 = vunpack.c.l.b16 %v6361
  %v6991 = vunpack.c.h.b16 %v6361
  %v6992 = vunpack.c.l.b16 %v6362
  %v6993 = vunpack.c.h.b16 %v6362
  %v6994 = vunpack.c.l.b16 %v6363
  %v6995 = vunpack.c.h.b16 %v6363
  %v6996 = vunpack.c.l.b16 %v6364
  %v6997 = vunpack.c.h.b16 %v6364
  %v6998 = vunpack.c.l.b16 %v6365
  %v6999 = vunpack.c.h.b16 %v6365
  %v7000 = vunpack.c.l.b16 %v6366
  %v7001 = vunpack.c.h.b16 %v6366
  %v7002 = vunpack.c.l.b16 %v6367
  %v7003 = vunpack.c.h.b16 %v6367
  %v7004 = vunpack.c.l.b16 %v6368
  %v7005 = vunpack.c.h.b16 %v6368
  %v7006 = vunpack.c.l.b16 %v6369
  %v7007 = vunpack.c.h.b16 %v6369
  %v7008 = vunpack.c.l.b16 %v6370
  %v7009 = vunpack.c.h.b16 %v6370
  %v7010 = vunpack.c.l.b16 %v6371
  %v7011 = vunpack.c.h.b16 %v6371
  %v7012 = vunpack.c.l.b16 %v6372
  %v7013 = vunpack.c.h.b16 %v6372
  %v7014 = vunpack.c.l.b16 %v6373
  %v7015 = vunpack.c.h.b16 %v6373
  %v7016 = vunpack.c.l.b16 %v6374
  %v7017 = vunpack.c.h.b16 %v6374
  %v7018 = vunpack.c.l.b16 %v6375
  %v7019 = vunpack.c.h.b16 %v6375
  %v7020 = vunpack.c.l.b16 %v6376
  %v7021 = vunpack.c.h.b16 %v6376
  %v7022 = vunpack.c.l.b16 %v6377
  %v7023 = vunpack.c.h.b16 %v6377
  %v7024 = vunpack.c.l.b16 %v6378
  %v7025 = vunpack.c.h.b16 %v6378
  %v7026 = vunpack.c.l.b16 %v6379
  %v7027 = vunpack.c.h.b16 %v6379
  %v7028 = vunpack.c.l.b16 %v6380
  %v7029 = vunpack.c.h.b16 %v6380
  %v7030 = vunpack.c.l.b16 %v6381
  %v7031 = vunpack.c.h.b16 %v6381
  %v7032 = vunpack.c.l.b16 %v6382
  %v7033 = vunpack.c.h.b16 %v6382
  %v7034 = vunpack.c.l.b16 %v6383
  %v7035 = vunpack.c.h.b16 %v6383
  %v7036 = vunpack.c.l.b16 %v6384
  %v7037 = vunpack.c.h.b16 %v6384
  %v7038 = vunpack.c.l.b16 %v6385
  %v7039 = vunpack.c.h.b16 %v6385
  %v7040 = vunpack.c.l.b16 %v6386
  %v7041 = vunpack.c.h.b16 %v6386
  %v7042 = vunpack.c.l.b16 %v6387
  %v7043 = vunpack.c.h.b16 %v6387
  %v7044 = vunpack.c.l.b16 %v6388
  %v7045 = vunpack.c.h.b16 %v6388
  %v7046 = vunpack.c.l.b16 %v6389
  %v7047 = vunpack.c.h.b16 %v6389
  %v7048 = vunpack.c.l.b16 %v6390
  %v7049 = vunpack.c.h.b16 %v6390
  %v7050 = vunpack.c.l.b16 %v6391
  %v7051 = vunpack.c.h.b16 %v6391
  %v7052 = vunpack.c.l.b16 %v6392
  %v7053 = vunpack.c.h.b16 %v6392
  %v7054 = vunpack.c.l.b16 %v6393
  %v7055 = vunpack.c.h.b16 %v6393
  %v7056 = vunpack.c.l.b16 %v6394
  %v7057 = vunpack.c.h.b16 %v6394
  %v7058 = vunpack.c.l.b16 %v6395
  %v7059 = vunpack.c.h.b16 %v6395
  %v7060 = vunpack.c.l.b16 %v6396
  %v7061 = vunpack.c.h.b16 %v6396
  %v7062 = vunpack.c.l.b16 %v6397
  %v7063 = vunpack.c.h.b16 %v6397
  %v7064 = vunpack.c.l.b16 %v6398
  %v7065 = vunpack.c.h.b16 %v6398
  %v7066 = vunpack.c.l.b16 %v6399
  %v7067 = vunpack.c.h.b16 %v6399
  %v7068 = vunpack.c.l.b16 %v6400
  %v7069 = vunpack.c.h.b16 %v6400
  %v7070 = vunpack.c.l.b16 %v6401
  %v7071 = vunpack.c.h.b16 %v6401
  %v7072 = vunpack.c.l.b16 %v6402
  %v7073 = vunpack.c.h.b16 %v6402
  %v7074 = vunpack.c.l.b16 %v6403
  %v7075 = vunpack.c.h.b16 %v6403
  %v7076 = vunpack.c.l.b16 %v6404
  %v7077 = vunpack.c.h.b16 %v6404
  %v7078 = vunpack.c.l.b16 %v6405
  %v7079 = vunpack.c.h.b16 %v6405
  %v7080 = vunpack.c.l.b16 %v6406
  %v7081 = vunpack.c.h.b16 %v6406
  %v7082 = vunpack.c.l.b16 %v6407
  %v7083 = vunpack.c.h.b16 %v6407
  %v7084 = vunpack.c.l.b16 %v6408
  %v7085 = vunpack.c.h.b16 %v6408
  %v7086 = vunpack.c.l.b16 %v6409
  %v7087 = vunpack.c.h.b16 %v6409
  %v7088 = vunpack.c.l.b16 %v6410
  %v7089 = vunpack.c.h.b16 %v6410
  %v7090 = vunpack.c.l.b16 %v6411
  %v7091 = vunpack.c.h.b16 %v6411
  %v7092 = vunpack.c.l.b16 %v6412
  %v7093 = vunpack.c.h.b16 %v6412
  %v7094 = vunpack.c.l.b16 %v6413
  %v7095 = vunpack.c.h.b16 %v6413
  %v7096 = vunpack.c.l.b16 %v6414
  %v7097 = vunpack.c.h.b16 %v6414
  %v7098 = vunpack.c.l.b16 %v6415
  %v7099 = vunpack.c.h.b16 %v6415
  %v7100 = vunpack.c.l.b16 %v6416
  %v7101 = vunpack.c.h.b16 %v6416
  %v7102 = vunpack.c.l.b16 %v6417
  %v7103 = vunpack.c.h.b16 %v6417
  %v7104 = vunpack.c.l.b16 %v6418
  %v7105 = vunpack.c.h.b16 %v6418
  %v7106 = vunpack.c.l.b16 %v6419
  %v7107 = vunpack.c.h.b16 %v6419
  %v7108 = vunpack.c.l.b16 %v6420
  %v7109 = vunpack.c.h.b16 %v6420
  %v7110 = vunpack.c.l.b16 %v6421
  %v7111 = vunpack.c.h.b16 %v6421
  %v7112 = vunpack.c.l.b16 %v6422
  %v7113 = vunpack.c.h.b16 %v6422
  %v7114 = vunpack.c.l.b16 %v6423
  %v7115 = vunpack.c.h.b16 %v6423
  %v7116 = vunpack.c.l.b16 %v6424
  %v7117 = vunpack.c.h.b16 %v6424
  %v7118 = vunpack.c.l.b16 %v6425
  %v7119 = vunpack.c.h.b16 %v6425
  %v7120 = vunpack.c.l.b16 %v6426
  %v7121 = vunpack.c.h.b16 %v6426
  %v7122 = vunpack.c.l.b16 %v6427
  %v7123 = vunpack.c.h.b16 %v6427
  %v7124 = vunpack.c.l.b16 %v6428
  %v7125 = vunpack.c.h.b16 %v6428
  %v7126 = vunpack.c.l.b16 %v6429
  %v7127 = vunpack.c.h.b16 %v6429
  %v7128 = vunpack.c.l.b16 %v6430
  %v7129 = vunpack.c.h.b16 %v6430
  %v7130 = vunpack.c.l.b16 %v6431
  %v7131 = vunpack.c.h.b16 %v6431
  %v7132 = vunpack.c.l.b16 %v6432
  %v7133 = vunpack.c.h.b16 %v6432
  %v7134 = vunpack.c.l.b16 %v6433
  %v7135 = vunpack.c.h.b16 %v6433
  %v7136 = vunpack.c.l.b16 %v6434
  %v7137 = vunpack.c.h.b16 %v6434
  %v7138 = vunpack.c.l.b16 %v6435
  %v7139 = vunpack.c.h.b16 %v6435
  %v7140 = vunpack.c.l.b16 %v6436
  %v7141 = vunpack.c.h.b16 %v6436
  %v7142 = vunpack.c.l.b16 %v6437
  %v7143 = vunpack.c.h.b16 %v6437
  %v7144 = vunpack.c.l.b16 %v6438
  %v7145 = vunpack.c.h.b16 %v6438
  %v7146 = vunpack.c.l.b16 %v6439
  %v7147 = vunpack.c.h.b16 %v6439
  %v7148 = vunpack.c.l.b16 %v6440
  %v7149 = vunpack.c.h.b16 %v6440
  %v7150 = vunpack.c.l.b16 %v6441
  %v7151 = vunpack.c.h.b16 %v6441
  %v7152 = vunpack.c.l.b16 %v6442
  %v7153 = vunpack.c.h.b16 %v6442
  %v7154 = vunpack.c.l.b16 %v6443
  %v7155 = vunpack.c.h.b16 %v6443
  %v7156 = vunpack.c.l.b16 %v6444
  %v7157 = vunpack.c.h.b16 %v6444
  %v7158 = vunpack.c.l.b16 %v6445
  %v7159 = vunpack.c.h.b16 %v6445
  %v7160 = vunpack.c.l.b16 %v6446
  %v7161 = vunpack.c.h.b16 %v6446
  %v7162 = vunpack.c.l.b16 %v6447
  %v7163 = vunpack.c.h.b16 %v6447
  %v7164 = vunpack.c.l.b16 %v6448
  %v7165 = vunpack.c.h.b16 %v6448
  %v7166 = vunpack.c.l.b16 %v6449
  %v7167 = vunpack.c.h.b16 %v6449
  %v7168 = vunpack.c.l.b16 %v6450
  %v7169 = vunpack.c.h.b16 %v6450
  %v7170 = vunpack.c.l.b16 %v6451
  %v7171 = vunpack.c.h.b16 %v6451
  %v7172 = vunpack.c.l.b16 %v6452
  %v7173 = vunpack.c.h.b16 %v6452
  %v7174 = vunpack.c.l.b16 %v6453
  %v7175 = vunpack.c.h.b16 %v6453
  %v7176 = vunpack.c.l.b16 %v6454
  %v7177 = vunpack.c.h.b16 %v6454
  %v7178 = vunpack.c.l.b16 %v6455
  %v7179 = vunpack.c.h.b16 %v6455
  %v7180 = vunpack.c.l.b16 %v6456
  %v7181 = vunpack.c.h.b16 %v6456
  %v7182 = vunpack.c.l.b16 %v6457
  %v7183 = vunpack.c.h.b16 %v6457
  %v7184 = vunpack.c.l.b16 %v6458
  %v7185 = vunpack.c.h.b16 %v6458
  %v7186 = vunpack.c.l.b16 %v6459
  %v7187 = vunpack.c.h.b16 %v6459
  %v7188 = vunpack.c.l.b16 %v6460
  %v7189 = vunpack.c.h.b16 %v6460
  %v7190 = vunpack.c.l.b16 %v6461
  %v7191 = vunpack.c.h.b16 %v6461
  %v7192 = vunpack.c.l.b16 %v6462
  %v7193 = vunpack.c.h.b16 %v6462
  %v7194 = vunpack.c.l.b16 %v6463
  %v7195 = vunpack.c.h.b16 %v6463
  %v7196 = vunpack.c.l.b16 %v6464
  %v7197 = vunpack.c.h.b16 %v6464
  %v7198 = vunpack.c.l.b16 %v6465
  %v7199 = vunpack.c.h.b16 %v6465
  %v7200 = vunpack.c.l.b16 %v6466
  %v7201 = vunpack.c.h.b16 %v6466
  %v7202 = vunpack.c.l.b16 %v6467
  %v7203 = vunpack.c.h.b16 %v6467
  %v7204 = vunpack.c.l.b16 %v6468
  %v7205 = vunpack.c.h.b16 %v6468
  %v7206 = vunpack.c.l.b16 %v6469
  %v7207 = vunpack.c.h.b16 %v6469
  %v7208 = vunpack.c.l.b16 %v6470
  %v7209 = vunpack.c.h.b16 %v6470
  %v7210 = vunpack.c.l.b16 %v6471
  %v7211 = vunpack.c.h.b16 %v6471
  %v7212 = vunpack.c.l.b16 %v6472
  %v7213 = vunpack.c.h.b16 %v6472
  %v7214 = vunpack.c.l.b16 %v6473
  %v7215 = vunpack.c.h.b16 %v6473
  %v7216 = vunpack.c.l.b16 %v6474
  %v7217 = vunpack.c.h.b16 %v6474
  %v7218 = vunpack.c.l.b16 %v6475
  %v7219 = vunpack.c.h.b16 %v6475
  %v7220 = vunpack.c.l.b16 %v6476
  %v7221 = vunpack.c.h.b16 %v6476
  %v7222 = vunpack.c.l.b16 %v6477
  %v7223 = vunpack.c.h.b16 %v6477
  %v7224 = vunpack.c.l.b16 %v6478
  %v7225 = vunpack.c.h.b16 %v6478
  %v7226 = vunpack.c.l.b16 %v6479
  %v7227 = vunpack.c.h.b16 %v6479
  %v7228 = vunpack.c.l.b16 %v6480
  %v7229 = vunpack.c.h.b16 %v6480
  %v7230 = vunpack.c.l.b16 %v6481
  %v7231 = vunpack.c.h.b16 %v6481
  %v7232 = vunpack.c.l.b16 %v6482
  %v7233 = vunpack.c.h.b16 %v6482
  %v7234 = vunpack.c.l.b16 %v6483
  %v7235 = vunpack.c.h.b16 %v6483
  %v7236 = vpack.c.b16 %v6762, %v6756
  %v7237 = vpack.c.b16 %v6763, %v6757
  %v7238 = vpack.c.b16 %v6764, %v6758
  %v7239 = vpack.c.b16 %v6765, %v6759
  %v7240 = vpack.c.b16 %v6766, %v6760
  %v7241 = vpack.c.b16 %v6767, %v6761
  %v7242 = vpack.c.b16 %v6774, %v6768
  %v7243 = vpack.c.b16 %v6775, %v6769
  %v7244 = vpack.c.b16 %v6776, %v6770
  %v7245 = vpack.c.b16 %v6777, %v6771
  %v7246 = vpack.c.b16 %v6778, %v6772
  %v7247 = vpack.c.b16 %v6779, %v6773
  %v7248 = vpack.c.b16 %v6786, %v6780
  %v7249 = vpack.c.b16 %v6787, %v6781
  %v7250 = vpack.c.b16 %v6788, %v6782
  %v7251 = vpack.c.b16 %v6789, %v6783
  %v7252 = vpack.c.b16 %v6790, %v6784
  %v7253 = vpack.c.b16 %v6791, %v6785
  %v7254 = vpack.c.b16 %v6798, %v6792
  %v7255 = vpack.c.b16 %v6799, %v6793
  %v7256 = vpack.c.b16 %v6800, %v6794
  %v7257 = vpack.c.b16 %v6801, %v6795
  %v7258 = vpack.c.b16 %v6802, %v6796
  %v7259 = vpack.c.b16 %v6803, %v6797
  %v7260 = vpack.c.b16 %v6810, %v6804
  %v7261 = vpack.c.b16 %v6811, %v6805
  %v7262 = vpack.c.b16 %v6812, %v6806
  %v7263 = vpack.c.b16 %v6813, %v6807
  %v7264 = vpack.c.b16 %v6814, %v6808
  %v7265 = vpack.c.b16 %v6815, %v6809
  %v7266 = vpack.c.b16 %v6822, %v6816
  %v7267 = vpack.c.b16 %v6823, %v6817
  %v7268 = vpack.c.b16 %v6824, %v6818
  %v7269 = vpack.c.b16 %v6825, %v6819
  %v7270 = vpack.c.b16 %v6826, %v6820
  %v7271 = vpack.c.b16 %v6827, %v6821
  %v7272 = vpack.c.b16 %v6834, %v6828
  %v7273 = vpack.c.b16 %v6835, %v6829
  %v7274 = vpack.c.b16 %v6836, %v6830
  %v7275 = vpack.c.b16 %v6837, %v6831
  %v7276 = vpack.c.b16 %v6838, %v6832
  %v7277 = vpack.c.b16 %v6839, %v6833
  %v7278 = vpack.c.b16 %v6846, %v6840
  %v7279 = vpack.c.b16 %v6847, %v6841
  %v7280 = vpack.c.b16 %v6848, %v6842
  %v7281 = vpack.c.b16 %v6849, %v6843
  %v7282 = vpack.c.b16 %v6850, %v6844
  %v7283 = vpack.c.b16 %v6851, %v6845
  %v7284 = vpack.c.b16 %v6858, %v6852
  %v7285 = vpack.c.b16 %v6859, %v6853
  %v7286 = vpack.c.b16 %v6860, %v6854
  %v7287 = vpack.c.b16 %v6861, %v6855
  %v7288 = vpack.c.b16 %v6862, %v6856
  %v7289 = vpack.c.b16 %v6863, %v6857
  %v7290 = vpack.c.b16 %v6870, %v6864
  %v7291 = vpack.c.b16 %v6871, %v6865
  %v7292 = vpack.c.b16 %v6872, %v6866
  %v7293 = vpack.c.b16 %v6873, %v6867
  %v7294 = vpack.c.b16 %v6874, %v6868
  %v7295 = vpack.c.b16 %v6875, %v6869
  %v7296 = vpack.c.b16 %v6882, %v6876
  %v7297 = vpack.c.b16 %v6883, %v6877
  %v7298 = vpack.c.b16 %v6884, %v6878
  %v7299 = vpack.c.b16 %v6885, %v6879
  %v7300 = vpack.c.b16 %v6886, %v6880
  %v7301 = vpack.c.b16 %v6887, %v6881
  %v7302 = vpack.c.b16 %v6894, %v6888
  %v7303 = vpack.c.b16 %v6895, %v6889
  %v7304 = vpack.c.b16 %v6896, %v6890
  %v7305 = vpack.c.b16 %v6897, %v6891
  %v7306 = vpack.c.b16 %v6898, %v6892
  %v7307 = vpack.c.b16 %v6899, %v6893
  %v7308 = vpack.c.b16 %v6906, %v6900
  %v7309 = vpack.c.b16 %v6907, %v6901
  %v7310 = vpack.c.b16 %v6908, %v6902
  %v7311 = vpack.c.b16 %v6909, %v6903
  %v7312 = vpack.c.b16 %v6910, %v6904
  %v7313 = vpack.c.b16 %v6911, %v6905
  %v7314 = vpack.c.b16 %v6918, %v6912
  %v7315 = vpack.c.b16 %v6919, %v6913
  %v7316 = vpack.c.b16 %v6920, %v6914
  %v7317 = vpack.c.b16 %v6921, %v6915
  %v7318 = vpack.c.b16 %v6922, %v6916
  %v7319 = vpack.c.b16 %v6923, %v6917
  %v7320 = vpack.c.b16 %v6930, %v6924
  %v7321 = vpack.c.b16 %v6931, %v6925
  %v7322 = vpack.c.b16 %v6932, %v6926
  %v7323 = vpack.c.b16 %v6933, %v6927
  %v7324 = vpack.c.b16 %v6934, %v6928
  %v7325 = vpack.c.b16 %v6935, %v6929
  %v7326 = vpack.c.b16 %v6942, %v6936
  %v7327 = vpack.c.b16 %v6943, %v6937
  %v7328 = vpack.c.b16 %v6944, %v6938
  %v7329 = vpack.c.b16 %v6945, %v6939
  %v7330 = vpack.c.b16 %v6946, %v6940
  %v7331 = vpack.c.b16 %v6947, %v6941
  %v7332 = vpack.c.b16 %v6954, %v6948
  %v7333 = vpack.c.b16 %v6955, %v6949
  %v7334 = vpack.c.b16 %v6956, %v6950
  %v7335 = vpack.c.b16 %v6957, %v6951
  %v7336 = vpack.c.b16 %v6958, %v6952
  %v7337 = vpack.c.b16 %v6959, %v6953
  %v7338 = vpack.c.b16 %v6966, %v6960
  %v7339 = vpack.c.b16 %v6967, %v6961
  %v7340 = vpack.c.b16 %v6968, %v6962
  %v7341 = vpack.c.b16 %v6969, %v6963
  %v7342 = vpack.c.b16 %v6970, %v6964
  %v7343 = vpack.c.b16 %v6971, %v6965
  %v7344 = vpack.c.b16 %v6978, %v6972
  %v7345 = vpack.c.b16 %v6979, %v6973
  %v7346 = vpack.c.b16 %v6980, %v6974
  %v7347 = vpack.c.b16 %v6981, %v6975
  %v7348 = vpack.c.b16 %v6982, %v6976
  %v7349 = vpack.c.b16 %v6983, %v6977
  %v7350 = vpack.c.b16 %v6990, %v6984
  %v7351 = vpack.c.b16 %v6991, %v6985
  %v7352 = vpack.c.b16 %v6992, %v6986
  %v7353 = vpack.c.b16 %v6993, %v6987
  %v7354 = vpack.c.b16 %v6994, %v6988
  %v7355 = vpack.c.b16 %v6995, %v6989
  %v7356 = vpack.c.b16 %v7002, %v6996
  %v7357 = vpack.c.b16 %v7003, %v6997
  %v7358 = vpack.c.b16 %v7004, %v6998
  %v7359 = vpack.c.b16 %v7005, %v6999
  %v7360 = vpack.c.b16 %v7006, %v7000
  %v7361 = vpack.c.b16 %v7007, %v7001
  %v7362 = vpack.c.b16 %v7014, %v7008
  %v7363 = vpack.c.b16 %v7015, %v7009
  %v7364 = vpack.c.b16 %v7016, %v7010
  %v7365 = vpack.c.b16 %v7017, %v7011
  %v7366 = vpack.c.b16 %v7018, %v7012
  %v7367 = vpack.c.b16 %v7019, %v7013
  %v7368 = vpack.c.b16 %v7026, %v7020
  %v7369 = vpack.c.b16 %v7027, %v7021
  %v7370 = vpack.c.b16 %v7028, %v7022
  %v7371 = vpack.c.b16 %v7029, %v7023
  %v7372 = vpack.c.b16 %v7030, %v7024
  %v7373 = vpack.c.b16 %v7031, %v7025
  %v7374 = vpack.c.b16 %v7038, %v7032
  %v7375 = vpack.c.b16 %v7039, %v7033
  %v7376 = vpack.c.b16 %v7040, %v7034
  %v7377 = vpack.c.b16 %v7041, %v7035
  %v7378 = vpack.c.b16 %v7042, %v7036
  %v7379 = vpack.c.b16 %v7043, %v7037
  %v7380 = vpack.c.b16 %v7050, %v7044
  %v7381 = vpack.c.b16 %v7051, %v7045
  %v7382 = vpack.c.b16 %v7052, %v7046
  %v7383 = vpack.c.b16 %v7053, %v7047
  %v7384 = vpack.c.b16 %v7054, %v7048
  %v7385 = vpack.c.b16 %v7055, %v7049
  %v7386 = vpack.c.b16 %v7062, %v7056
  %v7387 = vpack.c.b16 %v7063, %v7057
  %v7388 = vpack.c.b16 %v7064, %v7058
  %v7389 = vpack.c.b16 %v7065, %v7059
  %v7390 = vpack.c.b16 %v7066, %v7060
  %v7391 = vpack.c.b16 %v7067, %v7061
  %v7392 = vpack.c.b16 %v7074, %v7068
  %v7393 = vpack.c.b16 %v7075, %v7069
  %v7394 = vpack.c.b16 %v7076, %v7070
  %v7395 = vpack.c.b16 %v7077, %v7071
  %v7396 = vpack.c.b16 %v7078, %v7072
  %v7397 = vpack.c.b16 %v7079, %v7073
  %v7398 = vpack.c.b16 %v7086, %v7080
  %v7399 = vpack.c.b16 %v7087, %v7081
  %v7400 = vpack.c.b16 %v7088, %v7082
  %v7401 = vpack.c.b16 %v7089, %v7083
  %v7402 = vpack.c.b16 %v7090, %v7084
  %v7403 = vpack.c.b16 %v7091, %v7085
  %v7404 = vpack.c.b16 %v7098, %v7092
  %v7405 = vpack.c.b16 %v7099, %v7093
  %v7406 = vpack.c.b16 %v7100, %v7094
  %v7407 = vpack.c.b16 %v7101, %v7095
  %v7408 = vpack.c.b16 %v7102, %v7096
  %v7409 = vpack.c.b16 %v7103, %v7097
  %v7410 = vpack.c.b16 %v7110, %v7104
  %v7411 = vpack.c.b16 %v7111, %v7105
  %v7412 = vpack.c.b16 %v7112, %v7106
  %v7413 = vpack.c.b16 %v7113, %v7107
  %v7414 = vpack.c.b16 %v7114, %v7108
  %v7415 = vpack.c.b16 %v7115, %v7109
  %v7416 = vpack.c.b16 %v7122, %v7116
  %v7417 = vpack.c.b16 %v7123, %v7117
  %v7418 = vpack.c.b16 %v7124, %v7118
  %v7419 = vpack.c.b16 %v7125, %v7119
  %v7420 = vpack.c.b16 %v7126, %v7120
  %v7421 = vpack.c.b16 %v7127, %v7121
  %v7422 = vpack.c.b16 %v7134, %v7128
  %v7423 = vpack.c.b16 %v7135, %v7129
  %v7424 = vpack.c.b16 %v7136, %v7130
  %v7425 = vpack.c.b16 %v7137, %v7131
  %v7426 = vpack.c.b16 %v7138, %v7132
  %v7427 = vpack.c.b16 %v7139, %v7133
  %v7428 = vpack.c.b16 %v7146, %v7140
  %v7429 = vpack.c.b16 %v7147, %v7141
  %v7430 = vpack.c.b16 %v7148, %v7142
  %v7431 = vpack.c.b16 %v7149, %v7143
  %v7432 = vpack.c.b16 %v7150, %v7144
  %v7433 = vpack.c.b16 %v7151, %v7145
  %v7434 = vpack.c.b16 %v7158, %v7152
  %v7435 = vpack.c.b16 %v7159, %v7153
  %v7436 = vpack.c.b16 %v7160, %v7154
  %v7437 = vpack.c.b16 %v7161, %v7155
  %v7438 = vpack.c.b16 %v7162, %v7156
  %v7439 = vpack.c.b16 %v7163, %v7157
  %v7440 = vpack.c.b16 %v7170, %v7164
  %v7441 = vpack.c.b16 %v7171, %v7165
  %v7442 = vpack.c.b16 %v7172, %v7166
  %v7443 = vpack.c.b16 %v7173, %v7167
  %v7444 = vpack.c.b16 %v7174, %v7168
  %v7445 = vpack.c.b16 %v7175, %v7169
  %v7446 = vpack.c.b16 %v7182, %v7176
  %v7447 = vpack.c.b16 %v7183, %v7177
  %v7448 = vpack.c.b16 %v7184, %v7178
  %v7449 = vpack.c.b16 %v7185, %v7179
  %v7450 = vpack.c.b16 %v7186, %v7180
  %v7451 = vpack.c.b16 %v7187, %v7181
  %v7452 = vpack.c.b16 %v7194, %v7188
  %v7453 = vpack.c.b16 %v7195, %v7189
  %v7454 = vpack.c.b16 %v7196, %v7190
  %v7455 = vpack.c.b16 %v7197, %v7191
  %v7456 = vpack.c.b16 %v7198, %v7192
  %v7457 = vpack.c.b16 %v7199, %v7193
  %v7458 = vpack.c.b16 %v7206, %v7200
  %v7459 = vpack.c.b16 %v7207, %v7201
  %v7460 = vpack.c.b16 %v7208, %v7202
  %v7461 = vpack.c.b16 %v7209, %v7203
  %v7462 = vpack.c.b16 %v7210, %v7204
  %v7463 = vpack.c.b16 %v7211, %v7205
  %v7464 = vpack.c.b16 %v7218, %v7212
  %v7465 = vpack.c.b16 %v7219, %v7213
  %v7466 = vpack.c.b16 %v7220, %v7214
  %v7467 = vpack.c.b16 %v7221, %v7215
  %v7468 = vpack.c.b16 %v7222, %v7216
  %v7469 = vpack.c.b16 %v7223, %v7217
  %v7470 = vpack.c.b16 %v7230, %v7224
  %v7471 = vpack.c.b16 %v7231, %v7225
  %v7472 = vpack.c.b16 %v7232, %v7226
  %v7473 = vpack.c.b16 %v7233, %v7227
  %v7474 = vpack.c.b16 %v7234, %v7228
  %v7475 = vpack.c.b16 %v7235, %v7229
  %7716 = vmatprep.subr.bf16.mxu0 %v7237
  %7717 = vmatpush1.bf16.msra.mxu0 %v7236
  %7718 = vmatprep.subr.bf16.mxu0 %v7243
  %7719 = vmatpush1.bf16.msra.mxu0 %v7242
  %7720 = vmatprep.subr.bf16.mxu0 %v7249
  %7721 = vmatpush1.bf16.msra.mxu0 %v7248
  %7722 = vmatprep.subr.bf16.mxu0 %v7255
  %7723 = vmatpush1.bf16.msra.mxu0 %v7254
  %7724 = vmatprep.subr.bf16.mxu0 %v7261
  %7725 = vmatpush1.bf16.msra.mxu0 %v7260
  %7726 = vmatprep.subr.bf16.mxu0 %v7267
  %7727 = vmatpush1.bf16.msra.mxu0 %v7266
  %7728 = vmatprep.subr.bf16.mxu0 %v7273
  %7729 = vmatpush1.bf16.msra.mxu0 %v7272
  %7730 = vmatprep.subr.bf16.mxu0 %v7279
  %7731 = vmatpush1.bf16.msra.mxu0 %v7278
  %7732 = vmatprep.subr.bf16.mxu0 %v7285
  %7733 = vmatpush1.bf16.msra.mxu0 %v7284
  %7734 = vmatprep.subr.bf16.mxu0 %v7291
  %7735 = vmatpush1.bf16.msra.mxu0 %v7290
  %7736 = vmatprep.subr.bf16.mxu0 %v7297
  %7737 = vmatpush1.bf16.msra.mxu0 %v7296
  %7738 = vmatprep.subr.bf16.mxu0 %v7303
  %7739 = vmatpush1.bf16.msra.mxu0 %v7302
  %7740 = vmatprep.subr.bf16.mxu0 %v7309
  %7741 = vmatpush1.bf16.msra.mxu0 %v7308
  %7742 = vmatprep.subr.bf16.mxu0 %v7315
  %7743 = vmatpush1.bf16.msra.mxu0 %v7314
  %7744 = vmatprep.subr.bf16.mxu0 %v7321
  %7745 = vmatpush1.bf16.msra.mxu0 %v7320
  %7746 = vmatprep.subr.bf16.mxu0 %v7327
  %7747 = vmatpush1.bf16.msra.mxu0 %v7326
  %7748 = vmatprep.mubr.bf16.mxu0 %v6240
  %7749 = vmatmul.mubr.bf16.gmra.mrb[0].mxu0 %v6239
  %v7750 = vpop.f32.mrb[0].mxu0
  %v7751 = vadd.f32 %v6489, %v7750
  %v7752 = vpop.f32.mrb[0].mxu0
  %v7753 = vadd.f32 %v6493, %v7752
  %v7754 = vpop.f32.mrb[0].mxu0
  %v7755 = vadd.f32 %v6489, %v7754
  %v7756 = vpop.f32.mrb[0].mxu0
  %v7757 = vadd.f32 %v6493, %v7756
  %7758 = vdwg.mxu0
  %7759 = vmatprep.subr.bf16.mxu0 %v7333
  %7760 = vmatpush1.bf16.msra.mxu0 %v7332
  %7761 = vmatprep.subr.bf16.mxu0 %v7339
  %7762 = vmatpush1.bf16.msra.mxu0 %v7338
  %7763 = vmatprep.subr.bf16.mxu0 %v7345
  %7764 = vmatpush1.bf16.msra.mxu0 %v7344
  %7765 = vmatprep.subr.bf16.mxu0 %v7351
  %7766 = vmatpush1.bf16.msra.mxu0 %v7350
  %7767 = vmatprep.subr.bf16.mxu0 %v7357
  %7768 = vmatpush1.bf16.msra.mxu0 %v7356
  %7769 = vmatprep.subr.bf16.mxu0 %v7363
  %7770 = vmatpush1.bf16.msra.mxu0 %v7362
  %7771 = vmatprep.subr.bf16.mxu0 %v7369
  %7772 = vmatpush1.bf16.msra.mxu0 %v7368
  %7773 = vmatprep.subr.bf16.mxu0 %v7375
  %7774 = vmatpush1.bf16.msra.mxu0 %v7374
  %7775 = vmatprep.subr.bf16.mxu0 %v7381
  %7776 = vmatpush1.bf16.msra.mxu0 %v7380
  %7777 = vmatprep.subr.bf16.mxu0 %v7387
  %7778 = vmatpush1.bf16.msra.mxu0 %v7386
  %7779 = vmatprep.subr.bf16.mxu0 %v7393
  %7780 = vmatpush1.bf16.msra.mxu0 %v7392
  %7781 = vmatprep.subr.bf16.mxu0 %v7399
  %7782 = vmatpush1.bf16.msra.mxu0 %v7398
  %7783 = vmatprep.subr.bf16.mxu0 %v7405
  %7784 = vmatpush1.bf16.msra.mxu0 %v7404
  %7785 = vmatprep.subr.bf16.mxu0 %v7411
  %7786 = vmatpush1.bf16.msra.mxu0 %v7410
  %7787 = vmatprep.subr.bf16.mxu0 %v7417
  %7788 = vmatpush1.bf16.msra.mxu0 %v7416
  %7789 = vmatprep.subr.bf16.mxu0 %v7423
  %7790 = vmatpush1.bf16.msra.mxu0 %v7422
  %7791 = vmatprep.mubr.bf16.mxu0 %v6242
  %7792 = vmatmul.mubr.bf16.gmra.mrb[0].mxu0 %v6241
  %v7793 = vpop.f32.mrb[0].mxu0
  %v7794 = vadd.f32 %v7751, %v7793
  %v7795 = vpop.f32.mrb[0].mxu0
  %v7796 = vadd.f32 %v7753, %v7795
  %v7797 = vpop.f32.mrb[0].mxu0
  %v7798 = vadd.f32 %v7755, %v7797
  %v7799 = vpop.f32.mrb[0].mxu0
  %v7800 = vadd.f32 %v7757, %v7799
  %7801 = vdwg.mxu0
  %7802 = vmatprep.subr.bf16.mxu0 %v7429
  %7803 = vmatpush1.bf16.msra.mxu0 %v7428
  %7804 = vmatprep.subr.bf16.mxu0 %v7435
  %7805 = vmatpush1.bf16.msra.mxu0 %v7434
  %7806 = vmatprep.subr.bf16.mxu0 %v7441
  %7807 = vmatpush1.bf16.msra.mxu0 %v7440
  %7808 = vmatprep.subr.bf16.mxu0 %v7447
  %7809 = vmatpush1.bf16.msra.mxu0 %v7446
  %7810 = vmatprep.subr.bf16.mxu0 %v7453
  %7811 = vmatpush1.bf16.msra.mxu0 %v7452
  %7812 = vmatprep.subr.bf16.mxu0 %v7459
  %7813 = vmatpush1.bf16.msra.mxu0 %v7458
  %7814 = vmatprep.subr.bf16.mxu0 %v7465
  %7815 = vmatpush1.bf16.msra.mxu0 %v7464
  %7816 = vmatprep.subr.bf16.mxu0 %v7471
  %7817 = vmatpush1.bf16.msra.mxu0 %v7470
  %7818 = vmatprep.subr.bf16.mxu0 0
  %7819 = vmatpush1.bf16.msra.mxu0 0
  %7820 = vmatprep.subr.bf16.mxu0 0
  %7821 = vmatpush1.bf16.msra.mxu0 0
  %7822 = vmatprep.subr.bf16.mxu0 0
  %7823 = vmatpush1.bf16.msra.mxu0 0
  %7824 = vmatprep.subr.bf16.mxu0 0
  %7825 = vmatpush1.bf16.msra.mxu0 0
  %7826 = vmatprep.subr.bf16.mxu0 0
  %7827 = vmatpush1.bf16.msra.mxu0 0
  %7828 = vmatprep.subr.bf16.mxu0 0
  %7829 = vmatpush1.bf16.msra.mxu0 0
  %7830 = vmatprep.subr.bf16.mxu0 0
  %7831 = vmatpush1.bf16.msra.mxu0 0
  %7832 = vmatprep.subr.bf16.mxu0 0
  %7833 = vmatpush1.bf16.msra.mxu0 0
  %7834 = vmatprep.mubr.bf16.mxu0 0
  %7835 = vmatmul.mubr.bf16.gmra.mrb[0].mxu0 %v6243
  %v7836 = vpop.f32.mrb[0].mxu0
  %v7837 = vadd.f32 %v7794, %v7836
  %v7838 = vpop.f32.mrb[0].mxu0
  %v7839 = vadd.f32 %v7796, %v7838
  %v7840 = vpop.f32.mrb[0].mxu0
  %v7841 = vadd.f32 %v7798, %v7840
  %v7842 = vpop.f32.mrb[0].mxu0
  %v7843 = vadd.f32 %v7800, %v7842
  %7844 = vdwg.mxu0
  %7845 = vmatprep.subr.bf16.mxu0 %v7239
  %7846 = vmatpush1.bf16.msra.mxu0 %v7238
  %7847 = vmatprep.subr.bf16.mxu0 %v7245
  %7848 = vmatpush1.bf16.msra.mxu0 %v7244
  %7849 = vmatprep.subr.bf16.mxu0 %v7251
  %7850 = vmatpush1.bf16.msra.mxu0 %v7250
  %7851 = vmatprep.subr.bf16.mxu0 %v7257
  %7852 = vmatpush1.bf16.msra.mxu0 %v7256
  %7853 = vmatprep.subr.bf16.mxu0 %v7263
  %7854 = vmatpush1.bf16.msra.mxu0 %v7262
  %7855 = vmatprep.subr.bf16.mxu0 %v7269
  %7856 = vmatpush1.bf16.msra.mxu0 %v7268
  %7857 = vmatprep.subr.bf16.mxu0 %v7275
  %7858 = vmatpush1.bf16.msra.mxu0 %v7274
  %7859 = vmatprep.subr.bf16.mxu0 %v7281
  %7860 = vmatpush1.bf16.msra.mxu0 %v7280
  %7861 = vmatprep.subr.bf16.mxu0 %v7287
  %7862 = vmatpush1.bf16.msra.mxu0 %v7286
  %7863 = vmatprep.subr.bf16.mxu0 %v7293
  %7864 = vmatpush1.bf16.msra.mxu0 %v7292
  %7865 = vmatprep.subr.bf16.mxu0 %v7299
  %7866 = vmatpush1.bf16.msra.mxu0 %v7298
  %7867 = vmatprep.subr.bf16.mxu0 %v7305
  %7868 = vmatpush1.bf16.msra.mxu0 %v7304
  %7869 = vmatprep.subr.bf16.mxu0 %v7311
  %7870 = vmatpush1.bf16.msra.mxu0 %v7310
  %7871 = vmatprep.subr.bf16.mxu0 %v7317
  %7872 = vmatpush1.bf16.msra.mxu0 %v7316
  %7873 = vmatprep.subr.bf16.mxu0 %v7323
  %7874 = vmatpush1.bf16.msra.mxu0 %v7322
  %7875 = vmatprep.subr.bf16.mxu0 %v7329
  %7876 = vmatpush1.bf16.msra.mxu0 %v7328
  %7877 = vmatprep.mubr.bf16.mxu0 %v6240
  %7878 = vmatmul.mubr.bf16.gmra.mrb[0].mxu0 %v6239
  %v7879 = vpop.f32.mrb[0].mxu0
  %v7880 = vadd.f32 %v6497, %v7879
  %v7881 = vpop.f32.mrb[0].mxu0
  %v7882 = vadd.f32 %v6501, %v7881
  %v7883 = vpop.f32.mrb[0].mxu0
  %v7884 = vadd.f32 %v6497, %v7883
  %v7885 = vpop.f32.mrb[0].mxu0
  %v7886 = vadd.f32 %v6501, %v7885
  %7887 = vdwg.mxu0
  %7888 = vmatprep.subr.bf16.mxu0 %v7335
  %7889 = vmatpush1.bf16.msra.mxu0 %v7334
  %7890 = vmatprep.subr.bf16.mxu0 %v7341
  %7891 = vmatpush1.bf16.msra.mxu0 %v7340
  %7892 = vmatprep.subr.bf16.mxu0 %v7347
  %7893 = vmatpush1.bf16.msra.mxu0 %v7346
  %7894 = vmatprep.subr.bf16.mxu0 %v7353
  %7895 = vmatpush1.bf16.msra.mxu0 %v7352
  %7896 = vmatprep.subr.bf16.mxu0 %v7359
  %7897 = vmatpush1.bf16.msra.mxu0 %v7358
  %7898 = vmatprep.subr.bf16.mxu0 %v7365
  %7899 = vmatpush1.bf16.msra.mxu0 %v7364
  %7900 = vmatprep.subr.bf16.mxu0 %v7371
  %7901 = vmatpush1.bf16.msra.mxu0 %v7370
  %7902 = vmatprep.subr.bf16.mxu0 %v7377
  %7903 = vmatpush1.bf16.msra.mxu0 %v7376
  %7904 = vmatprep.subr.bf16.mxu0 %v7383
  %7905 = vmatpush1.bf16.msra.mxu0 %v7382
  %7906 = vmatprep.subr.bf16.mxu0 %v7389
  %7907 = vmatpush1.bf16.msra.mxu0 %v7388
  %7908 = vmatprep.subr.bf16.mxu0 %v7395
  %7909 = vmatpush1.bf16.msra.mxu0 %v7394
  %7910 = vmatprep.subr.bf16.mxu0 %v7401
  %7911 = vmatpush1.bf16.msra.mxu0 %v7400
  %7912 = vmatprep.subr.bf16.mxu0 %v7407
  %7913 = vmatpush1.bf16.msra.mxu0 %v7406
  %7914 = vmatprep.subr.bf16.mxu0 %v7413
  %7915 = vmatpush1.bf16.msra.mxu0 %v7412
  %7916 = vmatprep.subr.bf16.mxu0 %v7419
  %7917 = vmatpush1.bf16.msra.mxu0 %v7418
  %7918 = vmatprep.subr.bf16.mxu0 %v7425
  %7919 = vmatpush1.bf16.msra.mxu0 %v7424
  %7920 = vmatprep.mubr.bf16.mxu0 %v6242
  %7921 = vmatmul.mubr.bf16.gmra.mrb[0].mxu0 %v6241
  %v7922 = vpop.f32.mrb[0].mxu0
  %v7923 = vadd.f32 %v7880, %v7922
  %v7924 = vpop.f32.mrb[0].mxu0
  %v7925 = vadd.f32 %v7882, %v7924
  %v7926 = vpop.f32.mrb[0].mxu0
  %v7927 = vadd.f32 %v7884, %v7926
  %v7928 = vpop.f32.mrb[0].mxu0
  %v7929 = vadd.f32 %v7886, %v7928
  %7930 = vdwg.mxu0
  %7931 = vmatprep.subr.bf16.mxu0 %v7431
  %7932 = vmatpush1.bf16.msra.mxu0 %v7430
  %7933 = vmatprep.subr.bf16.mxu0 %v7437
  %7934 = vmatpush1.bf16.msra.mxu0 %v7436
  %7935 = vmatprep.subr.bf16.mxu0 %v7443
  %7936 = vmatpush1.bf16.msra.mxu0 %v7442
  %7937 = vmatprep.subr.bf16.mxu0 %v7449
  %7938 = vmatpush1.bf16.msra.mxu0 %v7448
  %7939 = vmatprep.subr.bf16.mxu0 %v7455
  %7940 = vmatpush1.bf16.msra.mxu0 %v7454
  %7941 = vmatprep.subr.bf16.mxu0 %v7461
  %7942 = vmatpush1.bf16.msra.mxu0 %v7460
  %7943 = vmatprep.subr.bf16.mxu0 %v7467
  %7944 = vmatpush1.bf16.msra.mxu0 %v7466
  %7945 = vmatprep.subr.bf16.mxu0 %v7473
  %7946 = vmatpush1.bf16.msra.mxu0 %v7472
  %7947 = vmatprep.subr.bf16.mxu0 0
  %7948 = vmatpush1.bf16.msra.mxu0 0
  %7949 = vmatprep.subr.bf16.mxu0 0
  %7950 = vmatpush1.bf16.msra.mxu0 0
  %7951 = vmatprep.subr.bf16.mxu0 0
  %7952 = vmatpush1.bf16.msra.mxu0 0
  %7953 = vmatprep.subr.bf16.mxu0 0
  %7954 = vmatpush1.bf16.msra.mxu0 0
  %7955 = vmatprep.subr.bf16.mxu0 0
  %7956 = vmatpush1.bf16.msra.mxu0 0
  %7957 = vmatprep.subr.bf16.mxu0 0
  %7958 = vmatpush1.bf16.msra.mxu0 0
  %7959 = vmatprep.subr.bf16.mxu0 0
  %7960 = vmatpush1.bf16.msra.mxu0 0
  %7961 = vmatprep.subr.bf16.mxu0 0
  %7962 = vmatpush1.bf16.msra.mxu0 0
  %7963 = vmatprep.mubr.bf16.mxu0 0
  %7964 = vmatmul.mubr.bf16.gmra.mrb[0].mxu0 %v6243
  %v7965 = vpop.f32.mrb[0].mxu0
  %v7966 = vadd.f32 %v7923, %v7965
  %v7967 = vpop.f32.mrb[0].mxu0
  %v7968 = vadd.f32 %v7925, %v7967
  %v7969 = vpop.f32.mrb[0].mxu0
  %v7970 = vadd.f32 %v7927, %v7969
  %v7971 = vpop.f32.mrb[0].mxu0
  %v7972 = vadd.f32 %v7929, %v7971
  %7973 = vdwg.mxu0
  %7974 = vmatprep.subr.bf16.mxu0 %v7241
  %7975 = vmatpush1.bf16.msra.mxu0 %v7240
  %7976 = vmatprep.subr.bf16.mxu0 %v7247
  %7977 = vmatpush1.bf16.msra.mxu0 %v7246
  %7978 = vmatprep.subr.bf16.mxu0 %v7253
  %7979 = vmatpush1.bf16.msra.mxu0 %v7252
  %7980 = vmatprep.subr.bf16.mxu0 %v7259
  %7981 = vmatpush1.bf16.msra.mxu0 %v7258
  %7982 = vmatprep.subr.bf16.mxu0 %v7265
  %7983 = vmatpush1.bf16.msra.mxu0 %v7264
  %7984 = vmatprep.subr.bf16.mxu0 %v7271
  %7985 = vmatpush1.bf16.msra.mxu0 %v7270
  %7986 = vmatprep.subr.bf16.mxu0 %v7277
  %7987 = vmatpush1.bf16.msra.mxu0 %v7276
  %7988 = vmatprep.subr.bf16.mxu0 %v7283
  %7989 = vmatpush1.bf16.msra.mxu0 %v7282
  %7990 = vmatprep.subr.bf16.mxu0 %v7289
  %7991 = vmatpush1.bf16.msra.mxu0 %v7288
  %7992 = vmatprep.subr.bf16.mxu0 %v7295
  %7993 = vmatpush1.bf16.msra.mxu0 %v7294
  %7994 = vmatprep.subr.bf16.mxu0 %v7301
  %7995 = vmatpush1.bf16.msra.mxu0 %v7300
  %7996 = vmatprep.subr.bf16.mxu0 %v7307
  %7997 = vmatpush1.bf16.msra.mxu0 %v7306
  %7998 = vmatprep.subr.bf16.mxu0 %v7313
  %7999 = vmatpush1.bf16.msra.mxu0 %v7312
  %8000 = vmatprep.subr.bf16.mxu0 %v7319
  %8001 = vmatpush1.bf16.msra.mxu0 %v7318
  %8002 = vmatprep.subr.bf16.mxu0 %v7325
  %8003 = vmatpush1.bf16.msra.mxu0 %v7324
  %8004 = vmatprep.subr.bf16.mxu0 %v7331
  %8005 = vmatpush1.bf16.msra.mxu0 %v7330
  %8006 = vmatprep.mubr.bf16.mxu0 %v6240
  %8007 = vmatmul.mubr.bf16.gmra.mrb[0].mxu0 %v6239
  %v8008 = vpop.f32.mrb[0].mxu0
  %v8009 = vadd.f32 %v6505, %v8008
  %v8010 = vpop.f32.mrb[0].mxu0
  %v8011 = vadd.f32 %v6509, %v8010
  %v8012 = vpop.f32.mrb[0].mxu0
  %v8013 = vadd.f32 %v6505, %v8012
  %v8014 = vpop.f32.mrb[0].mxu0
  %v8015 = vadd.f32 %v6509, %v8014
  %8016 = vdwg.mxu0
  %8017 = vmatprep.subr.bf16.mxu0 %v7337
  %8018 = vmatpush1.bf16.msra.mxu0 %v7336
  %8019 = vmatprep.subr.bf16.mxu0 %v7343
  %8020 = vmatpush1.bf16.msra.mxu0 %v7342
  %8021 = vmatprep.subr.bf16.mxu0 %v7349
  %8022 = vmatpush1.bf16.msra.mxu0 %v7348
  %8023 = vmatprep.subr.bf16.mxu0 %v7355
  %8024 = vmatpush1.bf16.msra.mxu0 %v7354
  %8025 = vmatprep.subr.bf16.mxu0 %v7361
  %8026 = vmatpush1.bf16.msra.mxu0 %v7360
  %8027 = vmatprep.subr.bf16.mxu0 %v7367
  %8028 = vmatpush1.bf16.msra.mxu0 %v7366
  %8029 = vmatprep.subr.bf16.mxu0 %v7373
  %8030 = vmatpush1.bf16.msra.mxu0 %v7372
  %8031 = vmatprep.subr.bf16.mxu0 %v7379
  %8032 = vmatpush1.bf16.msra.mxu0 %v7378
  %8033 = vmatprep.subr.bf16.mxu0 %v7385
  %8034 = vmatpush1.bf16.msra.mxu0 %v7384
  %8035 = vmatprep.subr.bf16.mxu0 %v7391
  %8036 = vmatpush1.bf16.msra.mxu0 %v7390
  %8037 = vmatprep.subr.bf16.mxu0 %v7397
  %8038 = vmatpush1.bf16.msra.mxu0 %v7396
  %8039 = vmatprep.subr.bf16.mxu0 %v7403
  %8040 = vmatpush1.bf16.msra.mxu0 %v7402
  %8041 = vmatprep.subr.bf16.mxu0 %v7409
  %8042 = vmatpush1.bf16.msra.mxu0 %v7408
  %8043 = vmatprep.subr.bf16.mxu0 %v7415
  %8044 = vmatpush1.bf16.msra.mxu0 %v7414
  %8045 = vmatprep.subr.bf16.mxu0 %v7421
  %8046 = vmatpush1.bf16.msra.mxu0 %v7420
  %8047 = vmatprep.subr.bf16.mxu0 %v7427
  %8048 = vmatpush1.bf16.msra.mxu0 %v7426
  %8049 = vmatprep.mubr.bf16.mxu0 %v6242
  %8050 = vmatmul.mubr.bf16.gmra.mrb[0].mxu0 %v6241
  %v8051 = vpop.f32.mrb[0].mxu0
  %v8052 = vadd.f32 %v8009, %v8051
  %v8053 = vpop.f32.mrb[0].mxu0
  %v8054 = vadd.f32 %v8011, %v8053
  %v8055 = vpop.f32.mrb[0].mxu0
  %v8056 = vadd.f32 %v8013, %v8055
  %v8057 = vpop.f32.mrb[0].mxu0
  %v8058 = vadd.f32 %v8015, %v8057
  %8059 = vdwg.mxu0
  %8060 = vmatprep.subr.bf16.mxu0 %v7433
  %8061 = vmatpush1.bf16.msra.mxu0 %v7432
  %8062 = vmatprep.subr.bf16.mxu0 %v7439
  %8063 = vmatpush1.bf16.msra.mxu0 %v7438
  %8064 = vmatprep.subr.bf16.mxu0 %v7445
  %8065 = vmatpush1.bf16.msra.mxu0 %v7444
  %8066 = vmatprep.subr.bf16.mxu0 %v7451
  %8067 = vmatpush1.bf16.msra.mxu0 %v7450
  %8068 = vmatprep.subr.bf16.mxu0 %v7457
  %8069 = vmatpush1.bf16.msra.mxu0 %v7456
  %8070 = vmatprep.subr.bf16.mxu0 %v7463
  %8071 = vmatpush1.bf16.msra.mxu0 %v7462
  %8072 = vmatprep.subr.bf16.mxu0 %v7469
  %8073 = vmatpush1.bf16.msra.mxu0 %v7468
  %8074 = vmatprep.subr.bf16.mxu0 %v7475
  %8075 = vmatpush1.bf16.msra.mxu0 %v7474
  %8076 = vmatprep.subr.bf16.mxu0 0
  %8077 = vmatpush1.bf16.msra.mxu0 0
  %8078 = vmatprep.subr.bf16.mxu0 0
  %8079 = vmatpush1.bf16.msra.mxu0 0
  %8080 = vmatprep.subr.bf16.mxu0 0
  %8081 = vmatpush1.bf16.msra.mxu0 0
  %8082 = vmatprep.subr.bf16.mxu0 0
  %8083 = vmatpush1.bf16.msra.mxu0 0
  %8084 = vmatprep.subr.bf16.mxu0 0
  %8085 = vmatpush1.bf16.msra.mxu0 0
  %8086 = vmatprep.subr.bf16.mxu0 0
  %8087 = vmatpush1.bf16.msra.mxu0 0
  %8088 = vmatprep.subr.bf16.mxu0 0
  %8089 = vmatpush1.bf16.msra.mxu0 0
  %8090 = vmatprep.subr.bf16.mxu0 0
  %8091 = vmatpush1.bf16.msra.mxu0 0
  %8092 = vmatprep.mubr.bf16.mxu0 0
  %8093 = vmatmul.mubr.bf16.gmra.mrb[0].mxu0 %v6243
  %v8094 = vpop.f32.mrb[0].mxu0
  %v8095 = vadd.f32 %v8052, %v8094
  %v8096 = vpop.f32.mrb[0].mxu0
  %v8097 = vadd.f32 %v8054, %v8096
  %v8098 = vpop.f32.mrb[0].mxu0
  %v8099 = vadd.f32 %v8056, %v8098
  %v8100 = vpop.f32.mrb[0].mxu0
  %v8101 = vadd.f32 %v8058, %v8100
  %8102 = vdwg.mxu0
  %v8103 = vmul.f32 %v7837, 0.1
  %v8104 = vmul.f32 %v7839, 0.1
  %v8105 = vmul.f32 %v7966, 0.1
  %v8106 = vmul.f32 %v7968, 0.1
  %v8107 = vmul.f32 %v8095, 0.1
  %v8108 = vmul.f32 %v8097, 0.1
  %v8109 = vmul.f32 %v7841, 0.1
  %v8110 = vmul.f32 %v7843, 0.1
  %v8111 = vmul.f32 %v7970, 0.1
  %v8112 = vmul.f32 %v7972, 0.1
  %v8113 = vmul.f32 %v8099, 0.1
  %v8114 = vmul.f32 %v8101, 0.1
  %v8115 = vmax.f32 %v7837, %v8103
  %v8116 = vmax.f32 %v7839, %v8104
  %v8117 = vmax.f32 %v7966, %v8105
  %v8118 = vmax.f32 %v7968, %v8106
  %v8119 = vmax.f32 %v8095, %v8107
  %v8120 = vmax.f32 %v8097, %v8108
  %v8121 = vmax.f32 %v7841, %v8109
  %v8122 = vmax.f32 %v7843, %v8110
  %v8123 = vmax.f32 %v7970, %v8111
  %v8124 = vmax.f32 %v7972, %v8112
  %v8125 = vmax.f32 %v8099, %v8113
  %v8126 = vmax.f32 %v8101, %v8114
  %v8127 = vmul.f32 %v8115, 0.5
  %v8128 = vmul.f32 %v8116, 0.5
  %v8129 = vmul.f32 %v8117, 0.5
  %v8130 = vmul.f32 %v8118, 0.5
  %v8131 = vmul.f32 %v8119, 0.5
  %v8132 = vmul.f32 %v8120, 0.5
  %v8133 = vmul.f32 %v8121, 0.5
  %v8134 = vmul.f32 %v8122, 0.5
  %v8135 = vmul.f32 %v8123, 0.5
  %v8136 = vmul.f32 %v8124, 0.5
  %v8137 = vmul.f32 %v8125, 0.5
  %v8138 = vmul.f32 %v8126, 0.5
  %v8139 = vtanh.pop %v8127
  %v8140 = vtanh.pop %v8128
  %v8141 = vtanh.pop %v8129
  %v8142 = vtanh.pop %v8130
  %v8143 = vtanh.pop %v8131
  %v8144 = vtanh.pop %v8132
  %v8145 = vtanh.pop %v8133
  %v8146 = vtanh.pop %v8134
  %v8147 = vtanh.pop %v8135
  %v8148 = vtanh.pop %v8136
  %v8149 = vtanh.pop %v8137
  %v8150 = vtanh.pop %v8138
  %v8151 = vadd.f32 %v8139, 1.0
  %v8152 = vadd.f32 %v8140, 1.0
  %v8153 = vadd.f32 %v8141, 1.0
  %v8154 = vadd.f32 %v8142, 1.0
  %v8155 = vadd.f32 %v8143, 1.0
  %v8156 = vadd.f32 %v8144, 1.0
  %v8157 = vadd.f32 %v8145, 1.0
  %v8158 = vadd.f32 %v8146, 1.0
  %v8159 = vadd.f32 %v8147, 1.0
  %v8160 = vadd.f32 %v8148, 1.0
  %v8161 = vadd.f32 %v8149, 1.0
  %v8162 = vadd.f32 %v8150, 1.0
  %v8163 = vmul.f32 %v8151, 0.5
  %v8164 = vmul.f32 %v8152, 0.5
  %v8165 = vmul.f32 %v8153, 0.5
  %v8166 = vmul.f32 %v8154, 0.5
  %v8167 = vmul.f32 %v8155, 0.5
  %v8168 = vmul.f32 %v8156, 0.5
  %v8169 = vmul.f32 %v8157, 0.5
  %v8170 = vmul.f32 %v8158, 0.5
  %v8171 = vmul.f32 %v8159, 0.5
  %v8172 = vmul.f32 %v8160, 0.5
  %v8173 = vmul.f32 %v8161, 0.5
  %v8174 = vmul.f32 %v8162, 0.5
  %8175 = vst [vmem:[%s21] sm:$0xff] %v8163
  %8176 = vst [vmem:[%s21 + $0x8] sm:$0xff] %v8164
  %8177 = vst [vmem:[%s21 + $0x10] sm:$0xff] %v8165
  %8178 = vst [vmem:[%s21 + $0x18] sm:$0xff] %v8166
  %8179 = vst [vmem:[%s21 + $0x20] sm:$0xff] %v8167
  %8180 = vst [vmem:[%s21 + $0x28] sm:$0xff] %v8168
  %8181 = vst [vmem:[%s21 + $0x30] sm:$0xff] %v8169
  %8182 = vst [vmem:[%s21 + $0x38] sm:$0xff] %v8170
  %8183 = vst [vmem:[%s21 + $0x40] sm:$0xff] %v8171
  %8184 = vst [vmem:[%s21 + $0x48] sm:$0xff] %v8172
  %8185 = vst [vmem:[%s21 + $0x50] sm:$0xff] %v8173
  %8186 = vst [vmem:[%s21 + $0x58] sm:$0xff] %v8174
  // Predicated region
  $region86: #{autoencoder_forward.1} parent=0 // pred_check
    _
  $region87: #{autoencoder_forward.1} parent=0 // pred_check_branch
    %8188 = sbr.rel (0) target = $region89
  $region88: #{autoencoder_forward.1} parent=0 // pred_region
    _
  $region89: #{autoencoder_forward.1} parent=0 // pred_fallthru
    _
  // Predicated region
  $region90: #{autoencoder_forward.1} parent=0 // pred_check
    _
  $region91: #{autoencoder_forward.1} parent=0 // pred_check_branch
    %8190 = sbr.rel (0) target = $region93
  $region92: #{autoencoder_forward.1} parent=0 // pred_region
    _
  $region93: #{autoencoder_forward.1} parent=0 // pred_fallthru
    _

</llo_original>
